<compile_context>
chip_gen: v7x
topology: tpu7x:2x2x1
jax: 0.10.0
libtpu: 0.0.40
codegen_flags: <defaults>
</compile_context>

<pallas_src>
import functools
import math

import jax
import jax.numpy as jnp
from jax import lax
from jax.experimental import pallas as pl
from jax.experimental.pallas import tpu as pltpu


# ----------------------------------------------------------------------------
# Shared helpers
# ----------------------------------------------------------------------------
def _elu(x):
    # alpha = 1.0 (torch.nn.ELU default); clamp exp arg so the unused branch is finite
    return jnp.where(x > 0, x, jnp.exp(jnp.minimum(x, 0.0)) - 1.0)


def _pad_left(kernel_size, dilation, causal):
    p = dilation * (kernel_size - 1)
    return p if causal else p // 2


def _pad_amounts(kernel_size, dilation, causal=False):
    p = dilation * (kernel_size - 1)
    if causal:
        return p, 0
    return p // 2, p - p // 2


# ----------------------------------------------------------------------------
# Fused encoder kernel (one grid step == one batch element, everything in VMEM)
# ----------------------------------------------------------------------------
def _fused_encoder_kernel(x_ref, wm_ref, wf_ref, o_ref, pad_ref, *, cfg):
    K = cfg["kernel_size"]
    causal = cfg["causal"]
    layout = iter(cfg["layout"])

    def nxt():
        # Next parameter, sliced out of one of the two packed weight arrays.
        grp, off, rows, cols = next(layout)
        ref = wm_ref if grp == "m" else wf_ref
        return ref[off:off + rows, 0:cols]

    def mm(a, w):
        # MXU matmul; operand dtype chosen at pack time (bf16 recommended),
        # accumulation always f32.
        return jnp.dot(a.astype(w.dtype), w, preferred_element_type=jnp.float32)

    def fill_pad(v, left, rows):
        # Write the zero-haloed activation ONCE into the shared VMEM scratch.
        t, c = v.shape
        right = rows - left - t
        if left > 0:
            pad_ref[0:left, 0:c] = jnp.zeros((left, c), jnp.float32)
        pad_ref[left:left + t, 0:c] = v
        if right > 0:
            pad_ref[left + t:left + t + right, 0:c] = jnp.zeros((right, c), jnp.float32)

    def conv(v, w, b, ksize, dilation=1, stride=1):
        # "same"-padded (optionally strided) conv as ONE im2col MXU matmul
        # (t_out, K*Cin) @ (K*Cin, Cout).  Taps are read directly from the
        # padded scratch ref; strided outputs use pl.ds(..., stride=s) so only
        # the kept rows are ever computed (no selection matmul, no waste).
        t, c = v.shape
        t_out = t // stride
        rows = (t_out - 1) * stride + (ksize - 1) * dilation + 1
        left = _pad_left(ksize, dilation, causal)
        fill_pad(v, left, rows)
        taps = []
        for k in range(ksize):
            start = k * dilation
            if stride == 1:
                taps.append(pad_ref[start:start + t_out, 0:c])
            else:
                taps.append(pad_ref[pl.ds(start, t_out, stride=stride), 0:c])
        cols = taps[0] if ksize == 1 else jnp.concatenate(taps, axis=-1)
        return mm(cols, w) + b

    # ---- input conv (Pad + Conv1d, no activation) ----
    x = x_ref[0].astype(jnp.float32)                           # (T, Cin)
    w_in, b_in = nxt(), nxt()
    if cfg["cin"] == 1:
        # Cin == 1: rank-1 matmul wastes the MXU -> K-tap FIR on the VPU,
        # taps read from the padded scratch.
        # TODO(synk): fold time across lanes (pltpu.roll) to fill 128 lanes.
        t = x.shape[0]
        left = _pad_left(K, 1, causal)
        fill_pad(x, left, t + K - 1)
        acc = pad_ref[0:t, 0:1] * w_in[0:1, :]
        for k in range(1, K):
            acc = acc + pad_ref[k:k + t, 0:1] * w_in[k:k + 1, :]
        x = acc + b_in
    else:
        x = conv(x, w_in, b_in, K, 1, 1)

    # ---- encoder blocks: residual units (per-block dilations) + downsample ----
    for s, dils in zip(cfg["strides"], cfg["dilations"]):
        for d in dils:
            w1, b1, w2, b2 = nxt(), nxt(), nxt(), nxt()
            h = _elu(conv(x, w1, b1, K, d, 1))                 # dilated conv + ELU
            x = x + _elu(mm(h, w2) + b2)                       # 1x1 conv + ELU + skip
        w_dn, b_dn = nxt(), nxt()
        x = _elu(conv(x, w_dn, b_dn, 2 * s, 1, s))             # strided im2col downsample

    # ---- output conv (Pad(3) + Conv1d, no activation) ----
    w_o, b_o = nxt(), nxt()
    x = conv(x, w_o, b_o, 3, 1, 1)                             # (T_f, OC)

    # ---- attention pooling over time ----
    pw1, pb1, pw2, pb2 = nxt(), nxt(), nxt(), nxt()
    a = jnp.tanh(mm(x, pw1) + pb1)
    # width-1 score head: VPU multiply + lane reduce, not a width-1 MXU matmul
    sc = jnp.sum(a * pw2, axis=-1, keepdims=True) + pb2        # (T_f, 1)
    sc = sc - jnp.max(sc, axis=0, keepdims=True)
    e = jnp.exp(sc)
    attn = e / jnp.sum(e, axis=0, keepdims=True)
    o_ref[0] = jnp.sum(x * attn, axis=0, keepdims=True).astype(o_ref.dtype)


# ----------------------------------------------------------------------------
# Parameter packing (host-side): two packed 2-D arrays + a static layout table
# ----------------------------------------------------------------------------
def _pack_params(params, mxu_dtype):
    mxu_list, f32_list, layout = [], [], []

    def add(arr, group):
        lst = mxu_list if group == "m" else f32_list
        off = sum(int(a.shape[0]) for a in lst)
        lst.append(jnp.asarray(arr, jnp.float32))
        layout.append((group, off, int(arr.shape[0]), int(arr.shape[1])))

    w_in, b_in = params["input"]                               # (K, Cin, H), (H,)
    K, cin, hidden = w_in.shape
    if cin == 1:
        add(w_in.reshape(K, hidden), "f")                      # FIR taps stay f32 (VPU)
    else:
        add(w_in.reshape(K * cin, hidden), "m")
    add(b_in.reshape(1, hidden), "f")

    for blk in params["blocks"]:
        for u in blk["units"]:
            kk, c, _ = u["w1"].shape
            add(u["w1"].reshape(kk * c, c), "m")
            add(u["b1"].reshape(1, c), "f")
            add(u["w2"].reshape(c, c), "m")
            add(u["b2"].reshape(1, c), "f")
        ko, c, c2 = blk["out_w"].shape
        add(blk["out_w"].reshape(ko * c, c2), "m")
        add(blk["out_b"].reshape(1, c2), "f")

    w_o, b_o = params["output"]
    ko, hf, oc = w_o.shape
    add(w_o.reshape(ko * hf, oc), "m")
    add(b_o.reshape(1, oc), "f")

    p = params["pool"]
    add(p["w1"].reshape(oc, oc), "m")
    add(p["b1"].reshape(1, oc), "f")
    add(p["w2"].reshape(1, oc), "f")                           # VPU score head: f32
    add(p["b2"].reshape(1, 1), "f")

    def pack(lst, dtype):
        cmax = max(int(a.shape[1]) for a in lst)
        rows = [jnp.pad(a, ((0, 0), (0, cmax - a.shape[1]))) for a in lst]
        return jnp.concatenate(rows, axis=0).astype(dtype)

    return (pack(mxu_list, mxu_dtype), pack(f32_list, jnp.float32),
            tuple(layout), int(oc), int(hidden))


def soundstream_attention_encoder_pallas(params, x_ncw, *, kernel_size=7, causal=False,
                                         mxu_dtype=jnp.bfloat16):
    # x_ncw: (B, Cin, T) -- PyTorch NCW; convert once to channels-last at the boundary.
    x = jnp.transpose(x_ncw, (0, 2, 1)).astype(jnp.float32)    # (B, T, Cin)
    B, T, Cin = x.shape

    strides = tuple(int(blk["stride"]) for blk in params["blocks"])
    dilations = tuple(tuple(int(u["dilation"]) for u in blk["units"])
                      for blk in params["blocks"])

    # Stride-divisibility check (PyTorch 'same'+stride would ceil; require exact).
    t = T
    for s in strides:
        if t % s != 0:
            raise ValueError(
                f"time length {t} not divisible by stride {s}; pad the input so "
                f"T is a multiple of {math.prod(strides)}")
        t //= s

    wm, wf, layout, out_ch, hidden = _pack_params(params, mxu_dtype)

    # ---- scratch / VMEM sizing + cost model (host-side, static) ----
    r8 = lambda n: -(-int(n) // 8) * 8
    r128 = lambda n: -(-int(n) // 128) * 128

    pad_rows, pad_cols = 8, max(Cin, 1)
    pad_rows = max(pad_rows, T + kernel_size - 1)
    act_bytes = r8(T) * (r128(kernel_size * max(Cin, hidden)) + 4 * r128(hidden)) * 4
    flops = 2 * T * kernel_size * Cin * hidden
    trans = 0
    t, c = T, hidden
    for s, dils in zip(strides, dilations):
        pad_cols = max(pad_cols, c)
        for d in dils:
            pad_rows = max(pad_rows, t + (kernel_size - 1) * d)
            flops += 2 * t * kernel_size * c * c + 2 * t * c * c
            trans += 2 * t * c
        pad_rows = max(pad_rows, t + 2 * s - 1)
        act_bytes = max(act_bytes, r8(t) * (r128(kernel_size * c) + 4 * r128(c)) * 4)
        act_bytes = max(act_bytes,
                        r8(t // s) * (r128(2 * s * c) + 4 * r128(2 * c)) * 4)
        flops += 2 * (t // s) * (2 * s * c) * (2 * c)
        trans += (t // s) * 2 * c
        t //= s
        c *= 2
    pad_cols = max(pad_cols, c)
    pad_rows = max(pad_rows, t + 2)
    act_bytes = max(act_bytes, r8(t) * (r128(3 * c) + 4 * r128(out_ch)) * 4)
    flops += 2 * t * 3 * c * out_ch + 2 * t * out_ch * out_ch + 2 * t * out_ch
    trans += t * (out_ch + 1)

    itemsize = jnp.dtype(mxu_dtype).itemsize
    w_bytes = (r8(wm.shape[0]) * r128(wm.shape[1]) * itemsize
               + r8(wf.shape[0]) * r128(wf.shape[1]) * 4)
    scratch_bytes = r8(pad_rows) * r128(pad_cols) * 4
    vmem_bytes = int(2 * r8(T) * r128(max(Cin, 1)) * 4        # double-buffered input tile
                     + 2 * w_bytes                            # double-buffered packed weights
                     + scratch_bytes
                     + 3 * act_bytes) + (4 << 20)
    vmem_bytes = max(32 << 20, min(vmem_bytes, 96 << 20))

    cost = pl.CostEstimate(
        flops=int(B * flops),
        transcendentals=int(B * trans),
        bytes_accessed=int(x.size * 4 + B * out_ch * 4
                           + wm.size * itemsize + wf.size * 4),
    )

    cfg = dict(kernel_size=kernel_size, causal=causal, strides=strides,
               dilations=dilations, layout=layout, cin=Cin)

    y = pl.pallas_call(
        functools.partial(_fused_encoder_kernel, cfg=cfg),
        out_shape=jax.ShapeDtypeStruct((B, 1, out_ch), jnp.float32),
        grid=(B,),
        in_specs=[
            pl.BlockSpec((1, T, Cin), lambda i: (i, 0, 0)),
            pl.BlockSpec(wm.shape, lambda i: (0, 0)),
            pl.BlockSpec(wf.shape, lambda i: (0, 0)),
        ],
        out_specs=pl.BlockSpec((1, 1, out_ch), lambda i: (i, 0, 0)),
        scratch_shapes=[pltpu.VMEM((pad_rows, pad_cols), jnp.float32)],
        compiler_params=pltpu.CompilerParams(
            # v7x: one batch element per TensorCore (B<2 leaves a core idle; see TODO).
            dimension_semantics=("parallel",),
            vmem_limit_bytes=int(vmem_bytes),
        ),
        cost_estimate=cost,
    )(x, wm, wf)
    return y[:, 0, :]


# ----------------------------------------------------------------------------
# Parameter init (same structure / format as the PyTorch module)
# ----------------------------------------------------------------------------
def init_params(key, input_channels, hidden_channels, output_channels,
                kernel_size=7, strides=(2, 2, 4, 4)):
    def conv_init(k, K, cin, cout):
        k1, k2 = jax.random.split(k)
        scale = 1.0 / jnp.sqrt(float(K * cin))
        w = jax.random.normal(k1, (K, cin, cout), jnp.float32) * scale
        b = jax.random.normal(k2, (cout,), jnp.float32) * 0.1
        return w, b

    keys = iter(jax.random.split(key, 64))
    params = {"input": conv_init(next(keys), kernel_size, input_channels, hidden_channels)}
    h = hidden_channels
    blocks = []
    for s in strides:
        h *= 2
        c = h // 2
        units = []
        for d in (1, 3, 9):
            w1, b1 = conv_init(next(keys), kernel_size, c, c)
            w2, b2 = conv_init(next(keys), 1, c, c)
            units.append({"w1": w1, "b1": b1, "w2": w2.reshape(c, c), "b2": b2, "dilation": d})
        wo, bo = conv_init(next(keys), 2 * s, c, h)
        blocks.append({"units": units, "out_w": wo, "out_b": bo, "stride": s})
    params["blocks"] = blocks
    params["output"] = conv_init(next(keys), 3, h, output_channels)
    ka, kb = jax.random.split(next(keys))
    wa, ba = conv_init(ka, 1, output_channels, output_channels)
    wv, bv = conv_init(kb, 1, output_channels, 1)
    params["pool"] = {"w1": wa.reshape(output_channels, output_channels), "b1": ba,
                      "w2": wv.reshape(output_channels, 1), "b2": bv}
    return params


# ----------------------------------------------------------------------------
# Pure-JAX reference (independent path, for a correctness cross-check)
# ----------------------------------------------------------------------------
def _ref_conv1d(x, w, b, stride, dilation, left, right):
    y = lax.conv_general_dilated(x, w, window_strides=(stride,), padding=[(left, right)],
                                 rhs_dilation=(dilation,),
                                 dimension_numbers=("NWC", "WIO", "NWC"))
    return y + b[None, None, :]


def reference_forward(params, x_ncw, *, kernel_size=7, causal=False):
    x = jnp.transpose(x_ncw, (0, 2, 1)).astype(jnp.float32)
    w, b = params["input"]
    l, r = _pad_amounts(kernel_size, 1, causal)
    x = _ref_conv1d(x, w, b, 1, 1, l, r)
    for blk in params["blocks"]:
        for u in blk["units"]:
            d = u["dilation"]
            l, r = _pad_amounts(kernel_size, d, causal)
            y = _elu(_ref_conv1d(x, u["w1"], u["b1"], 1, d, l, r))
            y = jnp.einsum("btc,cd->btd", y, u["w2"]) + u["b2"][None, None, :]
            x = x + _elu(y)
        s = blk["stride"]
        l, r = _pad_amounts(2 * s, 1, causal)
        x = _elu(_ref_conv1d(x, blk["out_w"], blk["out_b"], s, 1, l, r))
    w, b = params["output"]
    l, r = _pad_amounts(3, 1, causal)
    x = _ref_conv1d(x, w, b, 1, 1, l, r)
    p = params["pool"]
    a = jnp.tanh(jnp.einsum("btc,cd->btd", x, p["w1"]) + p["b1"][None, None, :])
    sc = jnp.einsum("btc,cd->btd", a, p["w2"]) + p["b2"][None, None, :]
    attn = jax.nn.softmax(sc, axis=1)
    return jnp.sum(x * attn, axis=1)


# ----------------------------------------------------------------------------
if __name__ == "__main__":
    key = jax.random.PRNGKey(0)
    k_param, k_x = jax.random.split(key)

    B, Cin, T = 2, 1, 128            # NCW input, as in the PyTorch module
    hidden, out_ch = 4, 32           # hidden doubles per block: 8, 16, 32, 64

    params = init_params(k_param, Cin, hidden, out_ch)
    x = jax.random.normal(k_x, (B, Cin, T), jnp.float32)

    y_ref = reference_forward(params, x)

    # f32 MXU operands -- strict check against the independent pure-JAX reference
    y32 = jax.block_until_ready(
        soundstream_attention_encoder_pallas(params, x, mxu_dtype=jnp.float32))
    assert y32.shape == (B, out_ch), y32.shape
    err32 = float(jnp.max(jnp.abs(y32 - y_ref)))
    if not (err32 < 1e-3):
        raise AssertionError(f"f32 path mismatch vs pure-JAX reference: max_err={err32}")

    # bf16 MXU operands (recommended default on v5e/v6e/v7x), f32 accumulation
    ybf = jax.block_until_ready(
        soundstream_attention_encoder_pallas(params, x, mxu_dtype=jnp.bfloat16))
    errbf = float(jnp.max(jnp.abs(ybf - y_ref)))
    tol_bf = 1e-1 * max(1.0, float(jnp.max(jnp.abs(y_ref))))
    if not (bool(jnp.all(jnp.isfinite(ybf))) and errbf < tol_bf):
        raise AssertionError(f"bf16 path mismatch vs reference: max_err={errbf} (tol={tol_bf})")

    print("KERNEL_OK")
</pallas_src>

<mosaic_0001>
module attributes {stable_mosaic.version = 11 : i64} {
  func.func @_fused_encoder_kernel(%arg0: i32, %arg1: memref<1x128x1xf32, #tpu.memory_space<vmem>>, %arg2: memref<2096x64xf32, #tpu.memory_space<vmem>>, %arg3: memref<40x64xf32, #tpu.memory_space<vmem>>, %arg4: memref<1x1x32xf32, #tpu.memory_space<vmem>>, %arg5: memref<182x64xf32, #tpu.memory_space<vmem>>) attributes {dimension_semantics = [#tpu.dimension_semantics<parallel>], iteration_bounds = array<i64: 2>, scalar_prefetch = 0 : i64, scratch_operands = 1 : i64, tpu.core_type = #tpu.core_type<tc>, window_params = [{transform_indices = @transform_0, window_bounds = array<i64: 1, 128, 1>}, {pipeline_mode = #tpu.pipeline_mode<synchronous>, transform_indices = @transform_1, window_bounds = array<i64: 2096, 64>}, {pipeline_mode = #tpu.pipeline_mode<synchronous>, transform_indices = @transform_2, window_bounds = array<i64: 40, 64>}, {transform_indices = @transform_3, window_bounds = array<i64: 1, 1, 32>}]} {
    %c0 = arith.constant 0 : index
    %c0_0 = arith.constant 0 : index
    %c0_1 = arith.constant 0 : index
    %0 = vector.load %arg1[%c0, %c0_0, %c0_1] : memref<1x128x1xf32, #tpu.memory_space<vmem>>, vector<1x128x1xf32>
    %1 = vector.shape_cast %0 : vector<1x128x1xf32> to vector<128x1xf32>
    %c0_2 = arith.constant 0 : index
    %c0_3 = arith.constant 0 : index
    %2 = vector.load %arg3[%c0_2, %c0_3] : memref<40x64xf32, #tpu.memory_space<vmem>>, vector<7x4xf32>
    %c7 = arith.constant 7 : index
    %c0_4 = arith.constant 0 : index
    %3 = vector.load %arg3[%c7, %c0_4] : memref<40x64xf32, #tpu.memory_space<vmem>>, vector<1x4xf32>
    %cst = arith.constant 0.000000e+00 : f32
    %4 = vector.broadcast %cst : f32 to vector<3x1xf32>
    %c0_5 = arith.constant 0 : index
    %c0_6 = arith.constant 0 : index
    %5 = vector.load %arg5[%c0_5, %c0_6] : memref<182x64xf32, #tpu.memory_space<vmem>>, vector<3x1xf32>
    tpu.vector_store %arg5[%c0_5, %c0_6], %4 {strides = array<i32>} : memref<182x64xf32, #tpu.memory_space<vmem>>, vector<3x1xf32>,
    %c3 = arith.constant 3 : index
    %c0_7 = arith.constant 0 : index
    %6 = vector.load %arg5[%c3, %c0_7] : memref<182x64xf32, #tpu.memory_space<vmem>>, vector<128x1xf32>
    tpu.vector_store %arg5[%c3, %c0_7], %1 {strides = array<i32>} : memref<182x64xf32, #tpu.memory_space<vmem>>, vector<128x1xf32>,
    %cst_8 = arith.constant 0.000000e+00 : f32
    %7 = vector.broadcast %cst_8 : f32 to vector<3x1xf32>
    %c131 = arith.constant 131 : index
    %c0_9 = arith.constant 0 : index
    %8 = vector.load %arg5[%c131, %c0_9] : memref<182x64xf32, #tpu.memory_space<vmem>>, vector<3x1xf32>
    tpu.vector_store %arg5[%c131, %c0_9], %7 {strides = array<i32>} : memref<182x64xf32, #tpu.memory_space<vmem>>, vector<3x1xf32>,
    %c0_10 = arith.constant 0 : index
    %c0_11 = arith.constant 0 : index
    %9 = vector.load %arg5[%c0_10, %c0_11] : memref<182x64xf32, #tpu.memory_space<vmem>>, vector<128x1xf32>
    %10 = vector.extract_strided_slice %2 {offsets = [0, 0], sizes = [1, 4], strides = [1, 1]} : vector<7x4xf32> to vector<1x4xf32>
    %11 = vector.broadcast %9 : vector<128x1xf32> to vector<128x4xf32>
    %12 = vector.broadcast %10 : vector<1x4xf32> to vector<128x4xf32>
    %13 = arith.mulf %11, %12 : vector<128x4xf32>
    %c1 = arith.constant 1 : index
    %c0_12 = arith.constant 0 : index
    %14 = vector.load %arg5[%c1, %c0_12] : memref<182x64xf32, #tpu.memory_space<vmem>>, vector<128x1xf32>
    %15 = vector.extract_strided_slice %2 {offsets = [1, 0], sizes = [1, 4], strides = [1, 1]} : vector<7x4xf32> to vector<1x4xf32>
    %16 = vector.broadcast %14 : vector<128x1xf32> to vector<128x4xf32>
    %17 = vector.broadcast %15 : vector<1x4xf32> to vector<128x4xf32>
    %18 = arith.mulf %16, %17 : vector<128x4xf32>
    %19 = arith.addf %13, %18 : vector<128x4xf32>
    %c2 = arith.constant 2 : index
    %c0_13 = arith.constant 0 : index
    %20 = vector.load %arg5[%c2, %c0_13] : memref<182x64xf32, #tpu.memory_space<vmem>>, vector<128x1xf32>
    %21 = vector.extract_strided_slice %2 {offsets = [2, 0], sizes = [1, 4], strides = [1, 1]} : vector<7x4xf32> to vector<1x4xf32>
    %22 = vector.broadcast %20 : vector<128x1xf32> to vector<128x4xf32>
    %23 = vector.broadcast %21 : vector<1x4xf32> to vector<128x4xf32>
    %24 = arith.mulf %22, %23 : vector<128x4xf32>
    %25 = arith.addf %19, %24 : vector<128x4xf32>
    %c3_14 = arith.constant 3 : index
    %c0_15 = arith.constant 0 : index
    %26 = vector.load %arg5[%c3_14, %c0_15] : memref<182x64xf32, #tpu.memory_space<vmem>>, vector<128x1xf32>
    %27 = vector.extract_strided_slice %2 {offsets = [3, 0], sizes = [1, 4], strides = [1, 1]} : vector<7x4xf32> to vector<1x4xf32>
    %28 = vector.broadcast %26 : vector<128x1xf32> to vector<128x4xf32>
    %29 = vector.broadcast %27 : vector<1x4xf32> to vector<128x4xf32>
    %30 = arith.mulf %28, %29 : vector<128x4xf32>
    %31 = arith.addf %25, %30 : vector<128x4xf32>
    %c4 = arith.constant 4 : index
    %c0_16 = arith.constant 0 : index
    %32 = vector.load %arg5[%c4, %c0_16] : memref<182x64xf32, #tpu.memory_space<vmem>>, vector<128x1xf32>
    %33 = vector.extract_strided_slice %2 {offsets = [4, 0], sizes = [1, 4], strides = [1, 1]} : vector<7x4xf32> to vector<1x4xf32>
    %34 = vector.broadcast %32 : vector<128x1xf32> to vector<128x4xf32>
    %35 = vector.broadcast %33 : vector<1x4xf32> to vector<128x4xf32>
    %36 = arith.mulf %34, %35 : vector<128x4xf32>
    %37 = arith.addf %31, %36 : vector<128x4xf32>
    %c5 = arith.constant 5 : index
    %c0_17 = arith.constant 0 : index
    %38 = vector.load %arg5[%c5, %c0_17] : memref<182x64xf32, #tpu.memory_space<vmem>>, vector<128x1xf32>
    %39 = vector.extract_strided_slice %2 {offsets = [5, 0], sizes = [1, 4], strides = [1, 1]} : vector<7x4xf32> to vector<1x4xf32>
    %40 = vector.broadcast %38 : vector<128x1xf32> to vector<128x4xf32>
    %41 = vector.broadcast %39 : vector<1x4xf32> to vector<128x4xf32>
    %42 = arith.mulf %40, %41 : vector<128x4xf32>
    %43 = arith.addf %37, %42 : vector<128x4xf32>
    %c6 = arith.constant 6 : index
    %c0_18 = arith.constant 0 : index
    %44 = vector.load %arg5[%c6, %c0_18] : memref<182x64xf32, #tpu.memory_space<vmem>>, vector<128x1xf32>
    %45 = vector.extract_strided_slice %2 {offsets = [6, 0], sizes = [1, 4], strides = [1, 1]} : vector<7x4xf32> to vector<1x4xf32>
    %46 = vector.broadcast %44 : vector<128x1xf32> to vector<128x4xf32>
    %47 = vector.broadcast %45 : vector<1x4xf32> to vector<128x4xf32>
    %48 = arith.mulf %46, %47 : vector<128x4xf32>
    %49 = arith.addf %43, %48 : vector<128x4xf32>
    %50 = vector.broadcast %3 : vector<1x4xf32> to vector<128x4xf32>
    %51 = arith.addf %49, %50 : vector<128x4xf32>
    %c0_19 = arith.constant 0 : index
    %c0_20 = arith.constant 0 : index
    %52 = vector.load %arg2[%c0_19, %c0_20] : memref<2096x64xf32, #tpu.memory_space<vmem>>, vector<28x4xf32>
    %c8 = arith.constant 8 : index
    %c0_21 = arith.constant 0 : index
    %53 = vector.load %arg3[%c8, %c0_21] : memref<40x64xf32, #tpu.memory_space<vmem>>, vector<1x4xf32>
    %c28 = arith.constant 28 : index
    %c0_22 = arith.constant 0 : index
    %54 = vector.load %arg2[%c28, %c0_22] : memref<2096x64xf32, #tpu.memory_space<vmem>>, vector<4x4xf32>
    %c9 = arith.constant 9 : index
    %c0_23 = arith.constant 0 : index
    %55 = vector.load %arg3[%c9, %c0_23] : memref<40x64xf32, #tpu.memory_space<vmem>>, vector<1x4xf32>
    %cst_24 = arith.constant 0.000000e+00 : f32
    %56 = vector.broadcast %cst_24 : f32 to vector<3x4xf32>
    %c0_25 = arith.constant 0 : index
    %c0_26 = arith.constant 0 : index
    %57 = vector.load %arg5[%c0_25, %c0_26] : memref<182x64xf32, #tpu.memory_space<vmem>>, vector<3x4xf32>
    tpu.vector_store %arg5[%c0_25, %c0_26], %56 {strides = array<i32>} : memref<182x64xf32, #tpu.memory_space<vmem>>, vector<3x4xf32>,
    %c3_27 = arith.constant 3 : index
    %c0_28 = arith.constant 0 : index
    %58 = vector.load %arg5[%c3_27, %c0_28] : memref<182x64xf32, #tpu.memory_space<vmem>>, vector<128x4xf32>
    tpu.vector_store %arg5[%c3_27, %c0_28], %51 {strides = array<i32>} : memref<182x64xf32, #tpu.memory_space<vmem>>, vector<128x4xf32>,
    %cst_29 = arith.constant 0.000000e+00 : f32
    %59 = vector.broadcast %cst_29 : f32 to vector<3x4xf32>
    %c131_30 = arith.constant 131 : index
    %c0_31 = arith.constant 0 : index
    %60 = vector.load %arg5[%c131_30, %c0_31] : memref<182x64xf32, #tpu.memory_space<vmem>>, vector<3x4xf32>
    tpu.vector_store %arg5[%c131_30, %c0_31], %59 {strides = array<i32>} : memref<182x64xf32, #tpu.memory_space<vmem>>, vector<3x4xf32>,
    %c0_32 = arith.constant 0 : index
    %c0_33 = arith.constant 0 : index
    %61 = vector.load %arg5[%c0_32, %c0_33] : memref<182x64xf32, #tpu.memory_space<vmem>>, vector<128x4xf32>
    %c1_34 = arith.constant 1 : index
    %c0_35 = arith.constant 0 : index
    %62 = vector.load %arg5[%c1_34, %c0_35] : memref<182x64xf32, #tpu.memory_space<vmem>>, vector<128x4xf32>
    %c2_36 = arith.constant 2 : index
    %c0_37 = arith.constant 0 : index
    %63 = vector.load %arg5[%c2_36, %c0_37] : memref<182x64xf32, #tpu.memory_space<vmem>>, vector<128x4xf32>
    %c3_38 = arith.constant 3 : index
    %c0_39 = arith.constant 0 : index
    %64 = vector.load %arg5[%c3_38, %c0_39] : memref<182x64xf32, #tpu.memory_space<vmem>>, vector<128x4xf32>
    %c4_40 = arith.constant 4 : index
    %c0_41 = arith.constant 0 : index
    %65 = vector.load %arg5[%c4_40, %c0_41] : memref<182x64xf32, #tpu.memory_space<vmem>>, vector<128x4xf32>
    %c5_42 = arith.constant 5 : index
    %c0_43 = arith.constant 0 : index
    %66 = vector.load %arg5[%c5_42, %c0_43] : memref<182x64xf32, #tpu.memory_space<vmem>>, vector<128x4xf32>
    %c6_44 = arith.constant 6 : index
    %c0_45 = arith.constant 0 : index
    %67 = vector.load %arg5[%c6_44, %c0_45] : memref<182x64xf32, #tpu.memory_space<vmem>>, vector<128x4xf32>
    %68 = tpu.concatenate %61, %62, %63, %64, %65, %66, %67 in 1 : vector<128x4xf32>, vector<128x4xf32>, vector<128x4xf32>, vector<128x4xf32>, vector<128x4xf32>, vector<128x4xf32>, vector<128x4xf32> -> vector<128x28xf32>
    %cst_46 = arith.constant dense<0.000000e+00> : vector<128x4xf32>
    %69 = tpu.matmul %68, %52, %cst_46 {dimension_numbers = #tpu.dot_dimension_numbers<[1], [0], [0], [1], [0, 0, 1, 1], [], []>} : vector<128x28xf32>, vector<28x4xf32>, vector<128x4xf32> -> vector<128x4xf32>
    %70 = vector.broadcast %53 : vector<1x4xf32> to vector<128x4xf32>
    %71 = arith.addf %69, %70 : vector<128x4xf32>
    %cst_47 = arith.constant 0.000000e+00 : f32
    %72 = vector.broadcast %cst_47 : f32 to vector<128x4xf32>
    %73 = arith.cmpf ogt, %71, %72 : vector<128x4xf32>
    %cst_48 = arith.constant 0.000000e+00 : f32
    %74 = vector.broadcast %cst_48 : f32 to vector<128x4xf32>
    %75 = arith.minimumf %71, %74 : vector<128x4xf32>
    %76 = math.exp %75 : vector<128x4xf32>
    %cst_49 = arith.constant 1.000000e+00 : f32
    %77 = vector.broadcast %cst_49 : f32 to vector<128x4xf32>
    %78 = arith.subf %76, %77 : vector<128x4xf32>
    %79 = arith.select %73, %71, %78 : vector<128x4xi1>, vector<128x4xf32>
    %cst_50 = arith.constant dense<0.000000e+00> : vector<128x4xf32>
    %80 = tpu.matmul %79, %54, %cst_50 {dimension_numbers = #tpu.dot_dimension_numbers<[1], [0], [0], [1], [0, 0, 1, 1], [], []>} : vector<128x4xf32>, vector<4x4xf32>, vector<128x4xf32> -> vector<128x4xf32>
    %81 = vector.broadcast %55 : vector<1x4xf32> to vector<128x4xf32>
    %82 = arith.addf %80, %81 : vector<128x4xf32>
    %cst_51 = arith.constant 0.000000e+00 : f32
    %83 = vector.broadcast %cst_51 : f32 to vector<128x4xf32>
    %84 = arith.cmpf ogt, %82, %83 : vector<128x4xf32>
    %cst_52 = arith.constant 0.000000e+00 : f32
    %85 = vector.broadcast %cst_52 : f32 to vector<128x4xf32>
    %86 = arith.minimumf %82, %85 : vector<128x4xf32>
    %87 = math.exp %86 : vector<128x4xf32>
    %cst_53 = arith.constant 1.000000e+00 : f32
    %88 = vector.broadcast %cst_53 : f32 to vector<128x4xf32>
    %89 = arith.subf %87, %88 : vector<128x4xf32>
    %90 = arith.select %84, %82, %89 : vector<128x4xi1>, vector<128x4xf32>
    %91 = arith.addf %51, %90 : vector<128x4xf32>
    %c32 = arith.constant 32 : index
    %c0_54 = arith.constant 0 : index
    %92 = vector.load %arg2[%c32, %c0_54] : memref<2096x64xf32, #tpu.memory_space<vmem>>, vector<28x4xf32>
    %c10 = arith.constant 10 : index
    %c0_55 = arith.constant 0 : index
    %93 = vector.load %arg3[%c10, %c0_55] : memref<40x64xf32, #tpu.memory_space<vmem>>, vector<1x4xf32>
    %c60 = arith.constant 60 : index
    %c0_56 = arith.constant 0 : index
    %94 = vector.load %arg2[%c60, %c0_56] : memref<2096x64xf32, #tpu.memory_space<vmem>>, vector<4x4xf32>
    %c11 = arith.constant 11 : index
    %c0_57 = arith.constant 0 : index
    %95 = vector.load %arg3[%c11, %c0_57] : memref<40x64xf32, #tpu.memory_space<vmem>>, vector<1x4xf32>
    %cst_58 = arith.constant 0.000000e+00 : f32
    %96 = vector.broadcast %cst_58 : f32 to vector<9x4xf32>
    %c0_59 = arith.constant 0 : index
    %c0_60 = arith.constant 0 : index
    %97 = vector.load %arg5[%c0_59, %c0_60] : memref<182x64xf32, #tpu.memory_space<vmem>>, vector<9x4xf32>
    tpu.vector_store %arg5[%c0_59, %c0_60], %96 {strides = array<i32>} : memref<182x64xf32, #tpu.memory_space<vmem>>, vector<9x4xf32>,
    %c9_61 = arith.constant 9 : index
    %c0_62 = arith.constant 0 : index
    %98 = vector.load %arg5[%c9_61, %c0_62] : memref<182x64xf32, #tpu.memory_space<vmem>>, vector<128x4xf32>
    tpu.vector_store %arg5[%c9_61, %c0_62], %91 {strides = array<i32>} : memref<182x64xf32, #tpu.memory_space<vmem>>, vector<128x4xf32>,
    %cst_63 = arith.constant 0.000000e+00 : f32
    %99 = vector.broadcast %cst_63 : f32 to vector<9x4xf32>
    %c137 = arith.constant 137 : index
    %c0_64 = arith.constant 0 : index
    %100 = vector.load %arg5[%c137, %c0_64] : memref<182x64xf32, #tpu.memory_space<vmem>>, vector<9x4xf32>
    tpu.vector_store %arg5[%c137, %c0_64], %99 {strides = array<i32>} : memref<182x64xf32, #tpu.memory_space<vmem>>, vector<9x4xf32>,
    %c0_65 = arith.constant 0 : index
    %c0_66 = arith.constant 0 : index
    %101 = vector.load %arg5[%c0_65, %c0_66] : memref<182x64xf32, #tpu.memory_space<vmem>>, vector<128x4xf32>
    %c3_67 = arith.constant 3 : index
    %c0_68 = arith.constant 0 : index
    %102 = vector.load %arg5[%c3_67, %c0_68] : memref<182x64xf32, #tpu.memory_space<vmem>>, vector<128x4xf32>
    %c6_69 = arith.constant 6 : index
    %c0_70 = arith.constant 0 : index
    %103 = vector.load %arg5[%c6_69, %c0_70] : memref<182x64xf32, #tpu.memory_space<vmem>>, vector<128x4xf32>
    %c9_71 = arith.constant 9 : index
    %c0_72 = arith.constant 0 : index
    %104 = vector.load %arg5[%c9_71, %c0_72] : memref<182x64xf32, #tpu.memory_space<vmem>>, vector<128x4xf32>
    %c12 = arith.constant 12 : index
    %c0_73 = arith.constant 0 : index
    %105 = vector.load %arg5[%c12, %c0_73] : memref<182x64xf32, #tpu.memory_space<vmem>>, vector<128x4xf32>
    %c15 = arith.constant 15 : index
    %c0_74 = arith.constant 0 : index
    %106 = vector.load %arg5[%c15, %c0_74] : memref<182x64xf32, #tpu.memory_space<vmem>>, vector<128x4xf32>
    %c18 = arith.constant 18 : index
    %c0_75 = arith.constant 0 : index
    %107 = vector.load %arg5[%c18, %c0_75] : memref<182x64xf32, #tpu.memory_space<vmem>>, vector<128x4xf32>
    %108 = tpu.concatenate %101, %102, %103, %104, %105, %106, %107 in 1 : vector<128x4xf32>, vector<128x4xf32>, vector<128x4xf32>, vector<128x4xf32>, vector<128x4xf32>, vector<128x4xf32>, vector<128x4xf32> -> vector<128x28xf32>
    %cst_76 = arith.constant dense<0.000000e+00> : vector<128x4xf32>
    %109 = tpu.matmul %108, %92, %cst_76 {dimension_numbers = #tpu.dot_dimension_numbers<[1], [0], [0], [1], [0, 0, 1, 1], [], []>} : vector<128x28xf32>, vector<28x4xf32>, vector<128x4xf32> -> vector<128x4xf32>
    %110 = vector.broadcast %93 : vector<1x4xf32> to vector<128x4xf32>
    %111 = arith.addf %109, %110 : vector<128x4xf32>
    %cst_77 = arith.constant 0.000000e+00 : f32
    %112 = vector.broadcast %cst_77 : f32 to vector<128x4xf32>
    %113 = arith.cmpf ogt, %111, %112 : vector<128x4xf32>
    %cst_78 = arith.constant 0.000000e+00 : f32
    %114 = vector.broadcast %cst_78 : f32 to vector<128x4xf32>
    %115 = arith.minimumf %111, %114 : vector<128x4xf32>
    %116 = math.exp %115 : vector<128x4xf32>
    %cst_79 = arith.constant 1.000000e+00 : f32
    %117 = vector.broadcast %cst_79 : f32 to vector<128x4xf32>
    %118 = arith.subf %116, %117 : vector<128x4xf32>
    %119 = arith.select %113, %111, %118 : vector<128x4xi1>, vector<128x4xf32>
    %cst_80 = arith.constant dense<0.000000e+00> : vector<128x4xf32>
    %120 = tpu.matmul %119, %94, %cst_80 {dimension_numbers = #tpu.dot_dimension_numbers<[1], [0], [0], [1], [0, 0, 1, 1], [], []>} : vector<128x4xf32>, vector<4x4xf32>, vector<128x4xf32> -> vector<128x4xf32>
    %121 = vector.broadcast %95 : vector<1x4xf32> to vector<128x4xf32>
    %122 = arith.addf %120, %121 : vector<128x4xf32>
    %cst_81 = arith.constant 0.000000e+00 : f32
    %123 = vector.broadcast %cst_81 : f32 to vector<128x4xf32>
    %124 = arith.cmpf ogt, %122, %123 : vector<128x4xf32>
    %cst_82 = arith.constant 0.000000e+00 : f32
    %125 = vector.broadcast %cst_82 : f32 to vector<128x4xf32>
    %126 = arith.minimumf %122, %125 : vector<128x4xf32>
    %127 = math.exp %126 : vector<128x4xf32>
    %cst_83 = arith.constant 1.000000e+00 : f32
    %128 = vector.broadcast %cst_83 : f32 to vector<128x4xf32>
    %129 = arith.subf %127, %128 : vector<128x4xf32>
    %130 = arith.select %124, %122, %129 : vector<128x4xi1>, vector<128x4xf32>
    %131 = arith.addf %91, %130 : vector<128x4xf32>
    %c64 = arith.constant 64 : index
    %c0_84 = arith.constant 0 : index
    %132 = vector.load %arg2[%c64, %c0_84] : memref<2096x64xf32, #tpu.memory_space<vmem>>, vector<28x4xf32>
    %c12_85 = arith.constant 12 : index
    %c0_86 = arith.constant 0 : index
    %133 = vector.load %arg3[%c12_85, %c0_86] : memref<40x64xf32, #tpu.memory_space<vmem>>, vector<1x4xf32>
    %c92 = arith.constant 92 : index
    %c0_87 = arith.constant 0 : index
    %134 = vector.load %arg2[%c92, %c0_87] : memref<2096x64xf32, #tpu.memory_space<vmem>>, vector<4x4xf32>
    %c13 = arith.constant 13 : index
    %c0_88 = arith.constant 0 : index
    %135 = vector.load %arg3[%c13, %c0_88] : memref<40x64xf32, #tpu.memory_space<vmem>>, vector<1x4xf32>
    %cst_89 = arith.constant 0.000000e+00 : f32
    %136 = vector.broadcast %cst_89 : f32 to vector<27x4xf32>
    %c0_90 = arith.constant 0 : index
    %c0_91 = arith.constant 0 : index
    %137 = vector.load %arg5[%c0_90, %c0_91] : memref<182x64xf32, #tpu.memory_space<vmem>>, vector<27x4xf32>
    tpu.vector_store %arg5[%c0_90, %c0_91], %136 {strides = array<i32>} : memref<182x64xf32, #tpu.memory_space<vmem>>, vector<27x4xf32>,
    %c27 = arith.constant 27 : index
    %c0_92 = arith.constant 0 : index
    %138 = vector.load %arg5[%c27, %c0_92] : memref<182x64xf32, #tpu.memory_space<vmem>>, vector<128x4xf32>
    tpu.vector_store %arg5[%c27, %c0_92], %131 {strides = array<i32>} : memref<182x64xf32, #tpu.memory_space<vmem>>, vector<128x4xf32>,
    %cst_93 = arith.constant 0.000000e+00 : f32
    %139 = vector.broadcast %cst_93 : f32 to vector<27x4xf32>
    %c155 = arith.constant 155 : index
    %c0_94 = arith.constant 0 : index
    %140 = vector.load %arg5[%c155, %c0_94] : memref<182x64xf32, #tpu.memory_space<vmem>>, vector<27x4xf32>
    tpu.vector_store %arg5[%c155, %c0_94], %139 {strides = array<i32>} : memref<182x64xf32, #tpu.memory_space<vmem>>, vector<27x4xf32>,
    %c0_95 = arith.constant 0 : index
    %c0_96 = arith.constant 0 : index
    %141 = vector.load %arg5[%c0_95, %c0_96] : memref<182x64xf32, #tpu.memory_space<vmem>>, vector<128x4xf32>
    %c9_97 = arith.constant 9 : index
    %c0_98 = arith.constant 0 : index
    %142 = vector.load %arg5[%c9_97, %c0_98] : memref<182x64xf32, #tpu.memory_space<vmem>>, vector<128x4xf32>
    %c18_99 = arith.constant 18 : index
    %c0_100 = arith.constant 0 : index
    %143 = vector.load %arg5[%c18_99, %c0_100] : memref<182x64xf32, #tpu.memory_space<vmem>>, vector<128x4xf32>
    %c27_101 = arith.constant 27 : index
    %c0_102 = arith.constant 0 : index
    %144 = vector.load %arg5[%c27_101, %c0_102] : memref<182x64xf32, #tpu.memory_space<vmem>>, vector<128x4xf32>
    %c36 = arith.constant 36 : index
    %c0_103 = arith.constant 0 : index
    %145 = vector.load %arg5[%c36, %c0_103] : memref<182x64xf32, #tpu.memory_space<vmem>>, vector<128x4xf32>
    %c45 = arith.constant 45 : index
    %c0_104 = arith.constant 0 : index
    %146 = vector.load %arg5[%c45, %c0_104] : memref<182x64xf32, #tpu.memory_space<vmem>>, vector<128x4xf32>
    %c54 = arith.constant 54 : index
    %c0_105 = arith.constant 0 : index
    %147 = vector.load %arg5[%c54, %c0_105] : memref<182x64xf32, #tpu.memory_space<vmem>>, vector<128x4xf32>
    %148 = tpu.concatenate %141, %142, %143, %144, %145, %146, %147 in 1 : vector<128x4xf32>, vector<128x4xf32>, vector<128x4xf32>, vector<128x4xf32>, vector<128x4xf32>, vector<128x4xf32>, vector<128x4xf32> -> vector<128x28xf32>
    %cst_106 = arith.constant dense<0.000000e+00> : vector<128x4xf32>
    %149 = tpu.matmul %148, %132, %cst_106 {dimension_numbers = #tpu.dot_dimension_numbers<[1], [0], [0], [1], [0, 0, 1, 1], [], []>} : vector<128x28xf32>, vector<28x4xf32>, vector<128x4xf32> -> vector<128x4xf32>
    %150 = vector.broadcast %133 : vector<1x4xf32> to vector<128x4xf32>
    %151 = arith.addf %149, %150 : vector<128x4xf32>
    %cst_107 = arith.constant 0.000000e+00 : f32
    %152 = vector.broadcast %cst_107 : f32 to vector<128x4xf32>
    %153 = arith.cmpf ogt, %151, %152 : vector<128x4xf32>
    %cst_108 = arith.constant 0.000000e+00 : f32
    %154 = vector.broadcast %cst_108 : f32 to vector<128x4xf32>
    %155 = arith.minimumf %151, %154 : vector<128x4xf32>
    %156 = math.exp %155 : vector<128x4xf32>
    %cst_109 = arith.constant 1.000000e+00 : f32
    %157 = vector.broadcast %cst_109 : f32 to vector<128x4xf32>
    %158 = arith.subf %156, %157 : vector<128x4xf32>
    %159 = arith.select %153, %151, %158 : vector<128x4xi1>, vector<128x4xf32>
    %cst_110 = arith.constant dense<0.000000e+00> : vector<128x4xf32>
    %160 = tpu.matmul %159, %134, %cst_110 {dimension_numbers = #tpu.dot_dimension_numbers<[1], [0], [0], [1], [0, 0, 1, 1], [], []>} : vector<128x4xf32>, vector<4x4xf32>, vector<128x4xf32> -> vector<128x4xf32>
    %161 = vector.broadcast %135 : vector<1x4xf32> to vector<128x4xf32>
    %162 = arith.addf %160, %161 : vector<128x4xf32>
    %cst_111 = arith.constant 0.000000e+00 : f32
    %163 = vector.broadcast %cst_111 : f32 to vector<128x4xf32>
    %164 = arith.cmpf ogt, %162, %163 : vector<128x4xf32>
    %cst_112 = arith.constant 0.000000e+00 : f32
    %165 = vector.broadcast %cst_112 : f32 to vector<128x4xf32>
    %166 = arith.minimumf %162, %165 : vector<128x4xf32>
    %167 = math.exp %166 : vector<128x4xf32>
    %cst_113 = arith.constant 1.000000e+00 : f32
    %168 = vector.broadcast %cst_113 : f32 to vector<128x4xf32>
    %169 = arith.subf %167, %168 : vector<128x4xf32>
    %170 = arith.select %164, %162, %169 : vector<128x4xi1>, vector<128x4xf32>
    %171 = arith.addf %131, %170 : vector<128x4xf32>
    %c96 = arith.constant 96 : index
    %c0_114 = arith.constant 0 : index
    %172 = vector.load %arg2[%c96, %c0_114] : memref<2096x64xf32, #tpu.memory_space<vmem>>, vector<16x8xf32>
    %c14 = arith.constant 14 : index
    %c0_115 = arith.constant 0 : index
    %173 = vector.load %arg3[%c14, %c0_115] : memref<40x64xf32, #tpu.memory_space<vmem>>, vector<1x8xf32>
    %cst_116 = arith.constant 0.000000e+00 : f32
    %174 = vector.broadcast %cst_116 : f32 to vector<1x4xf32>
    %c0_117 = arith.constant 0 : index
    %c0_118 = arith.constant 0 : index
    %175 = vector.load %arg5[%c0_117, %c0_118] : memref<182x64xf32, #tpu.memory_space<vmem>>, vector<1x4xf32>
    tpu.vector_store %arg5[%c0_117, %c0_118], %174 {strides = array<i32>} : memref<182x64xf32, #tpu.memory_space<vmem>>, vector<1x4xf32>,
    %c1_119 = arith.constant 1 : index
    %c0_120 = arith.constant 0 : index
    %176 = vector.load %arg5[%c1_119, %c0_120] : memref<182x64xf32, #tpu.memory_space<vmem>>, vector<128x4xf32>
    tpu.vector_store %arg5[%c1_119, %c0_120], %171 {strides = array<i32>} : memref<182x64xf32, #tpu.memory_space<vmem>>, vector<128x4xf32>,
    %cst_121 = arith.constant 0.000000e+00 : f32
    %177 = vector.broadcast %cst_121 : f32 to vector<1x4xf32>
    %c129 = arith.constant 129 : index
    %c0_122 = arith.constant 0 : index
    %178 = vector.load %arg5[%c129, %c0_122] : memref<182x64xf32, #tpu.memory_space<vmem>>, vector<1x4xf32>
    tpu.vector_store %arg5[%c129, %c0_122], %177 {strides = array<i32>} : memref<182x64xf32, #tpu.memory_space<vmem>>, vector<1x4xf32>,
    %c0_123 = arith.constant 0 : index
    %c0_124 = arith.constant 0 : index
    %179 = tpu.strided_load %arg5[%c0_123, %c0_124] {strides = array<i32: 2, 1>} : memref<182x64xf32, #tpu.memory_space<vmem>>, vector<64x4xf32>
    %c1_125 = arith.constant 1 : index
    %c0_126 = arith.constant 0 : index
    %180 = tpu.strided_load %arg5[%c1_125, %c0_126] {strides = array<i32: 2, 1>} : memref<182x64xf32, #tpu.memory_space<vmem>>, vector<64x4xf32>
    %c2_127 = arith.constant 2 : index
    %c0_128 = arith.constant 0 : index
    %181 = tpu.strided_load %arg5[%c2_127, %c0_128] {strides = array<i32: 2, 1>} : memref<182x64xf32, #tpu.memory_space<vmem>>, vector<64x4xf32>
    %c3_129 = arith.constant 3 : index
    %c0_130 = arith.constant 0 : index
    %182 = tpu.strided_load %arg5[%c3_129, %c0_130] {strides = array<i32: 2, 1>} : memref<182x64xf32, #tpu.memory_space<vmem>>, vector<64x4xf32>
    %183 = tpu.concatenate %179, %180, %181, %182 in 1 : vector<64x4xf32>, vector<64x4xf32>, vector<64x4xf32>, vector<64x4xf32> -> vector<64x16xf32>
    %cst_131 = arith.constant dense<0.000000e+00> : vector<64x8xf32>
    %184 = tpu.matmul %183, %172, %cst_131 {dimension_numbers = #tpu.dot_dimension_numbers<[1], [0], [0], [1], [0, 0, 1, 1], [], []>} : vector<64x16xf32>, vector<16x8xf32>, vector<64x8xf32> -> vector<64x8xf32>
    %185 = vector.broadcast %173 : vector<1x8xf32> to vector<64x8xf32>
    %186 = arith.addf %184, %185 : vector<64x8xf32>
    %cst_132 = arith.constant 0.000000e+00 : f32
    %187 = vector.broadcast %cst_132 : f32 to vector<64x8xf32>
    %188 = arith.cmpf ogt, %186, %187 : vector<64x8xf32>
    %cst_133 = arith.constant 0.000000e+00 : f32
    %189 = vector.broadcast %cst_133 : f32 to vector<64x8xf32>
    %190 = arith.minimumf %186, %189 : vector<64x8xf32>
    %191 = math.exp %190 : vector<64x8xf32>
    %cst_134 = arith.constant 1.000000e+00 : f32
    %192 = vector.broadcast %cst_134 : f32 to vector<64x8xf32>
    %193 = arith.subf %191, %192 : vector<64x8xf32>
    %194 = arith.select %188, %186, %193 : vector<64x8xi1>, vector<64x8xf32>
    %c112 = arith.constant 112 : index
    %c0_135 = arith.constant 0 : index
    %195 = vector.load %arg2[%c112, %c0_135] : memref<2096x64xf32, #tpu.memory_space<vmem>>, vector<56x8xf32>
    %c15_136 = arith.constant 15 : index
    %c0_137 = arith.constant 0 : index
    %196 = vector.load %arg3[%c15_136, %c0_137] : memref<40x64xf32, #tpu.memory_space<vmem>>, vector<1x8xf32>
    %c168 = arith.constant 168 : index
    %c0_138 = arith.constant 0 : index
    %197 = vector.load %arg2[%c168, %c0_138] : memref<2096x64xf32, #tpu.memory_space<vmem>>, vector<8x8xf32>
    %c16 = arith.constant 16 : index
    %c0_139 = arith.constant 0 : index
    %198 = vector.load %arg3[%c16, %c0_139] : memref<40x64xf32, #tpu.memory_space<vmem>>, vector<1x8xf32>
    %cst_140 = arith.constant 0.000000e+00 : f32
    %199 = vector.broadcast %cst_140 : f32 to vector<3x8xf32>
    %c0_141 = arith.constant 0 : index
    %c0_142 = arith.constant 0 : index
    %200 = vector.load %arg5[%c0_141, %c0_142] : memref<182x64xf32, #tpu.memory_space<vmem>>, vector<3x8xf32>
    tpu.vector_store %arg5[%c0_141, %c0_142], %199 {strides = array<i32>} : memref<182x64xf32, #tpu.memory_space<vmem>>, vector<3x8xf32>,
    %c3_143 = arith.constant 3 : index
    %c0_144 = arith.constant 0 : index
    %201 = vector.load %arg5[%c3_143, %c0_144] : memref<182x64xf32, #tpu.memory_space<vmem>>, vector<64x8xf32>
    tpu.vector_store %arg5[%c3_143, %c0_144], %194 {strides = array<i32>} : memref<182x64xf32, #tpu.memory_space<vmem>>, vector<64x8xf32>,
    %cst_145 = arith.constant 0.000000e+00 : f32
    %202 = vector.broadcast %cst_145 : f32 to vector<3x8xf32>
    %c67 = arith.constant 67 : index
    %c0_146 = arith.constant 0 : index
    %203 = vector.load %arg5[%c67, %c0_146] : memref<182x64xf32, #tpu.memory_space<vmem>>, vector<3x8xf32>
    tpu.vector_store %arg5[%c67, %c0_146], %202 {strides = array<i32>} : memref<182x64xf32, #tpu.memory_space<vmem>>, vector<3x8xf32>,
    %c0_147 = arith.constant 0 : index
    %c0_148 = arith.constant 0 : index
    %204 = vector.load %arg5[%c0_147, %c0_148] : memref<182x64xf32, #tpu.memory_space<vmem>>, vector<64x8xf32>
    %c1_149 = arith.constant 1 : index
    %c0_150 = arith.constant 0 : index
    %205 = vector.load %arg5[%c1_149, %c0_150] : memref<182x64xf32, #tpu.memory_space<vmem>>, vector<64x8xf32>
    %c2_151 = arith.constant 2 : index
    %c0_152 = arith.constant 0 : index
    %206 = vector.load %arg5[%c2_151, %c0_152] : memref<182x64xf32, #tpu.memory_space<vmem>>, vector<64x8xf32>
    %c3_153 = arith.constant 3 : index
    %c0_154 = arith.constant 0 : index
    %207 = vector.load %arg5[%c3_153, %c0_154] : memref<182x64xf32, #tpu.memory_space<vmem>>, vector<64x8xf32>
    %c4_155 = arith.constant 4 : index
    %c0_156 = arith.constant 0 : index
    %208 = vector.load %arg5[%c4_155, %c0_156] : memref<182x64xf32, #tpu.memory_space<vmem>>, vector<64x8xf32>
    %c5_157 = arith.constant 5 : index
    %c0_158 = arith.constant 0 : index
    %209 = vector.load %arg5[%c5_157, %c0_158] : memref<182x64xf32, #tpu.memory_space<vmem>>, vector<64x8xf32>
    %c6_159 = arith.constant 6 : index
    %c0_160 = arith.constant 0 : index
    %210 = vector.load %arg5[%c6_159, %c0_160] : memref<182x64xf32, #tpu.memory_space<vmem>>, vector<64x8xf32>
    %211 = tpu.concatenate %204, %205, %206, %207, %208, %209, %210 in 1 : vector<64x8xf32>, vector<64x8xf32>, vector<64x8xf32>, vector<64x8xf32>, vector<64x8xf32>, vector<64x8xf32>, vector<64x8xf32> -> vector<64x56xf32>
    %cst_161 = arith.constant dense<0.000000e+00> : vector<64x8xf32>
    %212 = tpu.matmul %211, %195, %cst_161 {dimension_numbers = #tpu.dot_dimension_numbers<[1], [0], [0], [1], [0, 0, 1, 1], [], []>} : vector<64x56xf32>, vector<56x8xf32>, vector<64x8xf32> -> vector<64x8xf32>
    %213 = vector.broadcast %196 : vector<1x8xf32> to vector<64x8xf32>
    %214 = arith.addf %212, %213 : vector<64x8xf32>
    %cst_162 = arith.constant 0.000000e+00 : f32
    %215 = vector.broadcast %cst_162 : f32 to vector<64x8xf32>
    %216 = arith.cmpf ogt, %214, %215 : vector<64x8xf32>
    %cst_163 = arith.constant 0.000000e+00 : f32
    %217 = vector.broadcast %cst_163 : f32 to vector<64x8xf32>
    %218 = arith.minimumf %214, %217 : vector<64x8xf32>
    %219 = math.exp %218 : vector<64x8xf32>
    %cst_164 = arith.constant 1.000000e+00 : f32
    %220 = vector.broadcast %cst_164 : f32 to vector<64x8xf32>
    %221 = arith.subf %219, %220 : vector<64x8xf32>
    %222 = arith.select %216, %214, %221 : vector<64x8xi1>, vector<64x8xf32>
    %cst_165 = arith.constant dense<0.000000e+00> : vector<64x8xf32>
    %223 = tpu.matmul %222, %197, %cst_165 {dimension_numbers = #tpu.dot_dimension_numbers<[1], [0], [0], [1], [0, 0, 1, 1], [], []>} : vector<64x8xf32>, vector<8x8xf32>, vector<64x8xf32> -> vector<64x8xf32>
    %224 = vector.broadcast %198 : vector<1x8xf32> to vector<64x8xf32>
    %225 = arith.addf %223, %224 : vector<64x8xf32>
    %cst_166 = arith.constant 0.000000e+00 : f32
    %226 = vector.broadcast %cst_166 : f32 to vector<64x8xf32>
    %227 = arith.cmpf ogt, %225, %226 : vector<64x8xf32>
    %cst_167 = arith.constant 0.000000e+00 : f32
    %228 = vector.broadcast %cst_167 : f32 to vector<64x8xf32>
    %229 = arith.minimumf %225, %228 : vector<64x8xf32>
    %230 = math.exp %229 : vector<64x8xf32>
    %cst_168 = arith.constant 1.000000e+00 : f32
    %231 = vector.broadcast %cst_168 : f32 to vector<64x8xf32>
    %232 = arith.subf %230, %231 : vector<64x8xf32>
    %233 = arith.select %227, %225, %232 : vector<64x8xi1>, vector<64x8xf32>
    %234 = arith.addf %194, %233 : vector<64x8xf32>
    %c176 = arith.constant 176 : index
    %c0_169 = arith.constant 0 : index
    %235 = vector.load %arg2[%c176, %c0_169] : memref<2096x64xf32, #tpu.memory_space<vmem>>, vector<56x8xf32>
    %c17 = arith.constant 17 : index
    %c0_170 = arith.constant 0 : index
    %236 = vector.load %arg3[%c17, %c0_170] : memref<40x64xf32, #tpu.memory_space<vmem>>, vector<1x8xf32>
    %c232 = arith.constant 232 : index
    %c0_171 = arith.constant 0 : index
    %237 = vector.load %arg2[%c232, %c0_171] : memref<2096x64xf32, #tpu.memory_space<vmem>>, vector<8x8xf32>
    %c18_172 = arith.constant 18 : index
    %c0_173 = arith.constant 0 : index
    %238 = vector.load %arg3[%c18_172, %c0_173] : memref<40x64xf32, #tpu.memory_space<vmem>>, vector<1x8xf32>
    %cst_174 = arith.constant 0.000000e+00 : f32
    %239 = vector.broadcast %cst_174 : f32 to vector<9x8xf32>
    %c0_175 = arith.constant 0 : index
    %c0_176 = arith.constant 0 : index
    %240 = vector.load %arg5[%c0_175, %c0_176] : memref<182x64xf32, #tpu.memory_space<vmem>>, vector<9x8xf32>
    tpu.vector_store %arg5[%c0_175, %c0_176], %239 {strides = array<i32>} : memref<182x64xf32, #tpu.memory_space<vmem>>, vector<9x8xf32>,
    %c9_177 = arith.constant 9 : index
    %c0_178 = arith.constant 0 : index
    %241 = vector.load %arg5[%c9_177, %c0_178] : memref<182x64xf32, #tpu.memory_space<vmem>>, vector<64x8xf32>
    tpu.vector_store %arg5[%c9_177, %c0_178], %234 {strides = array<i32>} : memref<182x64xf32, #tpu.memory_space<vmem>>, vector<64x8xf32>,
    %cst_179 = arith.constant 0.000000e+00 : f32
    %242 = vector.broadcast %cst_179 : f32 to vector<9x8xf32>
    %c73 = arith.constant 73 : index
    %c0_180 = arith.constant 0 : index
    %243 = vector.load %arg5[%c73, %c0_180] : memref<182x64xf32, #tpu.memory_space<vmem>>, vector<9x8xf32>
    tpu.vector_store %arg5[%c73, %c0_180], %242 {strides = array<i32>} : memref<182x64xf32, #tpu.memory_space<vmem>>, vector<9x8xf32>,
    %c0_181 = arith.constant 0 : index
    %c0_182 = arith.constant 0 : index
    %244 = vector.load %arg5[%c0_181, %c0_182] : memref<182x64xf32, #tpu.memory_space<vmem>>, vector<64x8xf32>
    %c3_183 = arith.constant 3 : index
    %c0_184 = arith.constant 0 : index
    %245 = vector.load %arg5[%c3_183, %c0_184] : memref<182x64xf32, #tpu.memory_space<vmem>>, vector<64x8xf32>
    %c6_185 = arith.constant 6 : index
    %c0_186 = arith.constant 0 : index
    %246 = vector.load %arg5[%c6_185, %c0_186] : memref<182x64xf32, #tpu.memory_space<vmem>>, vector<64x8xf32>
    %c9_187 = arith.constant 9 : index
    %c0_188 = arith.constant 0 : index
    %247 = vector.load %arg5[%c9_187, %c0_188] : memref<182x64xf32, #tpu.memory_space<vmem>>, vector<64x8xf32>
    %c12_189 = arith.constant 12 : index
    %c0_190 = arith.constant 0 : index
    %248 = vector.load %arg5[%c12_189, %c0_190] : memref<182x64xf32, #tpu.memory_space<vmem>>, vector<64x8xf32>
    %c15_191 = arith.constant 15 : index
    %c0_192 = arith.constant 0 : index
    %249 = vector.load %arg5[%c15_191, %c0_192] : memref<182x64xf32, #tpu.memory_space<vmem>>, vector<64x8xf32>
    %c18_193 = arith.constant 18 : index
    %c0_194 = arith.constant 0 : index
    %250 = vector.load %arg5[%c18_193, %c0_194] : memref<182x64xf32, #tpu.memory_space<vmem>>, vector<64x8xf32>
    %251 = tpu.concatenate %244, %245, %246, %247, %248, %249, %250 in 1 : vector<64x8xf32>, vector<64x8xf32>, vector<64x8xf32>, vector<64x8xf32>, vector<64x8xf32>, vector<64x8xf32>, vector<64x8xf32> -> vector<64x56xf32>
    %cst_195 = arith.constant dense<0.000000e+00> : vector<64x8xf32>
    %252 = tpu.matmul %251, %235, %cst_195 {dimension_numbers = #tpu.dot_dimension_numbers<[1], [0], [0], [1], [0, 0, 1, 1], [], []>} : vector<64x56xf32>, vector<56x8xf32>, vector<64x8xf32> -> vector<64x8xf32>
    %253 = vector.broadcast %236 : vector<1x8xf32> to vector<64x8xf32>
    %254 = arith.addf %252, %253 : vector<64x8xf32>
    %cst_196 = arith.constant 0.000000e+00 : f32
    %255 = vector.broadcast %cst_196 : f32 to vector<64x8xf32>
    %256 = arith.cmpf ogt, %254, %255 : vector<64x8xf32>
    %cst_197 = arith.constant 0.000000e+00 : f32
    %257 = vector.broadcast %cst_197 : f32 to vector<64x8xf32>
    %258 = arith.minimumf %254, %257 : vector<64x8xf32>
    %259 = math.exp %258 : vector<64x8xf32>
    %cst_198 = arith.constant 1.000000e+00 : f32
    %260 = vector.broadcast %cst_198 : f32 to vector<64x8xf32>
    %261 = arith.subf %259, %260 : vector<64x8xf32>
    %262 = arith.select %256, %254, %261 : vector<64x8xi1>, vector<64x8xf32>
    %cst_199 = arith.constant dense<0.000000e+00> : vector<64x8xf32>
    %263 = tpu.matmul %262, %237, %cst_199 {dimension_numbers = #tpu.dot_dimension_numbers<[1], [0], [0], [1], [0, 0, 1, 1], [], []>} : vector<64x8xf32>, vector<8x8xf32>, vector<64x8xf32> -> vector<64x8xf32>
    %264 = vector.broadcast %238 : vector<1x8xf32> to vector<64x8xf32>
    %265 = arith.addf %263, %264 : vector<64x8xf32>
    %cst_200 = arith.constant 0.000000e+00 : f32
    %266 = vector.broadcast %cst_200 : f32 to vector<64x8xf32>
    %267 = arith.cmpf ogt, %265, %266 : vector<64x8xf32>
    %cst_201 = arith.constant 0.000000e+00 : f32
    %268 = vector.broadcast %cst_201 : f32 to vector<64x8xf32>
    %269 = arith.minimumf %265, %268 : vector<64x8xf32>
    %270 = math.exp %269 : vector<64x8xf32>
    %cst_202 = arith.constant 1.000000e+00 : f32
    %271 = vector.broadcast %cst_202 : f32 to vector<64x8xf32>
    %272 = arith.subf %270, %271 : vector<64x8xf32>
    %273 = arith.select %267, %265, %272 : vector<64x8xi1>, vector<64x8xf32>
    %274 = arith.addf %234, %273 : vector<64x8xf32>
    %c240 = arith.constant 240 : index
    %c0_203 = arith.constant 0 : index
    %275 = vector.load %arg2[%c240, %c0_203] : memref<2096x64xf32, #tpu.memory_space<vmem>>, vector<56x8xf32>
    %c19 = arith.constant 19 : index
    %c0_204 = arith.constant 0 : index
    %276 = vector.load %arg3[%c19, %c0_204] : memref<40x64xf32, #tpu.memory_space<vmem>>, vector<1x8xf32>
    %c296 = arith.constant 296 : index
    %c0_205 = arith.constant 0 : index
    %277 = vector.load %arg2[%c296, %c0_205] : memref<2096x64xf32, #tpu.memory_space<vmem>>, vector<8x8xf32>
    %c20 = arith.constant 20 : index
    %c0_206 = arith.constant 0 : index
    %278 = vector.load %arg3[%c20, %c0_206] : memref<40x64xf32, #tpu.memory_space<vmem>>, vector<1x8xf32>
    %cst_207 = arith.constant 0.000000e+00 : f32
    %279 = vector.broadcast %cst_207 : f32 to vector<27x8xf32>
    %c0_208 = arith.constant 0 : index
    %c0_209 = arith.constant 0 : index
    %280 = vector.load %arg5[%c0_208, %c0_209] : memref<182x64xf32, #tpu.memory_space<vmem>>, vector<27x8xf32>
    tpu.vector_store %arg5[%c0_208, %c0_209], %279 {strides = array<i32>} : memref<182x64xf32, #tpu.memory_space<vmem>>, vector<27x8xf32>,
    %c27_210 = arith.constant 27 : index
    %c0_211 = arith.constant 0 : index
    %281 = vector.load %arg5[%c27_210, %c0_211] : memref<182x64xf32, #tpu.memory_space<vmem>>, vector<64x8xf32>
    tpu.vector_store %arg5[%c27_210, %c0_211], %274 {strides = array<i32>} : memref<182x64xf32, #tpu.memory_space<vmem>>, vector<64x8xf32>,
    %cst_212 = arith.constant 0.000000e+00 : f32
    %282 = vector.broadcast %cst_212 : f32 to vector<27x8xf32>
    %c91 = arith.constant 91 : index
    %c0_213 = arith.constant 0 : index
    %283 = vector.load %arg5[%c91, %c0_213] : memref<182x64xf32, #tpu.memory_space<vmem>>, vector<27x8xf32>
    tpu.vector_store %arg5[%c91, %c0_213], %282 {strides = array<i32>} : memref<182x64xf32, #tpu.memory_space<vmem>>, vector<27x8xf32>,
    %c0_214 = arith.constant 0 : index
    %c0_215 = arith.constant 0 : index
    %284 = vector.load %arg5[%c0_214, %c0_215] : memref<182x64xf32, #tpu.memory_space<vmem>>, vector<64x8xf32>
    %c9_216 = arith.constant 9 : index
    %c0_217 = arith.constant 0 : index
    %285 = vector.load %arg5[%c9_216, %c0_217] : memref<182x64xf32, #tpu.memory_space<vmem>>, vector<64x8xf32>
    %c18_218 = arith.constant 18 : index
    %c0_219 = arith.constant 0 : index
    %286 = vector.load %arg5[%c18_218, %c0_219] : memref<182x64xf32, #tpu.memory_space<vmem>>, vector<64x8xf32>
    %c27_220 = arith.constant 27 : index
    %c0_221 = arith.constant 0 : index
    %287 = vector.load %arg5[%c27_220, %c0_221] : memref<182x64xf32, #tpu.memory_space<vmem>>, vector<64x8xf32>
    %c36_222 = arith.constant 36 : index
    %c0_223 = arith.constant 0 : index
    %288 = vector.load %arg5[%c36_222, %c0_223] : memref<182x64xf32, #tpu.memory_space<vmem>>, vector<64x8xf32>
    %c45_224 = arith.constant 45 : index
    %c0_225 = arith.constant 0 : index
    %289 = vector.load %arg5[%c45_224, %c0_225] : memref<182x64xf32, #tpu.memory_space<vmem>>, vector<64x8xf32>
    %c54_226 = arith.constant 54 : index
    %c0_227 = arith.constant 0 : index
    %290 = vector.load %arg5[%c54_226, %c0_227] : memref<182x64xf32, #tpu.memory_space<vmem>>, vector<64x8xf32>
    %291 = tpu.concatenate %284, %285, %286, %287, %288, %289, %290 in 1 : vector<64x8xf32>, vector<64x8xf32>, vector<64x8xf32>, vector<64x8xf32>, vector<64x8xf32>, vector<64x8xf32>, vector<64x8xf32> -> vector<64x56xf32>
    %cst_228 = arith.constant dense<0.000000e+00> : vector<64x8xf32>
    %292 = tpu.matmul %291, %275, %cst_228 {dimension_numbers = #tpu.dot_dimension_numbers<[1], [0], [0], [1], [0, 0, 1, 1], [], []>} : vector<64x56xf32>, vector<56x8xf32>, vector<64x8xf32> -> vector<64x8xf32>
    %293 = vector.broadcast %276 : vector<1x8xf32> to vector<64x8xf32>
    %294 = arith.addf %292, %293 : vector<64x8xf32>
    %cst_229 = arith.constant 0.000000e+00 : f32
    %295 = vector.broadcast %cst_229 : f32 to vector<64x8xf32>
    %296 = arith.cmpf ogt, %294, %295 : vector<64x8xf32>
    %cst_230 = arith.constant 0.000000e+00 : f32
    %297 = vector.broadcast %cst_230 : f32 to vector<64x8xf32>
    %298 = arith.minimumf %294, %297 : vector<64x8xf32>
    %299 = math.exp %298 : vector<64x8xf32>
    %cst_231 = arith.constant 1.000000e+00 : f32
    %300 = vector.broadcast %cst_231 : f32 to vector<64x8xf32>
    %301 = arith.subf %299, %300 : vector<64x8xf32>
    %302 = arith.select %296, %294, %301 : vector<64x8xi1>, vector<64x8xf32>
    %cst_232 = arith.constant dense<0.000000e+00> : vector<64x8xf32>
    %303 = tpu.matmul %302, %277, %cst_232 {dimension_numbers = #tpu.dot_dimension_numbers<[1], [0], [0], [1], [0, 0, 1, 1], [], []>} : vector<64x8xf32>, vector<8x8xf32>, vector<64x8xf32> -> vector<64x8xf32>
    %304 = vector.broadcast %278 : vector<1x8xf32> to vector<64x8xf32>
    %305 = arith.addf %303, %304 : vector<64x8xf32>
    %cst_233 = arith.constant 0.000000e+00 : f32
    %306 = vector.broadcast %cst_233 : f32 to vector<64x8xf32>
    %307 = arith.cmpf ogt, %305, %306 : vector<64x8xf32>
    %cst_234 = arith.constant 0.000000e+00 : f32
    %308 = vector.broadcast %cst_234 : f32 to vector<64x8xf32>
    %309 = arith.minimumf %305, %308 : vector<64x8xf32>
    %310 = math.exp %309 : vector<64x8xf32>
    %cst_235 = arith.constant 1.000000e+00 : f32
    %311 = vector.broadcast %cst_235 : f32 to vector<64x8xf32>
    %312 = arith.subf %310, %311 : vector<64x8xf32>
    %313 = arith.select %307, %305, %312 : vector<64x8xi1>, vector<64x8xf32>
    %314 = arith.addf %274, %313 : vector<64x8xf32>
    %c304 = arith.constant 304 : index
    %c0_236 = arith.constant 0 : index
    %315 = vector.load %arg2[%c304, %c0_236] : memref<2096x64xf32, #tpu.memory_space<vmem>>, vector<32x16xf32>
    %c21 = arith.constant 21 : index
    %c0_237 = arith.constant 0 : index
    %316 = vector.load %arg3[%c21, %c0_237] : memref<40x64xf32, #tpu.memory_space<vmem>>, vector<1x16xf32>
    %cst_238 = arith.constant 0.000000e+00 : f32
    %317 = vector.broadcast %cst_238 : f32 to vector<1x8xf32>
    %c0_239 = arith.constant 0 : index
    %c0_240 = arith.constant 0 : index
    %318 = vector.load %arg5[%c0_239, %c0_240] : memref<182x64xf32, #tpu.memory_space<vmem>>, vector<1x8xf32>
    tpu.vector_store %arg5[%c0_239, %c0_240], %317 {strides = array<i32>} : memref<182x64xf32, #tpu.memory_space<vmem>>, vector<1x8xf32>,
    %c1_241 = arith.constant 1 : index
    %c0_242 = arith.constant 0 : index
    %319 = vector.load %arg5[%c1_241, %c0_242] : memref<182x64xf32, #tpu.memory_space<vmem>>, vector<64x8xf32>
    tpu.vector_store %arg5[%c1_241, %c0_242], %314 {strides = array<i32>} : memref<182x64xf32, #tpu.memory_space<vmem>>, vector<64x8xf32>,
    %cst_243 = arith.constant 0.000000e+00 : f32
    %320 = vector.broadcast %cst_243 : f32 to vector<1x8xf32>
    %c65 = arith.constant 65 : index
    %c0_244 = arith.constant 0 : index
    %321 = vector.load %arg5[%c65, %c0_244] : memref<182x64xf32, #tpu.memory_space<vmem>>, vector<1x8xf32>
    tpu.vector_store %arg5[%c65, %c0_244], %320 {strides = array<i32>} : memref<182x64xf32, #tpu.memory_space<vmem>>, vector<1x8xf32>,
    %c0_245 = arith.constant 0 : index
    %c0_246 = arith.constant 0 : index
    %322 = tpu.strided_load %arg5[%c0_245, %c0_246] {strides = array<i32: 2, 1>} : memref<182x64xf32, #tpu.memory_space<vmem>>, vector<32x8xf32>
    %c1_247 = arith.constant 1 : index
    %c0_248 = arith.constant 0 : index
    %323 = tpu.strided_load %arg5[%c1_247, %c0_248] {strides = array<i32: 2, 1>} : memref<182x64xf32, #tpu.memory_space<vmem>>, vector<32x8xf32>
    %c2_249 = arith.constant 2 : index
    %c0_250 = arith.constant 0 : index
    %324 = tpu.strided_load %arg5[%c2_249, %c0_250] {strides = array<i32: 2, 1>} : memref<182x64xf32, #tpu.memory_space<vmem>>, vector<32x8xf32>
    %c3_251 = arith.constant 3 : index
    %c0_252 = arith.constant 0 : index
    %325 = tpu.strided_load %arg5[%c3_251, %c0_252] {strides = array<i32: 2, 1>} : memref<182x64xf32, #tpu.memory_space<vmem>>, vector<32x8xf32>
    %326 = tpu.concatenate %322, %323, %324, %325 in 1 : vector<32x8xf32>, vector<32x8xf32>, vector<32x8xf32>, vector<32x8xf32> -> vector<32x32xf32>
    %cst_253 = arith.constant dense<0.000000e+00> : vector<32x16xf32>
    %327 = tpu.matmul %326, %315, %cst_253 {dimension_numbers = #tpu.dot_dimension_numbers<[1], [0], [0], [1], [0, 0, 1, 1], [], []>} : vector<32x32xf32>, vector<32x16xf32>, vector<32x16xf32> -> vector<32x16xf32>
    %328 = vector.broadcast %316 : vector<1x16xf32> to vector<32x16xf32>
    %329 = arith.addf %327, %328 : vector<32x16xf32>
    %cst_254 = arith.constant 0.000000e+00 : f32
    %330 = vector.broadcast %cst_254 : f32 to vector<32x16xf32>
    %331 = arith.cmpf ogt, %329, %330 : vector<32x16xf32>
    %cst_255 = arith.constant 0.000000e+00 : f32
    %332 = vector.broadcast %cst_255 : f32 to vector<32x16xf32>
    %333 = arith.minimumf %329, %332 : vector<32x16xf32>
    %334 = math.exp %333 : vector<32x16xf32>
    %cst_256 = arith.constant 1.000000e+00 : f32
    %335 = vector.broadcast %cst_256 : f32 to vector<32x16xf32>
    %336 = arith.subf %334, %335 : vector<32x16xf32>
    %337 = arith.select %331, %329, %336 : vector<32x16xi1>, vector<32x16xf32>
    %c336 = arith.constant 336 : index
    %c0_257 = arith.constant 0 : index
    %338 = vector.load %arg2[%c336, %c0_257] : memref<2096x64xf32, #tpu.memory_space<vmem>>, vector<112x16xf32>
    %c22 = arith.constant 22 : index
    %c0_258 = arith.constant 0 : index
    %339 = vector.load %arg3[%c22, %c0_258] : memref<40x64xf32, #tpu.memory_space<vmem>>, vector<1x16xf32>
    %c448 = arith.constant 448 : index
    %c0_259 = arith.constant 0 : index
    %340 = vector.load %arg2[%c448, %c0_259] : memref<2096x64xf32, #tpu.memory_space<vmem>>, vector<16x16xf32>
    %c23 = arith.constant 23 : index
    %c0_260 = arith.constant 0 : index
    %341 = vector.load %arg3[%c23, %c0_260] : memref<40x64xf32, #tpu.memory_space<vmem>>, vector<1x16xf32>
    %cst_261 = arith.constant 0.000000e+00 : f32
    %342 = vector.broadcast %cst_261 : f32 to vector<3x16xf32>
    %c0_262 = arith.constant 0 : index
    %c0_263 = arith.constant 0 : index
    %343 = vector.load %arg5[%c0_262, %c0_263] : memref<182x64xf32, #tpu.memory_space<vmem>>, vector<3x16xf32>
    tpu.vector_store %arg5[%c0_262, %c0_263], %342 {strides = array<i32>} : memref<182x64xf32, #tpu.memory_space<vmem>>, vector<3x16xf32>,
    %c3_264 = arith.constant 3 : index
    %c0_265 = arith.constant 0 : index
    %344 = vector.load %arg5[%c3_264, %c0_265] : memref<182x64xf32, #tpu.memory_space<vmem>>, vector<32x16xf32>
    tpu.vector_store %arg5[%c3_264, %c0_265], %337 {strides = array<i32>} : memref<182x64xf32, #tpu.memory_space<vmem>>, vector<32x16xf32>,
    %cst_266 = arith.constant 0.000000e+00 : f32
    %345 = vector.broadcast %cst_266 : f32 to vector<3x16xf32>
    %c35 = arith.constant 35 : index
    %c0_267 = arith.constant 0 : index
    %346 = vector.load %arg5[%c35, %c0_267] : memref<182x64xf32, #tpu.memory_space<vmem>>, vector<3x16xf32>
    tpu.vector_store %arg5[%c35, %c0_267], %345 {strides = array<i32>} : memref<182x64xf32, #tpu.memory_space<vmem>>, vector<3x16xf32>,
    %c0_268 = arith.constant 0 : index
    %c0_269 = arith.constant 0 : index
    %347 = vector.load %arg5[%c0_268, %c0_269] : memref<182x64xf32, #tpu.memory_space<vmem>>, vector<32x16xf32>
    %c1_270 = arith.constant 1 : index
    %c0_271 = arith.constant 0 : index
    %348 = vector.load %arg5[%c1_270, %c0_271] : memref<182x64xf32, #tpu.memory_space<vmem>>, vector<32x16xf32>
    %c2_272 = arith.constant 2 : index
    %c0_273 = arith.constant 0 : index
    %349 = vector.load %arg5[%c2_272, %c0_273] : memref<182x64xf32, #tpu.memory_space<vmem>>, vector<32x16xf32>
    %c3_274 = arith.constant 3 : index
    %c0_275 = arith.constant 0 : index
    %350 = vector.load %arg5[%c3_274, %c0_275] : memref<182x64xf32, #tpu.memory_space<vmem>>, vector<32x16xf32>
    %c4_276 = arith.constant 4 : index
    %c0_277 = arith.constant 0 : index
    %351 = vector.load %arg5[%c4_276, %c0_277] : memref<182x64xf32, #tpu.memory_space<vmem>>, vector<32x16xf32>
    %c5_278 = arith.constant 5 : index
    %c0_279 = arith.constant 0 : index
    %352 = vector.load %arg5[%c5_278, %c0_279] : memref<182x64xf32, #tpu.memory_space<vmem>>, vector<32x16xf32>
    %c6_280 = arith.constant 6 : index
    %c0_281 = arith.constant 0 : index
    %353 = vector.load %arg5[%c6_280, %c0_281] : memref<182x64xf32, #tpu.memory_space<vmem>>, vector<32x16xf32>
    %354 = tpu.concatenate %347, %348, %349, %350, %351, %352, %353 in 1 : vector<32x16xf32>, vector<32x16xf32>, vector<32x16xf32>, vector<32x16xf32>, vector<32x16xf32>, vector<32x16xf32>, vector<32x16xf32> -> vector<32x112xf32>
    %cst_282 = arith.constant dense<0.000000e+00> : vector<32x16xf32>
    %355 = tpu.matmul %354, %338, %cst_282 {dimension_numbers = #tpu.dot_dimension_numbers<[1], [0], [0], [1], [0, 0, 1, 1], [], []>} : vector<32x112xf32>, vector<112x16xf32>, vector<32x16xf32> -> vector<32x16xf32>
    %356 = vector.broadcast %339 : vector<1x16xf32> to vector<32x16xf32>
    %357 = arith.addf %355, %356 : vector<32x16xf32>
    %cst_283 = arith.constant 0.000000e+00 : f32
    %358 = vector.broadcast %cst_283 : f32 to vector<32x16xf32>
    %359 = arith.cmpf ogt, %357, %358 : vector<32x16xf32>
    %cst_284 = arith.constant 0.000000e+00 : f32
    %360 = vector.broadcast %cst_284 : f32 to vector<32x16xf32>
    %361 = arith.minimumf %357, %360 : vector<32x16xf32>
    %362 = math.exp %361 : vector<32x16xf32>
    %cst_285 = arith.constant 1.000000e+00 : f32
    %363 = vector.broadcast %cst_285 : f32 to vector<32x16xf32>
    %364 = arith.subf %362, %363 : vector<32x16xf32>
    %365 = arith.select %359, %357, %364 : vector<32x16xi1>, vector<32x16xf32>
    %cst_286 = arith.constant dense<0.000000e+00> : vector<32x16xf32>
    %366 = tpu.matmul %365, %340, %cst_286 {dimension_numbers = #tpu.dot_dimension_numbers<[1], [0], [0], [1], [0, 0, 1, 1], [], []>} : vector<32x16xf32>, vector<16x16xf32>, vector<32x16xf32> -> vector<32x16xf32>
    %367 = vector.broadcast %341 : vector<1x16xf32> to vector<32x16xf32>
    %368 = arith.addf %366, %367 : vector<32x16xf32>
    %cst_287 = arith.constant 0.000000e+00 : f32
    %369 = vector.broadcast %cst_287 : f32 to vector<32x16xf32>
    %370 = arith.cmpf ogt, %368, %369 : vector<32x16xf32>
    %cst_288 = arith.constant 0.000000e+00 : f32
    %371 = vector.broadcast %cst_288 : f32 to vector<32x16xf32>
    %372 = arith.minimumf %368, %371 : vector<32x16xf32>
    %373 = math.exp %372 : vector<32x16xf32>
    %cst_289 = arith.constant 1.000000e+00 : f32
    %374 = vector.broadcast %cst_289 : f32 to vector<32x16xf32>
    %375 = arith.subf %373, %374 : vector<32x16xf32>
    %376 = arith.select %370, %368, %375 : vector<32x16xi1>, vector<32x16xf32>
    %377 = arith.addf %337, %376 : vector<32x16xf32>
    %c464 = arith.constant 464 : index
    %c0_290 = arith.constant 0 : index
    %378 = vector.load %arg2[%c464, %c0_290] : memref<2096x64xf32, #tpu.memory_space<vmem>>, vector<112x16xf32>
    %c24 = arith.constant 24 : index
    %c0_291 = arith.constant 0 : index
    %379 = vector.load %arg3[%c24, %c0_291] : memref<40x64xf32, #tpu.memory_space<vmem>>, vector<1x16xf32>
    %c576 = arith.constant 576 : index
    %c0_292 = arith.constant 0 : index
    %380 = vector.load %arg2[%c576, %c0_292] : memref<2096x64xf32, #tpu.memory_space<vmem>>, vector<16x16xf32>
    %c25 = arith.constant 25 : index
    %c0_293 = arith.constant 0 : index
    %381 = vector.load %arg3[%c25, %c0_293] : memref<40x64xf32, #tpu.memory_space<vmem>>, vector<1x16xf32>
    %cst_294 = arith.constant 0.000000e+00 : f32
    %382 = vector.broadcast %cst_294 : f32 to vector<9x16xf32>
    %c0_295 = arith.constant 0 : index
    %c0_296 = arith.constant 0 : index
    %383 = vector.load %arg5[%c0_295, %c0_296] : memref<182x64xf32, #tpu.memory_space<vmem>>, vector<9x16xf32>
    tpu.vector_store %arg5[%c0_295, %c0_296], %382 {strides = array<i32>} : memref<182x64xf32, #tpu.memory_space<vmem>>, vector<9x16xf32>,
    %c9_297 = arith.constant 9 : index
    %c0_298 = arith.constant 0 : index
    %384 = vector.load %arg5[%c9_297, %c0_298] : memref<182x64xf32, #tpu.memory_space<vmem>>, vector<32x16xf32>
    tpu.vector_store %arg5[%c9_297, %c0_298], %377 {strides = array<i32>} : memref<182x64xf32, #tpu.memory_space<vmem>>, vector<32x16xf32>,
    %cst_299 = arith.constant 0.000000e+00 : f32
    %385 = vector.broadcast %cst_299 : f32 to vector<9x16xf32>
    %c41 = arith.constant 41 : index
    %c0_300 = arith.constant 0 : index
    %386 = vector.load %arg5[%c41, %c0_300] : memref<182x64xf32, #tpu.memory_space<vmem>>, vector<9x16xf32>
    tpu.vector_store %arg5[%c41, %c0_300], %385 {strides = array<i32>} : memref<182x64xf32, #tpu.memory_space<vmem>>, vector<9x16xf32>,
    %c0_301 = arith.constant 0 : index
    %c0_302 = arith.constant 0 : index
    %387 = vector.load %arg5[%c0_301, %c0_302] : memref<182x64xf32, #tpu.memory_space<vmem>>, vector<32x16xf32>
    %c3_303 = arith.constant 3 : index
    %c0_304 = arith.constant 0 : index
    %388 = vector.load %arg5[%c3_303, %c0_304] : memref<182x64xf32, #tpu.memory_space<vmem>>, vector<32x16xf32>
    %c6_305 = arith.constant 6 : index
    %c0_306 = arith.constant 0 : index
    %389 = vector.load %arg5[%c6_305, %c0_306] : memref<182x64xf32, #tpu.memory_space<vmem>>, vector<32x16xf32>
    %c9_307 = arith.constant 9 : index
    %c0_308 = arith.constant 0 : index
    %390 = vector.load %arg5[%c9_307, %c0_308] : memref<182x64xf32, #tpu.memory_space<vmem>>, vector<32x16xf32>
    %c12_309 = arith.constant 12 : index
    %c0_310 = arith.constant 0 : index
    %391 = vector.load %arg5[%c12_309, %c0_310] : memref<182x64xf32, #tpu.memory_space<vmem>>, vector<32x16xf32>
    %c15_311 = arith.constant 15 : index
    %c0_312 = arith.constant 0 : index
    %392 = vector.load %arg5[%c15_311, %c0_312] : memref<182x64xf32, #tpu.memory_space<vmem>>, vector<32x16xf32>
    %c18_313 = arith.constant 18 : index
    %c0_314 = arith.constant 0 : index
    %393 = vector.load %arg5[%c18_313, %c0_314] : memref<182x64xf32, #tpu.memory_space<vmem>>, vector<32x16xf32>
    %394 = tpu.concatenate %387, %388, %389, %390, %391, %392, %393 in 1 : vector<32x16xf32>, vector<32x16xf32>, vector<32x16xf32>, vector<32x16xf32>, vector<32x16xf32>, vector<32x16xf32>, vector<32x16xf32> -> vector<32x112xf32>
    %cst_315 = arith.constant dense<0.000000e+00> : vector<32x16xf32>
    %395 = tpu.matmul %394, %378, %cst_315 {dimension_numbers = #tpu.dot_dimension_numbers<[1], [0], [0], [1], [0, 0, 1, 1], [], []>} : vector<32x112xf32>, vector<112x16xf32>, vector<32x16xf32> -> vector<32x16xf32>
    %396 = vector.broadcast %379 : vector<1x16xf32> to vector<32x16xf32>
    %397 = arith.addf %395, %396 : vector<32x16xf32>
    %cst_316 = arith.constant 0.000000e+00 : f32
    %398 = vector.broadcast %cst_316 : f32 to vector<32x16xf32>
    %399 = arith.cmpf ogt, %397, %398 : vector<32x16xf32>
    %cst_317 = arith.constant 0.000000e+00 : f32
    %400 = vector.broadcast %cst_317 : f32 to vector<32x16xf32>
    %401 = arith.minimumf %397, %400 : vector<32x16xf32>
    %402 = math.exp %401 : vector<32x16xf32>
    %cst_318 = arith.constant 1.000000e+00 : f32
    %403 = vector.broadcast %cst_318 : f32 to vector<32x16xf32>
    %404 = arith.subf %402, %403 : vector<32x16xf32>
    %405 = arith.select %399, %397, %404 : vector<32x16xi1>, vector<32x16xf32>
    %cst_319 = arith.constant dense<0.000000e+00> : vector<32x16xf32>
    %406 = tpu.matmul %405, %380, %cst_319 {dimension_numbers = #tpu.dot_dimension_numbers<[1], [0], [0], [1], [0, 0, 1, 1], [], []>} : vector<32x16xf32>, vector<16x16xf32>, vector<32x16xf32> -> vector<32x16xf32>
    %407 = vector.broadcast %381 : vector<1x16xf32> to vector<32x16xf32>
    %408 = arith.addf %406, %407 : vector<32x16xf32>
    %cst_320 = arith.constant 0.000000e+00 : f32
    %409 = vector.broadcast %cst_320 : f32 to vector<32x16xf32>
    %410 = arith.cmpf ogt, %408, %409 : vector<32x16xf32>
    %cst_321 = arith.constant 0.000000e+00 : f32
    %411 = vector.broadcast %cst_321 : f32 to vector<32x16xf32>
    %412 = arith.minimumf %408, %411 : vector<32x16xf32>
    %413 = math.exp %412 : vector<32x16xf32>
    %cst_322 = arith.constant 1.000000e+00 : f32
    %414 = vector.broadcast %cst_322 : f32 to vector<32x16xf32>
    %415 = arith.subf %413, %414 : vector<32x16xf32>
    %416 = arith.select %410, %408, %415 : vector<32x16xi1>, vector<32x16xf32>
    %417 = arith.addf %377, %416 : vector<32x16xf32>
    %c592 = arith.constant 592 : index
    %c0_323 = arith.constant 0 : index
    %418 = vector.load %arg2[%c592, %c0_323] : memref<2096x64xf32, #tpu.memory_space<vmem>>, vector<112x16xf32>
    %c26 = arith.constant 26 : index
    %c0_324 = arith.constant 0 : index
    %419 = vector.load %arg3[%c26, %c0_324] : memref<40x64xf32, #tpu.memory_space<vmem>>, vector<1x16xf32>
    %c704 = arith.constant 704 : index
    %c0_325 = arith.constant 0 : index
    %420 = vector.load %arg2[%c704, %c0_325] : memref<2096x64xf32, #tpu.memory_space<vmem>>, vector<16x16xf32>
    %c27_326 = arith.constant 27 : index
    %c0_327 = arith.constant 0 : index
    %421 = vector.load %arg3[%c27_326, %c0_327] : memref<40x64xf32, #tpu.memory_space<vmem>>, vector<1x16xf32>
    %cst_328 = arith.constant 0.000000e+00 : f32
    %422 = vector.broadcast %cst_328 : f32 to vector<27x16xf32>
    %c0_329 = arith.constant 0 : index
    %c0_330 = arith.constant 0 : index
    %423 = vector.load %arg5[%c0_329, %c0_330] : memref<182x64xf32, #tpu.memory_space<vmem>>, vector<27x16xf32>
    tpu.vector_store %arg5[%c0_329, %c0_330], %422 {strides = array<i32>} : memref<182x64xf32, #tpu.memory_space<vmem>>, vector<27x16xf32>,
    %c27_331 = arith.constant 27 : index
    %c0_332 = arith.constant 0 : index
    %424 = vector.load %arg5[%c27_331, %c0_332] : memref<182x64xf32, #tpu.memory_space<vmem>>, vector<32x16xf32>
    tpu.vector_store %arg5[%c27_331, %c0_332], %417 {strides = array<i32>} : memref<182x64xf32, #tpu.memory_space<vmem>>, vector<32x16xf32>,
    %cst_333 = arith.constant 0.000000e+00 : f32
    %425 = vector.broadcast %cst_333 : f32 to vector<27x16xf32>
    %c59 = arith.constant 59 : index
    %c0_334 = arith.constant 0 : index
    %426 = vector.load %arg5[%c59, %c0_334] : memref<182x64xf32, #tpu.memory_space<vmem>>, vector<27x16xf32>
    tpu.vector_store %arg5[%c59, %c0_334], %425 {strides = array<i32>} : memref<182x64xf32, #tpu.memory_space<vmem>>, vector<27x16xf32>,
    %c0_335 = arith.constant 0 : index
    %c0_336 = arith.constant 0 : index
    %427 = vector.load %arg5[%c0_335, %c0_336] : memref<182x64xf32, #tpu.memory_space<vmem>>, vector<32x16xf32>
    %c9_337 = arith.constant 9 : index
    %c0_338 = arith.constant 0 : index
    %428 = vector.load %arg5[%c9_337, %c0_338] : memref<182x64xf32, #tpu.memory_space<vmem>>, vector<32x16xf32>
    %c18_339 = arith.constant 18 : index
    %c0_340 = arith.constant 0 : index
    %429 = vector.load %arg5[%c18_339, %c0_340] : memref<182x64xf32, #tpu.memory_space<vmem>>, vector<32x16xf32>
    %c27_341 = arith.constant 27 : index
    %c0_342 = arith.constant 0 : index
    %430 = vector.load %arg5[%c27_341, %c0_342] : memref<182x64xf32, #tpu.memory_space<vmem>>, vector<32x16xf32>
    %c36_343 = arith.constant 36 : index
    %c0_344 = arith.constant 0 : index
    %431 = vector.load %arg5[%c36_343, %c0_344] : memref<182x64xf32, #tpu.memory_space<vmem>>, vector<32x16xf32>
    %c45_345 = arith.constant 45 : index
    %c0_346 = arith.constant 0 : index
    %432 = vector.load %arg5[%c45_345, %c0_346] : memref<182x64xf32, #tpu.memory_space<vmem>>, vector<32x16xf32>
    %c54_347 = arith.constant 54 : index
    %c0_348 = arith.constant 0 : index
    %433 = vector.load %arg5[%c54_347, %c0_348] : memref<182x64xf32, #tpu.memory_space<vmem>>, vector<32x16xf32>
    %434 = tpu.concatenate %427, %428, %429, %430, %431, %432, %433 in 1 : vector<32x16xf32>, vector<32x16xf32>, vector<32x16xf32>, vector<32x16xf32>, vector<32x16xf32>, vector<32x16xf32>, vector<32x16xf32> -> vector<32x112xf32>
    %cst_349 = arith.constant dense<0.000000e+00> : vector<32x16xf32>
    %435 = tpu.matmul %434, %418, %cst_349 {dimension_numbers = #tpu.dot_dimension_numbers<[1], [0], [0], [1], [0, 0, 1, 1], [], []>} : vector<32x112xf32>, vector<112x16xf32>, vector<32x16xf32> -> vector<32x16xf32>
    %436 = vector.broadcast %419 : vector<1x16xf32> to vector<32x16xf32>
    %437 = arith.addf %435, %436 : vector<32x16xf32>
    %cst_350 = arith.constant 0.000000e+00 : f32
    %438 = vector.broadcast %cst_350 : f32 to vector<32x16xf32>
    %439 = arith.cmpf ogt, %437, %438 : vector<32x16xf32>
    %cst_351 = arith.constant 0.000000e+00 : f32
    %440 = vector.broadcast %cst_351 : f32 to vector<32x16xf32>
    %441 = arith.minimumf %437, %440 : vector<32x16xf32>
    %442 = math.exp %441 : vector<32x16xf32>
    %cst_352 = arith.constant 1.000000e+00 : f32
    %443 = vector.broadcast %cst_352 : f32 to vector<32x16xf32>
    %444 = arith.subf %442, %443 : vector<32x16xf32>
    %445 = arith.select %439, %437, %444 : vector<32x16xi1>, vector<32x16xf32>
    %cst_353 = arith.constant dense<0.000000e+00> : vector<32x16xf32>
    %446 = tpu.matmul %445, %420, %cst_353 {dimension_numbers = #tpu.dot_dimension_numbers<[1], [0], [0], [1], [0, 0, 1, 1], [], []>} : vector<32x16xf32>, vector<16x16xf32>, vector<32x16xf32> -> vector<32x16xf32>
    %447 = vector.broadcast %421 : vector<1x16xf32> to vector<32x16xf32>
    %448 = arith.addf %446, %447 : vector<32x16xf32>
    %cst_354 = arith.constant 0.000000e+00 : f32
    %449 = vector.broadcast %cst_354 : f32 to vector<32x16xf32>
    %450 = arith.cmpf ogt, %448, %449 : vector<32x16xf32>
    %cst_355 = arith.constant 0.000000e+00 : f32
    %451 = vector.broadcast %cst_355 : f32 to vector<32x16xf32>
    %452 = arith.minimumf %448, %451 : vector<32x16xf32>
    %453 = math.exp %452 : vector<32x16xf32>
    %cst_356 = arith.constant 1.000000e+00 : f32
    %454 = vector.broadcast %cst_356 : f32 to vector<32x16xf32>
    %455 = arith.subf %453, %454 : vector<32x16xf32>
    %456 = arith.select %450, %448, %455 : vector<32x16xi1>, vector<32x16xf32>
    %457 = arith.addf %417, %456 : vector<32x16xf32>
    %c720 = arith.constant 720 : index
    %c0_357 = arith.constant 0 : index
    %458 = vector.load %arg2[%c720, %c0_357] : memref<2096x64xf32, #tpu.memory_space<vmem>>, vector<128x32xf32>
    %c28_358 = arith.constant 28 : index
    %c0_359 = arith.constant 0 : index
    %459 = vector.load %arg3[%c28_358, %c0_359] : memref<40x64xf32, #tpu.memory_space<vmem>>, vector<1x32xf32>
    %cst_360 = arith.constant 0.000000e+00 : f32
    %460 = vector.broadcast %cst_360 : f32 to vector<3x16xf32>
    %c0_361 = arith.constant 0 : index
    %c0_362 = arith.constant 0 : index
    %461 = vector.load %arg5[%c0_361, %c0_362] : memref<182x64xf32, #tpu.memory_space<vmem>>, vector<3x16xf32>
    tpu.vector_store %arg5[%c0_361, %c0_362], %460 {strides = array<i32>} : memref<182x64xf32, #tpu.memory_space<vmem>>, vector<3x16xf32>,
    %c3_363 = arith.constant 3 : index
    %c0_364 = arith.constant 0 : index
    %462 = vector.load %arg5[%c3_363, %c0_364] : memref<182x64xf32, #tpu.memory_space<vmem>>, vector<32x16xf32>
    tpu.vector_store %arg5[%c3_363, %c0_364], %457 {strides = array<i32>} : memref<182x64xf32, #tpu.memory_space<vmem>>, vector<32x16xf32>,
    %cst_365 = arith.constant 0.000000e+00 : f32
    %463 = vector.broadcast %cst_365 : f32 to vector<1x16xf32>
    %c35_366 = arith.constant 35 : index
    %c0_367 = arith.constant 0 : index
    %464 = vector.load %arg5[%c35_366, %c0_367] : memref<182x64xf32, #tpu.memory_space<vmem>>, vector<1x16xf32>
    tpu.vector_store %arg5[%c35_366, %c0_367], %463 {strides = array<i32>} : memref<182x64xf32, #tpu.memory_space<vmem>>, vector<1x16xf32>,
    %c0_368 = arith.constant 0 : index
    %c0_369 = arith.constant 0 : index
    %465 = tpu.strided_load %arg5[%c0_368, %c0_369] {strides = array<i32: 4, 1>} : memref<182x64xf32, #tpu.memory_space<vmem>>, vector<8x16xf32>
    %c1_370 = arith.constant 1 : index
    %c0_371 = arith.constant 0 : index
    %466 = tpu.strided_load %arg5[%c1_370, %c0_371] {strides = array<i32: 4, 1>} : memref<182x64xf32, #tpu.memory_space<vmem>>, vector<8x16xf32>
    %c2_372 = arith.constant 2 : index
    %c0_373 = arith.constant 0 : index
    %467 = tpu.strided_load %arg5[%c2_372, %c0_373] {strides = array<i32: 4, 1>} : memref<182x64xf32, #tpu.memory_space<vmem>>, vector<8x16xf32>
    %c3_374 = arith.constant 3 : index
    %c0_375 = arith.constant 0 : index
    %468 = tpu.strided_load %arg5[%c3_374, %c0_375] {strides = array<i32: 4, 1>} : memref<182x64xf32, #tpu.memory_space<vmem>>, vector<8x16xf32>
    %c4_376 = arith.constant 4 : index
    %c0_377 = arith.constant 0 : index
    %469 = tpu.strided_load %arg5[%c4_376, %c0_377] {strides = array<i32: 4, 1>} : memref<182x64xf32, #tpu.memory_space<vmem>>, vector<8x16xf32>
    %c5_378 = arith.constant 5 : index
    %c0_379 = arith.constant 0 : index
    %470 = tpu.strided_load %arg5[%c5_378, %c0_379] {strides = array<i32: 4, 1>} : memref<182x64xf32, #tpu.memory_space<vmem>>, vector<8x16xf32>
    %c6_380 = arith.constant 6 : index
    %c0_381 = arith.constant 0 : index
    %471 = tpu.strided_load %arg5[%c6_380, %c0_381] {strides = array<i32: 4, 1>} : memref<182x64xf32, #tpu.memory_space<vmem>>, vector<8x16xf32>
    %c7_382 = arith.constant 7 : index
    %c0_383 = arith.constant 0 : index
    %472 = tpu.strided_load %arg5[%c7_382, %c0_383] {strides = array<i32: 4, 1>} : memref<182x64xf32, #tpu.memory_space<vmem>>, vector<8x16xf32>
    %473 = tpu.concatenate %465, %466, %467, %468, %469, %470, %471, %472 in 1 : vector<8x16xf32>, vector<8x16xf32>, vector<8x16xf32>, vector<8x16xf32>, vector<8x16xf32>, vector<8x16xf32>, vector<8x16xf32>, vector<8x16xf32> -> vector<8x128xf32>
    %cst_384 = arith.constant dense<0.000000e+00> : vector<8x32xf32>
    %474 = tpu.matmul %473, %458, %cst_384 {dimension_numbers = #tpu.dot_dimension_numbers<[1], [0], [0], [1], [0, 0, 1, 1], [], []>} : vector<8x128xf32>, vector<128x32xf32>, vector<8x32xf32> -> vector<8x32xf32>
    %475 = vector.broadcast %459 : vector<1x32xf32> to vector<8x32xf32>
    %476 = arith.addf %474, %475 : vector<8x32xf32>
    %cst_385 = arith.constant 0.000000e+00 : f32
    %477 = vector.broadcast %cst_385 : f32 to vector<8x32xf32>
    %478 = arith.cmpf ogt, %476, %477 : vector<8x32xf32>
    %cst_386 = arith.constant 0.000000e+00 : f32
    %479 = vector.broadcast %cst_386 : f32 to vector<8x32xf32>
    %480 = arith.minimumf %476, %479 : vector<8x32xf32>
    %481 = math.exp %480 : vector<8x32xf32>
    %cst_387 = arith.constant 1.000000e+00 : f32
    %482 = vector.broadcast %cst_387 : f32 to vector<8x32xf32>
    %483 = arith.subf %481, %482 : vector<8x32xf32>
    %484 = arith.select %478, %476, %483 : vector<8x32xi1>, vector<8x32xf32>
    %c848 = arith.constant 848 : index
    %c0_388 = arith.constant 0 : index
    %485 = vector.load %arg2[%c848, %c0_388] : memref<2096x64xf32, #tpu.memory_space<vmem>>, vector<224x32xf32>
    %c29 = arith.constant 29 : index
    %c0_389 = arith.constant 0 : index
    %486 = vector.load %arg3[%c29, %c0_389] : memref<40x64xf32, #tpu.memory_space<vmem>>, vector<1x32xf32>
    %c1072 = arith.constant 1072 : index
    %c0_390 = arith.constant 0 : index
    %487 = vector.load %arg2[%c1072, %c0_390] : memref<2096x64xf32, #tpu.memory_space<vmem>>, vector<32x32xf32>
    %c30 = arith.constant 30 : index
    %c0_391 = arith.constant 0 : index
    %488 = vector.load %arg3[%c30, %c0_391] : memref<40x64xf32, #tpu.memory_space<vmem>>, vector<1x32xf32>
    %cst_392 = arith.constant 0.000000e+00 : f32
    %489 = vector.broadcast %cst_392 : f32 to vector<3x32xf32>
    %c0_393 = arith.constant 0 : index
    %c0_394 = arith.constant 0 : index
    %490 = vector.load %arg5[%c0_393, %c0_394] : memref<182x64xf32, #tpu.memory_space<vmem>>, vector<3x32xf32>
    tpu.vector_store %arg5[%c0_393, %c0_394], %489 {strides = array<i32>} : memref<182x64xf32, #tpu.memory_space<vmem>>, vector<3x32xf32>,
    %c3_395 = arith.constant 3 : index
    %c0_396 = arith.constant 0 : index
    %491 = vector.load %arg5[%c3_395, %c0_396] : memref<182x64xf32, #tpu.memory_space<vmem>>, vector<8x32xf32>
    tpu.vector_store %arg5[%c3_395, %c0_396], %484 {strides = array<i32>} : memref<182x64xf32, #tpu.memory_space<vmem>>, vector<8x32xf32>,
    %cst_397 = arith.constant 0.000000e+00 : f32
    %492 = vector.broadcast %cst_397 : f32 to vector<3x32xf32>
    %c11_398 = arith.constant 11 : index
    %c0_399 = arith.constant 0 : index
    %493 = vector.load %arg5[%c11_398, %c0_399] : memref<182x64xf32, #tpu.memory_space<vmem>>, vector<3x32xf32>
    tpu.vector_store %arg5[%c11_398, %c0_399], %492 {strides = array<i32>} : memref<182x64xf32, #tpu.memory_space<vmem>>, vector<3x32xf32>,
    %c0_400 = arith.constant 0 : index
    %c0_401 = arith.constant 0 : index
    %494 = vector.load %arg5[%c0_400, %c0_401] : memref<182x64xf32, #tpu.memory_space<vmem>>, vector<8x32xf32>
    %c1_402 = arith.constant 1 : index
    %c0_403 = arith.constant 0 : index
    %495 = vector.load %arg5[%c1_402, %c0_403] : memref<182x64xf32, #tpu.memory_space<vmem>>, vector<8x32xf32>
    %c2_404 = arith.constant 2 : index
    %c0_405 = arith.constant 0 : index
    %496 = vector.load %arg5[%c2_404, %c0_405] : memref<182x64xf32, #tpu.memory_space<vmem>>, vector<8x32xf32>
    %c3_406 = arith.constant 3 : index
    %c0_407 = arith.constant 0 : index
    %497 = vector.load %arg5[%c3_406, %c0_407] : memref<182x64xf32, #tpu.memory_space<vmem>>, vector<8x32xf32>
    %c4_408 = arith.constant 4 : index
    %c0_409 = arith.constant 0 : index
    %498 = vector.load %arg5[%c4_408, %c0_409] : memref<182x64xf32, #tpu.memory_space<vmem>>, vector<8x32xf32>
    %c5_410 = arith.constant 5 : index
    %c0_411 = arith.constant 0 : index
    %499 = vector.load %arg5[%c5_410, %c0_411] : memref<182x64xf32, #tpu.memory_space<vmem>>, vector<8x32xf32>
    %c6_412 = arith.constant 6 : index
    %c0_413 = arith.constant 0 : index
    %500 = vector.load %arg5[%c6_412, %c0_413] : memref<182x64xf32, #tpu.memory_space<vmem>>, vector<8x32xf32>
    %501 = tpu.concatenate %494, %495, %496, %497, %498, %499, %500 in 1 : vector<8x32xf32>, vector<8x32xf32>, vector<8x32xf32>, vector<8x32xf32>, vector<8x32xf32>, vector<8x32xf32>, vector<8x32xf32> -> vector<8x224xf32>
    %cst_414 = arith.constant dense<0.000000e+00> : vector<8x32xf32>
    %502 = tpu.matmul %501, %485, %cst_414 {dimension_numbers = #tpu.dot_dimension_numbers<[1], [0], [0], [1], [0, 0, 1, 1], [], []>} : vector<8x224xf32>, vector<224x32xf32>, vector<8x32xf32> -> vector<8x32xf32>
    %503 = vector.broadcast %486 : vector<1x32xf32> to vector<8x32xf32>
    %504 = arith.addf %502, %503 : vector<8x32xf32>
    %cst_415 = arith.constant 0.000000e+00 : f32
    %505 = vector.broadcast %cst_415 : f32 to vector<8x32xf32>
    %506 = arith.cmpf ogt, %504, %505 : vector<8x32xf32>
    %cst_416 = arith.constant 0.000000e+00 : f32
    %507 = vector.broadcast %cst_416 : f32 to vector<8x32xf32>
    %508 = arith.minimumf %504, %507 : vector<8x32xf32>
    %509 = math.exp %508 : vector<8x32xf32>
    %cst_417 = arith.constant 1.000000e+00 : f32
    %510 = vector.broadcast %cst_417 : f32 to vector<8x32xf32>
    %511 = arith.subf %509, %510 : vector<8x32xf32>
    %512 = arith.select %506, %504, %511 : vector<8x32xi1>, vector<8x32xf32>
    %cst_418 = arith.constant dense<0.000000e+00> : vector<8x32xf32>
    %513 = tpu.matmul %512, %487, %cst_418 {dimension_numbers = #tpu.dot_dimension_numbers<[1], [0], [0], [1], [0, 0, 1, 1], [], []>} : vector<8x32xf32>, vector<32x32xf32>, vector<8x32xf32> -> vector<8x32xf32>
    %514 = vector.broadcast %488 : vector<1x32xf32> to vector<8x32xf32>
    %515 = arith.addf %513, %514 : vector<8x32xf32>
    %cst_419 = arith.constant 0.000000e+00 : f32
    %516 = vector.broadcast %cst_419 : f32 to vector<8x32xf32>
    %517 = arith.cmpf ogt, %515, %516 : vector<8x32xf32>
    %cst_420 = arith.constant 0.000000e+00 : f32
    %518 = vector.broadcast %cst_420 : f32 to vector<8x32xf32>
    %519 = arith.minimumf %515, %518 : vector<8x32xf32>
    %520 = math.exp %519 : vector<8x32xf32>
    %cst_421 = arith.constant 1.000000e+00 : f32
    %521 = vector.broadcast %cst_421 : f32 to vector<8x32xf32>
    %522 = arith.subf %520, %521 : vector<8x32xf32>
    %523 = arith.select %517, %515, %522 : vector<8x32xi1>, vector<8x32xf32>
    %524 = arith.addf %484, %523 : vector<8x32xf32>
    %c1104 = arith.constant 1104 : index
    %c0_422 = arith.constant 0 : index
    %525 = vector.load %arg2[%c1104, %c0_422] : memref<2096x64xf32, #tpu.memory_space<vmem>>, vector<224x32xf32>
    %c31 = arith.constant 31 : index
    %c0_423 = arith.constant 0 : index
    %526 = vector.load %arg3[%c31, %c0_423] : memref<40x64xf32, #tpu.memory_space<vmem>>, vector<1x32xf32>
    %c1328 = arith.constant 1328 : index
    %c0_424 = arith.constant 0 : index
    %527 = vector.load %arg2[%c1328, %c0_424] : memref<2096x64xf32, #tpu.memory_space<vmem>>, vector<32x32xf32>
    %c32_425 = arith.constant 32 : index
    %c0_426 = arith.constant 0 : index
    %528 = vector.load %arg3[%c32_425, %c0_426] : memref<40x64xf32, #tpu.memory_space<vmem>>, vector<1x32xf32>
    %cst_427 = arith.constant 0.000000e+00 : f32
    %529 = vector.broadcast %cst_427 : f32 to vector<9x32xf32>
    %c0_428 = arith.constant 0 : index
    %c0_429 = arith.constant 0 : index
    %530 = vector.load %arg5[%c0_428, %c0_429] : memref<182x64xf32, #tpu.memory_space<vmem>>, vector<9x32xf32>
    tpu.vector_store %arg5[%c0_428, %c0_429], %529 {strides = array<i32>} : memref<182x64xf32, #tpu.memory_space<vmem>>, vector<9x32xf32>,
    %c9_430 = arith.constant 9 : index
    %c0_431 = arith.constant 0 : index
    %531 = vector.load %arg5[%c9_430, %c0_431] : memref<182x64xf32, #tpu.memory_space<vmem>>, vector<8x32xf32>
    tpu.vector_store %arg5[%c9_430, %c0_431], %524 {strides = array<i32>} : memref<182x64xf32, #tpu.memory_space<vmem>>, vector<8x32xf32>,
    %cst_432 = arith.constant 0.000000e+00 : f32
    %532 = vector.broadcast %cst_432 : f32 to vector<9x32xf32>
    %c17_433 = arith.constant 17 : index
    %c0_434 = arith.constant 0 : index
    %533 = vector.load %arg5[%c17_433, %c0_434] : memref<182x64xf32, #tpu.memory_space<vmem>>, vector<9x32xf32>
    tpu.vector_store %arg5[%c17_433, %c0_434], %532 {strides = array<i32>} : memref<182x64xf32, #tpu.memory_space<vmem>>, vector<9x32xf32>,
    %c0_435 = arith.constant 0 : index
    %c0_436 = arith.constant 0 : index
    %534 = vector.load %arg5[%c0_435, %c0_436] : memref<182x64xf32, #tpu.memory_space<vmem>>, vector<8x32xf32>
    %c3_437 = arith.constant 3 : index
    %c0_438 = arith.constant 0 : index
    %535 = vector.load %arg5[%c3_437, %c0_438] : memref<182x64xf32, #tpu.memory_space<vmem>>, vector<8x32xf32>
    %c6_439 = arith.constant 6 : index
    %c0_440 = arith.constant 0 : index
    %536 = vector.load %arg5[%c6_439, %c0_440] : memref<182x64xf32, #tpu.memory_space<vmem>>, vector<8x32xf32>
    %c9_441 = arith.constant 9 : index
    %c0_442 = arith.constant 0 : index
    %537 = vector.load %arg5[%c9_441, %c0_442] : memref<182x64xf32, #tpu.memory_space<vmem>>, vector<8x32xf32>
    %c12_443 = arith.constant 12 : index
    %c0_444 = arith.constant 0 : index
    %538 = vector.load %arg5[%c12_443, %c0_444] : memref<182x64xf32, #tpu.memory_space<vmem>>, vector<8x32xf32>
    %c15_445 = arith.constant 15 : index
    %c0_446 = arith.constant 0 : index
    %539 = vector.load %arg5[%c15_445, %c0_446] : memref<182x64xf32, #tpu.memory_space<vmem>>, vector<8x32xf32>
    %c18_447 = arith.constant 18 : index
    %c0_448 = arith.constant 0 : index
    %540 = vector.load %arg5[%c18_447, %c0_448] : memref<182x64xf32, #tpu.memory_space<vmem>>, vector<8x32xf32>
    %541 = tpu.concatenate %534, %535, %536, %537, %538, %539, %540 in 1 : vector<8x32xf32>, vector<8x32xf32>, vector<8x32xf32>, vector<8x32xf32>, vector<8x32xf32>, vector<8x32xf32>, vector<8x32xf32> -> vector<8x224xf32>
    %cst_449 = arith.constant dense<0.000000e+00> : vector<8x32xf32>
    %542 = tpu.matmul %541, %525, %cst_449 {dimension_numbers = #tpu.dot_dimension_numbers<[1], [0], [0], [1], [0, 0, 1, 1], [], []>} : vector<8x224xf32>, vector<224x32xf32>, vector<8x32xf32> -> vector<8x32xf32>
    %543 = vector.broadcast %526 : vector<1x32xf32> to vector<8x32xf32>
    %544 = arith.addf %542, %543 : vector<8x32xf32>
    %cst_450 = arith.constant 0.000000e+00 : f32
    %545 = vector.broadcast %cst_450 : f32 to vector<8x32xf32>
    %546 = arith.cmpf ogt, %544, %545 : vector<8x32xf32>
    %cst_451 = arith.constant 0.000000e+00 : f32
    %547 = vector.broadcast %cst_451 : f32 to vector<8x32xf32>
    %548 = arith.minimumf %544, %547 : vector<8x32xf32>
    %549 = math.exp %548 : vector<8x32xf32>
    %cst_452 = arith.constant 1.000000e+00 : f32
    %550 = vector.broadcast %cst_452 : f32 to vector<8x32xf32>
    %551 = arith.subf %549, %550 : vector<8x32xf32>
    %552 = arith.select %546, %544, %551 : vector<8x32xi1>, vector<8x32xf32>
    %cst_453 = arith.constant dense<0.000000e+00> : vector<8x32xf32>
    %553 = tpu.matmul %552, %527, %cst_453 {dimension_numbers = #tpu.dot_dimension_numbers<[1], [0], [0], [1], [0, 0, 1, 1], [], []>} : vector<8x32xf32>, vector<32x32xf32>, vector<8x32xf32> -> vector<8x32xf32>
    %554 = vector.broadcast %528 : vector<1x32xf32> to vector<8x32xf32>
    %555 = arith.addf %553, %554 : vector<8x32xf32>
    %cst_454 = arith.constant 0.000000e+00 : f32
    %556 = vector.broadcast %cst_454 : f32 to vector<8x32xf32>
    %557 = arith.cmpf ogt, %555, %556 : vector<8x32xf32>
    %cst_455 = arith.constant 0.000000e+00 : f32
    %558 = vector.broadcast %cst_455 : f32 to vector<8x32xf32>
    %559 = arith.minimumf %555, %558 : vector<8x32xf32>
    %560 = math.exp %559 : vector<8x32xf32>
    %cst_456 = arith.constant 1.000000e+00 : f32
    %561 = vector.broadcast %cst_456 : f32 to vector<8x32xf32>
    %562 = arith.subf %560, %561 : vector<8x32xf32>
    %563 = arith.select %557, %555, %562 : vector<8x32xi1>, vector<8x32xf32>
    %564 = arith.addf %524, %563 : vector<8x32xf32>
    %c1360 = arith.constant 1360 : index
    %c0_457 = arith.constant 0 : index
    %565 = vector.load %arg2[%c1360, %c0_457] : memref<2096x64xf32, #tpu.memory_space<vmem>>, vector<224x32xf32>
    %c33 = arith.constant 33 : index
    %c0_458 = arith.constant 0 : index
    %566 = vector.load %arg3[%c33, %c0_458] : memref<40x64xf32, #tpu.memory_space<vmem>>, vector<1x32xf32>
    %c1584 = arith.constant 1584 : index
    %c0_459 = arith.constant 0 : index
    %567 = vector.load %arg2[%c1584, %c0_459] : memref<2096x64xf32, #tpu.memory_space<vmem>>, vector<32x32xf32>
    %c34 = arith.constant 34 : index
    %c0_460 = arith.constant 0 : index
    %568 = vector.load %arg3[%c34, %c0_460] : memref<40x64xf32, #tpu.memory_space<vmem>>, vector<1x32xf32>
    %cst_461 = arith.constant 0.000000e+00 : f32
    %569 = vector.broadcast %cst_461 : f32 to vector<27x32xf32>
    %c0_462 = arith.constant 0 : index
    %c0_463 = arith.constant 0 : index
    %570 = vector.load %arg5[%c0_462, %c0_463] : memref<182x64xf32, #tpu.memory_space<vmem>>, vector<27x32xf32>
    tpu.vector_store %arg5[%c0_462, %c0_463], %569 {strides = array<i32>} : memref<182x64xf32, #tpu.memory_space<vmem>>, vector<27x32xf32>,
    %c27_464 = arith.constant 27 : index
    %c0_465 = arith.constant 0 : index
    %571 = vector.load %arg5[%c27_464, %c0_465] : memref<182x64xf32, #tpu.memory_space<vmem>>, vector<8x32xf32>
    tpu.vector_store %arg5[%c27_464, %c0_465], %564 {strides = array<i32>} : memref<182x64xf32, #tpu.memory_space<vmem>>, vector<8x32xf32>,
    %cst_466 = arith.constant 0.000000e+00 : f32
    %572 = vector.broadcast %cst_466 : f32 to vector<27x32xf32>
    %c35_467 = arith.constant 35 : index
    %c0_468 = arith.constant 0 : index
    %573 = vector.load %arg5[%c35_467, %c0_468] : memref<182x64xf32, #tpu.memory_space<vmem>>, vector<27x32xf32>
    tpu.vector_store %arg5[%c35_467, %c0_468], %572 {strides = array<i32>} : memref<182x64xf32, #tpu.memory_space<vmem>>, vector<27x32xf32>,
    %c0_469 = arith.constant 0 : index
    %c0_470 = arith.constant 0 : index
    %574 = vector.load %arg5[%c0_469, %c0_470] : memref<182x64xf32, #tpu.memory_space<vmem>>, vector<8x32xf32>
    %c9_471 = arith.constant 9 : index
    %c0_472 = arith.constant 0 : index
    %575 = vector.load %arg5[%c9_471, %c0_472] : memref<182x64xf32, #tpu.memory_space<vmem>>, vector<8x32xf32>
    %c18_473 = arith.constant 18 : index
    %c0_474 = arith.constant 0 : index
    %576 = vector.load %arg5[%c18_473, %c0_474] : memref<182x64xf32, #tpu.memory_space<vmem>>, vector<8x32xf32>
    %c27_475 = arith.constant 27 : index
    %c0_476 = arith.constant 0 : index
    %577 = vector.load %arg5[%c27_475, %c0_476] : memref<182x64xf32, #tpu.memory_space<vmem>>, vector<8x32xf32>
    %c36_477 = arith.constant 36 : index
    %c0_478 = arith.constant 0 : index
    %578 = vector.load %arg5[%c36_477, %c0_478] : memref<182x64xf32, #tpu.memory_space<vmem>>, vector<8x32xf32>
    %c45_479 = arith.constant 45 : index
    %c0_480 = arith.constant 0 : index
    %579 = vector.load %arg5[%c45_479, %c0_480] : memref<182x64xf32, #tpu.memory_space<vmem>>, vector<8x32xf32>
    %c54_481 = arith.constant 54 : index
    %c0_482 = arith.constant 0 : index
    %580 = vector.load %arg5[%c54_481, %c0_482] : memref<182x64xf32, #tpu.memory_space<vmem>>, vector<8x32xf32>
    %581 = tpu.concatenate %574, %575, %576, %577, %578, %579, %580 in 1 : vector<8x32xf32>, vector<8x32xf32>, vector<8x32xf32>, vector<8x32xf32>, vector<8x32xf32>, vector<8x32xf32>, vector<8x32xf32> -> vector<8x224xf32>
    %cst_483 = arith.constant dense<0.000000e+00> : vector<8x32xf32>
    %582 = tpu.matmul %581, %565, %cst_483 {dimension_numbers = #tpu.dot_dimension_numbers<[1], [0], [0], [1], [0, 0, 1, 1], [], []>} : vector<8x224xf32>, vector<224x32xf32>, vector<8x32xf32> -> vector<8x32xf32>
    %583 = vector.broadcast %566 : vector<1x32xf32> to vector<8x32xf32>
    %584 = arith.addf %582, %583 : vector<8x32xf32>
    %cst_484 = arith.constant 0.000000e+00 : f32
    %585 = vector.broadcast %cst_484 : f32 to vector<8x32xf32>
    %586 = arith.cmpf ogt, %584, %585 : vector<8x32xf32>
    %cst_485 = arith.constant 0.000000e+00 : f32
    %587 = vector.broadcast %cst_485 : f32 to vector<8x32xf32>
    %588 = arith.minimumf %584, %587 : vector<8x32xf32>
    %589 = math.exp %588 : vector<8x32xf32>
    %cst_486 = arith.constant 1.000000e+00 : f32
    %590 = vector.broadcast %cst_486 : f32 to vector<8x32xf32>
    %591 = arith.subf %589, %590 : vector<8x32xf32>
    %592 = arith.select %586, %584, %591 : vector<8x32xi1>, vector<8x32xf32>
    %cst_487 = arith.constant dense<0.000000e+00> : vector<8x32xf32>
    %593 = tpu.matmul %592, %567, %cst_487 {dimension_numbers = #tpu.dot_dimension_numbers<[1], [0], [0], [1], [0, 0, 1, 1], [], []>} : vector<8x32xf32>, vector<32x32xf32>, vector<8x32xf32> -> vector<8x32xf32>
    %594 = vector.broadcast %568 : vector<1x32xf32> to vector<8x32xf32>
    %595 = arith.addf %593, %594 : vector<8x32xf32>
    %cst_488 = arith.constant 0.000000e+00 : f32
    %596 = vector.broadcast %cst_488 : f32 to vector<8x32xf32>
    %597 = arith.cmpf ogt, %595, %596 : vector<8x32xf32>
    %cst_489 = arith.constant 0.000000e+00 : f32
    %598 = vector.broadcast %cst_489 : f32 to vector<8x32xf32>
    %599 = arith.minimumf %595, %598 : vector<8x32xf32>
    %600 = math.exp %599 : vector<8x32xf32>
    %cst_490 = arith.constant 1.000000e+00 : f32
    %601 = vector.broadcast %cst_490 : f32 to vector<8x32xf32>
    %602 = arith.subf %600, %601 : vector<8x32xf32>
    %603 = arith.select %597, %595, %602 : vector<8x32xi1>, vector<8x32xf32>
    %604 = arith.addf %564, %603 : vector<8x32xf32>
    %c1616 = arith.constant 1616 : index
    %c0_491 = arith.constant 0 : index
    %605 = vector.load %arg2[%c1616, %c0_491] : memref<2096x64xf32, #tpu.memory_space<vmem>>, vector<256x64xf32>
    %c35_492 = arith.constant 35 : index
    %c0_493 = arith.constant 0 : index
    %606 = vector.load %arg3[%c35_492, %c0_493] : memref<40x64xf32, #tpu.memory_space<vmem>>, vector<1x64xf32>
    %cst_494 = arith.constant 0.000000e+00 : f32
    %607 = vector.broadcast %cst_494 : f32 to vector<3x32xf32>
    %c0_495 = arith.constant 0 : index
    %c0_496 = arith.constant 0 : index
    %608 = vector.load %arg5[%c0_495, %c0_496] : memref<182x64xf32, #tpu.memory_space<vmem>>, vector<3x32xf32>
    tpu.vector_store %arg5[%c0_495, %c0_496], %607 {strides = array<i32>} : memref<182x64xf32, #tpu.memory_space<vmem>>, vector<3x32xf32>,
    %c3_497 = arith.constant 3 : index
    %c0_498 = arith.constant 0 : index
    %609 = vector.load %arg5[%c3_497, %c0_498] : memref<182x64xf32, #tpu.memory_space<vmem>>, vector<8x32xf32>
    tpu.vector_store %arg5[%c3_497, %c0_498], %604 {strides = array<i32>} : memref<182x64xf32, #tpu.memory_space<vmem>>, vector<8x32xf32>,
    %cst_499 = arith.constant 0.000000e+00 : f32
    %610 = vector.broadcast %cst_499 : f32 to vector<1x32xf32>
    %c11_500 = arith.constant 11 : index
    %c0_501 = arith.constant 0 : index
    %611 = vector.load %arg5[%c11_500, %c0_501] : memref<182x64xf32, #tpu.memory_space<vmem>>, vector<1x32xf32>
    tpu.vector_store %arg5[%c11_500, %c0_501], %610 {strides = array<i32>} : memref<182x64xf32, #tpu.memory_space<vmem>>, vector<1x32xf32>,
    %c0_502 = arith.constant 0 : index
    %c0_503 = arith.constant 0 : index
    %612 = tpu.strided_load %arg5[%c0_502, %c0_503] {strides = array<i32: 4, 1>} : memref<182x64xf32, #tpu.memory_space<vmem>>, vector<2x32xf32>
    %c1_504 = arith.constant 1 : index
    %c0_505 = arith.constant 0 : index
    %613 = tpu.strided_load %arg5[%c1_504, %c0_505] {strides = array<i32: 4, 1>} : memref<182x64xf32, #tpu.memory_space<vmem>>, vector<2x32xf32>
    %c2_506 = arith.constant 2 : index
    %c0_507 = arith.constant 0 : index
    %614 = tpu.strided_load %arg5[%c2_506, %c0_507] {strides = array<i32: 4, 1>} : memref<182x64xf32, #tpu.memory_space<vmem>>, vector<2x32xf32>
    %c3_508 = arith.constant 3 : index
    %c0_509 = arith.constant 0 : index
    %615 = tpu.strided_load %arg5[%c3_508, %c0_509] {strides = array<i32: 4, 1>} : memref<182x64xf32, #tpu.memory_space<vmem>>, vector<2x32xf32>
    %c4_510 = arith.constant 4 : index
    %c0_511 = arith.constant 0 : index
    %616 = tpu.strided_load %arg5[%c4_510, %c0_511] {strides = array<i32: 4, 1>} : memref<182x64xf32, #tpu.memory_space<vmem>>, vector<2x32xf32>
    %c5_512 = arith.constant 5 : index
    %c0_513 = arith.constant 0 : index
    %617 = tpu.strided_load %arg5[%c5_512, %c0_513] {strides = array<i32: 4, 1>} : memref<182x64xf32, #tpu.memory_space<vmem>>, vector<2x32xf32>
    %c6_514 = arith.constant 6 : index
    %c0_515 = arith.constant 0 : index
    %618 = tpu.strided_load %arg5[%c6_514, %c0_515] {strides = array<i32: 4, 1>} : memref<182x64xf32, #tpu.memory_space<vmem>>, vector<2x32xf32>
    %c7_516 = arith.constant 7 : index
    %c0_517 = arith.constant 0 : index
    %619 = tpu.strided_load %arg5[%c7_516, %c0_517] {strides = array<i32: 4, 1>} : memref<182x64xf32, #tpu.memory_space<vmem>>, vector<2x32xf32>
    %620 = tpu.concatenate %612, %613, %614, %615, %616, %617, %618, %619 in 1 : vector<2x32xf32>, vector<2x32xf32>, vector<2x32xf32>, vector<2x32xf32>, vector<2x32xf32>, vector<2x32xf32>, vector<2x32xf32>, vector<2x32xf32> -> vector<2x256xf32>
    %cst_518 = arith.constant dense<0.000000e+00> : vector<2x64xf32>
    %621 = tpu.matmul %620, %605, %cst_518 {dimension_numbers = #tpu.dot_dimension_numbers<[1], [0], [0], [1], [0, 0, 1, 1], [], []>} : vector<2x256xf32>, vector<256x64xf32>, vector<2x64xf32> -> vector<2x64xf32>
    %622 = vector.broadcast %606 : vector<1x64xf32> to vector<2x64xf32>
    %623 = arith.addf %621, %622 : vector<2x64xf32>
    %cst_519 = arith.constant 0.000000e+00 : f32
    %624 = vector.broadcast %cst_519 : f32 to vector<2x64xf32>
    %625 = arith.cmpf ogt, %623, %624 : vector<2x64xf32>
    %cst_520 = arith.constant 0.000000e+00 : f32
    %626 = vector.broadcast %cst_520 : f32 to vector<2x64xf32>
    %627 = arith.minimumf %623, %626 : vector<2x64xf32>
    %628 = math.exp %627 : vector<2x64xf32>
    %cst_521 = arith.constant 1.000000e+00 : f32
    %629 = vector.broadcast %cst_521 : f32 to vector<2x64xf32>
    %630 = arith.subf %628, %629 : vector<2x64xf32>
    %631 = arith.select %625, %623, %630 : vector<2x64xi1>, vector<2x64xf32>
    %c1872 = arith.constant 1872 : index
    %c0_522 = arith.constant 0 : index
    %632 = vector.load %arg2[%c1872, %c0_522] : memref<2096x64xf32, #tpu.memory_space<vmem>>, vector<192x32xf32>
    %c36_523 = arith.constant 36 : index
    %c0_524 = arith.constant 0 : index
    %633 = vector.load %arg3[%c36_523, %c0_524] : memref<40x64xf32, #tpu.memory_space<vmem>>, vector<1x32xf32>
    %cst_525 = arith.constant 0.000000e+00 : f32
    %634 = vector.broadcast %cst_525 : f32 to vector<1x64xf32>
    %c0_526 = arith.constant 0 : index
    %c0_527 = arith.constant 0 : index
    %635 = vector.load %arg5[%c0_526, %c0_527] : memref<182x64xf32, #tpu.memory_space<vmem>>, vector<1x64xf32>
    tpu.vector_store %arg5[%c0_526, %c0_527], %634 {strides = array<i32>} : memref<182x64xf32, #tpu.memory_space<vmem>>, vector<1x64xf32>,
    %c1_528 = arith.constant 1 : index
    %c0_529 = arith.constant 0 : index
    %636 = vector.load %arg5[%c1_528, %c0_529] : memref<182x64xf32, #tpu.memory_space<vmem>>, vector<2x64xf32>
    tpu.vector_store %arg5[%c1_528, %c0_529], %631 {strides = array<i32>} : memref<182x64xf32, #tpu.memory_space<vmem>>, vector<2x64xf32>,
    %cst_530 = arith.constant 0.000000e+00 : f32
    %637 = vector.broadcast %cst_530 : f32 to vector<1x64xf32>
    %c3_531 = arith.constant 3 : index
    %c0_532 = arith.constant 0 : index
    %638 = vector.load %arg5[%c3_531, %c0_532] : memref<182x64xf32, #tpu.memory_space<vmem>>, vector<1x64xf32>
    tpu.vector_store %arg5[%c3_531, %c0_532], %637 {strides = array<i32>} : memref<182x64xf32, #tpu.memory_space<vmem>>, vector<1x64xf32>,
    %c0_533 = arith.constant 0 : index
    %c0_534 = arith.constant 0 : index
    %639 = vector.load %arg5[%c0_533, %c0_534] : memref<182x64xf32, #tpu.memory_space<vmem>>, vector<2x64xf32>
    %c1_535 = arith.constant 1 : index
    %c0_536 = arith.constant 0 : index
    %640 = vector.load %arg5[%c1_535, %c0_536] : memref<182x64xf32, #tpu.memory_space<vmem>>, vector<2x64xf32>
    %c2_537 = arith.constant 2 : index
    %c0_538 = arith.constant 0 : index
    %641 = vector.load %arg5[%c2_537, %c0_538] : memref<182x64xf32, #tpu.memory_space<vmem>>, vector<2x64xf32>
    %642 = tpu.concatenate %639, %640, %641 in 1 : vector<2x64xf32>, vector<2x64xf32>, vector<2x64xf32> -> vector<2x192xf32>
    %cst_539 = arith.constant dense<0.000000e+00> : vector<2x32xf32>
    %643 = tpu.matmul %642, %632, %cst_539 {dimension_numbers = #tpu.dot_dimension_numbers<[1], [0], [0], [1], [0, 0, 1, 1], [], []>} : vector<2x192xf32>, vector<192x32xf32>, vector<2x32xf32> -> vector<2x32xf32>
    %644 = vector.broadcast %633 : vector<1x32xf32> to vector<2x32xf32>
    %645 = arith.addf %643, %644 : vector<2x32xf32>
    %c2064 = arith.constant 2064 : index
    %c0_540 = arith.constant 0 : index
    %646 = vector.load %arg2[%c2064, %c0_540] : memref<2096x64xf32, #tpu.memory_space<vmem>>, vector<32x32xf32>
    %c37 = arith.constant 37 : index
    %c0_541 = arith.constant 0 : index
    %647 = vector.load %arg3[%c37, %c0_541] : memref<40x64xf32, #tpu.memory_space<vmem>>, vector<1x32xf32>
    %c38 = arith.constant 38 : index
    %c0_542 = arith.constant 0 : index
    %648 = vector.load %arg3[%c38, %c0_542] : memref<40x64xf32, #tpu.memory_space<vmem>>, vector<1x32xf32>
    %c39 = arith.constant 39 : index
    %c0_543 = arith.constant 0 : index
    %649 = vector.load %arg3[%c39, %c0_543] : memref<40x64xf32, #tpu.memory_space<vmem>>, vector<1x1xf32>
    %cst_544 = arith.constant dense<0.000000e+00> : vector<2x32xf32>
    %650 = tpu.matmul %645, %646, %cst_544 {dimension_numbers = #tpu.dot_dimension_numbers<[1], [0], [0], [1], [0, 0, 1, 1], [], []>} : vector<2x32xf32>, vector<32x32xf32>, vector<2x32xf32> -> vector<2x32xf32>
    %651 = vector.broadcast %647 : vector<1x32xf32> to vector<2x32xf32>
    %652 = arith.addf %650, %651 : vector<2x32xf32>
    %653 = math.tanh %652 : vector<2x32xf32>
    %654 = vector.broadcast %648 : vector<1x32xf32> to vector<2x32xf32>
    %655 = arith.mulf %653, %654 : vector<2x32xf32>
    %cst_545 = arith.constant dense<0.000000e+00> : vector<2xf32>
    %656 = vector.multi_reduction <add>, %655, %cst_545 [1] : vector<2x32xf32> to vector<2xf32>
    %657 = vector.shape_cast %656 : vector<2xf32> to vector<2x1xf32>
    %658 = vector.broadcast %649 : vector<1x1xf32> to vector<2x1xf32>
    %659 = arith.addf %657, %658 : vector<2x1xf32>
    %cst_546 = arith.constant dense<0xFF800000> : vector<1xf32>
    %660 = vector.multi_reduction <maximumf>, %659, %cst_546 [0] : vector<2x1xf32> to vector<1xf32>
    %661 = vector.shape_cast %660 : vector<1xf32> to vector<1x1xf32>
    %662 = vector.broadcast %661 : vector<1x1xf32> to vector<2x1xf32>
    %663 = arith.subf %659, %662 : vector<2x1xf32>
    %664 = math.exp %663 : vector<2x1xf32>
    %cst_547 = arith.constant dense<0.000000e+00> : vector<1xf32>
    %665 = vector.multi_reduction <add>, %664, %cst_547 [0] : vector<2x1xf32> to vector<1xf32>
    %666 = vector.shape_cast %665 : vector<1xf32> to vector<1x1xf32>
    %667 = vector.broadcast %666 : vector<1x1xf32> to vector<2x1xf32>
    %668 = arith.divf %664, %667 : vector<2x1xf32>
    %669 = vector.broadcast %668 : vector<2x1xf32> to vector<2x32xf32>
    %670 = arith.mulf %645, %669 : vector<2x32xf32>
    %cst_548 = arith.constant dense<0.000000e+00> : vector<32xf32>
    %671 = vector.multi_reduction <add>, %670, %cst_548 [0] : vector<2x32xf32> to vector<32xf32>
    %672 = vector.shape_cast %671 : vector<32xf32> to vector<1x32xf32>
    %c0_549 = arith.constant 0 : index
    %c0_550 = arith.constant 0 : index
    %c0_551 = arith.constant 0 : index
    %673 = vector.load %arg4[%c0_549, %c0_550, %c0_551] : memref<1x1x32xf32, #tpu.memory_space<vmem>>, vector<1x1x32xf32>
    %674 = vector.shape_cast %673 : vector<1x1x32xf32> to vector<1x32xf32>
    %675 = vector.shape_cast %672 : vector<1x32xf32> to vector<1x1x32xf32>
    tpu.vector_store %arg4[%c0_549, %c0_550, %c0_551], %675 {strides = array<i32>} : memref<1x1x32xf32, #tpu.memory_space<vmem>>, vector<1x1x32xf32>,
    return
  }
  func.func @transform_0(%arg0: i32) -> (i32, i32, i32) {
    %c0_i32 = arith.constant 0 : i32
    %c0_i32_0 = arith.constant 0 : i32
    %c0_i32_1 = arith.constant 0 : i32
    return %arg0, %c0_i32, %c0_i32_0 : i32, i32, i32
  }
  func.func @transform_1(%arg0: i32) -> (i32, i32) {
    %c0_i32 = arith.constant 0 : i32
    %c0_i32_0 = arith.constant 0 : i32
    %c0_i32_1 = arith.constant 0 : i32
    return %c0_i32, %c0_i32_0 : i32, i32
  }
  func.func @transform_2(%arg0: i32) -> (i32, i32) {
    %c0_i32 = arith.constant 0 : i32
    %c0_i32_0 = arith.constant 0 : i32
    %c0_i32_1 = arith.constant 0 : i32
    return %c0_i32, %c0_i32_0 : i32, i32
  }
  func.func @transform_3(%arg0: i32) -> (i32, i32, i32) {
    %c0_i32 = arith.constant 0 : i32
    %c0_i32_0 = arith.constant 0 : i32
    %c0_i32_1 = arith.constant 0 : i32
    return %arg0, %c0_i32, %c0_i32_0 : i32, i32, i32
  }
}

</mosaic_0001>

<llo_original>
// kernel: tpu_custom_call.1
$region0: #{tpu_custom_call.1}
  #allocation0 [shape = 'u32[]', space=smem, size = 0x4, offset = 0x4, fixed_abs, tag = 'smem constant byte address 0x4 - core index']
  #allocation1 [shape = 'u32[144,128]{1,0:T(1,128)}', space=vmem, size = 0x12000, scoped, tag = 'internal scratch']
  #allocation2 [shape = 'f32[182,64]{1,0:T(8,128)}', space=vmem, size = 0x17000, scoped, tag = 'scratch operand']
  %s0 = inlined_call_operand.vmem [shape: f32[2,128,1], index: 0, kind: input, shape index: {}]
  %s1 = inlined_call_operand.vmem [shape: f32[2096,64], index: 1, kind: input, shape index: {}]
  %s2 = inlined_call_operand.vmem [shape: f32[40,64], index: 2, kind: input, shape index: {}]
  %s3 = inlined_call_operand.hbm [shape: f32[2,1,32], index: 3, kind: output, shape index: {}]
  %s4 = sld [smem:[#allocation0]]
  $region45: #{tpu_custom_call.1} parent=0
    _
  %s6 = ssub.s32 1, %s4
  %s7 = scalar_select 0, %s6, %s4
  $region1: #{tpu_custom_call.1} parent=0
    #allocation3 [shape = 'u8[1024]{0}', space=vmem, size = 0x400, scoped, tag = 'output window, operand 0']
    #allocation4 [shape = 's32[2]{0}', space=sflag, size = 0x8, scoped, tag = 'scoped memory for tpu_custom_call.1']
    %8 = vsyncpa [#allocation4], 0
    %s9 = scalar_lea.sflag [#allocation4], 1
    %10 = vsyncpa %s9, 0
    loop: start=0, step=1, limit=4
    $region2: #{tpu_custom_call.1} parent=1 // loop_pre_header
      _
    $region3: #{tpu_custom_call.1} parent=1 // loop_header
      %s12 = sphi 0, %s16
      %p13 = scmp.ge.s32.totalorder %s12, 4
      %s22 = sphi 0, %s24
      %s25 = sphi 0, %s22
      %s26 = sphi 0, %s25
      %s42 = sphi 0, %s26
      %s46 = sphi 0, %s46
      %s48 = sphi 0, %s46
      %s49 = sphi 0, %s48
      %s63 = sphi 0, %s49
      %s67 = sphi 0, %s67
      %s69 = sphi 0, %s67
      %s70 = sphi 0, %s69
      %s84 = sphi 0, %s70
      %s90 = sphi 0, %s92
      %s93 = sphi 0, %s90
      %s94 = sphi 0, %s93
      %s110 = sphi 0, %s94
    $region4: #{tpu_custom_call.1} parent=1 // loop_header_branch
      %15 = sbr.rel (%p13) target = $region8
    $region5: #{tpu_custom_call.1} parent=1 // loop_body
      %s17 = ssub.s32 %s12, 1
      %s18 = ssub.s32 %s12, 2
      %s19 = sadd.s32 %s12, 1
      %s20 = ssub.s32 %s12, %s19
      %p21 = scmp.eq.s32.totalorder %s20, 0
      %s23 = sadd.s32 %s22, 1
      %s24 = scalar_select %p21, %s22, %s23
      %p27 = pneg %p21
      %p28 = scmp.eq.s32.totalorder %s12, 1
      %p29 = por %p27, %p28
      %p30 = scmp.ne.s32.totalorder %s22, %s25
      %p31 = scmp.eq.s32.totalorder %s12, 0
      %p32 = por %p30, %p31
      %p33 = scmp.ne.s32.totalorder %s22, %s25
      %p34 = scmp.eq.s32.totalorder %s17, 1
      %p35 = por %p33, %p34
      %p36 = scmp.ne.s32.totalorder %s25, %s26
      %p37 = scmp.eq.s32.totalorder %s17, 0
      %p38 = por %p36, %p37
      %p39 = scmp.ne.s32.totalorder %s25, %s26
      %p40 = scmp.eq.s32.totalorder %s18, 1
      %p41 = por %p39, %p40
      %p43 = scmp.ne.s32.totalorder %s26, %s42
      %p44 = scmp.eq.s32.totalorder %s18, 0
      %p45 = por %p43, %p44
      %s47 = sadd.s32 %s46, 1
      %p50 = scmp.eq.s32.totalorder %s12, 1
      %p51 = scmp.ne.s32.totalorder %s46, %s48
      %p52 = scmp.eq.s32.totalorder %s12, 0
      %p53 = por %p51, %p52
      %p54 = scmp.ne.s32.totalorder %s46, %s48
      %p55 = scmp.eq.s32.totalorder %s17, 1
      %p56 = por %p54, %p55
      %p57 = scmp.ne.s32.totalorder %s48, %s49
      %p58 = scmp.eq.s32.totalorder %s17, 0
      %p59 = por %p57, %p58
      %p60 = scmp.ne.s32.totalorder %s48, %s49
      %p61 = scmp.eq.s32.totalorder %s18, 1
      %p62 = por %p60, %p61
      %p64 = scmp.ne.s32.totalorder %s49, %s63
      %p65 = scmp.eq.s32.totalorder %s18, 0
      %p66 = por %p64, %p65
      %s68 = sadd.s32 %s67, 1
      %p71 = scmp.eq.s32.totalorder %s12, 1
      %p72 = scmp.ne.s32.totalorder %s67, %s69
      %p73 = scmp.eq.s32.totalorder %s12, 0
      %p74 = por %p72, %p73
      %p75 = scmp.ne.s32.totalorder %s67, %s69
      %p76 = scmp.eq.s32.totalorder %s17, 1
      %p77 = por %p75, %p76
      %p78 = scmp.ne.s32.totalorder %s69, %s70
      %p79 = scmp.eq.s32.totalorder %s17, 0
      %p80 = por %p78, %p79
      %p81 = scmp.ne.s32.totalorder %s69, %s70
      %p82 = scmp.eq.s32.totalorder %s18, 1
      %p83 = por %p81, %p82
      %p85 = scmp.ne.s32.totalorder %s70, %s84
      %p86 = scmp.eq.s32.totalorder %s18, 0
      %p87 = por %p85, %p86
      %s88 = ssub.s32 %s12, %s19
      %p89 = scmp.eq.s32.totalorder %s88, 0
      %s91 = sadd.s32 %s90, 1
      %s92 = scalar_select %p89, %s90, %s91
      %p95 = pneg %p89
      %p96 = scmp.eq.s32.totalorder %s12, 1
      %p97 = por %p95, %p96
      %p98 = scmp.ne.s32.totalorder %s90, %s93
      %p99 = scmp.eq.s32.totalorder %s12, 0
      %p100 = por %p98, %p99
      %p101 = scmp.ne.s32.totalorder %s90, %s93
      %p102 = scmp.eq.s32.totalorder %s17, 1
      %p103 = por %p101, %p102
      %p104 = scmp.ne.s32.totalorder %s93, %s94
      %p105 = scmp.eq.s32.totalorder %s17, 0
      %p106 = por %p104, %p105
      %p107 = scmp.ne.s32.totalorder %s93, %s94
      %p108 = scmp.eq.s32.totalorder %s18, 1
      %p109 = por %p107, %p108
      %p111 = scmp.ne.s32.totalorder %s94, %s110
      %p112 = scmp.eq.s32.totalorder %s18, 0
      %p113 = por %p111, %p112
      %p114 = scmp.le.s32.totalorder 1, %s12
      %p115 = scmp.lt.s32.totalorder %s12, 3
      %p116 = pnand %p114, %p115
      %p117 = pneg %p116
      // Predicated region
      $region9: #{tpu_custom_call.1} parent=5 // pred_check
        _
      $region10: #{tpu_custom_call.1} parent=5 // pred_check_branch
        %119 = sbr.rel (%p116) target = $region12
      $region11: #{tpu_custom_call.1} parent=5 // pred_region
        %s120 = ssub.s32 %s12, 1
        // Predicated region
        $region13: #{tpu_custom_call.1} parent=11 // pred_check
          %p121 = pneg %p59
        $region14: #{tpu_custom_call.1} parent=11 // pred_check_branch
          %123 = sbr.rel (%p121) target = $region16
        $region15: #{tpu_custom_call.1} parent=11 // pred_region
          _
        $region16: #{tpu_custom_call.1} parent=11 // pred_fallthru
          _
        // Predicated region
        $region17: #{tpu_custom_call.1} parent=11 // pred_check
          %p124 = pneg %p80
        $region18: #{tpu_custom_call.1} parent=11 // pred_check_branch
          %126 = sbr.rel (%p124) target = $region20
        $region19: #{tpu_custom_call.1} parent=11 // pred_region
          _
        $region20: #{tpu_custom_call.1} parent=11 // pred_fallthru
          _
      $region12: #{tpu_custom_call.1} parent=5 // pred_fallthru
        _
      %p127 = scmp.lt.s32.totalorder %s12, 2
      // Predicated region
      $region21: #{tpu_custom_call.1} parent=5 // pred_check
        %p128 = pneg %p127
      $region22: #{tpu_custom_call.1} parent=5 // pred_check_branch
        %130 = sbr.rel (%p128) target = $region24
      $region23: #{tpu_custom_call.1} parent=5 // pred_region
        // Predicated region
        $region25: #{tpu_custom_call.1} parent=23 // pred_check
          %p131 = pneg %p32
        $region26: #{tpu_custom_call.1} parent=23 // pred_check_branch
          %133 = sbr.rel (%p131) target = $region28
        $region27: #{tpu_custom_call.1} parent=23 // pred_region
          %p134 = scmp.lt.s32.totalorder %s12, 1
          %s135 = scalar_select %p134, %s12, 1
          %s136 = smul.addr %s135, 16
          %s137 = smul.addr %s136, 8
          %s138 = scalar_lea.vmem %s0, %s137
        $region28: #{tpu_custom_call.1} parent=23 // pred_fallthru
          _
      $region24: #{tpu_custom_call.1} parent=5 // pred_fallthru
        _
      %p139 = scmp.le.s32.totalorder 1, %s12
      %p140 = scmp.lt.s32.totalorder %s12, 3
      %p141 = pnand %p139, %p140
      %p142 = pneg %p141
      // Predicated region
      $region29: #{tpu_custom_call.1} parent=5 // pred_check
        _
      $region30: #{tpu_custom_call.1} parent=5 // pred_check_branch
        %144 = sbr.rel (%p141) target = $region32
      $region31: #{tpu_custom_call.1} parent=5 // pred_region
        %s145 = ssub.s32 %s12, 1
        %p146 = scmp.lt.s32.totalorder %s17, 1
        %s147 = scalar_select %p146, %s17, 1
        %s148 = smul.addr %s147, 16
        %s149 = smul.addr %s148, 8
        %s150 = scalar_lea.vmem %s0, %s149
        %p151 = pneg %p38
        %p152 = pneg %p35
        %p153 = pneg %p59
        %p154 = pneg %p56
        %p155 = pneg %p80
        %p156 = pneg %p77
        %p157 = pneg %p106
        %p158 = pneg %p103
        %s159 = sand.u32 %s93, 1
        %s160 = scalar_lea.sflag [#allocation4], %s159
        %s161 = sand.u32 %s93, 1
        %s162 = scalar_lea.vmem [#allocation3], %s161
        %p163 = scmp.lt.s32.totalorder %s17, 1
        %s164 = scalar_select %p163, %s17, 1
        %s165 = smul.addr %s164, 16
        %s166 = smul.addr %s165, 8
        %s167 = scalar_lea.vmem %s0, %s166
        %v168 = vld [vmem:[%s167] sm:$0xff]
        %v169 = vld [vmem:[%s167 + $0x8] sm:$0xff]
        %v170 = vld [vmem:[%s167 + $0x10] sm:$0xff]
        %v171 = vld [vmem:[%s167 + $0x18] sm:$0xff]
        %v172 = vld [vmem:[%s167 + $0x20] sm:$0xff]
        %v173 = vld [vmem:[%s167 + $0x28] sm:$0xff]
        %v174 = vld [vmem:[%s167 + $0x30] sm:$0xff]
        %v175 = vld [vmem:[%s167 + $0x38] sm:$0xff]
        %v176 = vld [vmem:[%s167 + $0x40] sm:$0xff]
        %v177 = vld [vmem:[%s167 + $0x48] sm:$0xff]
        %v178 = vld [vmem:[%s167 + $0x50] sm:$0xff]
        %v179 = vld [vmem:[%s167 + $0x58] sm:$0xff]
        %v180 = vld [vmem:[%s167 + $0x60] sm:$0xff]
        %v181 = vld [vmem:[%s167 + $0x68] sm:$0xff]
        %v182 = vld [vmem:[%s167 + $0x70] sm:$0xff]
        %v183 = vld [vmem:[%s167 + $0x78] sm:$0xff]
        %v184 = vld [vmem:[%s2] sm:$0x7f]
        %v185 = vld [vmem:[%s2 + $0x7] sm:$0x1]
        %vm186 = vcmask 2048
        %187 = vst.msk [vmem:[#allocation2] sm:$0x7] %vm186, 0.0
        %vm188 = vcmask 7168
        %189 = vst.msk [vmem:[#allocation2 + $0x3] sm:$0xff] %vm188, %v168
        %190 = vst.msk [vmem:[#allocation2 + $0xb] sm:$0xff] %vm188, %v169
        %191 = vst.msk [vmem:[#allocation2 + $0x13] sm:$0xff] %vm188, %v170
        %192 = vst.msk [vmem:[#allocation2 + $0x1b] sm:$0xff] %vm188, %v171
        %193 = vst.msk [vmem:[#allocation2 + $0x23] sm:$0xff] %vm188, %v172
        %194 = vst.msk [vmem:[#allocation2 + $0x2b] sm:$0xff] %vm188, %v173
        %195 = vst.msk [vmem:[#allocation2 + $0x33] sm:$0xff] %vm188, %v174
        %196 = vst.msk [vmem:[#allocation2 + $0x3b] sm:$0xff] %vm188, %v175
        %197 = vst.msk [vmem:[#allocation2 + $0x43] sm:$0xff] %vm188, %v176
        %198 = vst.msk [vmem:[#allocation2 + $0x4b] sm:$0xff] %vm188, %v177
        %199 = vst.msk [vmem:[#allocation2 + $0x53] sm:$0xff] %vm188, %v178
        %200 = vst.msk [vmem:[#allocation2 + $0x5b] sm:$0xff] %vm188, %v179
        %201 = vst.msk [vmem:[#allocation2 + $0x63] sm:$0xff] %vm188, %v180
        %202 = vst.msk [vmem:[#allocation2 + $0x6b] sm:$0xff] %vm188, %v181
        %203 = vst.msk [vmem:[#allocation2 + $0x73] sm:$0xff] %vm188, %v182
        %204 = vst.msk [vmem:[#allocation2 + $0x7b] sm:$0xff] %vm188, %v183
        %205 = vst.msk [vmem:[#allocation2 + $0x83] sm:$0x7] %vm186, 0.0
        %v206 = vld [vmem:[#allocation2] sm:$0xff]
        %v207 = vld [vmem:[#allocation2 + $0x8] sm:$0xff]
        %v208 = vld [vmem:[#allocation2 + $0x10] sm:$0xff]
        %v209 = vld [vmem:[#allocation2 + $0x18] sm:$0xff]
        %v210 = vld [vmem:[#allocation2 + $0x20] sm:$0xff]
        %v211 = vld [vmem:[#allocation2 + $0x28] sm:$0xff]
        %v212 = vld [vmem:[#allocation2 + $0x30] sm:$0xff]
        %v213 = vld [vmem:[#allocation2 + $0x38] sm:$0xff]
        %v214 = vld [vmem:[#allocation2 + $0x40] sm:$0xff]
        %v215 = vld [vmem:[#allocation2 + $0x48] sm:$0xff]
        %v216 = vld [vmem:[#allocation2 + $0x50] sm:$0xff]
        %v217 = vld [vmem:[#allocation2 + $0x58] sm:$0xff]
        %v218 = vld [vmem:[#allocation2 + $0x60] sm:$0xff]
        %v219 = vld [vmem:[#allocation2 + $0x68] sm:$0xff]
        %v220 = vld [vmem:[#allocation2 + $0x70] sm:$0xff]
        %v221 = vld [vmem:[#allocation2 + $0x78] sm:$0xff]
        %223 = vset.pattern.permute.xlu0 0
        %224 = vperm.xlu0 %223, %v206
        %v225 = vpop.permute.xlu0 %224
        %228 = vset.pattern.permute.xlu0 0
        %229 = vperm.xlu0 %228, %v207
        %v230 = vpop.permute.xlu0 %229
        %233 = vset.pattern.permute.xlu0 0
        %234 = vperm.xlu0 %233, %v208
        %v235 = vpop.permute.xlu0 %234
        %238 = vset.pattern.permute.xlu0 0
        %239 = vperm.xlu0 %238, %v209
        %v240 = vpop.permute.xlu0 %239
        %243 = vset.pattern.permute.xlu0 0
        %244 = vperm.xlu0 %243, %v210
        %v245 = vpop.permute.xlu0 %244
        %248 = vset.pattern.permute.xlu0 0
        %249 = vperm.xlu0 %248, %v211
        %v250 = vpop.permute.xlu0 %249
        %253 = vset.pattern.permute.xlu0 0
        %254 = vperm.xlu0 %253, %v212
        %v255 = vpop.permute.xlu0 %254
        %258 = vset.pattern.permute.xlu0 0
        %259 = vperm.xlu0 %258, %v213
        %v260 = vpop.permute.xlu0 %259
        %263 = vset.pattern.permute.xlu0 0
        %264 = vperm.xlu0 %263, %v214
        %v265 = vpop.permute.xlu0 %264
        %268 = vset.pattern.permute.xlu0 0
        %269 = vperm.xlu0 %268, %v215
        %v270 = vpop.permute.xlu0 %269
        %273 = vset.pattern.permute.xlu0 0
        %274 = vperm.xlu0 %273, %v216
        %v275 = vpop.permute.xlu0 %274
        %278 = vset.pattern.permute.xlu0 0
        %279 = vperm.xlu0 %278, %v217
        %v280 = vpop.permute.xlu0 %279
        %283 = vset.pattern.permute.xlu0 0
        %284 = vperm.xlu0 %283, %v218
        %v285 = vpop.permute.xlu0 %284
        %288 = vset.pattern.permute.xlu0 0
        %289 = vperm.xlu0 %288, %v219
        %v290 = vpop.permute.xlu0 %289
        %293 = vset.pattern.permute.xlu0 0
        %294 = vperm.xlu0 %293, %v220
        %v295 = vpop.permute.xlu0 %294
        %298 = vset.pattern.permute.xlu0 0
        %299 = vperm.xlu0 %298, %v221
        %v300 = vpop.permute.xlu0 %299
        %v302 = vlaneseq
        %v303 = vshrl.u32 %v302, 7
        %v304 = vsub.s32 0, %v303
        %v305 = vrot.slane %v184, %v304
        %v306 = vmul.f32 %v225, %v305
        %v307 = vmul.f32 %v230, %v305
        %v308 = vmul.f32 %v235, %v305
        %v309 = vmul.f32 %v240, %v305
        %v310 = vmul.f32 %v245, %v305
        %v311 = vmul.f32 %v250, %v305
        %v312 = vmul.f32 %v255, %v305
        %v313 = vmul.f32 %v260, %v305
        %v314 = vmul.f32 %v265, %v305
        %v315 = vmul.f32 %v270, %v305
        %v316 = vmul.f32 %v275, %v305
        %v317 = vmul.f32 %v280, %v305
        %v318 = vmul.f32 %v285, %v305
        %v319 = vmul.f32 %v290, %v305
        %v320 = vmul.f32 %v295, %v305
        %v321 = vmul.f32 %v300, %v305
        %v322 = vld [vmem:[#allocation2 + $0x1] sm:$0xff]
        %v323 = vld [vmem:[#allocation2 + $0x9] sm:$0xff]
        %v324 = vld [vmem:[#allocation2 + $0x11] sm:$0xff]
        %v325 = vld [vmem:[#allocation2 + $0x19] sm:$0xff]
        %v326 = vld [vmem:[#allocation2 + $0x21] sm:$0xff]
        %v327 = vld [vmem:[#allocation2 + $0x29] sm:$0xff]
        %v328 = vld [vmem:[#allocation2 + $0x31] sm:$0xff]
        %v329 = vld [vmem:[#allocation2 + $0x39] sm:$0xff]
        %v330 = vld [vmem:[#allocation2 + $0x41] sm:$0xff]
        %v331 = vld [vmem:[#allocation2 + $0x49] sm:$0xff]
        %v332 = vld [vmem:[#allocation2 + $0x51] sm:$0xff]
        %v333 = vld [vmem:[#allocation2 + $0x59] sm:$0xff]
        %v334 = vld [vmem:[#allocation2 + $0x61] sm:$0xff]
        %v335 = vld [vmem:[#allocation2 + $0x69] sm:$0xff]
        %v336 = vld [vmem:[#allocation2 + $0x71] sm:$0xff]
        %v337 = vld [vmem:[#allocation2 + $0x79] sm:$0xff]
        %339 = vset.pattern.permute.xlu0 0
        %340 = vperm.xlu0 %339, %v322
        %v341 = vpop.permute.xlu0 %340
        %344 = vset.pattern.permute.xlu0 0
        %345 = vperm.xlu0 %344, %v323
        %v346 = vpop.permute.xlu0 %345
        %349 = vset.pattern.permute.xlu0 0
        %350 = vperm.xlu0 %349, %v324
        %v351 = vpop.permute.xlu0 %350
        %354 = vset.pattern.permute.xlu0 0
        %355 = vperm.xlu0 %354, %v325
        %v356 = vpop.permute.xlu0 %355
        %359 = vset.pattern.permute.xlu0 0
        %360 = vperm.xlu0 %359, %v326
        %v361 = vpop.permute.xlu0 %360
        %364 = vset.pattern.permute.xlu0 0
        %365 = vperm.xlu0 %364, %v327
        %v366 = vpop.permute.xlu0 %365
        %369 = vset.pattern.permute.xlu0 0
        %370 = vperm.xlu0 %369, %v328
        %v371 = vpop.permute.xlu0 %370
        %374 = vset.pattern.permute.xlu0 0
        %375 = vperm.xlu0 %374, %v329
        %v376 = vpop.permute.xlu0 %375
        %379 = vset.pattern.permute.xlu0 0
        %380 = vperm.xlu0 %379, %v330
        %v381 = vpop.permute.xlu0 %380
        %384 = vset.pattern.permute.xlu0 0
        %385 = vperm.xlu0 %384, %v331
        %v386 = vpop.permute.xlu0 %385
        %389 = vset.pattern.permute.xlu0 0
        %390 = vperm.xlu0 %389, %v332
        %v391 = vpop.permute.xlu0 %390
        %394 = vset.pattern.permute.xlu0 0
        %395 = vperm.xlu0 %394, %v333
        %v396 = vpop.permute.xlu0 %395
        %399 = vset.pattern.permute.xlu0 0
        %400 = vperm.xlu0 %399, %v334
        %v401 = vpop.permute.xlu0 %400
        %404 = vset.pattern.permute.xlu0 0
        %405 = vperm.xlu0 %404, %v335
        %v406 = vpop.permute.xlu0 %405
        %409 = vset.pattern.permute.xlu0 0
        %410 = vperm.xlu0 %409, %v336
        %v411 = vpop.permute.xlu0 %410
        %414 = vset.pattern.permute.xlu0 0
        %415 = vperm.xlu0 %414, %v337
        %v416 = vpop.permute.xlu0 %415
        %v418 = vlaneseq
        %v419 = vshrl.u32 %v418, 7
        %v420 = vsub.s32 1, %v419
        %v421 = vrot.slane %v184, %v420
        %v422 = vmul.f32 %v341, %v421
        %v423 = vmul.f32 %v346, %v421
        %v424 = vmul.f32 %v351, %v421
        %v425 = vmul.f32 %v356, %v421
        %v426 = vmul.f32 %v361, %v421
        %v427 = vmul.f32 %v366, %v421
        %v428 = vmul.f32 %v371, %v421
        %v429 = vmul.f32 %v376, %v421
        %v430 = vmul.f32 %v381, %v421
        %v431 = vmul.f32 %v386, %v421
        %v432 = vmul.f32 %v391, %v421
        %v433 = vmul.f32 %v396, %v421
        %v434 = vmul.f32 %v401, %v421
        %v435 = vmul.f32 %v406, %v421
        %v436 = vmul.f32 %v411, %v421
        %v437 = vmul.f32 %v416, %v421
        %v438 = vadd.f32 %v306, %v422
        %v439 = vadd.f32 %v307, %v423
        %v440 = vadd.f32 %v308, %v424
        %v441 = vadd.f32 %v309, %v425
        %v442 = vadd.f32 %v310, %v426
        %v443 = vadd.f32 %v311, %v427
        %v444 = vadd.f32 %v312, %v428
        %v445 = vadd.f32 %v313, %v429
        %v446 = vadd.f32 %v314, %v430
        %v447 = vadd.f32 %v315, %v431
        %v448 = vadd.f32 %v316, %v432
        %v449 = vadd.f32 %v317, %v433
        %v450 = vadd.f32 %v318, %v434
        %v451 = vadd.f32 %v319, %v435
        %v452 = vadd.f32 %v320, %v436
        %v453 = vadd.f32 %v321, %v437
        %v454 = vld [vmem:[#allocation2 + $0x2] sm:$0xff]
        %v455 = vld [vmem:[#allocation2 + $0xa] sm:$0xff]
        %v456 = vld [vmem:[#allocation2 + $0x12] sm:$0xff]
        %v457 = vld [vmem:[#allocation2 + $0x1a] sm:$0xff]
        %v458 = vld [vmem:[#allocation2 + $0x22] sm:$0xff]
        %v459 = vld [vmem:[#allocation2 + $0x2a] sm:$0xff]
        %v460 = vld [vmem:[#allocation2 + $0x32] sm:$0xff]
        %v461 = vld [vmem:[#allocation2 + $0x3a] sm:$0xff]
        %v462 = vld [vmem:[#allocation2 + $0x42] sm:$0xff]
        %v463 = vld [vmem:[#allocation2 + $0x4a] sm:$0xff]
        %v464 = vld [vmem:[#allocation2 + $0x52] sm:$0xff]
        %v465 = vld [vmem:[#allocation2 + $0x5a] sm:$0xff]
        %v466 = vld [vmem:[#allocation2 + $0x62] sm:$0xff]
        %v467 = vld [vmem:[#allocation2 + $0x6a] sm:$0xff]
        %v468 = vld [vmem:[#allocation2 + $0x72] sm:$0xff]
        %v469 = vld [vmem:[#allocation2 + $0x7a] sm:$0xff]
        %471 = vset.pattern.permute.xlu0 0
        %472 = vperm.xlu0 %471, %v454
        %v473 = vpop.permute.xlu0 %472
        %476 = vset.pattern.permute.xlu0 0
        %477 = vperm.xlu0 %476, %v455
        %v478 = vpop.permute.xlu0 %477
        %481 = vset.pattern.permute.xlu0 0
        %482 = vperm.xlu0 %481, %v456
        %v483 = vpop.permute.xlu0 %482
        %486 = vset.pattern.permute.xlu0 0
        %487 = vperm.xlu0 %486, %v457
        %v488 = vpop.permute.xlu0 %487
        %491 = vset.pattern.permute.xlu0 0
        %492 = vperm.xlu0 %491, %v458
        %v493 = vpop.permute.xlu0 %492
        %496 = vset.pattern.permute.xlu0 0
        %497 = vperm.xlu0 %496, %v459
        %v498 = vpop.permute.xlu0 %497
        %501 = vset.pattern.permute.xlu0 0
        %502 = vperm.xlu0 %501, %v460
        %v503 = vpop.permute.xlu0 %502
        %506 = vset.pattern.permute.xlu0 0
        %507 = vperm.xlu0 %506, %v461
        %v508 = vpop.permute.xlu0 %507
        %511 = vset.pattern.permute.xlu0 0
        %512 = vperm.xlu0 %511, %v462
        %v513 = vpop.permute.xlu0 %512
        %516 = vset.pattern.permute.xlu0 0
        %517 = vperm.xlu0 %516, %v463
        %v518 = vpop.permute.xlu0 %517
        %521 = vset.pattern.permute.xlu0 0
        %522 = vperm.xlu0 %521, %v464
        %v523 = vpop.permute.xlu0 %522
        %526 = vset.pattern.permute.xlu0 0
        %527 = vperm.xlu0 %526, %v465
        %v528 = vpop.permute.xlu0 %527
        %531 = vset.pattern.permute.xlu0 0
        %532 = vperm.xlu0 %531, %v466
        %v533 = vpop.permute.xlu0 %532
        %536 = vset.pattern.permute.xlu0 0
        %537 = vperm.xlu0 %536, %v467
        %v538 = vpop.permute.xlu0 %537
        %541 = vset.pattern.permute.xlu0 0
        %542 = vperm.xlu0 %541, %v468
        %v543 = vpop.permute.xlu0 %542
        %546 = vset.pattern.permute.xlu0 0
        %547 = vperm.xlu0 %546, %v469
        %v548 = vpop.permute.xlu0 %547
        %v550 = vlaneseq
        %v551 = vshrl.u32 %v550, 7
        %v552 = vsub.s32 2, %v551
        %v553 = vrot.slane %v184, %v552
        %v554 = vmul.f32 %v473, %v553
        %v555 = vmul.f32 %v478, %v553
        %v556 = vmul.f32 %v483, %v553
        %v557 = vmul.f32 %v488, %v553
        %v558 = vmul.f32 %v493, %v553
        %v559 = vmul.f32 %v498, %v553
        %v560 = vmul.f32 %v503, %v553
        %v561 = vmul.f32 %v508, %v553
        %v562 = vmul.f32 %v513, %v553
        %v563 = vmul.f32 %v518, %v553
        %v564 = vmul.f32 %v523, %v553
        %v565 = vmul.f32 %v528, %v553
        %v566 = vmul.f32 %v533, %v553
        %v567 = vmul.f32 %v538, %v553
        %v568 = vmul.f32 %v543, %v553
        %v569 = vmul.f32 %v548, %v553
        %v570 = vadd.f32 %v438, %v554
        %v571 = vadd.f32 %v439, %v555
        %v572 = vadd.f32 %v440, %v556
        %v573 = vadd.f32 %v441, %v557
        %v574 = vadd.f32 %v442, %v558
        %v575 = vadd.f32 %v443, %v559
        %v576 = vadd.f32 %v444, %v560
        %v577 = vadd.f32 %v445, %v561
        %v578 = vadd.f32 %v446, %v562
        %v579 = vadd.f32 %v447, %v563
        %v580 = vadd.f32 %v448, %v564
        %v581 = vadd.f32 %v449, %v565
        %v582 = vadd.f32 %v450, %v566
        %v583 = vadd.f32 %v451, %v567
        %v584 = vadd.f32 %v452, %v568
        %v585 = vadd.f32 %v453, %v569
        %v586 = vld [vmem:[#allocation2 + $0x3] sm:$0xff]
        %v587 = vld [vmem:[#allocation2 + $0xb] sm:$0xff]
        %v588 = vld [vmem:[#allocation2 + $0x13] sm:$0xff]
        %v589 = vld [vmem:[#allocation2 + $0x1b] sm:$0xff]
        %v590 = vld [vmem:[#allocation2 + $0x23] sm:$0xff]
        %v591 = vld [vmem:[#allocation2 + $0x2b] sm:$0xff]
        %v592 = vld [vmem:[#allocation2 + $0x33] sm:$0xff]
        %v593 = vld [vmem:[#allocation2 + $0x3b] sm:$0xff]
        %v594 = vld [vmem:[#allocation2 + $0x43] sm:$0xff]
        %v595 = vld [vmem:[#allocation2 + $0x4b] sm:$0xff]
        %v596 = vld [vmem:[#allocation2 + $0x53] sm:$0xff]
        %v597 = vld [vmem:[#allocation2 + $0x5b] sm:$0xff]
        %v598 = vld [vmem:[#allocation2 + $0x63] sm:$0xff]
        %v599 = vld [vmem:[#allocation2 + $0x6b] sm:$0xff]
        %v600 = vld [vmem:[#allocation2 + $0x73] sm:$0xff]
        %v601 = vld [vmem:[#allocation2 + $0x7b] sm:$0xff]
        %603 = vset.pattern.permute.xlu0 0
        %604 = vperm.xlu0 %603, %v586
        %v605 = vpop.permute.xlu0 %604
        %608 = vset.pattern.permute.xlu0 0
        %609 = vperm.xlu0 %608, %v587
        %v610 = vpop.permute.xlu0 %609
        %613 = vset.pattern.permute.xlu0 0
        %614 = vperm.xlu0 %613, %v588
        %v615 = vpop.permute.xlu0 %614
        %618 = vset.pattern.permute.xlu0 0
        %619 = vperm.xlu0 %618, %v589
        %v620 = vpop.permute.xlu0 %619
        %623 = vset.pattern.permute.xlu0 0
        %624 = vperm.xlu0 %623, %v590
        %v625 = vpop.permute.xlu0 %624
        %628 = vset.pattern.permute.xlu0 0
        %629 = vperm.xlu0 %628, %v591
        %v630 = vpop.permute.xlu0 %629
        %633 = vset.pattern.permute.xlu0 0
        %634 = vperm.xlu0 %633, %v592
        %v635 = vpop.permute.xlu0 %634
        %638 = vset.pattern.permute.xlu0 0
        %639 = vperm.xlu0 %638, %v593
        %v640 = vpop.permute.xlu0 %639
        %643 = vset.pattern.permute.xlu0 0
        %644 = vperm.xlu0 %643, %v594
        %v645 = vpop.permute.xlu0 %644
        %648 = vset.pattern.permute.xlu0 0
        %649 = vperm.xlu0 %648, %v595
        %v650 = vpop.permute.xlu0 %649
        %653 = vset.pattern.permute.xlu0 0
        %654 = vperm.xlu0 %653, %v596
        %v655 = vpop.permute.xlu0 %654
        %658 = vset.pattern.permute.xlu0 0
        %659 = vperm.xlu0 %658, %v597
        %v660 = vpop.permute.xlu0 %659
        %663 = vset.pattern.permute.xlu0 0
        %664 = vperm.xlu0 %663, %v598
        %v665 = vpop.permute.xlu0 %664
        %668 = vset.pattern.permute.xlu0 0
        %669 = vperm.xlu0 %668, %v599
        %v670 = vpop.permute.xlu0 %669
        %673 = vset.pattern.permute.xlu0 0
        %674 = vperm.xlu0 %673, %v600
        %v675 = vpop.permute.xlu0 %674
        %678 = vset.pattern.permute.xlu0 0
        %679 = vperm.xlu0 %678, %v601
        %v680 = vpop.permute.xlu0 %679
        %v682 = vlaneseq
        %v683 = vshrl.u32 %v682, 7
        %v684 = vsub.s32 3, %v683
        %v685 = vrot.slane %v184, %v684
        %v686 = vmul.f32 %v605, %v685
        %v687 = vmul.f32 %v610, %v685
        %v688 = vmul.f32 %v615, %v685
        %v689 = vmul.f32 %v620, %v685
        %v690 = vmul.f32 %v625, %v685
        %v691 = vmul.f32 %v630, %v685
        %v692 = vmul.f32 %v635, %v685
        %v693 = vmul.f32 %v640, %v685
        %v694 = vmul.f32 %v645, %v685
        %v695 = vmul.f32 %v650, %v685
        %v696 = vmul.f32 %v655, %v685
        %v697 = vmul.f32 %v660, %v685
        %v698 = vmul.f32 %v665, %v685
        %v699 = vmul.f32 %v670, %v685
        %v700 = vmul.f32 %v675, %v685
        %v701 = vmul.f32 %v680, %v685
        %v702 = vadd.f32 %v570, %v686
        %v703 = vadd.f32 %v571, %v687
        %v704 = vadd.f32 %v572, %v688
        %v705 = vadd.f32 %v573, %v689
        %v706 = vadd.f32 %v574, %v690
        %v707 = vadd.f32 %v575, %v691
        %v708 = vadd.f32 %v576, %v692
        %v709 = vadd.f32 %v577, %v693
        %v710 = vadd.f32 %v578, %v694
        %v711 = vadd.f32 %v579, %v695
        %v712 = vadd.f32 %v580, %v696
        %v713 = vadd.f32 %v581, %v697
        %v714 = vadd.f32 %v582, %v698
        %v715 = vadd.f32 %v583, %v699
        %v716 = vadd.f32 %v584, %v700
        %v717 = vadd.f32 %v585, %v701
        %v718 = vld [vmem:[#allocation2 + $0x4] sm:$0xff]
        %v719 = vld [vmem:[#allocation2 + $0xc] sm:$0xff]
        %v720 = vld [vmem:[#allocation2 + $0x14] sm:$0xff]
        %v721 = vld [vmem:[#allocation2 + $0x1c] sm:$0xff]
        %v722 = vld [vmem:[#allocation2 + $0x24] sm:$0xff]
        %v723 = vld [vmem:[#allocation2 + $0x2c] sm:$0xff]
        %v724 = vld [vmem:[#allocation2 + $0x34] sm:$0xff]
        %v725 = vld [vmem:[#allocation2 + $0x3c] sm:$0xff]
        %v726 = vld [vmem:[#allocation2 + $0x44] sm:$0xff]
        %v727 = vld [vmem:[#allocation2 + $0x4c] sm:$0xff]
        %v728 = vld [vmem:[#allocation2 + $0x54] sm:$0xff]
        %v729 = vld [vmem:[#allocation2 + $0x5c] sm:$0xff]
        %v730 = vld [vmem:[#allocation2 + $0x64] sm:$0xff]
        %v731 = vld [vmem:[#allocation2 + $0x6c] sm:$0xff]
        %v732 = vld [vmem:[#allocation2 + $0x74] sm:$0xff]
        %v733 = vld [vmem:[#allocation2 + $0x7c] sm:$0xff]
        %735 = vset.pattern.permute.xlu0 0
        %736 = vperm.xlu0 %735, %v718
        %v737 = vpop.permute.xlu0 %736
        %740 = vset.pattern.permute.xlu0 0
        %741 = vperm.xlu0 %740, %v719
        %v742 = vpop.permute.xlu0 %741
        %745 = vset.pattern.permute.xlu0 0
        %746 = vperm.xlu0 %745, %v720
        %v747 = vpop.permute.xlu0 %746
        %750 = vset.pattern.permute.xlu0 0
        %751 = vperm.xlu0 %750, %v721
        %v752 = vpop.permute.xlu0 %751
        %755 = vset.pattern.permute.xlu0 0
        %756 = vperm.xlu0 %755, %v722
        %v757 = vpop.permute.xlu0 %756
        %760 = vset.pattern.permute.xlu0 0
        %761 = vperm.xlu0 %760, %v723
        %v762 = vpop.permute.xlu0 %761
        %765 = vset.pattern.permute.xlu0 0
        %766 = vperm.xlu0 %765, %v724
        %v767 = vpop.permute.xlu0 %766
        %770 = vset.pattern.permute.xlu0 0
        %771 = vperm.xlu0 %770, %v725
        %v772 = vpop.permute.xlu0 %771
        %775 = vset.pattern.permute.xlu0 0
        %776 = vperm.xlu0 %775, %v726
        %v777 = vpop.permute.xlu0 %776
        %780 = vset.pattern.permute.xlu0 0
        %781 = vperm.xlu0 %780, %v727
        %v782 = vpop.permute.xlu0 %781
        %785 = vset.pattern.permute.xlu0 0
        %786 = vperm.xlu0 %785, %v728
        %v787 = vpop.permute.xlu0 %786
        %790 = vset.pattern.permute.xlu0 0
        %791 = vperm.xlu0 %790, %v729
        %v792 = vpop.permute.xlu0 %791
        %795 = vset.pattern.permute.xlu0 0
        %796 = vperm.xlu0 %795, %v730
        %v797 = vpop.permute.xlu0 %796
        %800 = vset.pattern.permute.xlu0 0
        %801 = vperm.xlu0 %800, %v731
        %v802 = vpop.permute.xlu0 %801
        %805 = vset.pattern.permute.xlu0 0
        %806 = vperm.xlu0 %805, %v732
        %v807 = vpop.permute.xlu0 %806
        %810 = vset.pattern.permute.xlu0 0
        %811 = vperm.xlu0 %810, %v733
        %v812 = vpop.permute.xlu0 %811
        %v814 = vlaneseq
        %v815 = vshrl.u32 %v814, 7
        %v816 = vsub.s32 4, %v815
        %v817 = vrot.slane %v184, %v816
        %v818 = vmul.f32 %v737, %v817
        %v819 = vmul.f32 %v742, %v817
        %v820 = vmul.f32 %v747, %v817
        %v821 = vmul.f32 %v752, %v817
        %v822 = vmul.f32 %v757, %v817
        %v823 = vmul.f32 %v762, %v817
        %v824 = vmul.f32 %v767, %v817
        %v825 = vmul.f32 %v772, %v817
        %v826 = vmul.f32 %v777, %v817
        %v827 = vmul.f32 %v782, %v817
        %v828 = vmul.f32 %v787, %v817
        %v829 = vmul.f32 %v792, %v817
        %v830 = vmul.f32 %v797, %v817
        %v831 = vmul.f32 %v802, %v817
        %v832 = vmul.f32 %v807, %v817
        %v833 = vmul.f32 %v812, %v817
        %v834 = vadd.f32 %v702, %v818
        %v835 = vadd.f32 %v703, %v819
        %v836 = vadd.f32 %v704, %v820
        %v837 = vadd.f32 %v705, %v821
        %v838 = vadd.f32 %v706, %v822
        %v839 = vadd.f32 %v707, %v823
        %v840 = vadd.f32 %v708, %v824
        %v841 = vadd.f32 %v709, %v825
        %v842 = vadd.f32 %v710, %v826
        %v843 = vadd.f32 %v711, %v827
        %v844 = vadd.f32 %v712, %v828
        %v845 = vadd.f32 %v713, %v829
        %v846 = vadd.f32 %v714, %v830
        %v847 = vadd.f32 %v715, %v831
        %v848 = vadd.f32 %v716, %v832
        %v849 = vadd.f32 %v717, %v833
        %v850 = vld [vmem:[#allocation2 + $0x5] sm:$0xff]
        %v851 = vld [vmem:[#allocation2 + $0xd] sm:$0xff]
        %v852 = vld [vmem:[#allocation2 + $0x15] sm:$0xff]
        %v853 = vld [vmem:[#allocation2 + $0x1d] sm:$0xff]
        %v854 = vld [vmem:[#allocation2 + $0x25] sm:$0xff]
        %v855 = vld [vmem:[#allocation2 + $0x2d] sm:$0xff]
        %v856 = vld [vmem:[#allocation2 + $0x35] sm:$0xff]
        %v857 = vld [vmem:[#allocation2 + $0x3d] sm:$0xff]
        %v858 = vld [vmem:[#allocation2 + $0x45] sm:$0xff]
        %v859 = vld [vmem:[#allocation2 + $0x4d] sm:$0xff]
        %v860 = vld [vmem:[#allocation2 + $0x55] sm:$0xff]
        %v861 = vld [vmem:[#allocation2 + $0x5d] sm:$0xff]
        %v862 = vld [vmem:[#allocation2 + $0x65] sm:$0xff]
        %v863 = vld [vmem:[#allocation2 + $0x6d] sm:$0xff]
        %v864 = vld [vmem:[#allocation2 + $0x75] sm:$0xff]
        %v865 = vld [vmem:[#allocation2 + $0x7d] sm:$0xff]
        %867 = vset.pattern.permute.xlu0 0
        %868 = vperm.xlu0 %867, %v850
        %v869 = vpop.permute.xlu0 %868
        %872 = vset.pattern.permute.xlu0 0
        %873 = vperm.xlu0 %872, %v851
        %v874 = vpop.permute.xlu0 %873
        %877 = vset.pattern.permute.xlu0 0
        %878 = vperm.xlu0 %877, %v852
        %v879 = vpop.permute.xlu0 %878
        %882 = vset.pattern.permute.xlu0 0
        %883 = vperm.xlu0 %882, %v853
        %v884 = vpop.permute.xlu0 %883
        %887 = vset.pattern.permute.xlu0 0
        %888 = vperm.xlu0 %887, %v854
        %v889 = vpop.permute.xlu0 %888
        %892 = vset.pattern.permute.xlu0 0
        %893 = vperm.xlu0 %892, %v855
        %v894 = vpop.permute.xlu0 %893
        %897 = vset.pattern.permute.xlu0 0
        %898 = vperm.xlu0 %897, %v856
        %v899 = vpop.permute.xlu0 %898
        %902 = vset.pattern.permute.xlu0 0
        %903 = vperm.xlu0 %902, %v857
        %v904 = vpop.permute.xlu0 %903
        %907 = vset.pattern.permute.xlu0 0
        %908 = vperm.xlu0 %907, %v858
        %v909 = vpop.permute.xlu0 %908
        %912 = vset.pattern.permute.xlu0 0
        %913 = vperm.xlu0 %912, %v859
        %v914 = vpop.permute.xlu0 %913
        %917 = vset.pattern.permute.xlu0 0
        %918 = vperm.xlu0 %917, %v860
        %v919 = vpop.permute.xlu0 %918
        %922 = vset.pattern.permute.xlu0 0
        %923 = vperm.xlu0 %922, %v861
        %v924 = vpop.permute.xlu0 %923
        %927 = vset.pattern.permute.xlu0 0
        %928 = vperm.xlu0 %927, %v862
        %v929 = vpop.permute.xlu0 %928
        %932 = vset.pattern.permute.xlu0 0
        %933 = vperm.xlu0 %932, %v863
        %v934 = vpop.permute.xlu0 %933
        %937 = vset.pattern.permute.xlu0 0
        %938 = vperm.xlu0 %937, %v864
        %v939 = vpop.permute.xlu0 %938
        %942 = vset.pattern.permute.xlu0 0
        %943 = vperm.xlu0 %942, %v865
        %v944 = vpop.permute.xlu0 %943
        %v946 = vlaneseq
        %v947 = vshrl.u32 %v946, 7
        %v948 = vsub.s32 5, %v947
        %v949 = vrot.slane %v184, %v948
        %v950 = vmul.f32 %v869, %v949
        %v951 = vmul.f32 %v874, %v949
        %v952 = vmul.f32 %v879, %v949
        %v953 = vmul.f32 %v884, %v949
        %v954 = vmul.f32 %v889, %v949
        %v955 = vmul.f32 %v894, %v949
        %v956 = vmul.f32 %v899, %v949
        %v957 = vmul.f32 %v904, %v949
        %v958 = vmul.f32 %v909, %v949
        %v959 = vmul.f32 %v914, %v949
        %v960 = vmul.f32 %v919, %v949
        %v961 = vmul.f32 %v924, %v949
        %v962 = vmul.f32 %v929, %v949
        %v963 = vmul.f32 %v934, %v949
        %v964 = vmul.f32 %v939, %v949
        %v965 = vmul.f32 %v944, %v949
        %v966 = vadd.f32 %v834, %v950
        %v967 = vadd.f32 %v835, %v951
        %v968 = vadd.f32 %v836, %v952
        %v969 = vadd.f32 %v837, %v953
        %v970 = vadd.f32 %v838, %v954
        %v971 = vadd.f32 %v839, %v955
        %v972 = vadd.f32 %v840, %v956
        %v973 = vadd.f32 %v841, %v957
        %v974 = vadd.f32 %v842, %v958
        %v975 = vadd.f32 %v843, %v959
        %v976 = vadd.f32 %v844, %v960
        %v977 = vadd.f32 %v845, %v961
        %v978 = vadd.f32 %v846, %v962
        %v979 = vadd.f32 %v847, %v963
        %v980 = vadd.f32 %v848, %v964
        %v981 = vadd.f32 %v849, %v965
        %v982 = vld [vmem:[#allocation2 + $0x6] sm:$0xff]
        %v983 = vld [vmem:[#allocation2 + $0xe] sm:$0xff]
        %v984 = vld [vmem:[#allocation2 + $0x16] sm:$0xff]
        %v985 = vld [vmem:[#allocation2 + $0x1e] sm:$0xff]
        %v986 = vld [vmem:[#allocation2 + $0x26] sm:$0xff]
        %v987 = vld [vmem:[#allocation2 + $0x2e] sm:$0xff]
        %v988 = vld [vmem:[#allocation2 + $0x36] sm:$0xff]
        %v989 = vld [vmem:[#allocation2 + $0x3e] sm:$0xff]
        %v990 = vld [vmem:[#allocation2 + $0x46] sm:$0xff]
        %v991 = vld [vmem:[#allocation2 + $0x4e] sm:$0xff]
        %v992 = vld [vmem:[#allocation2 + $0x56] sm:$0xff]
        %v993 = vld [vmem:[#allocation2 + $0x5e] sm:$0xff]
        %v994 = vld [vmem:[#allocation2 + $0x66] sm:$0xff]
        %v995 = vld [vmem:[#allocation2 + $0x6e] sm:$0xff]
        %v996 = vld [vmem:[#allocation2 + $0x76] sm:$0xff]
        %v997 = vld [vmem:[#allocation2 + $0x7e] sm:$0xff]
        %999 = vset.pattern.permute.xlu0 0
        %1000 = vperm.xlu0 %999, %v982
        %v1001 = vpop.permute.xlu0 %1000
        %1004 = vset.pattern.permute.xlu0 0
        %1005 = vperm.xlu0 %1004, %v983
        %v1006 = vpop.permute.xlu0 %1005
        %1009 = vset.pattern.permute.xlu0 0
        %1010 = vperm.xlu0 %1009, %v984
        %v1011 = vpop.permute.xlu0 %1010
        %1014 = vset.pattern.permute.xlu0 0
        %1015 = vperm.xlu0 %1014, %v985
        %v1016 = vpop.permute.xlu0 %1015
        %1019 = vset.pattern.permute.xlu0 0
        %1020 = vperm.xlu0 %1019, %v986
        %v1021 = vpop.permute.xlu0 %1020
        %1024 = vset.pattern.permute.xlu0 0
        %1025 = vperm.xlu0 %1024, %v987
        %v1026 = vpop.permute.xlu0 %1025
        %1029 = vset.pattern.permute.xlu0 0
        %1030 = vperm.xlu0 %1029, %v988
        %v1031 = vpop.permute.xlu0 %1030
        %1034 = vset.pattern.permute.xlu0 0
        %1035 = vperm.xlu0 %1034, %v989
        %v1036 = vpop.permute.xlu0 %1035
        %1039 = vset.pattern.permute.xlu0 0
        %1040 = vperm.xlu0 %1039, %v990
        %v1041 = vpop.permute.xlu0 %1040
        %1044 = vset.pattern.permute.xlu0 0
        %1045 = vperm.xlu0 %1044, %v991
        %v1046 = vpop.permute.xlu0 %1045
        %1049 = vset.pattern.permute.xlu0 0
        %1050 = vperm.xlu0 %1049, %v992
        %v1051 = vpop.permute.xlu0 %1050
        %1054 = vset.pattern.permute.xlu0 0
        %1055 = vperm.xlu0 %1054, %v993
        %v1056 = vpop.permute.xlu0 %1055
        %1059 = vset.pattern.permute.xlu0 0
        %1060 = vperm.xlu0 %1059, %v994
        %v1061 = vpop.permute.xlu0 %1060
        %1064 = vset.pattern.permute.xlu0 0
        %1065 = vperm.xlu0 %1064, %v995
        %v1066 = vpop.permute.xlu0 %1065
        %1069 = vset.pattern.permute.xlu0 0
        %1070 = vperm.xlu0 %1069, %v996
        %v1071 = vpop.permute.xlu0 %1070
        %1074 = vset.pattern.permute.xlu0 0
        %1075 = vperm.xlu0 %1074, %v997
        %v1076 = vpop.permute.xlu0 %1075
        %v1078 = vlaneseq
        %v1079 = vshrl.u32 %v1078, 7
        %v1080 = vsub.s32 6, %v1079
        %v1081 = vrot.slane %v184, %v1080
        %v1082 = vmul.f32 %v1001, %v1081
        %v1083 = vmul.f32 %v1006, %v1081
        %v1084 = vmul.f32 %v1011, %v1081
        %v1085 = vmul.f32 %v1016, %v1081
        %v1086 = vmul.f32 %v1021, %v1081
        %v1087 = vmul.f32 %v1026, %v1081
        %v1088 = vmul.f32 %v1031, %v1081
        %v1089 = vmul.f32 %v1036, %v1081
        %v1090 = vmul.f32 %v1041, %v1081
        %v1091 = vmul.f32 %v1046, %v1081
        %v1092 = vmul.f32 %v1051, %v1081
        %v1093 = vmul.f32 %v1056, %v1081
        %v1094 = vmul.f32 %v1061, %v1081
        %v1095 = vmul.f32 %v1066, %v1081
        %v1096 = vmul.f32 %v1071, %v1081
        %v1097 = vmul.f32 %v1076, %v1081
        %v1098 = vadd.f32 %v966, %v1082
        %v1099 = vadd.f32 %v967, %v1083
        %v1100 = vadd.f32 %v968, %v1084
        %v1101 = vadd.f32 %v969, %v1085
        %v1102 = vadd.f32 %v970, %v1086
        %v1103 = vadd.f32 %v971, %v1087
        %v1104 = vadd.f32 %v972, %v1088
        %v1105 = vadd.f32 %v973, %v1089
        %v1106 = vadd.f32 %v974, %v1090
        %v1107 = vadd.f32 %v975, %v1091
        %v1108 = vadd.f32 %v976, %v1092
        %v1109 = vadd.f32 %v977, %v1093
        %v1110 = vadd.f32 %v978, %v1094
        %v1111 = vadd.f32 %v979, %v1095
        %v1112 = vadd.f32 %v980, %v1096
        %v1113 = vadd.f32 %v981, %v1097
        %v1114 = vlaneseq
        %v1115 = vshrl.u32 %v1114, 7
        %v1116 = vsub.s32 0, %v1115
        %v1117 = vrot.slane %v185, %v1116
        %v1118 = vadd.f32 %v1098, %v1117
        %v1119 = vadd.f32 %v1099, %v1117
        %v1120 = vadd.f32 %v1100, %v1117
        %v1121 = vadd.f32 %v1101, %v1117
        %v1122 = vadd.f32 %v1102, %v1117
        %v1123 = vadd.f32 %v1103, %v1117
        %v1124 = vadd.f32 %v1104, %v1117
        %v1125 = vadd.f32 %v1105, %v1117
        %v1126 = vadd.f32 %v1106, %v1117
        %v1127 = vadd.f32 %v1107, %v1117
        %v1128 = vadd.f32 %v1108, %v1117
        %v1129 = vadd.f32 %v1109, %v1117
        %v1130 = vadd.f32 %v1110, %v1117
        %v1131 = vadd.f32 %v1111, %v1117
        %v1132 = vadd.f32 %v1112, %v1117
        %v1133 = vadd.f32 %v1113, %v1117
        %v1134 = vld [vmem:[%s1] sm:$0xff]
        %v1135 = vld [vmem:[%s1 + $0x8] sm:$0xff]
        %v1136 = vld [vmem:[%s1 + $0x10] sm:$0xff]
        %v1137 = vld [vmem:[%s1 + $0x18] sm:$0xf]
        %v1138 = vld [vmem:[%s2 + $0x8] sm:$0x1]
        %v1139 = vld [vmem:[%s1 + $0x1c] sm:$0xf]
        %v1140 = vld [vmem:[%s2 + $0x9] sm:$0x1]
        %vm1141 = vcmask 26624
        %1142 = vst.msk [vmem:[#allocation2] sm:$0x7] %vm1141, 0.0
        %vm1143 = vcmask 31744
        %1144 = vst.msk [vmem:[#allocation2 + $0x3] sm:$0xff] %vm1143, %v1118
        %1145 = vst.msk [vmem:[#allocation2 + $0xb] sm:$0xff] %vm1143, %v1119
        %1146 = vst.msk [vmem:[#allocation2 + $0x13] sm:$0xff] %vm1143, %v1120
        %1147 = vst.msk [vmem:[#allocation2 + $0x1b] sm:$0xff] %vm1143, %v1121
        %1148 = vst.msk [vmem:[#allocation2 + $0x23] sm:$0xff] %vm1143, %v1122
        %1149 = vst.msk [vmem:[#allocation2 + $0x2b] sm:$0xff] %vm1143, %v1123
        %1150 = vst.msk [vmem:[#allocation2 + $0x33] sm:$0xff] %vm1143, %v1124
        %1151 = vst.msk [vmem:[#allocation2 + $0x3b] sm:$0xff] %vm1143, %v1125
        %1152 = vst.msk [vmem:[#allocation2 + $0x43] sm:$0xff] %vm1143, %v1126
        %1153 = vst.msk [vmem:[#allocation2 + $0x4b] sm:$0xff] %vm1143, %v1127
        %1154 = vst.msk [vmem:[#allocation2 + $0x53] sm:$0xff] %vm1143, %v1128
        %1155 = vst.msk [vmem:[#allocation2 + $0x5b] sm:$0xff] %vm1143, %v1129
        %1156 = vst.msk [vmem:[#allocation2 + $0x63] sm:$0xff] %vm1143, %v1130
        %1157 = vst.msk [vmem:[#allocation2 + $0x6b] sm:$0xff] %vm1143, %v1131
        %1158 = vst.msk [vmem:[#allocation2 + $0x73] sm:$0xff] %vm1143, %v1132
        %1159 = vst.msk [vmem:[#allocation2 + $0x7b] sm:$0xff] %vm1143, %v1133
        %1160 = vst.msk [vmem:[#allocation2 + $0x83] sm:$0x7] %vm1141, 0.0
        %v1161 = vld [vmem:[#allocation2] sm:$0xff]
        %v1162 = vld [vmem:[#allocation2 + $0x8] sm:$0xff]
        %v1163 = vld [vmem:[#allocation2 + $0x10] sm:$0xff]
        %v1164 = vld [vmem:[#allocation2 + $0x18] sm:$0xff]
        %v1165 = vld [vmem:[#allocation2 + $0x20] sm:$0xff]
        %v1166 = vld [vmem:[#allocation2 + $0x28] sm:$0xff]
        %v1167 = vld [vmem:[#allocation2 + $0x30] sm:$0xff]
        %v1168 = vld [vmem:[#allocation2 + $0x38] sm:$0xff]
        %v1169 = vld [vmem:[#allocation2 + $0x40] sm:$0xff]
        %v1170 = vld [vmem:[#allocation2 + $0x48] sm:$0xff]
        %v1171 = vld [vmem:[#allocation2 + $0x50] sm:$0xff]
        %v1172 = vld [vmem:[#allocation2 + $0x58] sm:$0xff]
        %v1173 = vld [vmem:[#allocation2 + $0x60] sm:$0xff]
        %v1174 = vld [vmem:[#allocation2 + $0x68] sm:$0xff]
        %v1175 = vld [vmem:[#allocation2 + $0x70] sm:$0xff]
        %v1176 = vld [vmem:[#allocation2 + $0x78] sm:$0xff]
        %v1177 = vld [vmem:[#allocation2 + $0x1] sm:$0xff]
        %v1178 = vld [vmem:[#allocation2 + $0x9] sm:$0xff]
        %v1179 = vld [vmem:[#allocation2 + $0x11] sm:$0xff]
        %v1180 = vld [vmem:[#allocation2 + $0x19] sm:$0xff]
        %v1181 = vld [vmem:[#allocation2 + $0x21] sm:$0xff]
        %v1182 = vld [vmem:[#allocation2 + $0x29] sm:$0xff]
        %v1183 = vld [vmem:[#allocation2 + $0x31] sm:$0xff]
        %v1184 = vld [vmem:[#allocation2 + $0x39] sm:$0xff]
        %v1185 = vld [vmem:[#allocation2 + $0x41] sm:$0xff]
        %v1186 = vld [vmem:[#allocation2 + $0x49] sm:$0xff]
        %v1187 = vld [vmem:[#allocation2 + $0x51] sm:$0xff]
        %v1188 = vld [vmem:[#allocation2 + $0x59] sm:$0xff]
        %v1189 = vld [vmem:[#allocation2 + $0x61] sm:$0xff]
        %v1190 = vld [vmem:[#allocation2 + $0x69] sm:$0xff]
        %v1191 = vld [vmem:[#allocation2 + $0x71] sm:$0xff]
        %v1192 = vld [vmem:[#allocation2 + $0x79] sm:$0xff]
        %v1193 = vld [vmem:[#allocation2 + $0x2] sm:$0xff]
        %v1194 = vld [vmem:[#allocation2 + $0xa] sm:$0xff]
        %v1195 = vld [vmem:[#allocation2 + $0x12] sm:$0xff]
        %v1196 = vld [vmem:[#allocation2 + $0x1a] sm:$0xff]
        %v1197 = vld [vmem:[#allocation2 + $0x22] sm:$0xff]
        %v1198 = vld [vmem:[#allocation2 + $0x2a] sm:$0xff]
        %v1199 = vld [vmem:[#allocation2 + $0x32] sm:$0xff]
        %v1200 = vld [vmem:[#allocation2 + $0x3a] sm:$0xff]
        %v1201 = vld [vmem:[#allocation2 + $0x42] sm:$0xff]
        %v1202 = vld [vmem:[#allocation2 + $0x4a] sm:$0xff]
        %v1203 = vld [vmem:[#allocation2 + $0x52] sm:$0xff]
        %v1204 = vld [vmem:[#allocation2 + $0x5a] sm:$0xff]
        %v1205 = vld [vmem:[#allocation2 + $0x62] sm:$0xff]
        %v1206 = vld [vmem:[#allocation2 + $0x6a] sm:$0xff]
        %v1207 = vld [vmem:[#allocation2 + $0x72] sm:$0xff]
        %v1208 = vld [vmem:[#allocation2 + $0x7a] sm:$0xff]
        %v1209 = vld [vmem:[#allocation2 + $0x3] sm:$0xff]
        %v1210 = vld [vmem:[#allocation2 + $0xb] sm:$0xff]
        %v1211 = vld [vmem:[#allocation2 + $0x13] sm:$0xff]
        %v1212 = vld [vmem:[#allocation2 + $0x1b] sm:$0xff]
        %v1213 = vld [vmem:[#allocation2 + $0x23] sm:$0xff]
        %v1214 = vld [vmem:[#allocation2 + $0x2b] sm:$0xff]
        %v1215 = vld [vmem:[#allocation2 + $0x33] sm:$0xff]
        %v1216 = vld [vmem:[#allocation2 + $0x3b] sm:$0xff]
        %v1217 = vld [vmem:[#allocation2 + $0x43] sm:$0xff]
        %v1218 = vld [vmem:[#allocation2 + $0x4b] sm:$0xff]
        %v1219 = vld [vmem:[#allocation2 + $0x53] sm:$0xff]
        %v1220 = vld [vmem:[#allocation2 + $0x5b] sm:$0xff]
        %v1221 = vld [vmem:[#allocation2 + $0x63] sm:$0xff]
        %v1222 = vld [vmem:[#allocation2 + $0x6b] sm:$0xff]
        %v1223 = vld [vmem:[#allocation2 + $0x73] sm:$0xff]
        %v1224 = vld [vmem:[#allocation2 + $0x7b] sm:$0xff]
        %v1225 = vld [vmem:[#allocation2 + $0x4] sm:$0xff]
        %v1226 = vld [vmem:[#allocation2 + $0xc] sm:$0xff]
        %v1227 = vld [vmem:[#allocation2 + $0x14] sm:$0xff]
        %v1228 = vld [vmem:[#allocation2 + $0x1c] sm:$0xff]
        %v1229 = vld [vmem:[#allocation2 + $0x24] sm:$0xff]
        %v1230 = vld [vmem:[#allocation2 + $0x2c] sm:$0xff]
        %v1231 = vld [vmem:[#allocation2 + $0x34] sm:$0xff]
        %v1232 = vld [vmem:[#allocation2 + $0x3c] sm:$0xff]
        %v1233 = vld [vmem:[#allocation2 + $0x44] sm:$0xff]
        %v1234 = vld [vmem:[#allocation2 + $0x4c] sm:$0xff]
        %v1235 = vld [vmem:[#allocation2 + $0x54] sm:$0xff]
        %v1236 = vld [vmem:[#allocation2 + $0x5c] sm:$0xff]
        %v1237 = vld [vmem:[#allocation2 + $0x64] sm:$0xff]
        %v1238 = vld [vmem:[#allocation2 + $0x6c] sm:$0xff]
        %v1239 = vld [vmem:[#allocation2 + $0x74] sm:$0xff]
        %v1240 = vld [vmem:[#allocation2 + $0x7c] sm:$0xff]
        %v1241 = vld [vmem:[#allocation2 + $0x5] sm:$0xff]
        %v1242 = vld [vmem:[#allocation2 + $0xd] sm:$0xff]
        %v1243 = vld [vmem:[#allocation2 + $0x15] sm:$0xff]
        %v1244 = vld [vmem:[#allocation2 + $0x1d] sm:$0xff]
        %v1245 = vld [vmem:[#allocation2 + $0x25] sm:$0xff]
        %v1246 = vld [vmem:[#allocation2 + $0x2d] sm:$0xff]
        %v1247 = vld [vmem:[#allocation2 + $0x35] sm:$0xff]
        %v1248 = vld [vmem:[#allocation2 + $0x3d] sm:$0xff]
        %v1249 = vld [vmem:[#allocation2 + $0x45] sm:$0xff]
        %v1250 = vld [vmem:[#allocation2 + $0x4d] sm:$0xff]
        %v1251 = vld [vmem:[#allocation2 + $0x55] sm:$0xff]
        %v1252 = vld [vmem:[#allocation2 + $0x5d] sm:$0xff]
        %v1253 = vld [vmem:[#allocation2 + $0x65] sm:$0xff]
        %v1254 = vld [vmem:[#allocation2 + $0x6d] sm:$0xff]
        %v1255 = vld [vmem:[#allocation2 + $0x75] sm:$0xff]
        %v1256 = vld [vmem:[#allocation2 + $0x7d] sm:$0xff]
        %v1257 = vld [vmem:[#allocation2 + $0x6] sm:$0xff]
        %v1258 = vld [vmem:[#allocation2 + $0xe] sm:$0xff]
        %v1259 = vld [vmem:[#allocation2 + $0x16] sm:$0xff]
        %v1260 = vld [vmem:[#allocation2 + $0x1e] sm:$0xff]
        %v1261 = vld [vmem:[#allocation2 + $0x26] sm:$0xff]
        %v1262 = vld [vmem:[#allocation2 + $0x2e] sm:$0xff]
        %v1263 = vld [vmem:[#allocation2 + $0x36] sm:$0xff]
        %v1264 = vld [vmem:[#allocation2 + $0x3e] sm:$0xff]
        %v1265 = vld [vmem:[#allocation2 + $0x46] sm:$0xff]
        %v1266 = vld [vmem:[#allocation2 + $0x4e] sm:$0xff]
        %v1267 = vld [vmem:[#allocation2 + $0x56] sm:$0xff]
        %v1268 = vld [vmem:[#allocation2 + $0x5e] sm:$0xff]
        %v1269 = vld [vmem:[#allocation2 + $0x66] sm:$0xff]
        %v1270 = vld [vmem:[#allocation2 + $0x6e] sm:$0xff]
        %v1271 = vld [vmem:[#allocation2 + $0x76] sm:$0xff]
        %v1272 = vld [vmem:[#allocation2 + $0x7e] sm:$0xff]
        %1289 = vrot.lane.b32.xlu0 %v1177, 4
        %v1290 = vpop.permute.xlu0 %1289
        %1291 = vrot.lane.b32.xlu0 %v1178, 4
        %v1292 = vpop.permute.xlu0 %1291
        %1293 = vrot.lane.b32.xlu0 %v1179, 4
        %v1294 = vpop.permute.xlu0 %1293
        %1295 = vrot.lane.b32.xlu0 %v1180, 4
        %v1296 = vpop.permute.xlu0 %1295
        %1297 = vrot.lane.b32.xlu0 %v1181, 4
        %v1298 = vpop.permute.xlu0 %1297
        %1299 = vrot.lane.b32.xlu0 %v1182, 4
        %v1300 = vpop.permute.xlu0 %1299
        %1301 = vrot.lane.b32.xlu0 %v1183, 4
        %v1302 = vpop.permute.xlu0 %1301
        %1303 = vrot.lane.b32.xlu0 %v1184, 4
        %v1304 = vpop.permute.xlu0 %1303
        %1305 = vrot.lane.b32.xlu0 %v1185, 4
        %v1306 = vpop.permute.xlu0 %1305
        %1307 = vrot.lane.b32.xlu0 %v1186, 4
        %v1308 = vpop.permute.xlu0 %1307
        %1309 = vrot.lane.b32.xlu0 %v1187, 4
        %v1310 = vpop.permute.xlu0 %1309
        %1311 = vrot.lane.b32.xlu0 %v1188, 4
        %v1312 = vpop.permute.xlu0 %1311
        %1313 = vrot.lane.b32.xlu0 %v1189, 4
        %v1314 = vpop.permute.xlu0 %1313
        %1315 = vrot.lane.b32.xlu0 %v1190, 4
        %v1316 = vpop.permute.xlu0 %1315
        %1317 = vrot.lane.b32.xlu0 %v1191, 4
        %v1318 = vpop.permute.xlu0 %1317
        %1319 = vrot.lane.b32.xlu0 %v1192, 4
        %v1320 = vpop.permute.xlu0 %1319
        %1353 = vrot.lane.b32.xlu0 %v1193, 8
        %v1354 = vpop.permute.xlu0 %1353
        %1355 = vrot.lane.b32.xlu0 %v1194, 8
        %v1356 = vpop.permute.xlu0 %1355
        %1357 = vrot.lane.b32.xlu0 %v1195, 8
        %v1358 = vpop.permute.xlu0 %1357
        %1359 = vrot.lane.b32.xlu0 %v1196, 8
        %v1360 = vpop.permute.xlu0 %1359
        %1361 = vrot.lane.b32.xlu0 %v1197, 8
        %v1362 = vpop.permute.xlu0 %1361
        %1363 = vrot.lane.b32.xlu0 %v1198, 8
        %v1364 = vpop.permute.xlu0 %1363
        %1365 = vrot.lane.b32.xlu0 %v1199, 8
        %v1366 = vpop.permute.xlu0 %1365
        %1367 = vrot.lane.b32.xlu0 %v1200, 8
        %v1368 = vpop.permute.xlu0 %1367
        %1369 = vrot.lane.b32.xlu0 %v1201, 8
        %v1370 = vpop.permute.xlu0 %1369
        %1371 = vrot.lane.b32.xlu0 %v1202, 8
        %v1372 = vpop.permute.xlu0 %1371
        %1373 = vrot.lane.b32.xlu0 %v1203, 8
        %v1374 = vpop.permute.xlu0 %1373
        %1375 = vrot.lane.b32.xlu0 %v1204, 8
        %v1376 = vpop.permute.xlu0 %1375
        %1377 = vrot.lane.b32.xlu0 %v1205, 8
        %v1378 = vpop.permute.xlu0 %1377
        %1379 = vrot.lane.b32.xlu0 %v1206, 8
        %v1380 = vpop.permute.xlu0 %1379
        %1381 = vrot.lane.b32.xlu0 %v1207, 8
        %v1382 = vpop.permute.xlu0 %1381
        %1383 = vrot.lane.b32.xlu0 %v1208, 8
        %v1384 = vpop.permute.xlu0 %1383
        %1417 = vrot.lane.b32.xlu0 %v1209, 12
        %v1418 = vpop.permute.xlu0 %1417
        %1419 = vrot.lane.b32.xlu0 %v1210, 12
        %v1420 = vpop.permute.xlu0 %1419
        %1421 = vrot.lane.b32.xlu0 %v1211, 12
        %v1422 = vpop.permute.xlu0 %1421
        %1423 = vrot.lane.b32.xlu0 %v1212, 12
        %v1424 = vpop.permute.xlu0 %1423
        %1425 = vrot.lane.b32.xlu0 %v1213, 12
        %v1426 = vpop.permute.xlu0 %1425
        %1427 = vrot.lane.b32.xlu0 %v1214, 12
        %v1428 = vpop.permute.xlu0 %1427
        %1429 = vrot.lane.b32.xlu0 %v1215, 12
        %v1430 = vpop.permute.xlu0 %1429
        %1431 = vrot.lane.b32.xlu0 %v1216, 12
        %v1432 = vpop.permute.xlu0 %1431
        %1433 = vrot.lane.b32.xlu0 %v1217, 12
        %v1434 = vpop.permute.xlu0 %1433
        %1435 = vrot.lane.b32.xlu0 %v1218, 12
        %v1436 = vpop.permute.xlu0 %1435
        %1437 = vrot.lane.b32.xlu0 %v1219, 12
        %v1438 = vpop.permute.xlu0 %1437
        %1439 = vrot.lane.b32.xlu0 %v1220, 12
        %v1440 = vpop.permute.xlu0 %1439
        %1441 = vrot.lane.b32.xlu0 %v1221, 12
        %v1442 = vpop.permute.xlu0 %1441
        %1443 = vrot.lane.b32.xlu0 %v1222, 12
        %v1444 = vpop.permute.xlu0 %1443
        %1445 = vrot.lane.b32.xlu0 %v1223, 12
        %v1446 = vpop.permute.xlu0 %1445
        %1447 = vrot.lane.b32.xlu0 %v1224, 12
        %v1448 = vpop.permute.xlu0 %1447
        %1481 = vrot.lane.b32.xlu0 %v1225, 16
        %v1482 = vpop.permute.xlu0 %1481
        %1483 = vrot.lane.b32.xlu0 %v1226, 16
        %v1484 = vpop.permute.xlu0 %1483
        %1485 = vrot.lane.b32.xlu0 %v1227, 16
        %v1486 = vpop.permute.xlu0 %1485
        %1487 = vrot.lane.b32.xlu0 %v1228, 16
        %v1488 = vpop.permute.xlu0 %1487
        %1489 = vrot.lane.b32.xlu0 %v1229, 16
        %v1490 = vpop.permute.xlu0 %1489
        %1491 = vrot.lane.b32.xlu0 %v1230, 16
        %v1492 = vpop.permute.xlu0 %1491
        %1493 = vrot.lane.b32.xlu0 %v1231, 16
        %v1494 = vpop.permute.xlu0 %1493
        %1495 = vrot.lane.b32.xlu0 %v1232, 16
        %v1496 = vpop.permute.xlu0 %1495
        %1497 = vrot.lane.b32.xlu0 %v1233, 16
        %v1498 = vpop.permute.xlu0 %1497
        %1499 = vrot.lane.b32.xlu0 %v1234, 16
        %v1500 = vpop.permute.xlu0 %1499
        %1501 = vrot.lane.b32.xlu0 %v1235, 16
        %v1502 = vpop.permute.xlu0 %1501
        %1503 = vrot.lane.b32.xlu0 %v1236, 16
        %v1504 = vpop.permute.xlu0 %1503
        %1505 = vrot.lane.b32.xlu0 %v1237, 16
        %v1506 = vpop.permute.xlu0 %1505
        %1507 = vrot.lane.b32.xlu0 %v1238, 16
        %v1508 = vpop.permute.xlu0 %1507
        %1509 = vrot.lane.b32.xlu0 %v1239, 16
        %v1510 = vpop.permute.xlu0 %1509
        %1511 = vrot.lane.b32.xlu0 %v1240, 16
        %v1512 = vpop.permute.xlu0 %1511
        %1545 = vrot.lane.b32.xlu0 %v1241, 20
        %v1546 = vpop.permute.xlu0 %1545
        %1547 = vrot.lane.b32.xlu0 %v1242, 20
        %v1548 = vpop.permute.xlu0 %1547
        %1549 = vrot.lane.b32.xlu0 %v1243, 20
        %v1550 = vpop.permute.xlu0 %1549
        %1551 = vrot.lane.b32.xlu0 %v1244, 20
        %v1552 = vpop.permute.xlu0 %1551
        %1553 = vrot.lane.b32.xlu0 %v1245, 20
        %v1554 = vpop.permute.xlu0 %1553
        %1555 = vrot.lane.b32.xlu0 %v1246, 20
        %v1556 = vpop.permute.xlu0 %1555
        %1557 = vrot.lane.b32.xlu0 %v1247, 20
        %v1558 = vpop.permute.xlu0 %1557
        %1559 = vrot.lane.b32.xlu0 %v1248, 20
        %v1560 = vpop.permute.xlu0 %1559
        %1561 = vrot.lane.b32.xlu0 %v1249, 20
        %v1562 = vpop.permute.xlu0 %1561
        %1563 = vrot.lane.b32.xlu0 %v1250, 20
        %v1564 = vpop.permute.xlu0 %1563
        %1565 = vrot.lane.b32.xlu0 %v1251, 20
        %v1566 = vpop.permute.xlu0 %1565
        %1567 = vrot.lane.b32.xlu0 %v1252, 20
        %v1568 = vpop.permute.xlu0 %1567
        %1569 = vrot.lane.b32.xlu0 %v1253, 20
        %v1570 = vpop.permute.xlu0 %1569
        %1571 = vrot.lane.b32.xlu0 %v1254, 20
        %v1572 = vpop.permute.xlu0 %1571
        %1573 = vrot.lane.b32.xlu0 %v1255, 20
        %v1574 = vpop.permute.xlu0 %1573
        %1575 = vrot.lane.b32.xlu0 %v1256, 20
        %v1576 = vpop.permute.xlu0 %1575
        %1609 = vrot.lane.b32.xlu0 %v1257, 24
        %v1610 = vpop.permute.xlu0 %1609
        %1611 = vrot.lane.b32.xlu0 %v1258, 24
        %v1612 = vpop.permute.xlu0 %1611
        %1613 = vrot.lane.b32.xlu0 %v1259, 24
        %v1614 = vpop.permute.xlu0 %1613
        %1615 = vrot.lane.b32.xlu0 %v1260, 24
        %v1616 = vpop.permute.xlu0 %1615
        %1617 = vrot.lane.b32.xlu0 %v1261, 24
        %v1618 = vpop.permute.xlu0 %1617
        %1619 = vrot.lane.b32.xlu0 %v1262, 24
        %v1620 = vpop.permute.xlu0 %1619
        %1621 = vrot.lane.b32.xlu0 %v1263, 24
        %v1622 = vpop.permute.xlu0 %1621
        %1623 = vrot.lane.b32.xlu0 %v1264, 24
        %v1624 = vpop.permute.xlu0 %1623
        %1625 = vrot.lane.b32.xlu0 %v1265, 24
        %v1626 = vpop.permute.xlu0 %1625
        %1627 = vrot.lane.b32.xlu0 %v1266, 24
        %v1628 = vpop.permute.xlu0 %1627
        %1629 = vrot.lane.b32.xlu0 %v1267, 24
        %v1630 = vpop.permute.xlu0 %1629
        %1631 = vrot.lane.b32.xlu0 %v1268, 24
        %v1632 = vpop.permute.xlu0 %1631
        %1633 = vrot.lane.b32.xlu0 %v1269, 24
        %v1634 = vpop.permute.xlu0 %1633
        %1635 = vrot.lane.b32.xlu0 %v1270, 24
        %v1636 = vpop.permute.xlu0 %1635
        %1637 = vrot.lane.b32.xlu0 %v1271, 24
        %v1638 = vpop.permute.xlu0 %1637
        %1639 = vrot.lane.b32.xlu0 %v1272, 24
        %v1640 = vpop.permute.xlu0 %1639
        %v1657 = vsel %vm1143, %v1161, %v1290
        %v1658 = vsel %vm1143, %v1162, %v1292
        %v1659 = vsel %vm1143, %v1163, %v1294
        %v1660 = vsel %vm1143, %v1164, %v1296
        %v1661 = vsel %vm1143, %v1165, %v1298
        %v1662 = vsel %vm1143, %v1166, %v1300
        %v1663 = vsel %vm1143, %v1167, %v1302
        %v1664 = vsel %vm1143, %v1168, %v1304
        %v1665 = vsel %vm1143, %v1169, %v1306
        %v1666 = vsel %vm1143, %v1170, %v1308
        %v1667 = vsel %vm1143, %v1171, %v1310
        %v1668 = vsel %vm1143, %v1172, %v1312
        %v1669 = vsel %vm1143, %v1173, %v1314
        %v1670 = vsel %vm1143, %v1174, %v1316
        %v1671 = vsel %vm1143, %v1175, %v1318
        %v1672 = vsel %vm1143, %v1176, %v1320
        %vm1673 = vcmask 64512
        %v1674 = vsel %vm1673, %v1657, %v1354
        %v1675 = vsel %vm1673, %v1658, %v1356
        %v1676 = vsel %vm1673, %v1659, %v1358
        %v1677 = vsel %vm1673, %v1660, %v1360
        %v1678 = vsel %vm1673, %v1661, %v1362
        %v1679 = vsel %vm1673, %v1662, %v1364
        %v1680 = vsel %vm1673, %v1663, %v1366
        %v1681 = vsel %vm1673, %v1664, %v1368
        %v1682 = vsel %vm1673, %v1665, %v1370
        %v1683 = vsel %vm1673, %v1666, %v1372
        %v1684 = vsel %vm1673, %v1667, %v1374
        %v1685 = vsel %vm1673, %v1668, %v1376
        %v1686 = vsel %vm1673, %v1669, %v1378
        %v1687 = vsel %vm1673, %v1670, %v1380
        %v1688 = vsel %vm1673, %v1671, %v1382
        %v1689 = vsel %vm1673, %v1672, %v1384
        %vm1690 = vcmask 97280
        %v1691 = vsel %vm1690, %v1674, %v1418
        %v1692 = vsel %vm1690, %v1675, %v1420
        %v1693 = vsel %vm1690, %v1676, %v1422
        %v1694 = vsel %vm1690, %v1677, %v1424
        %v1695 = vsel %vm1690, %v1678, %v1426
        %v1696 = vsel %vm1690, %v1679, %v1428
        %v1697 = vsel %vm1690, %v1680, %v1430
        %v1698 = vsel %vm1690, %v1681, %v1432
        %v1699 = vsel %vm1690, %v1682, %v1434
        %v1700 = vsel %vm1690, %v1683, %v1436
        %v1701 = vsel %vm1690, %v1684, %v1438
        %v1702 = vsel %vm1690, %v1685, %v1440
        %v1703 = vsel %vm1690, %v1686, %v1442
        %v1704 = vsel %vm1690, %v1687, %v1444
        %v1705 = vsel %vm1690, %v1688, %v1446
        %v1706 = vsel %vm1690, %v1689, %v1448
        %vm1707 = vcmask 130048
        %v1708 = vsel %vm1707, %v1691, %v1482
        %v1709 = vsel %vm1707, %v1692, %v1484
        %v1710 = vsel %vm1707, %v1693, %v1486
        %v1711 = vsel %vm1707, %v1694, %v1488
        %v1712 = vsel %vm1707, %v1695, %v1490
        %v1713 = vsel %vm1707, %v1696, %v1492
        %v1714 = vsel %vm1707, %v1697, %v1494
        %v1715 = vsel %vm1707, %v1698, %v1496
        %v1716 = vsel %vm1707, %v1699, %v1498
        %v1717 = vsel %vm1707, %v1700, %v1500
        %v1718 = vsel %vm1707, %v1701, %v1502
        %v1719 = vsel %vm1707, %v1702, %v1504
        %v1720 = vsel %vm1707, %v1703, %v1506
        %v1721 = vsel %vm1707, %v1704, %v1508
        %v1722 = vsel %vm1707, %v1705, %v1510
        %v1723 = vsel %vm1707, %v1706, %v1512
        %vm1724 = vcmask 162816
        %v1725 = vsel %vm1724, %v1708, %v1546
        %v1726 = vsel %vm1724, %v1709, %v1548
        %v1727 = vsel %vm1724, %v1710, %v1550
        %v1728 = vsel %vm1724, %v1711, %v1552
        %v1729 = vsel %vm1724, %v1712, %v1554
        %v1730 = vsel %vm1724, %v1713, %v1556
        %v1731 = vsel %vm1724, %v1714, %v1558
        %v1732 = vsel %vm1724, %v1715, %v1560
        %v1733 = vsel %vm1724, %v1716, %v1562
        %v1734 = vsel %vm1724, %v1717, %v1564
        %v1735 = vsel %vm1724, %v1718, %v1566
        %v1736 = vsel %vm1724, %v1719, %v1568
        %v1737 = vsel %vm1724, %v1720, %v1570
        %v1738 = vsel %vm1724, %v1721, %v1572
        %v1739 = vsel %vm1724, %v1722, %v1574
        %v1740 = vsel %vm1724, %v1723, %v1576
        %vm1741 = vcmask 195584
        %v1742 = vsel %vm1741, %v1725, %v1610
        %v1743 = vsel %vm1741, %v1726, %v1612
        %v1744 = vsel %vm1741, %v1727, %v1614
        %v1745 = vsel %vm1741, %v1728, %v1616
        %v1746 = vsel %vm1741, %v1729, %v1618
        %v1747 = vsel %vm1741, %v1730, %v1620
        %v1748 = vsel %vm1741, %v1731, %v1622
        %v1749 = vsel %vm1741, %v1732, %v1624
        %v1750 = vsel %vm1741, %v1733, %v1626
        %v1751 = vsel %vm1741, %v1734, %v1628
        %v1752 = vsel %vm1741, %v1735, %v1630
        %v1753 = vsel %vm1741, %v1736, %v1632
        %v1754 = vsel %vm1741, %v1737, %v1634
        %v1755 = vsel %vm1741, %v1738, %v1636
        %v1756 = vsel %vm1741, %v1739, %v1638
        %v1757 = vsel %vm1741, %v1740, %v1640
        %v1758 = vlaneseq
        %v1759 = vshrl.u32 %v1758, 7
        %v1760 = vsub.s32 0, %v1759
        %v1761 = vrot.slane %v1138, %v1760
        %vm1762 = vcmask 228352
        %v1764 = vsel %vm1762, %v1742, 0
        %v1767 = vsel %vm1762, %v1743, 0
        %v1770 = vsel %vm1762, %v1744, 0
        %v1773 = vsel %vm1762, %v1745, 0
        %v1776 = vsel %vm1762, %v1746, 0
        %v1779 = vsel %vm1762, %v1747, 0
        %v1782 = vsel %vm1762, %v1748, 0
        %v1785 = vsel %vm1762, %v1749, 0
        %v1788 = vsel %vm1762, %v1750, 0
        %v1791 = vsel %vm1762, %v1751, 0
        %v1794 = vsel %vm1762, %v1752, 0
        %v1797 = vsel %vm1762, %v1753, 0
        %v1800 = vsel %vm1762, %v1754, 0
        %v1803 = vsel %vm1762, %v1755, 0
        %v1806 = vsel %vm1762, %v1756, 0
        %v1809 = vsel %vm1762, %v1757, 0
        %vm1811 = vcmask 1043456
        %v1813 = vsel %vm1811, %v1137, 0
        %1815 = vmatprep.subr.mxu0 0.0
        %1816 = vmatpush1.msra.mxu0 %v1134
        %1817 = vmatprep.subr.mxu0 0.0
        %1818 = vmatpush1.msra.mxu0 %v1135
        %1819 = vmatprep.subr.mxu0 0.0
        %1820 = vmatpush1.msra.mxu0 %v1136
        %1821 = vmatprep.subr.mxu0 0.0
        %1822 = vmatpush1.msra.mxu0 %v1813
        %1823 = vmatprep.subr.mxu0 0.0
        %1824 = vmatpush1.msra.mxu0 0.0
        %1825 = vmatprep.subr.mxu0 0.0
        %1826 = vmatpush1.msra.mxu0 0.0
        %1827 = vmatprep.subr.mxu0 0.0
        %1828 = vmatpush1.msra.mxu0 0.0
        %1829 = vmatprep.subr.mxu0 0.0
        %1830 = vmatpush1.msra.mxu0 0.0
        %1831 = vmatprep.subr.mxu0 0.0
        %1832 = vmatpush1.msra.mxu0 0.0
        %1833 = vmatprep.subr.mxu0 0.0
        %1834 = vmatpush1.msra.mxu0 0.0
        %1835 = vmatprep.subr.mxu0 0.0
        %1836 = vmatpush1.msra.mxu0 0.0
        %1837 = vmatprep.subr.mxu0 0.0
        %1838 = vmatpush1.msra.mxu0 0.0
        %1839 = vmatprep.subr.mxu0 0.0
        %1840 = vmatpush1.msra.mxu0 0.0
        %1841 = vmatprep.subr.mxu0 0.0
        %1842 = vmatpush1.msra.mxu0 0.0
        %1843 = vmatprep.subr.mxu0 0.0
        %1844 = vmatpush1.msra.mxu0 0.0
        %1845 = vmatprep.subr.mxu0 0.0
        %1846 = vmatpush1.msra.mxu0 0.0
        %1847 = vmatprep.subr.mxu0 0.0
        %1848 = vmatpush1.msra.mxu0 0.0
        %1849 = vmatprep.subr.mxu0 0.0
        %1850 = vmatpush1.msra.mxu0 0.0
        %1851 = vmatprep.subr.mxu0 0.0
        %1852 = vmatpush1.msra.mxu0 0.0
        %1853 = vmatprep.subr.mxu0 0.0
        %1854 = vmatpush1.msra.mxu0 0.0
        %1855 = vmatprep.subr.mxu0 0.0
        %1856 = vmatpush1.msra.mxu0 0.0
        %1857 = vmatprep.subr.mxu0 0.0
        %1858 = vmatpush1.msra.mxu0 0.0
        %1859 = vmatprep.subr.mxu0 0.0
        %1860 = vmatpush1.msra.mxu0 0.0
        %1861 = vmatprep.subr.mxu0 0.0
        %1862 = vmatpush1.msra.mxu0 0.0
        %1863 = vmatprep.subr.mxu0 0.0
        %1864 = vmatpush1.msra.mxu0 0.0
        %1865 = vmatprep.subr.mxu0 0.0
        %1866 = vmatpush1.msra.mxu0 0.0
        %1867 = vmatprep.subr.mxu0 0.0
        %1868 = vmatpush1.msra.mxu0 0.0
        %1869 = vmatprep.subr.mxu0 0.0
        %1870 = vmatpush1.msra.mxu0 0.0
        %1871 = vmatprep.subr.mxu0 0.0
        %1872 = vmatpush1.msra.mxu0 0.0
        %1873 = vmatprep.subr.mxu0 0.0
        %1874 = vmatpush1.msra.mxu0 0.0
        %1875 = vmatprep.subr.mxu0 0.0
        %1876 = vmatpush1.msra.mxu0 0.0
        %1877 = vmatprep.subr.mxu0 0.0
        %1878 = vmatpush1.msra.mxu0 0.0
        %1879 = vmatprep.mubr.f32.mxu0 0.0
        %1880 = vmatmul.mubr.f32.gmra.mrb[0].mxu0 %v1764
        %v1881 = vpop.f32.mrb[0].mxu0
        %v1882 = vadd.f32 %v1761, %v1881
        %v1883 = vpop.f32.mrb[0].mxu0
        %1884 = vmatprep.mubr.f32.mxu0 0.0
        %1885 = vmatmul.mubr.f32.gmra.mrb[0].mxu0 %v1767
        %v1886 = vpop.f32.mrb[0].mxu0
        %v1887 = vadd.f32 %v1761, %v1886
        %v1888 = vpop.f32.mrb[0].mxu0
        %1889 = vmatprep.mubr.f32.mxu0 0.0
        %1890 = vmatmul.mubr.f32.gmra.mrb[0].mxu0 %v1770
        %v1891 = vpop.f32.mrb[0].mxu0
        %v1892 = vadd.f32 %v1761, %v1891
        %v1893 = vpop.f32.mrb[0].mxu0
        %1894 = vmatprep.mubr.f32.mxu0 0.0
        %1895 = vmatmul.mubr.f32.gmra.mrb[0].mxu0 %v1773
        %v1896 = vpop.f32.mrb[0].mxu0
        %v1897 = vadd.f32 %v1761, %v1896
        %v1898 = vpop.f32.mrb[0].mxu0
        %1899 = vmatprep.mubr.f32.mxu0 0.0
        %1900 = vmatmul.mubr.f32.gmra.mrb[0].mxu0 %v1776
        %v1901 = vpop.f32.mrb[0].mxu0
        %v1902 = vadd.f32 %v1761, %v1901
        %v1903 = vpop.f32.mrb[0].mxu0
        %1904 = vmatprep.mubr.f32.mxu0 0.0
        %1905 = vmatmul.mubr.f32.gmra.mrb[0].mxu0 %v1779
        %v1906 = vpop.f32.mrb[0].mxu0
        %v1907 = vadd.f32 %v1761, %v1906
        %v1908 = vpop.f32.mrb[0].mxu0
        %1909 = vmatprep.mubr.f32.mxu0 0.0
        %1910 = vmatmul.mubr.f32.gmra.mrb[0].mxu0 %v1782
        %v1911 = vpop.f32.mrb[0].mxu0
        %v1912 = vadd.f32 %v1761, %v1911
        %v1913 = vpop.f32.mrb[0].mxu0
        %1914 = vmatprep.mubr.f32.mxu0 0.0
        %1915 = vmatmul.mubr.f32.gmra.mrb[0].mxu0 %v1785
        %v1916 = vpop.f32.mrb[0].mxu0
        %v1917 = vadd.f32 %v1761, %v1916
        %v1918 = vpop.f32.mrb[0].mxu0
        %1919 = vmatprep.mubr.f32.mxu0 0.0
        %1920 = vmatmul.mubr.f32.gmra.mrb[0].mxu0 %v1788
        %v1921 = vpop.f32.mrb[0].mxu0
        %v1922 = vadd.f32 %v1761, %v1921
        %v1923 = vpop.f32.mrb[0].mxu0
        %1924 = vmatprep.mubr.f32.mxu0 0.0
        %1925 = vmatmul.mubr.f32.gmra.mrb[0].mxu0 %v1791
        %v1926 = vpop.f32.mrb[0].mxu0
        %v1927 = vadd.f32 %v1761, %v1926
        %v1928 = vpop.f32.mrb[0].mxu0
        %1929 = vmatprep.mubr.f32.mxu0 0.0
        %1930 = vmatmul.mubr.f32.gmra.mrb[0].mxu0 %v1794
        %v1931 = vpop.f32.mrb[0].mxu0
        %v1932 = vadd.f32 %v1761, %v1931
        %v1933 = vpop.f32.mrb[0].mxu0
        %1934 = vmatprep.mubr.f32.mxu0 0.0
        %1935 = vmatmul.mubr.f32.gmra.mrb[0].mxu0 %v1797
        %v1936 = vpop.f32.mrb[0].mxu0
        %v1937 = vadd.f32 %v1761, %v1936
        %v1938 = vpop.f32.mrb[0].mxu0
        %1939 = vmatprep.mubr.f32.mxu0 0.0
        %1940 = vmatmul.mubr.f32.gmra.mrb[0].mxu0 %v1800
        %v1941 = vpop.f32.mrb[0].mxu0
        %v1942 = vadd.f32 %v1761, %v1941
        %v1943 = vpop.f32.mrb[0].mxu0
        %1944 = vmatprep.mubr.f32.mxu0 0.0
        %1945 = vmatmul.mubr.f32.gmra.mrb[0].mxu0 %v1803
        %v1946 = vpop.f32.mrb[0].mxu0
        %v1947 = vadd.f32 %v1761, %v1946
        %v1948 = vpop.f32.mrb[0].mxu0
        %1949 = vmatprep.mubr.f32.mxu0 0.0
        %1950 = vmatmul.mubr.f32.gmra.mrb[0].mxu0 %v1806
        %v1951 = vpop.f32.mrb[0].mxu0
        %v1952 = vadd.f32 %v1761, %v1951
        %v1953 = vpop.f32.mrb[0].mxu0
        %1954 = vmatprep.mubr.f32.mxu0 0.0
        %1955 = vmatmul.mubr.f32.gmra.mrb[0].mxu0 %v1809
        %v1956 = vpop.f32.mrb[0].mxu0
        %v1957 = vadd.f32 %v1761, %v1956
        %v1958 = vpop.f32.mrb[0].mxu0
        %1959 = vdwg.mxu0
        %vm1960 = vcmp.gt.f32.partialorder %v1882, 0.0
        %vm1961 = vcmp.gt.f32.partialorder %v1887, 0.0
        %vm1962 = vcmp.gt.f32.partialorder %v1892, 0.0
        %vm1963 = vcmp.gt.f32.partialorder %v1897, 0.0
        %vm1964 = vcmp.gt.f32.partialorder %v1902, 0.0
        %vm1965 = vcmp.gt.f32.partialorder %v1907, 0.0
        %vm1966 = vcmp.gt.f32.partialorder %v1912, 0.0
        %vm1967 = vcmp.gt.f32.partialorder %v1917, 0.0
        %vm1968 = vcmp.gt.f32.partialorder %v1922, 0.0
        %vm1969 = vcmp.gt.f32.partialorder %v1927, 0.0
        %vm1970 = vcmp.gt.f32.partialorder %v1932, 0.0
        %vm1971 = vcmp.gt.f32.partialorder %v1937, 0.0
        %vm1972 = vcmp.gt.f32.partialorder %v1942, 0.0
        %vm1973 = vcmp.gt.f32.partialorder %v1947, 0.0
        %vm1974 = vcmp.gt.f32.partialorder %v1952, 0.0
        %vm1975 = vcmp.gt.f32.partialorder %v1957, 0.0
        %v1976 = vmin.f32 %v1882, 0.0
        %v1977 = vmin.f32 %v1887, 0.0
        %v1978 = vmin.f32 %v1892, 0.0
        %v1979 = vmin.f32 %v1897, 0.0
        %v1980 = vmin.f32 %v1902, 0.0
        %v1981 = vmin.f32 %v1907, 0.0
        %v1982 = vmin.f32 %v1912, 0.0
        %v1983 = vmin.f32 %v1917, 0.0
        %v1984 = vmin.f32 %v1922, 0.0
        %v1985 = vmin.f32 %v1927, 0.0
        %v1986 = vmin.f32 %v1932, 0.0
        %v1987 = vmin.f32 %v1937, 0.0
        %v1988 = vmin.f32 %v1942, 0.0
        %v1989 = vmin.f32 %v1947, 0.0
        %v1990 = vmin.f32 %v1952, 0.0
        %v1991 = vmin.f32 %v1957, 0.0
        %v1992 = vmul.f32 %v1976, 1.442695
        %v1993 = vpow.pop %v1992
        %v1994 = vmul.f32 %v1977, 1.442695
        %v1995 = vpow.pop %v1994
        %v1996 = vmul.f32 %v1978, 1.442695
        %v1997 = vpow.pop %v1996
        %v1998 = vmul.f32 %v1979, 1.442695
        %v1999 = vpow.pop %v1998
        %v2000 = vmul.f32 %v1980, 1.442695
        %v2001 = vpow.pop %v2000
        %v2002 = vmul.f32 %v1981, 1.442695
        %v2003 = vpow.pop %v2002
        %v2004 = vmul.f32 %v1982, 1.442695
        %v2005 = vpow.pop %v2004
        %v2006 = vmul.f32 %v1983, 1.442695
        %v2007 = vpow.pop %v2006
        %v2008 = vmul.f32 %v1984, 1.442695
        %v2009 = vpow.pop %v2008
        %v2010 = vmul.f32 %v1985, 1.442695
        %v2011 = vpow.pop %v2010
        %v2012 = vmul.f32 %v1986, 1.442695
        %v2013 = vpow.pop %v2012
        %v2014 = vmul.f32 %v1987, 1.442695
        %v2015 = vpow.pop %v2014
        %v2016 = vmul.f32 %v1988, 1.442695
        %v2017 = vpow.pop %v2016
        %v2018 = vmul.f32 %v1989, 1.442695
        %v2019 = vpow.pop %v2018
        %v2020 = vmul.f32 %v1990, 1.442695
        %v2021 = vpow.pop %v2020
        %v2022 = vmul.f32 %v1991, 1.442695
        %v2023 = vpow.pop %v2022
        %v2024 = vsub.f32 %v1993, 1.0
        %v2025 = vsub.f32 %v1995, 1.0
        %v2026 = vsub.f32 %v1997, 1.0
        %v2027 = vsub.f32 %v1999, 1.0
        %v2028 = vsub.f32 %v2001, 1.0
        %v2029 = vsub.f32 %v2003, 1.0
        %v2030 = vsub.f32 %v2005, 1.0
        %v2031 = vsub.f32 %v2007, 1.0
        %v2032 = vsub.f32 %v2009, 1.0
        %v2033 = vsub.f32 %v2011, 1.0
        %v2034 = vsub.f32 %v2013, 1.0
        %v2035 = vsub.f32 %v2015, 1.0
        %v2036 = vsub.f32 %v2017, 1.0
        %v2037 = vsub.f32 %v2019, 1.0
        %v2038 = vsub.f32 %v2021, 1.0
        %v2039 = vsub.f32 %v2023, 1.0
        %v2040 = vsel %vm1960, %v1882, %v2024
        %v2041 = vsel %vm1961, %v1887, %v2025
        %v2042 = vsel %vm1962, %v1892, %v2026
        %v2043 = vsel %vm1963, %v1897, %v2027
        %v2044 = vsel %vm1964, %v1902, %v2028
        %v2045 = vsel %vm1965, %v1907, %v2029
        %v2046 = vsel %vm1966, %v1912, %v2030
        %v2047 = vsel %vm1967, %v1917, %v2031
        %v2048 = vsel %vm1968, %v1922, %v2032
        %v2049 = vsel %vm1969, %v1927, %v2033
        %v2050 = vsel %vm1970, %v1932, %v2034
        %v2051 = vsel %vm1971, %v1937, %v2035
        %v2052 = vsel %vm1972, %v1942, %v2036
        %v2053 = vsel %vm1973, %v1947, %v2037
        %v2054 = vsel %vm1974, %v1952, %v2038
        %v2055 = vsel %vm1975, %v1957, %v2039
        %v2056 = vlaneseq
        %v2057 = vshrl.u32 %v2056, 7
        %v2058 = vsub.s32 0, %v2057
        %v2059 = vrot.slane %v1140, %v2058
        %v2061 = vsel %vm1143, %v2040, 0
        %v2064 = vsel %vm1143, %v2041, 0
        %v2067 = vsel %vm1143, %v2042, 0
        %v2070 = vsel %vm1143, %v2043, 0
        %v2073 = vsel %vm1143, %v2044, 0
        %v2076 = vsel %vm1143, %v2045, 0
        %v2079 = vsel %vm1143, %v2046, 0
        %v2082 = vsel %vm1143, %v2047, 0
        %v2085 = vsel %vm1143, %v2048, 0
        %v2088 = vsel %vm1143, %v2049, 0
        %v2091 = vsel %vm1143, %v2050, 0
        %v2094 = vsel %vm1143, %v2051, 0
        %v2097 = vsel %vm1143, %v2052, 0
        %v2100 = vsel %vm1143, %v2053, 0
        %v2103 = vsel %vm1143, %v2054, 0
        %v2106 = vsel %vm1143, %v2055, 0
        %v2109 = vsel %vm1811, %v1139, 0
        %2111 = vmatprep.subr.mxu0 0.0
        %2112 = vmatpush1.msra.mxu0 %v2109
        %2113 = vmatprep.subr.mxu0 0.0
        %2114 = vmatpush1.msra.mxu0 0.0
        %2115 = vmatprep.subr.mxu0 0.0
        %2116 = vmatpush1.msra.mxu0 0.0
        %2117 = vmatprep.subr.mxu0 0.0
        %2118 = vmatpush1.msra.mxu0 0.0
        %2119 = vmatprep.subr.mxu0 0.0
        %2120 = vmatpush1.msra.mxu0 0.0
        %2121 = vmatprep.subr.mxu0 0.0
        %2122 = vmatpush1.msra.mxu0 0.0
        %2123 = vmatprep.subr.mxu0 0.0
        %2124 = vmatpush1.msra.mxu0 0.0
        %2125 = vmatprep.subr.mxu0 0.0
        %2126 = vmatpush1.msra.mxu0 0.0
        %2127 = vmatprep.subr.mxu0 0.0
        %2128 = vmatpush1.msra.mxu0 0.0
        %2129 = vmatprep.subr.mxu0 0.0
        %2130 = vmatpush1.msra.mxu0 0.0
        %2131 = vmatprep.subr.mxu0 0.0
        %2132 = vmatpush1.msra.mxu0 0.0
        %2133 = vmatprep.subr.mxu0 0.0
        %2134 = vmatpush1.msra.mxu0 0.0
        %2135 = vmatprep.subr.mxu0 0.0
        %2136 = vmatpush1.msra.mxu0 0.0
        %2137 = vmatprep.subr.mxu0 0.0
        %2138 = vmatpush1.msra.mxu0 0.0
        %2139 = vmatprep.subr.mxu0 0.0
        %2140 = vmatpush1.msra.mxu0 0.0
        %2141 = vmatprep.subr.mxu0 0.0
        %2142 = vmatpush1.msra.mxu0 0.0
        %2143 = vmatprep.subr.mxu0 0.0
        %2144 = vmatpush1.msra.mxu0 0.0
        %2145 = vmatprep.subr.mxu0 0.0
        %2146 = vmatpush1.msra.mxu0 0.0
        %2147 = vmatprep.subr.mxu0 0.0
        %2148 = vmatpush1.msra.mxu0 0.0
        %2149 = vmatprep.subr.mxu0 0.0
        %2150 = vmatpush1.msra.mxu0 0.0
        %2151 = vmatprep.subr.mxu0 0.0
        %2152 = vmatpush1.msra.mxu0 0.0
        %2153 = vmatprep.subr.mxu0 0.0
        %2154 = vmatpush1.msra.mxu0 0.0
        %2155 = vmatprep.subr.mxu0 0.0
        %2156 = vmatpush1.msra.mxu0 0.0
        %2157 = vmatprep.subr.mxu0 0.0
        %2158 = vmatpush1.msra.mxu0 0.0
        %2159 = vmatprep.subr.mxu0 0.0
        %2160 = vmatpush1.msra.mxu0 0.0
        %2161 = vmatprep.subr.mxu0 0.0
        %2162 = vmatpush1.msra.mxu0 0.0
        %2163 = vmatprep.subr.mxu0 0.0
        %2164 = vmatpush1.msra.mxu0 0.0
        %2165 = vmatprep.subr.mxu0 0.0
        %2166 = vmatpush1.msra.mxu0 0.0
        %2167 = vmatprep.subr.mxu0 0.0
        %2168 = vmatpush1.msra.mxu0 0.0
        %2169 = vmatprep.subr.mxu0 0.0
        %2170 = vmatpush1.msra.mxu0 0.0
        %2171 = vmatprep.subr.mxu0 0.0
        %2172 = vmatpush1.msra.mxu0 0.0
        %2173 = vmatprep.subr.mxu0 0.0
        %2174 = vmatpush1.msra.mxu0 0.0
        %2175 = vmatprep.mubr.f32.mxu0 0.0
        %2176 = vmatmul.mubr.f32.gmra.mrb[0].mxu0 %v2061
        %v2177 = vpop.f32.mrb[0].mxu0
        %v2178 = vadd.f32 %v2059, %v2177
        %v2179 = vpop.f32.mrb[0].mxu0
        %2180 = vmatprep.mubr.f32.mxu0 0.0
        %2181 = vmatmul.mubr.f32.gmra.mrb[0].mxu0 %v2064
        %v2182 = vpop.f32.mrb[0].mxu0
        %v2183 = vadd.f32 %v2059, %v2182
        %v2184 = vpop.f32.mrb[0].mxu0
        %2185 = vmatprep.mubr.f32.mxu0 0.0
        %2186 = vmatmul.mubr.f32.gmra.mrb[0].mxu0 %v2067
        %v2187 = vpop.f32.mrb[0].mxu0
        %v2188 = vadd.f32 %v2059, %v2187
        %v2189 = vpop.f32.mrb[0].mxu0
        %2190 = vmatprep.mubr.f32.mxu0 0.0
        %2191 = vmatmul.mubr.f32.gmra.mrb[0].mxu0 %v2070
        %v2192 = vpop.f32.mrb[0].mxu0
        %v2193 = vadd.f32 %v2059, %v2192
        %v2194 = vpop.f32.mrb[0].mxu0
        %2195 = vmatprep.mubr.f32.mxu0 0.0
        %2196 = vmatmul.mubr.f32.gmra.mrb[0].mxu0 %v2073
        %v2197 = vpop.f32.mrb[0].mxu0
        %v2198 = vadd.f32 %v2059, %v2197
        %v2199 = vpop.f32.mrb[0].mxu0
        %2200 = vmatprep.mubr.f32.mxu0 0.0
        %2201 = vmatmul.mubr.f32.gmra.mrb[0].mxu0 %v2076
        %v2202 = vpop.f32.mrb[0].mxu0
        %v2203 = vadd.f32 %v2059, %v2202
        %v2204 = vpop.f32.mrb[0].mxu0
        %2205 = vmatprep.mubr.f32.mxu0 0.0
        %2206 = vmatmul.mubr.f32.gmra.mrb[0].mxu0 %v2079
        %v2207 = vpop.f32.mrb[0].mxu0
        %v2208 = vadd.f32 %v2059, %v2207
        %v2209 = vpop.f32.mrb[0].mxu0
        %2210 = vmatprep.mubr.f32.mxu0 0.0
        %2211 = vmatmul.mubr.f32.gmra.mrb[0].mxu0 %v2082
        %v2212 = vpop.f32.mrb[0].mxu0
        %v2213 = vadd.f32 %v2059, %v2212
        %v2214 = vpop.f32.mrb[0].mxu0
        %2215 = vmatprep.mubr.f32.mxu0 0.0
        %2216 = vmatmul.mubr.f32.gmra.mrb[0].mxu0 %v2085
        %v2217 = vpop.f32.mrb[0].mxu0
        %v2218 = vadd.f32 %v2059, %v2217
        %v2219 = vpop.f32.mrb[0].mxu0
        %2220 = vmatprep.mubr.f32.mxu0 0.0
        %2221 = vmatmul.mubr.f32.gmra.mrb[0].mxu0 %v2088
        %v2222 = vpop.f32.mrb[0].mxu0
        %v2223 = vadd.f32 %v2059, %v2222
        %v2224 = vpop.f32.mrb[0].mxu0
        %2225 = vmatprep.mubr.f32.mxu0 0.0
        %2226 = vmatmul.mubr.f32.gmra.mrb[0].mxu0 %v2091
        %v2227 = vpop.f32.mrb[0].mxu0
        %v2228 = vadd.f32 %v2059, %v2227
        %v2229 = vpop.f32.mrb[0].mxu0
        %2230 = vmatprep.mubr.f32.mxu0 0.0
        %2231 = vmatmul.mubr.f32.gmra.mrb[0].mxu0 %v2094
        %v2232 = vpop.f32.mrb[0].mxu0
        %v2233 = vadd.f32 %v2059, %v2232
        %v2234 = vpop.f32.mrb[0].mxu0
        %2235 = vmatprep.mubr.f32.mxu0 0.0
        %2236 = vmatmul.mubr.f32.gmra.mrb[0].mxu0 %v2097
        %v2237 = vpop.f32.mrb[0].mxu0
        %v2238 = vadd.f32 %v2059, %v2237
        %v2239 = vpop.f32.mrb[0].mxu0
        %2240 = vmatprep.mubr.f32.mxu0 0.0
        %2241 = vmatmul.mubr.f32.gmra.mrb[0].mxu0 %v2100
        %v2242 = vpop.f32.mrb[0].mxu0
        %v2243 = vadd.f32 %v2059, %v2242
        %v2244 = vpop.f32.mrb[0].mxu0
        %2245 = vmatprep.mubr.f32.mxu0 0.0
        %2246 = vmatmul.mubr.f32.gmra.mrb[0].mxu0 %v2103
        %v2247 = vpop.f32.mrb[0].mxu0
        %v2248 = vadd.f32 %v2059, %v2247
        %v2249 = vpop.f32.mrb[0].mxu0
        %2250 = vmatprep.mubr.f32.mxu0 0.0
        %2251 = vmatmul.mubr.f32.gmra.mrb[0].mxu0 %v2106
        %v2252 = vpop.f32.mrb[0].mxu0
        %v2253 = vadd.f32 %v2059, %v2252
        %v2254 = vpop.f32.mrb[0].mxu0
        %2255 = vdwg.mxu0
        %vm2256 = vcmp.gt.f32.partialorder %v2178, 0.0
        %vm2257 = vcmp.gt.f32.partialorder %v2183, 0.0
        %vm2258 = vcmp.gt.f32.partialorder %v2188, 0.0
        %vm2259 = vcmp.gt.f32.partialorder %v2193, 0.0
        %vm2260 = vcmp.gt.f32.partialorder %v2198, 0.0
        %vm2261 = vcmp.gt.f32.partialorder %v2203, 0.0
        %vm2262 = vcmp.gt.f32.partialorder %v2208, 0.0
        %vm2263 = vcmp.gt.f32.partialorder %v2213, 0.0
        %vm2264 = vcmp.gt.f32.partialorder %v2218, 0.0
        %vm2265 = vcmp.gt.f32.partialorder %v2223, 0.0
        %vm2266 = vcmp.gt.f32.partialorder %v2228, 0.0
        %vm2267 = vcmp.gt.f32.partialorder %v2233, 0.0
        %vm2268 = vcmp.gt.f32.partialorder %v2238, 0.0
        %vm2269 = vcmp.gt.f32.partialorder %v2243, 0.0
        %vm2270 = vcmp.gt.f32.partialorder %v2248, 0.0
        %vm2271 = vcmp.gt.f32.partialorder %v2253, 0.0
        %v2272 = vmin.f32 %v2178, 0.0
        %v2273 = vmin.f32 %v2183, 0.0
        %v2274 = vmin.f32 %v2188, 0.0
        %v2275 = vmin.f32 %v2193, 0.0
        %v2276 = vmin.f32 %v2198, 0.0
        %v2277 = vmin.f32 %v2203, 0.0
        %v2278 = vmin.f32 %v2208, 0.0
        %v2279 = vmin.f32 %v2213, 0.0
        %v2280 = vmin.f32 %v2218, 0.0
        %v2281 = vmin.f32 %v2223, 0.0
        %v2282 = vmin.f32 %v2228, 0.0
        %v2283 = vmin.f32 %v2233, 0.0
        %v2284 = vmin.f32 %v2238, 0.0
        %v2285 = vmin.f32 %v2243, 0.0
        %v2286 = vmin.f32 %v2248, 0.0
        %v2287 = vmin.f32 %v2253, 0.0
        %v2288 = vmul.f32 %v2272, 1.442695
        %v2289 = vpow.pop %v2288
        %v2290 = vmul.f32 %v2273, 1.442695
        %v2291 = vpow.pop %v2290
        %v2292 = vmul.f32 %v2274, 1.442695
        %v2293 = vpow.pop %v2292
        %v2294 = vmul.f32 %v2275, 1.442695
        %v2295 = vpow.pop %v2294
        %v2296 = vmul.f32 %v2276, 1.442695
        %v2297 = vpow.pop %v2296
        %v2298 = vmul.f32 %v2277, 1.442695
        %v2299 = vpow.pop %v2298
        %v2300 = vmul.f32 %v2278, 1.442695
        %v2301 = vpow.pop %v2300
        %v2302 = vmul.f32 %v2279, 1.442695
        %v2303 = vpow.pop %v2302
        %v2304 = vmul.f32 %v2280, 1.442695
        %v2305 = vpow.pop %v2304
        %v2306 = vmul.f32 %v2281, 1.442695
        %v2307 = vpow.pop %v2306
        %v2308 = vmul.f32 %v2282, 1.442695
        %v2309 = vpow.pop %v2308
        %v2310 = vmul.f32 %v2283, 1.442695
        %v2311 = vpow.pop %v2310
        %v2312 = vmul.f32 %v2284, 1.442695
        %v2313 = vpow.pop %v2312
        %v2314 = vmul.f32 %v2285, 1.442695
        %v2315 = vpow.pop %v2314
        %v2316 = vmul.f32 %v2286, 1.442695
        %v2317 = vpow.pop %v2316
        %v2318 = vmul.f32 %v2287, 1.442695
        %v2319 = vpow.pop %v2318
        %v2320 = vsub.f32 %v2289, 1.0
        %v2321 = vsub.f32 %v2291, 1.0
        %v2322 = vsub.f32 %v2293, 1.0
        %v2323 = vsub.f32 %v2295, 1.0
        %v2324 = vsub.f32 %v2297, 1.0
        %v2325 = vsub.f32 %v2299, 1.0
        %v2326 = vsub.f32 %v2301, 1.0
        %v2327 = vsub.f32 %v2303, 1.0
        %v2328 = vsub.f32 %v2305, 1.0
        %v2329 = vsub.f32 %v2307, 1.0
        %v2330 = vsub.f32 %v2309, 1.0
        %v2331 = vsub.f32 %v2311, 1.0
        %v2332 = vsub.f32 %v2313, 1.0
        %v2333 = vsub.f32 %v2315, 1.0
        %v2334 = vsub.f32 %v2317, 1.0
        %v2335 = vsub.f32 %v2319, 1.0
        %v2336 = vsel %vm2256, %v2178, %v2320
        %v2337 = vsel %vm2257, %v2183, %v2321
        %v2338 = vsel %vm2258, %v2188, %v2322
        %v2339 = vsel %vm2259, %v2193, %v2323
        %v2340 = vsel %vm2260, %v2198, %v2324
        %v2341 = vsel %vm2261, %v2203, %v2325
        %v2342 = vsel %vm2262, %v2208, %v2326
        %v2343 = vsel %vm2263, %v2213, %v2327
        %v2344 = vsel %vm2264, %v2218, %v2328
        %v2345 = vsel %vm2265, %v2223, %v2329
        %v2346 = vsel %vm2266, %v2228, %v2330
        %v2347 = vsel %vm2267, %v2233, %v2331
        %v2348 = vsel %vm2268, %v2238, %v2332
        %v2349 = vsel %vm2269, %v2243, %v2333
        %v2350 = vsel %vm2270, %v2248, %v2334
        %v2351 = vsel %vm2271, %v2253, %v2335
        %v2352 = vadd.f32 %v1118, %v2336
        %v2353 = vadd.f32 %v1119, %v2337
        %v2354 = vadd.f32 %v1120, %v2338
        %v2355 = vadd.f32 %v1121, %v2339
        %v2356 = vadd.f32 %v1122, %v2340
        %v2357 = vadd.f32 %v1123, %v2341
        %v2358 = vadd.f32 %v1124, %v2342
        %v2359 = vadd.f32 %v1125, %v2343
        %v2360 = vadd.f32 %v1126, %v2344
        %v2361 = vadd.f32 %v1127, %v2345
        %v2362 = vadd.f32 %v1128, %v2346
        %v2363 = vadd.f32 %v1129, %v2347
        %v2364 = vadd.f32 %v1130, %v2348
        %v2365 = vadd.f32 %v1131, %v2349
        %v2366 = vadd.f32 %v1132, %v2350
        %v2367 = vadd.f32 %v1133, %v2351
        %v2368 = vld [vmem:[%s1 + $0x20] sm:$0xff]
        %v2369 = vld [vmem:[%s1 + $0x28] sm:$0xff]
        %v2370 = vld [vmem:[%s1 + $0x30] sm:$0xff]
        %v2371 = vld [vmem:[%s1 + $0x38] sm:$0xf]
        %v2372 = vld [vmem:[%s2 + $0xa] sm:$0x1]
        %v2373 = vld [vmem:[%s1 + $0x3c] sm:$0xf]
        %v2374 = vld [vmem:[%s2 + $0xb] sm:$0x1]
        %2375 = vst.msk [vmem:[#allocation2] sm:$0xff] %vm1143, 0.0
        %vm2376 = vcmask 24576
        %2377 = vst.msk [vmem:[#allocation2 + $0x8] sm:$0x1] %vm2376, 0.0
        %2378 = vst.msk [vmem:[#allocation2 + $0x9] sm:$0xff] %vm1143, %v2352
        %2379 = vst.msk [vmem:[#allocation2 + $0x11] sm:$0xff] %vm1143, %v2353
        %2380 = vst.msk [vmem:[#allocation2 + $0x19] sm:$0xff] %vm1143, %v2354
        %2381 = vst.msk [vmem:[#allocation2 + $0x21] sm:$0xff] %vm1143, %v2355
        %2382 = vst.msk [vmem:[#allocation2 + $0x29] sm:$0xff] %vm1143, %v2356
        %2383 = vst.msk [vmem:[#allocation2 + $0x31] sm:$0xff] %vm1143, %v2357
        %2384 = vst.msk [vmem:[#allocation2 + $0x39] sm:$0xff] %vm1143, %v2358
        %2385 = vst.msk [vmem:[#allocation2 + $0x41] sm:$0xff] %vm1143, %v2359
        %2386 = vst.msk [vmem:[#allocation2 + $0x49] sm:$0xff] %vm1143, %v2360
        %2387 = vst.msk [vmem:[#allocation2 + $0x51] sm:$0xff] %vm1143, %v2361
        %2388 = vst.msk [vmem:[#allocation2 + $0x59] sm:$0xff] %vm1143, %v2362
        %2389 = vst.msk [vmem:[#allocation2 + $0x61] sm:$0xff] %vm1143, %v2363
        %2390 = vst.msk [vmem:[#allocation2 + $0x69] sm:$0xff] %vm1143, %v2364
        %2391 = vst.msk [vmem:[#allocation2 + $0x71] sm:$0xff] %vm1143, %v2365
        %2392 = vst.msk [vmem:[#allocation2 + $0x79] sm:$0xff] %vm1143, %v2366
        %2393 = vst.msk [vmem:[#allocation2 + $0x81] sm:$0xff] %vm1143, %v2367
        %2394 = vst.msk [vmem:[#allocation2 + $0x89] sm:$0xff] %vm1143, 0.0
        %2395 = vst.msk [vmem:[#allocation2 + $0x91] sm:$0x1] %vm2376, 0.0
        %v2396 = vld [vmem:[#allocation2] sm:$0xff]
        %v2397 = vld [vmem:[#allocation2 + $0x8] sm:$0xff]
        %v2398 = vld [vmem:[#allocation2 + $0x10] sm:$0xff]
        %v2399 = vld [vmem:[#allocation2 + $0x18] sm:$0xff]
        %v2400 = vld [vmem:[#allocation2 + $0x20] sm:$0xff]
        %v2401 = vld [vmem:[#allocation2 + $0x28] sm:$0xff]
        %v2402 = vld [vmem:[#allocation2 + $0x30] sm:$0xff]
        %v2403 = vld [vmem:[#allocation2 + $0x38] sm:$0xff]
        %v2404 = vld [vmem:[#allocation2 + $0x40] sm:$0xff]
        %v2405 = vld [vmem:[#allocation2 + $0x48] sm:$0xff]
        %v2406 = vld [vmem:[#allocation2 + $0x50] sm:$0xff]
        %v2407 = vld [vmem:[#allocation2 + $0x58] sm:$0xff]
        %v2408 = vld [vmem:[#allocation2 + $0x60] sm:$0xff]
        %v2409 = vld [vmem:[#allocation2 + $0x68] sm:$0xff]
        %v2410 = vld [vmem:[#allocation2 + $0x70] sm:$0xff]
        %v2411 = vld [vmem:[#allocation2 + $0x78] sm:$0xff]
        %v2412 = vld [vmem:[#allocation2 + $0x3] sm:$0xff]
        %v2413 = vld [vmem:[#allocation2 + $0xb] sm:$0xff]
        %v2414 = vld [vmem:[#allocation2 + $0x13] sm:$0xff]
        %v2415 = vld [vmem:[#allocation2 + $0x1b] sm:$0xff]
        %v2416 = vld [vmem:[#allocation2 + $0x23] sm:$0xff]
        %v2417 = vld [vmem:[#allocation2 + $0x2b] sm:$0xff]
        %v2418 = vld [vmem:[#allocation2 + $0x33] sm:$0xff]
        %v2419 = vld [vmem:[#allocation2 + $0x3b] sm:$0xff]
        %v2420 = vld [vmem:[#allocation2 + $0x43] sm:$0xff]
        %v2421 = vld [vmem:[#allocation2 + $0x4b] sm:$0xff]
        %v2422 = vld [vmem:[#allocation2 + $0x53] sm:$0xff]
        %v2423 = vld [vmem:[#allocation2 + $0x5b] sm:$0xff]
        %v2424 = vld [vmem:[#allocation2 + $0x63] sm:$0xff]
        %v2425 = vld [vmem:[#allocation2 + $0x6b] sm:$0xff]
        %v2426 = vld [vmem:[#allocation2 + $0x73] sm:$0xff]
        %v2427 = vld [vmem:[#allocation2 + $0x7b] sm:$0xff]
        %v2428 = vld [vmem:[#allocation2 + $0x6] sm:$0xff]
        %v2429 = vld [vmem:[#allocation2 + $0xe] sm:$0xff]
        %v2430 = vld [vmem:[#allocation2 + $0x16] sm:$0xff]
        %v2431 = vld [vmem:[#allocation2 + $0x1e] sm:$0xff]
        %v2432 = vld [vmem:[#allocation2 + $0x26] sm:$0xff]
        %v2433 = vld [vmem:[#allocation2 + $0x2e] sm:$0xff]
        %v2434 = vld [vmem:[#allocation2 + $0x36] sm:$0xff]
        %v2435 = vld [vmem:[#allocation2 + $0x3e] sm:$0xff]
        %v2436 = vld [vmem:[#allocation2 + $0x46] sm:$0xff]
        %v2437 = vld [vmem:[#allocation2 + $0x4e] sm:$0xff]
        %v2438 = vld [vmem:[#allocation2 + $0x56] sm:$0xff]
        %v2439 = vld [vmem:[#allocation2 + $0x5e] sm:$0xff]
        %v2440 = vld [vmem:[#allocation2 + $0x66] sm:$0xff]
        %v2441 = vld [vmem:[#allocation2 + $0x6e] sm:$0xff]
        %v2442 = vld [vmem:[#allocation2 + $0x76] sm:$0xff]
        %v2443 = vld [vmem:[#allocation2 + $0x7e] sm:$0xff]
        %v2444 = vld [vmem:[#allocation2 + $0x9] sm:$0xff]
        %v2445 = vld [vmem:[#allocation2 + $0x11] sm:$0xff]
        %v2446 = vld [vmem:[#allocation2 + $0x19] sm:$0xff]
        %v2447 = vld [vmem:[#allocation2 + $0x21] sm:$0xff]
        %v2448 = vld [vmem:[#allocation2 + $0x29] sm:$0xff]
        %v2449 = vld [vmem:[#allocation2 + $0x31] sm:$0xff]
        %v2450 = vld [vmem:[#allocation2 + $0x39] sm:$0xff]
        %v2451 = vld [vmem:[#allocation2 + $0x41] sm:$0xff]
        %v2452 = vld [vmem:[#allocation2 + $0x49] sm:$0xff]
        %v2453 = vld [vmem:[#allocation2 + $0x51] sm:$0xff]
        %v2454 = vld [vmem:[#allocation2 + $0x59] sm:$0xff]
        %v2455 = vld [vmem:[#allocation2 + $0x61] sm:$0xff]
        %v2456 = vld [vmem:[#allocation2 + $0x69] sm:$0xff]
        %v2457 = vld [vmem:[#allocation2 + $0x71] sm:$0xff]
        %v2458 = vld [vmem:[#allocation2 + $0x79] sm:$0xff]
        %v2459 = vld [vmem:[#allocation2 + $0x81] sm:$0xff]
        %v2460 = vld [vmem:[#allocation2 + $0xc] sm:$0xff]
        %v2461 = vld [vmem:[#allocation2 + $0x14] sm:$0xff]
        %v2462 = vld [vmem:[#allocation2 + $0x1c] sm:$0xff]
        %v2463 = vld [vmem:[#allocation2 + $0x24] sm:$0xff]
        %v2464 = vld [vmem:[#allocation2 + $0x2c] sm:$0xff]
        %v2465 = vld [vmem:[#allocation2 + $0x34] sm:$0xff]
        %v2466 = vld [vmem:[#allocation2 + $0x3c] sm:$0xff]
        %v2467 = vld [vmem:[#allocation2 + $0x44] sm:$0xff]
        %v2468 = vld [vmem:[#allocation2 + $0x4c] sm:$0xff]
        %v2469 = vld [vmem:[#allocation2 + $0x54] sm:$0xff]
        %v2470 = vld [vmem:[#allocation2 + $0x5c] sm:$0xff]
        %v2471 = vld [vmem:[#allocation2 + $0x64] sm:$0xff]
        %v2472 = vld [vmem:[#allocation2 + $0x6c] sm:$0xff]
        %v2473 = vld [vmem:[#allocation2 + $0x74] sm:$0xff]
        %v2474 = vld [vmem:[#allocation2 + $0x7c] sm:$0xff]
        %v2475 = vld [vmem:[#allocation2 + $0x84] sm:$0xff]
        %v2476 = vld [vmem:[#allocation2 + $0xf] sm:$0xff]
        %v2477 = vld [vmem:[#allocation2 + $0x17] sm:$0xff]
        %v2478 = vld [vmem:[#allocation2 + $0x1f] sm:$0xff]
        %v2479 = vld [vmem:[#allocation2 + $0x27] sm:$0xff]
        %v2480 = vld [vmem:[#allocation2 + $0x2f] sm:$0xff]
        %v2481 = vld [vmem:[#allocation2 + $0x37] sm:$0xff]
        %v2482 = vld [vmem:[#allocation2 + $0x3f] sm:$0xff]
        %v2483 = vld [vmem:[#allocation2 + $0x47] sm:$0xff]
        %v2484 = vld [vmem:[#allocation2 + $0x4f] sm:$0xff]
        %v2485 = vld [vmem:[#allocation2 + $0x57] sm:$0xff]
        %v2486 = vld [vmem:[#allocation2 + $0x5f] sm:$0xff]
        %v2487 = vld [vmem:[#allocation2 + $0x67] sm:$0xff]
        %v2488 = vld [vmem:[#allocation2 + $0x6f] sm:$0xff]
        %v2489 = vld [vmem:[#allocation2 + $0x77] sm:$0xff]
        %v2490 = vld [vmem:[#allocation2 + $0x7f] sm:$0xff]
        %v2491 = vld [vmem:[#allocation2 + $0x87] sm:$0xff]
        %v2492 = vld [vmem:[#allocation2 + $0x12] sm:$0xff]
        %v2493 = vld [vmem:[#allocation2 + $0x1a] sm:$0xff]
        %v2494 = vld [vmem:[#allocation2 + $0x22] sm:$0xff]
        %v2495 = vld [vmem:[#allocation2 + $0x2a] sm:$0xff]
        %v2496 = vld [vmem:[#allocation2 + $0x32] sm:$0xff]
        %v2497 = vld [vmem:[#allocation2 + $0x3a] sm:$0xff]
        %v2498 = vld [vmem:[#allocation2 + $0x42] sm:$0xff]
        %v2499 = vld [vmem:[#allocation2 + $0x4a] sm:$0xff]
        %v2500 = vld [vmem:[#allocation2 + $0x52] sm:$0xff]
        %v2501 = vld [vmem:[#allocation2 + $0x5a] sm:$0xff]
        %v2502 = vld [vmem:[#allocation2 + $0x62] sm:$0xff]
        %v2503 = vld [vmem:[#allocation2 + $0x6a] sm:$0xff]
        %v2504 = vld [vmem:[#allocation2 + $0x72] sm:$0xff]
        %v2505 = vld [vmem:[#allocation2 + $0x7a] sm:$0xff]
        %v2506 = vld [vmem:[#allocation2 + $0x82] sm:$0xff]
        %v2507 = vld [vmem:[#allocation2 + $0x8a] sm:$0xff]
        %2524 = vrot.lane.b32.xlu0 %v2412, 4
        %v2525 = vpop.permute.xlu0 %2524
        %2526 = vrot.lane.b32.xlu0 %v2413, 4
        %v2527 = vpop.permute.xlu0 %2526
        %2528 = vrot.lane.b32.xlu0 %v2414, 4
        %v2529 = vpop.permute.xlu0 %2528
        %2530 = vrot.lane.b32.xlu0 %v2415, 4
        %v2531 = vpop.permute.xlu0 %2530
        %2532 = vrot.lane.b32.xlu0 %v2416, 4
        %v2533 = vpop.permute.xlu0 %2532
        %2534 = vrot.lane.b32.xlu0 %v2417, 4
        %v2535 = vpop.permute.xlu0 %2534
        %2536 = vrot.lane.b32.xlu0 %v2418, 4
        %v2537 = vpop.permute.xlu0 %2536
        %2538 = vrot.lane.b32.xlu0 %v2419, 4
        %v2539 = vpop.permute.xlu0 %2538
        %2540 = vrot.lane.b32.xlu0 %v2420, 4
        %v2541 = vpop.permute.xlu0 %2540
        %2542 = vrot.lane.b32.xlu0 %v2421, 4
        %v2543 = vpop.permute.xlu0 %2542
        %2544 = vrot.lane.b32.xlu0 %v2422, 4
        %v2545 = vpop.permute.xlu0 %2544
        %2546 = vrot.lane.b32.xlu0 %v2423, 4
        %v2547 = vpop.permute.xlu0 %2546
        %2548 = vrot.lane.b32.xlu0 %v2424, 4
        %v2549 = vpop.permute.xlu0 %2548
        %2550 = vrot.lane.b32.xlu0 %v2425, 4
        %v2551 = vpop.permute.xlu0 %2550
        %2552 = vrot.lane.b32.xlu0 %v2426, 4
        %v2553 = vpop.permute.xlu0 %2552
        %2554 = vrot.lane.b32.xlu0 %v2427, 4
        %v2555 = vpop.permute.xlu0 %2554
        %2588 = vrot.lane.b32.xlu0 %v2428, 8
        %v2589 = vpop.permute.xlu0 %2588
        %2590 = vrot.lane.b32.xlu0 %v2429, 8
        %v2591 = vpop.permute.xlu0 %2590
        %2592 = vrot.lane.b32.xlu0 %v2430, 8
        %v2593 = vpop.permute.xlu0 %2592
        %2594 = vrot.lane.b32.xlu0 %v2431, 8
        %v2595 = vpop.permute.xlu0 %2594
        %2596 = vrot.lane.b32.xlu0 %v2432, 8
        %v2597 = vpop.permute.xlu0 %2596
        %2598 = vrot.lane.b32.xlu0 %v2433, 8
        %v2599 = vpop.permute.xlu0 %2598
        %2600 = vrot.lane.b32.xlu0 %v2434, 8
        %v2601 = vpop.permute.xlu0 %2600
        %2602 = vrot.lane.b32.xlu0 %v2435, 8
        %v2603 = vpop.permute.xlu0 %2602
        %2604 = vrot.lane.b32.xlu0 %v2436, 8
        %v2605 = vpop.permute.xlu0 %2604
        %2606 = vrot.lane.b32.xlu0 %v2437, 8
        %v2607 = vpop.permute.xlu0 %2606
        %2608 = vrot.lane.b32.xlu0 %v2438, 8
        %v2609 = vpop.permute.xlu0 %2608
        %2610 = vrot.lane.b32.xlu0 %v2439, 8
        %v2611 = vpop.permute.xlu0 %2610
        %2612 = vrot.lane.b32.xlu0 %v2440, 8
        %v2613 = vpop.permute.xlu0 %2612
        %2614 = vrot.lane.b32.xlu0 %v2441, 8
        %v2615 = vpop.permute.xlu0 %2614
        %2616 = vrot.lane.b32.xlu0 %v2442, 8
        %v2617 = vpop.permute.xlu0 %2616
        %2618 = vrot.lane.b32.xlu0 %v2443, 8
        %v2619 = vpop.permute.xlu0 %2618
        %2652 = vrot.lane.b32.xlu0 %v2444, 12
        %v2653 = vpop.permute.xlu0 %2652
        %2654 = vrot.lane.b32.xlu0 %v2445, 12
        %v2655 = vpop.permute.xlu0 %2654
        %2656 = vrot.lane.b32.xlu0 %v2446, 12
        %v2657 = vpop.permute.xlu0 %2656
        %2658 = vrot.lane.b32.xlu0 %v2447, 12
        %v2659 = vpop.permute.xlu0 %2658
        %2660 = vrot.lane.b32.xlu0 %v2448, 12
        %v2661 = vpop.permute.xlu0 %2660
        %2662 = vrot.lane.b32.xlu0 %v2449, 12
        %v2663 = vpop.permute.xlu0 %2662
        %2664 = vrot.lane.b32.xlu0 %v2450, 12
        %v2665 = vpop.permute.xlu0 %2664
        %2666 = vrot.lane.b32.xlu0 %v2451, 12
        %v2667 = vpop.permute.xlu0 %2666
        %2668 = vrot.lane.b32.xlu0 %v2452, 12
        %v2669 = vpop.permute.xlu0 %2668
        %2670 = vrot.lane.b32.xlu0 %v2453, 12
        %v2671 = vpop.permute.xlu0 %2670
        %2672 = vrot.lane.b32.xlu0 %v2454, 12
        %v2673 = vpop.permute.xlu0 %2672
        %2674 = vrot.lane.b32.xlu0 %v2455, 12
        %v2675 = vpop.permute.xlu0 %2674
        %2676 = vrot.lane.b32.xlu0 %v2456, 12
        %v2677 = vpop.permute.xlu0 %2676
        %2678 = vrot.lane.b32.xlu0 %v2457, 12
        %v2679 = vpop.permute.xlu0 %2678
        %2680 = vrot.lane.b32.xlu0 %v2458, 12
        %v2681 = vpop.permute.xlu0 %2680
        %2682 = vrot.lane.b32.xlu0 %v2459, 12
        %v2683 = vpop.permute.xlu0 %2682
        %2716 = vrot.lane.b32.xlu0 %v2460, 16
        %v2717 = vpop.permute.xlu0 %2716
        %2718 = vrot.lane.b32.xlu0 %v2461, 16
        %v2719 = vpop.permute.xlu0 %2718
        %2720 = vrot.lane.b32.xlu0 %v2462, 16
        %v2721 = vpop.permute.xlu0 %2720
        %2722 = vrot.lane.b32.xlu0 %v2463, 16
        %v2723 = vpop.permute.xlu0 %2722
        %2724 = vrot.lane.b32.xlu0 %v2464, 16
        %v2725 = vpop.permute.xlu0 %2724
        %2726 = vrot.lane.b32.xlu0 %v2465, 16
        %v2727 = vpop.permute.xlu0 %2726
        %2728 = vrot.lane.b32.xlu0 %v2466, 16
        %v2729 = vpop.permute.xlu0 %2728
        %2730 = vrot.lane.b32.xlu0 %v2467, 16
        %v2731 = vpop.permute.xlu0 %2730
        %2732 = vrot.lane.b32.xlu0 %v2468, 16
        %v2733 = vpop.permute.xlu0 %2732
        %2734 = vrot.lane.b32.xlu0 %v2469, 16
        %v2735 = vpop.permute.xlu0 %2734
        %2736 = vrot.lane.b32.xlu0 %v2470, 16
        %v2737 = vpop.permute.xlu0 %2736
        %2738 = vrot.lane.b32.xlu0 %v2471, 16
        %v2739 = vpop.permute.xlu0 %2738
        %2740 = vrot.lane.b32.xlu0 %v2472, 16
        %v2741 = vpop.permute.xlu0 %2740
        %2742 = vrot.lane.b32.xlu0 %v2473, 16
        %v2743 = vpop.permute.xlu0 %2742
        %2744 = vrot.lane.b32.xlu0 %v2474, 16
        %v2745 = vpop.permute.xlu0 %2744
        %2746 = vrot.lane.b32.xlu0 %v2475, 16
        %v2747 = vpop.permute.xlu0 %2746
        %2780 = vrot.lane.b32.xlu0 %v2476, 20
        %v2781 = vpop.permute.xlu0 %2780
        %2782 = vrot.lane.b32.xlu0 %v2477, 20
        %v2783 = vpop.permute.xlu0 %2782
        %2784 = vrot.lane.b32.xlu0 %v2478, 20
        %v2785 = vpop.permute.xlu0 %2784
        %2786 = vrot.lane.b32.xlu0 %v2479, 20
        %v2787 = vpop.permute.xlu0 %2786
        %2788 = vrot.lane.b32.xlu0 %v2480, 20
        %v2789 = vpop.permute.xlu0 %2788
        %2790 = vrot.lane.b32.xlu0 %v2481, 20
        %v2791 = vpop.permute.xlu0 %2790
        %2792 = vrot.lane.b32.xlu0 %v2482, 20
        %v2793 = vpop.permute.xlu0 %2792
        %2794 = vrot.lane.b32.xlu0 %v2483, 20
        %v2795 = vpop.permute.xlu0 %2794
        %2796 = vrot.lane.b32.xlu0 %v2484, 20
        %v2797 = vpop.permute.xlu0 %2796
        %2798 = vrot.lane.b32.xlu0 %v2485, 20
        %v2799 = vpop.permute.xlu0 %2798
        %2800 = vrot.lane.b32.xlu0 %v2486, 20
        %v2801 = vpop.permute.xlu0 %2800
        %2802 = vrot.lane.b32.xlu0 %v2487, 20
        %v2803 = vpop.permute.xlu0 %2802
        %2804 = vrot.lane.b32.xlu0 %v2488, 20
        %v2805 = vpop.permute.xlu0 %2804
        %2806 = vrot.lane.b32.xlu0 %v2489, 20
        %v2807 = vpop.permute.xlu0 %2806
        %2808 = vrot.lane.b32.xlu0 %v2490, 20
        %v2809 = vpop.permute.xlu0 %2808
        %2810 = vrot.lane.b32.xlu0 %v2491, 20
        %v2811 = vpop.permute.xlu0 %2810
        %2844 = vrot.lane.b32.xlu0 %v2492, 24
        %v2845 = vpop.permute.xlu0 %2844
        %2846 = vrot.lane.b32.xlu0 %v2493, 24
        %v2847 = vpop.permute.xlu0 %2846
        %2848 = vrot.lane.b32.xlu0 %v2494, 24
        %v2849 = vpop.permute.xlu0 %2848
        %2850 = vrot.lane.b32.xlu0 %v2495, 24
        %v2851 = vpop.permute.xlu0 %2850
        %2852 = vrot.lane.b32.xlu0 %v2496, 24
        %v2853 = vpop.permute.xlu0 %2852
        %2854 = vrot.lane.b32.xlu0 %v2497, 24
        %v2855 = vpop.permute.xlu0 %2854
        %2856 = vrot.lane.b32.xlu0 %v2498, 24
        %v2857 = vpop.permute.xlu0 %2856
        %2858 = vrot.lane.b32.xlu0 %v2499, 24
        %v2859 = vpop.permute.xlu0 %2858
        %2860 = vrot.lane.b32.xlu0 %v2500, 24
        %v2861 = vpop.permute.xlu0 %2860
        %2862 = vrot.lane.b32.xlu0 %v2501, 24
        %v2863 = vpop.permute.xlu0 %2862
        %2864 = vrot.lane.b32.xlu0 %v2502, 24
        %v2865 = vpop.permute.xlu0 %2864
        %2866 = vrot.lane.b32.xlu0 %v2503, 24
        %v2867 = vpop.permute.xlu0 %2866
        %2868 = vrot.lane.b32.xlu0 %v2504, 24
        %v2869 = vpop.permute.xlu0 %2868
        %2870 = vrot.lane.b32.xlu0 %v2505, 24
        %v2871 = vpop.permute.xlu0 %2870
        %2872 = vrot.lane.b32.xlu0 %v2506, 24
        %v2873 = vpop.permute.xlu0 %2872
        %2874 = vrot.lane.b32.xlu0 %v2507, 24
        %v2875 = vpop.permute.xlu0 %2874
        %v2892 = vsel %vm1143, %v2396, %v2525
        %v2893 = vsel %vm1143, %v2397, %v2527
        %v2894 = vsel %vm1143, %v2398, %v2529
        %v2895 = vsel %vm1143, %v2399, %v2531
        %v2896 = vsel %vm1143, %v2400, %v2533
        %v2897 = vsel %vm1143, %v2401, %v2535
        %v2898 = vsel %vm1143, %v2402, %v2537
        %v2899 = vsel %vm1143, %v2403, %v2539
        %v2900 = vsel %vm1143, %v2404, %v2541
        %v2901 = vsel %vm1143, %v2405, %v2543
        %v2902 = vsel %vm1143, %v2406, %v2545
        %v2903 = vsel %vm1143, %v2407, %v2547
        %v2904 = vsel %vm1143, %v2408, %v2549
        %v2905 = vsel %vm1143, %v2409, %v2551
        %v2906 = vsel %vm1143, %v2410, %v2553
        %v2907 = vsel %vm1143, %v2411, %v2555
        %v2908 = vsel %vm1673, %v2892, %v2589
        %v2909 = vsel %vm1673, %v2893, %v2591
        %v2910 = vsel %vm1673, %v2894, %v2593
        %v2911 = vsel %vm1673, %v2895, %v2595
        %v2912 = vsel %vm1673, %v2896, %v2597
        %v2913 = vsel %vm1673, %v2897, %v2599
        %v2914 = vsel %vm1673, %v2898, %v2601
        %v2915 = vsel %vm1673, %v2899, %v2603
        %v2916 = vsel %vm1673, %v2900, %v2605
        %v2917 = vsel %vm1673, %v2901, %v2607
        %v2918 = vsel %vm1673, %v2902, %v2609
        %v2919 = vsel %vm1673, %v2903, %v2611
        %v2920 = vsel %vm1673, %v2904, %v2613
        %v2921 = vsel %vm1673, %v2905, %v2615
        %v2922 = vsel %vm1673, %v2906, %v2617
        %v2923 = vsel %vm1673, %v2907, %v2619
        %v2924 = vsel %vm1690, %v2908, %v2653
        %v2925 = vsel %vm1690, %v2909, %v2655
        %v2926 = vsel %vm1690, %v2910, %v2657
        %v2927 = vsel %vm1690, %v2911, %v2659
        %v2928 = vsel %vm1690, %v2912, %v2661
        %v2929 = vsel %vm1690, %v2913, %v2663
        %v2930 = vsel %vm1690, %v2914, %v2665
        %v2931 = vsel %vm1690, %v2915, %v2667
        %v2932 = vsel %vm1690, %v2916, %v2669
        %v2933 = vsel %vm1690, %v2917, %v2671
        %v2934 = vsel %vm1690, %v2918, %v2673
        %v2935 = vsel %vm1690, %v2919, %v2675
        %v2936 = vsel %vm1690, %v2920, %v2677
        %v2937 = vsel %vm1690, %v2921, %v2679
        %v2938 = vsel %vm1690, %v2922, %v2681
        %v2939 = vsel %vm1690, %v2923, %v2683
        %v2940 = vsel %vm1707, %v2924, %v2717
        %v2941 = vsel %vm1707, %v2925, %v2719
        %v2942 = vsel %vm1707, %v2926, %v2721
        %v2943 = vsel %vm1707, %v2927, %v2723
        %v2944 = vsel %vm1707, %v2928, %v2725
        %v2945 = vsel %vm1707, %v2929, %v2727
        %v2946 = vsel %vm1707, %v2930, %v2729
        %v2947 = vsel %vm1707, %v2931, %v2731
        %v2948 = vsel %vm1707, %v2932, %v2733
        %v2949 = vsel %vm1707, %v2933, %v2735
        %v2950 = vsel %vm1707, %v2934, %v2737
        %v2951 = vsel %vm1707, %v2935, %v2739
        %v2952 = vsel %vm1707, %v2936, %v2741
        %v2953 = vsel %vm1707, %v2937, %v2743
        %v2954 = vsel %vm1707, %v2938, %v2745
        %v2955 = vsel %vm1707, %v2939, %v2747
        %v2956 = vsel %vm1724, %v2940, %v2781
        %v2957 = vsel %vm1724, %v2941, %v2783
        %v2958 = vsel %vm1724, %v2942, %v2785
        %v2959 = vsel %vm1724, %v2943, %v2787
        %v2960 = vsel %vm1724, %v2944, %v2789
        %v2961 = vsel %vm1724, %v2945, %v2791
        %v2962 = vsel %vm1724, %v2946, %v2793
        %v2963 = vsel %vm1724, %v2947, %v2795
        %v2964 = vsel %vm1724, %v2948, %v2797
        %v2965 = vsel %vm1724, %v2949, %v2799
        %v2966 = vsel %vm1724, %v2950, %v2801
        %v2967 = vsel %vm1724, %v2951, %v2803
        %v2968 = vsel %vm1724, %v2952, %v2805
        %v2969 = vsel %vm1724, %v2953, %v2807
        %v2970 = vsel %vm1724, %v2954, %v2809
        %v2971 = vsel %vm1724, %v2955, %v2811
        %v2972 = vsel %vm1741, %v2956, %v2845
        %v2973 = vsel %vm1741, %v2957, %v2847
        %v2974 = vsel %vm1741, %v2958, %v2849
        %v2975 = vsel %vm1741, %v2959, %v2851
        %v2976 = vsel %vm1741, %v2960, %v2853
        %v2977 = vsel %vm1741, %v2961, %v2855
        %v2978 = vsel %vm1741, %v2962, %v2857
        %v2979 = vsel %vm1741, %v2963, %v2859
        %v2980 = vsel %vm1741, %v2964, %v2861
        %v2981 = vsel %vm1741, %v2965, %v2863
        %v2982 = vsel %vm1741, %v2966, %v2865
        %v2983 = vsel %vm1741, %v2967, %v2867
        %v2984 = vsel %vm1741, %v2968, %v2869
        %v2985 = vsel %vm1741, %v2969, %v2871
        %v2986 = vsel %vm1741, %v2970, %v2873
        %v2987 = vsel %vm1741, %v2971, %v2875
        %v2988 = vlaneseq
        %v2989 = vshrl.u32 %v2988, 7
        %v2990 = vsub.s32 0, %v2989
        %v2991 = vrot.slane %v2372, %v2990
        %v2993 = vsel %vm1762, %v2972, 0
        %v2996 = vsel %vm1762, %v2973, 0
        %v2999 = vsel %vm1762, %v2974, 0
        %v3002 = vsel %vm1762, %v2975, 0
        %v3005 = vsel %vm1762, %v2976, 0
        %v3008 = vsel %vm1762, %v2977, 0
        %v3011 = vsel %vm1762, %v2978, 0
        %v3014 = vsel %vm1762, %v2979, 0
        %v3017 = vsel %vm1762, %v2980, 0
        %v3020 = vsel %vm1762, %v2981, 0
        %v3023 = vsel %vm1762, %v2982, 0
        %v3026 = vsel %vm1762, %v2983, 0
        %v3029 = vsel %vm1762, %v2984, 0
        %v3032 = vsel %vm1762, %v2985, 0
        %v3035 = vsel %vm1762, %v2986, 0
        %v3038 = vsel %vm1762, %v2987, 0
        %v3041 = vsel %vm1811, %v2371, 0
        %3043 = vmatprep.subr.mxu0 0.0
        %3044 = vmatpush1.msra.mxu0 %v2368
        %3045 = vmatprep.subr.mxu0 0.0
        %3046 = vmatpush1.msra.mxu0 %v2369
        %3047 = vmatprep.subr.mxu0 0.0
        %3048 = vmatpush1.msra.mxu0 %v2370
        %3049 = vmatprep.subr.mxu0 0.0
        %3050 = vmatpush1.msra.mxu0 %v3041
        %3051 = vmatprep.subr.mxu0 0.0
        %3052 = vmatpush1.msra.mxu0 0.0
        %3053 = vmatprep.subr.mxu0 0.0
        %3054 = vmatpush1.msra.mxu0 0.0
        %3055 = vmatprep.subr.mxu0 0.0
        %3056 = vmatpush1.msra.mxu0 0.0
        %3057 = vmatprep.subr.mxu0 0.0
        %3058 = vmatpush1.msra.mxu0 0.0
        %3059 = vmatprep.subr.mxu0 0.0
        %3060 = vmatpush1.msra.mxu0 0.0
        %3061 = vmatprep.subr.mxu0 0.0
        %3062 = vmatpush1.msra.mxu0 0.0
        %3063 = vmatprep.subr.mxu0 0.0
        %3064 = vmatpush1.msra.mxu0 0.0
        %3065 = vmatprep.subr.mxu0 0.0
        %3066 = vmatpush1.msra.mxu0 0.0
        %3067 = vmatprep.subr.mxu0 0.0
        %3068 = vmatpush1.msra.mxu0 0.0
        %3069 = vmatprep.subr.mxu0 0.0
        %3070 = vmatpush1.msra.mxu0 0.0
        %3071 = vmatprep.subr.mxu0 0.0
        %3072 = vmatpush1.msra.mxu0 0.0
        %3073 = vmatprep.subr.mxu0 0.0
        %3074 = vmatpush1.msra.mxu0 0.0
        %3075 = vmatprep.subr.mxu0 0.0
        %3076 = vmatpush1.msra.mxu0 0.0
        %3077 = vmatprep.subr.mxu0 0.0
        %3078 = vmatpush1.msra.mxu0 0.0
        %3079 = vmatprep.subr.mxu0 0.0
        %3080 = vmatpush1.msra.mxu0 0.0
        %3081 = vmatprep.subr.mxu0 0.0
        %3082 = vmatpush1.msra.mxu0 0.0
        %3083 = vmatprep.subr.mxu0 0.0
        %3084 = vmatpush1.msra.mxu0 0.0
        %3085 = vmatprep.subr.mxu0 0.0
        %3086 = vmatpush1.msra.mxu0 0.0
        %3087 = vmatprep.subr.mxu0 0.0
        %3088 = vmatpush1.msra.mxu0 0.0
        %3089 = vmatprep.subr.mxu0 0.0
        %3090 = vmatpush1.msra.mxu0 0.0
        %3091 = vmatprep.subr.mxu0 0.0
        %3092 = vmatpush1.msra.mxu0 0.0
        %3093 = vmatprep.subr.mxu0 0.0
        %3094 = vmatpush1.msra.mxu0 0.0
        %3095 = vmatprep.subr.mxu0 0.0
        %3096 = vmatpush1.msra.mxu0 0.0
        %3097 = vmatprep.subr.mxu0 0.0
        %3098 = vmatpush1.msra.mxu0 0.0
        %3099 = vmatprep.subr.mxu0 0.0
        %3100 = vmatpush1.msra.mxu0 0.0
        %3101 = vmatprep.subr.mxu0 0.0
        %3102 = vmatpush1.msra.mxu0 0.0
        %3103 = vmatprep.subr.mxu0 0.0
        %3104 = vmatpush1.msra.mxu0 0.0
        %3105 = vmatprep.subr.mxu0 0.0
        %3106 = vmatpush1.msra.mxu0 0.0
        %3107 = vmatprep.mubr.f32.mxu0 0.0
        %3108 = vmatmul.mubr.f32.gmra.mrb[0].mxu0 %v2993
        %v3109 = vpop.f32.mrb[0].mxu0
        %v3110 = vadd.f32 %v2991, %v3109
        %v3111 = vpop.f32.mrb[0].mxu0
        %3112 = vmatprep.mubr.f32.mxu0 0.0
        %3113 = vmatmul.mubr.f32.gmra.mrb[0].mxu0 %v2996
        %v3114 = vpop.f32.mrb[0].mxu0
        %v3115 = vadd.f32 %v2991, %v3114
        %v3116 = vpop.f32.mrb[0].mxu0
        %3117 = vmatprep.mubr.f32.mxu0 0.0
        %3118 = vmatmul.mubr.f32.gmra.mrb[0].mxu0 %v2999
        %v3119 = vpop.f32.mrb[0].mxu0
        %v3120 = vadd.f32 %v2991, %v3119
        %v3121 = vpop.f32.mrb[0].mxu0
        %3122 = vmatprep.mubr.f32.mxu0 0.0
        %3123 = vmatmul.mubr.f32.gmra.mrb[0].mxu0 %v3002
        %v3124 = vpop.f32.mrb[0].mxu0
        %v3125 = vadd.f32 %v2991, %v3124
        %v3126 = vpop.f32.mrb[0].mxu0
        %3127 = vmatprep.mubr.f32.mxu0 0.0
        %3128 = vmatmul.mubr.f32.gmra.mrb[0].mxu0 %v3005
        %v3129 = vpop.f32.mrb[0].mxu0
        %v3130 = vadd.f32 %v2991, %v3129
        %v3131 = vpop.f32.mrb[0].mxu0
        %3132 = vmatprep.mubr.f32.mxu0 0.0
        %3133 = vmatmul.mubr.f32.gmra.mrb[0].mxu0 %v3008
        %v3134 = vpop.f32.mrb[0].mxu0
        %v3135 = vadd.f32 %v2991, %v3134
        %v3136 = vpop.f32.mrb[0].mxu0
        %3137 = vmatprep.mubr.f32.mxu0 0.0
        %3138 = vmatmul.mubr.f32.gmra.mrb[0].mxu0 %v3011
        %v3139 = vpop.f32.mrb[0].mxu0
        %v3140 = vadd.f32 %v2991, %v3139
        %v3141 = vpop.f32.mrb[0].mxu0
        %3142 = vmatprep.mubr.f32.mxu0 0.0
        %3143 = vmatmul.mubr.f32.gmra.mrb[0].mxu0 %v3014
        %v3144 = vpop.f32.mrb[0].mxu0
        %v3145 = vadd.f32 %v2991, %v3144
        %v3146 = vpop.f32.mrb[0].mxu0
        %3147 = vmatprep.mubr.f32.mxu0 0.0
        %3148 = vmatmul.mubr.f32.gmra.mrb[0].mxu0 %v3017
        %v3149 = vpop.f32.mrb[0].mxu0
        %v3150 = vadd.f32 %v2991, %v3149
        %v3151 = vpop.f32.mrb[0].mxu0
        %3152 = vmatprep.mubr.f32.mxu0 0.0
        %3153 = vmatmul.mubr.f32.gmra.mrb[0].mxu0 %v3020
        %v3154 = vpop.f32.mrb[0].mxu0
        %v3155 = vadd.f32 %v2991, %v3154
        %v3156 = vpop.f32.mrb[0].mxu0
        %3157 = vmatprep.mubr.f32.mxu0 0.0
        %3158 = vmatmul.mubr.f32.gmra.mrb[0].mxu0 %v3023
        %v3159 = vpop.f32.mrb[0].mxu0
        %v3160 = vadd.f32 %v2991, %v3159
        %v3161 = vpop.f32.mrb[0].mxu0
        %3162 = vmatprep.mubr.f32.mxu0 0.0
        %3163 = vmatmul.mubr.f32.gmra.mrb[0].mxu0 %v3026
        %v3164 = vpop.f32.mrb[0].mxu0
        %v3165 = vadd.f32 %v2991, %v3164
        %v3166 = vpop.f32.mrb[0].mxu0
        %3167 = vmatprep.mubr.f32.mxu0 0.0
        %3168 = vmatmul.mubr.f32.gmra.mrb[0].mxu0 %v3029
        %v3169 = vpop.f32.mrb[0].mxu0
        %v3170 = vadd.f32 %v2991, %v3169
        %v3171 = vpop.f32.mrb[0].mxu0
        %3172 = vmatprep.mubr.f32.mxu0 0.0
        %3173 = vmatmul.mubr.f32.gmra.mrb[0].mxu0 %v3032
        %v3174 = vpop.f32.mrb[0].mxu0
        %v3175 = vadd.f32 %v2991, %v3174
        %v3176 = vpop.f32.mrb[0].mxu0
        %3177 = vmatprep.mubr.f32.mxu0 0.0
        %3178 = vmatmul.mubr.f32.gmra.mrb[0].mxu0 %v3035
        %v3179 = vpop.f32.mrb[0].mxu0
        %v3180 = vadd.f32 %v2991, %v3179
        %v3181 = vpop.f32.mrb[0].mxu0
        %3182 = vmatprep.mubr.f32.mxu0 0.0
        %3183 = vmatmul.mubr.f32.gmra.mrb[0].mxu0 %v3038
        %v3184 = vpop.f32.mrb[0].mxu0
        %v3185 = vadd.f32 %v2991, %v3184
        %v3186 = vpop.f32.mrb[0].mxu0
        %3187 = vdwg.mxu0
        %vm3188 = vcmp.gt.f32.partialorder %v3110, 0.0
        %vm3189 = vcmp.gt.f32.partialorder %v3115, 0.0
        %vm3190 = vcmp.gt.f32.partialorder %v3120, 0.0
        %vm3191 = vcmp.gt.f32.partialorder %v3125, 0.0
        %vm3192 = vcmp.gt.f32.partialorder %v3130, 0.0
        %vm3193 = vcmp.gt.f32.partialorder %v3135, 0.0
        %vm3194 = vcmp.gt.f32.partialorder %v3140, 0.0
        %vm3195 = vcmp.gt.f32.partialorder %v3145, 0.0
        %vm3196 = vcmp.gt.f32.partialorder %v3150, 0.0
        %vm3197 = vcmp.gt.f32.partialorder %v3155, 0.0
        %vm3198 = vcmp.gt.f32.partialorder %v3160, 0.0
        %vm3199 = vcmp.gt.f32.partialorder %v3165, 0.0
        %vm3200 = vcmp.gt.f32.partialorder %v3170, 0.0
        %vm3201 = vcmp.gt.f32.partialorder %v3175, 0.0
        %vm3202 = vcmp.gt.f32.partialorder %v3180, 0.0
        %vm3203 = vcmp.gt.f32.partialorder %v3185, 0.0
        %v3204 = vmin.f32 %v3110, 0.0
        %v3205 = vmin.f32 %v3115, 0.0
        %v3206 = vmin.f32 %v3120, 0.0
        %v3207 = vmin.f32 %v3125, 0.0
        %v3208 = vmin.f32 %v3130, 0.0
        %v3209 = vmin.f32 %v3135, 0.0
        %v3210 = vmin.f32 %v3140, 0.0
        %v3211 = vmin.f32 %v3145, 0.0
        %v3212 = vmin.f32 %v3150, 0.0
        %v3213 = vmin.f32 %v3155, 0.0
        %v3214 = vmin.f32 %v3160, 0.0
        %v3215 = vmin.f32 %v3165, 0.0
        %v3216 = vmin.f32 %v3170, 0.0
        %v3217 = vmin.f32 %v3175, 0.0
        %v3218 = vmin.f32 %v3180, 0.0
        %v3219 = vmin.f32 %v3185, 0.0
        %v3220 = vmul.f32 %v3204, 1.442695
        %v3221 = vpow.pop %v3220
        %v3222 = vmul.f32 %v3205, 1.442695
        %v3223 = vpow.pop %v3222
        %v3224 = vmul.f32 %v3206, 1.442695
        %v3225 = vpow.pop %v3224
        %v3226 = vmul.f32 %v3207, 1.442695
        %v3227 = vpow.pop %v3226
        %v3228 = vmul.f32 %v3208, 1.442695
        %v3229 = vpow.pop %v3228
        %v3230 = vmul.f32 %v3209, 1.442695
        %v3231 = vpow.pop %v3230
        %v3232 = vmul.f32 %v3210, 1.442695
        %v3233 = vpow.pop %v3232
        %v3234 = vmul.f32 %v3211, 1.442695
        %v3235 = vpow.pop %v3234
        %v3236 = vmul.f32 %v3212, 1.442695
        %v3237 = vpow.pop %v3236
        %v3238 = vmul.f32 %v3213, 1.442695
        %v3239 = vpow.pop %v3238
        %v3240 = vmul.f32 %v3214, 1.442695
        %v3241 = vpow.pop %v3240
        %v3242 = vmul.f32 %v3215, 1.442695
        %v3243 = vpow.pop %v3242
        %v3244 = vmul.f32 %v3216, 1.442695
        %v3245 = vpow.pop %v3244
        %v3246 = vmul.f32 %v3217, 1.442695
        %v3247 = vpow.pop %v3246
        %v3248 = vmul.f32 %v3218, 1.442695
        %v3249 = vpow.pop %v3248
        %v3250 = vmul.f32 %v3219, 1.442695
        %v3251 = vpow.pop %v3250
        %v3252 = vsub.f32 %v3221, 1.0
        %v3253 = vsub.f32 %v3223, 1.0
        %v3254 = vsub.f32 %v3225, 1.0
        %v3255 = vsub.f32 %v3227, 1.0
        %v3256 = vsub.f32 %v3229, 1.0
        %v3257 = vsub.f32 %v3231, 1.0
        %v3258 = vsub.f32 %v3233, 1.0
        %v3259 = vsub.f32 %v3235, 1.0
        %v3260 = vsub.f32 %v3237, 1.0
        %v3261 = vsub.f32 %v3239, 1.0
        %v3262 = vsub.f32 %v3241, 1.0
        %v3263 = vsub.f32 %v3243, 1.0
        %v3264 = vsub.f32 %v3245, 1.0
        %v3265 = vsub.f32 %v3247, 1.0
        %v3266 = vsub.f32 %v3249, 1.0
        %v3267 = vsub.f32 %v3251, 1.0
        %v3268 = vsel %vm3188, %v3110, %v3252
        %v3269 = vsel %vm3189, %v3115, %v3253
        %v3270 = vsel %vm3190, %v3120, %v3254
        %v3271 = vsel %vm3191, %v3125, %v3255
        %v3272 = vsel %vm3192, %v3130, %v3256
        %v3273 = vsel %vm3193, %v3135, %v3257
        %v3274 = vsel %vm3194, %v3140, %v3258
        %v3275 = vsel %vm3195, %v3145, %v3259
        %v3276 = vsel %vm3196, %v3150, %v3260
        %v3277 = vsel %vm3197, %v3155, %v3261
        %v3278 = vsel %vm3198, %v3160, %v3262
        %v3279 = vsel %vm3199, %v3165, %v3263
        %v3280 = vsel %vm3200, %v3170, %v3264
        %v3281 = vsel %vm3201, %v3175, %v3265
        %v3282 = vsel %vm3202, %v3180, %v3266
        %v3283 = vsel %vm3203, %v3185, %v3267
        %v3284 = vlaneseq
        %v3285 = vshrl.u32 %v3284, 7
        %v3286 = vsub.s32 0, %v3285
        %v3287 = vrot.slane %v2374, %v3286
        %v3289 = vsel %vm1143, %v3268, 0
        %v3292 = vsel %vm1143, %v3269, 0
        %v3295 = vsel %vm1143, %v3270, 0
        %v3298 = vsel %vm1143, %v3271, 0
        %v3301 = vsel %vm1143, %v3272, 0
        %v3304 = vsel %vm1143, %v3273, 0
        %v3307 = vsel %vm1143, %v3274, 0
        %v3310 = vsel %vm1143, %v3275, 0
        %v3313 = vsel %vm1143, %v3276, 0
        %v3316 = vsel %vm1143, %v3277, 0
        %v3319 = vsel %vm1143, %v3278, 0
        %v3322 = vsel %vm1143, %v3279, 0
        %v3325 = vsel %vm1143, %v3280, 0
        %v3328 = vsel %vm1143, %v3281, 0
        %v3331 = vsel %vm1143, %v3282, 0
        %v3334 = vsel %vm1143, %v3283, 0
        %v3337 = vsel %vm1811, %v2373, 0
        %3339 = vmatprep.subr.mxu0 0.0
        %3340 = vmatpush1.msra.mxu0 %v3337
        %3341 = vmatprep.subr.mxu0 0.0
        %3342 = vmatpush1.msra.mxu0 0.0
        %3343 = vmatprep.subr.mxu0 0.0
        %3344 = vmatpush1.msra.mxu0 0.0
        %3345 = vmatprep.subr.mxu0 0.0
        %3346 = vmatpush1.msra.mxu0 0.0
        %3347 = vmatprep.subr.mxu0 0.0
        %3348 = vmatpush1.msra.mxu0 0.0
        %3349 = vmatprep.subr.mxu0 0.0
        %3350 = vmatpush1.msra.mxu0 0.0
        %3351 = vmatprep.subr.mxu0 0.0
        %3352 = vmatpush1.msra.mxu0 0.0
        %3353 = vmatprep.subr.mxu0 0.0
        %3354 = vmatpush1.msra.mxu0 0.0
        %3355 = vmatprep.subr.mxu0 0.0
        %3356 = vmatpush1.msra.mxu0 0.0
        %3357 = vmatprep.subr.mxu0 0.0
        %3358 = vmatpush1.msra.mxu0 0.0
        %3359 = vmatprep.subr.mxu0 0.0
        %3360 = vmatpush1.msra.mxu0 0.0
        %3361 = vmatprep.subr.mxu0 0.0
        %3362 = vmatpush1.msra.mxu0 0.0
        %3363 = vmatprep.subr.mxu0 0.0
        %3364 = vmatpush1.msra.mxu0 0.0
        %3365 = vmatprep.subr.mxu0 0.0
        %3366 = vmatpush1.msra.mxu0 0.0
        %3367 = vmatprep.subr.mxu0 0.0
        %3368 = vmatpush1.msra.mxu0 0.0
        %3369 = vmatprep.subr.mxu0 0.0
        %3370 = vmatpush1.msra.mxu0 0.0
        %3371 = vmatprep.subr.mxu0 0.0
        %3372 = vmatpush1.msra.mxu0 0.0
        %3373 = vmatprep.subr.mxu0 0.0
        %3374 = vmatpush1.msra.mxu0 0.0
        %3375 = vmatprep.subr.mxu0 0.0
        %3376 = vmatpush1.msra.mxu0 0.0
        %3377 = vmatprep.subr.mxu0 0.0
        %3378 = vmatpush1.msra.mxu0 0.0
        %3379 = vmatprep.subr.mxu0 0.0
        %3380 = vmatpush1.msra.mxu0 0.0
        %3381 = vmatprep.subr.mxu0 0.0
        %3382 = vmatpush1.msra.mxu0 0.0
        %3383 = vmatprep.subr.mxu0 0.0
        %3384 = vmatpush1.msra.mxu0 0.0
        %3385 = vmatprep.subr.mxu0 0.0
        %3386 = vmatpush1.msra.mxu0 0.0
        %3387 = vmatprep.subr.mxu0 0.0
        %3388 = vmatpush1.msra.mxu0 0.0
        %3389 = vmatprep.subr.mxu0 0.0
        %3390 = vmatpush1.msra.mxu0 0.0
        %3391 = vmatprep.subr.mxu0 0.0
        %3392 = vmatpush1.msra.mxu0 0.0
        %3393 = vmatprep.subr.mxu0 0.0
        %3394 = vmatpush1.msra.mxu0 0.0
        %3395 = vmatprep.subr.mxu0 0.0
        %3396 = vmatpush1.msra.mxu0 0.0
        %3397 = vmatprep.subr.mxu0 0.0
        %3398 = vmatpush1.msra.mxu0 0.0
        %3399 = vmatprep.subr.mxu0 0.0
        %3400 = vmatpush1.msra.mxu0 0.0
        %3401 = vmatprep.subr.mxu0 0.0
        %3402 = vmatpush1.msra.mxu0 0.0
        %3403 = vmatprep.mubr.f32.mxu0 0.0
        %3404 = vmatmul.mubr.f32.gmra.mrb[0].mxu0 %v3289
        %v3405 = vpop.f32.mrb[0].mxu0
        %v3406 = vadd.f32 %v3287, %v3405
        %v3407 = vpop.f32.mrb[0].mxu0
        %3408 = vmatprep.mubr.f32.mxu0 0.0
        %3409 = vmatmul.mubr.f32.gmra.mrb[0].mxu0 %v3292
        %v3410 = vpop.f32.mrb[0].mxu0
        %v3411 = vadd.f32 %v3287, %v3410
        %v3412 = vpop.f32.mrb[0].mxu0
        %3413 = vmatprep.mubr.f32.mxu0 0.0
        %3414 = vmatmul.mubr.f32.gmra.mrb[0].mxu0 %v3295
        %v3415 = vpop.f32.mrb[0].mxu0
        %v3416 = vadd.f32 %v3287, %v3415
        %v3417 = vpop.f32.mrb[0].mxu0
        %3418 = vmatprep.mubr.f32.mxu0 0.0
        %3419 = vmatmul.mubr.f32.gmra.mrb[0].mxu0 %v3298
        %v3420 = vpop.f32.mrb[0].mxu0
        %v3421 = vadd.f32 %v3287, %v3420
        %v3422 = vpop.f32.mrb[0].mxu0
        %3423 = vmatprep.mubr.f32.mxu0 0.0
        %3424 = vmatmul.mubr.f32.gmra.mrb[0].mxu0 %v3301
        %v3425 = vpop.f32.mrb[0].mxu0
        %v3426 = vadd.f32 %v3287, %v3425
        %v3427 = vpop.f32.mrb[0].mxu0
        %3428 = vmatprep.mubr.f32.mxu0 0.0
        %3429 = vmatmul.mubr.f32.gmra.mrb[0].mxu0 %v3304
        %v3430 = vpop.f32.mrb[0].mxu0
        %v3431 = vadd.f32 %v3287, %v3430
        %v3432 = vpop.f32.mrb[0].mxu0
        %3433 = vmatprep.mubr.f32.mxu0 0.0
        %3434 = vmatmul.mubr.f32.gmra.mrb[0].mxu0 %v3307
        %v3435 = vpop.f32.mrb[0].mxu0
        %v3436 = vadd.f32 %v3287, %v3435
        %v3437 = vpop.f32.mrb[0].mxu0
        %3438 = vmatprep.mubr.f32.mxu0 0.0
        %3439 = vmatmul.mubr.f32.gmra.mrb[0].mxu0 %v3310
        %v3440 = vpop.f32.mrb[0].mxu0
        %v3441 = vadd.f32 %v3287, %v3440
        %v3442 = vpop.f32.mrb[0].mxu0
        %3443 = vmatprep.mubr.f32.mxu0 0.0
        %3444 = vmatmul.mubr.f32.gmra.mrb[0].mxu0 %v3313
        %v3445 = vpop.f32.mrb[0].mxu0
        %v3446 = vadd.f32 %v3287, %v3445
        %v3447 = vpop.f32.mrb[0].mxu0
        %3448 = vmatprep.mubr.f32.mxu0 0.0
        %3449 = vmatmul.mubr.f32.gmra.mrb[0].mxu0 %v3316
        %v3450 = vpop.f32.mrb[0].mxu0
        %v3451 = vadd.f32 %v3287, %v3450
        %v3452 = vpop.f32.mrb[0].mxu0
        %3453 = vmatprep.mubr.f32.mxu0 0.0
        %3454 = vmatmul.mubr.f32.gmra.mrb[0].mxu0 %v3319
        %v3455 = vpop.f32.mrb[0].mxu0
        %v3456 = vadd.f32 %v3287, %v3455
        %v3457 = vpop.f32.mrb[0].mxu0
        %3458 = vmatprep.mubr.f32.mxu0 0.0
        %3459 = vmatmul.mubr.f32.gmra.mrb[0].mxu0 %v3322
        %v3460 = vpop.f32.mrb[0].mxu0
        %v3461 = vadd.f32 %v3287, %v3460
        %v3462 = vpop.f32.mrb[0].mxu0
        %3463 = vmatprep.mubr.f32.mxu0 0.0
        %3464 = vmatmul.mubr.f32.gmra.mrb[0].mxu0 %v3325
        %v3465 = vpop.f32.mrb[0].mxu0
        %v3466 = vadd.f32 %v3287, %v3465
        %v3467 = vpop.f32.mrb[0].mxu0
        %3468 = vmatprep.mubr.f32.mxu0 0.0
        %3469 = vmatmul.mubr.f32.gmra.mrb[0].mxu0 %v3328
        %v3470 = vpop.f32.mrb[0].mxu0
        %v3471 = vadd.f32 %v3287, %v3470
        %v3472 = vpop.f32.mrb[0].mxu0
        %3473 = vmatprep.mubr.f32.mxu0 0.0
        %3474 = vmatmul.mubr.f32.gmra.mrb[0].mxu0 %v3331
        %v3475 = vpop.f32.mrb[0].mxu0
        %v3476 = vadd.f32 %v3287, %v3475
        %v3477 = vpop.f32.mrb[0].mxu0
        %3478 = vmatprep.mubr.f32.mxu0 0.0
        %3479 = vmatmul.mubr.f32.gmra.mrb[0].mxu0 %v3334
        %v3480 = vpop.f32.mrb[0].mxu0
        %v3481 = vadd.f32 %v3287, %v3480
        %v3482 = vpop.f32.mrb[0].mxu0
        %3483 = vdwg.mxu0
        %vm3484 = vcmp.gt.f32.partialorder %v3406, 0.0
        %vm3485 = vcmp.gt.f32.partialorder %v3411, 0.0
        %vm3486 = vcmp.gt.f32.partialorder %v3416, 0.0
        %vm3487 = vcmp.gt.f32.partialorder %v3421, 0.0
        %vm3488 = vcmp.gt.f32.partialorder %v3426, 0.0
        %vm3489 = vcmp.gt.f32.partialorder %v3431, 0.0
        %vm3490 = vcmp.gt.f32.partialorder %v3436, 0.0
        %vm3491 = vcmp.gt.f32.partialorder %v3441, 0.0
        %vm3492 = vcmp.gt.f32.partialorder %v3446, 0.0
        %vm3493 = vcmp.gt.f32.partialorder %v3451, 0.0
        %vm3494 = vcmp.gt.f32.partialorder %v3456, 0.0
        %vm3495 = vcmp.gt.f32.partialorder %v3461, 0.0
        %vm3496 = vcmp.gt.f32.partialorder %v3466, 0.0
        %vm3497 = vcmp.gt.f32.partialorder %v3471, 0.0
        %vm3498 = vcmp.gt.f32.partialorder %v3476, 0.0
        %vm3499 = vcmp.gt.f32.partialorder %v3481, 0.0
        %v3500 = vmin.f32 %v3406, 0.0
        %v3501 = vmin.f32 %v3411, 0.0
        %v3502 = vmin.f32 %v3416, 0.0
        %v3503 = vmin.f32 %v3421, 0.0
        %v3504 = vmin.f32 %v3426, 0.0
        %v3505 = vmin.f32 %v3431, 0.0
        %v3506 = vmin.f32 %v3436, 0.0
        %v3507 = vmin.f32 %v3441, 0.0
        %v3508 = vmin.f32 %v3446, 0.0
        %v3509 = vmin.f32 %v3451, 0.0
        %v3510 = vmin.f32 %v3456, 0.0
        %v3511 = vmin.f32 %v3461, 0.0
        %v3512 = vmin.f32 %v3466, 0.0
        %v3513 = vmin.f32 %v3471, 0.0
        %v3514 = vmin.f32 %v3476, 0.0
        %v3515 = vmin.f32 %v3481, 0.0
        %v3516 = vmul.f32 %v3500, 1.442695
        %v3517 = vpow.pop %v3516
        %v3518 = vmul.f32 %v3501, 1.442695
        %v3519 = vpow.pop %v3518
        %v3520 = vmul.f32 %v3502, 1.442695
        %v3521 = vpow.pop %v3520
        %v3522 = vmul.f32 %v3503, 1.442695
        %v3523 = vpow.pop %v3522
        %v3524 = vmul.f32 %v3504, 1.442695
        %v3525 = vpow.pop %v3524
        %v3526 = vmul.f32 %v3505, 1.442695
        %v3527 = vpow.pop %v3526
        %v3528 = vmul.f32 %v3506, 1.442695
        %v3529 = vpow.pop %v3528
        %v3530 = vmul.f32 %v3507, 1.442695
        %v3531 = vpow.pop %v3530
        %v3532 = vmul.f32 %v3508, 1.442695
        %v3533 = vpow.pop %v3532
        %v3534 = vmul.f32 %v3509, 1.442695
        %v3535 = vpow.pop %v3534
        %v3536 = vmul.f32 %v3510, 1.442695
        %v3537 = vpow.pop %v3536
        %v3538 = vmul.f32 %v3511, 1.442695
        %v3539 = vpow.pop %v3538
        %v3540 = vmul.f32 %v3512, 1.442695
        %v3541 = vpow.pop %v3540
        %v3542 = vmul.f32 %v3513, 1.442695
        %v3543 = vpow.pop %v3542
        %v3544 = vmul.f32 %v3514, 1.442695
        %v3545 = vpow.pop %v3544
        %v3546 = vmul.f32 %v3515, 1.442695
        %v3547 = vpow.pop %v3546
        %v3548 = vsub.f32 %v3517, 1.0
        %v3549 = vsub.f32 %v3519, 1.0
        %v3550 = vsub.f32 %v3521, 1.0
        %v3551 = vsub.f32 %v3523, 1.0
        %v3552 = vsub.f32 %v3525, 1.0
        %v3553 = vsub.f32 %v3527, 1.0
        %v3554 = vsub.f32 %v3529, 1.0
        %v3555 = vsub.f32 %v3531, 1.0
        %v3556 = vsub.f32 %v3533, 1.0
        %v3557 = vsub.f32 %v3535, 1.0
        %v3558 = vsub.f32 %v3537, 1.0
        %v3559 = vsub.f32 %v3539, 1.0
        %v3560 = vsub.f32 %v3541, 1.0
        %v3561 = vsub.f32 %v3543, 1.0
        %v3562 = vsub.f32 %v3545, 1.0
        %v3563 = vsub.f32 %v3547, 1.0
        %v3564 = vsel %vm3484, %v3406, %v3548
        %v3565 = vsel %vm3485, %v3411, %v3549
        %v3566 = vsel %vm3486, %v3416, %v3550
        %v3567 = vsel %vm3487, %v3421, %v3551
        %v3568 = vsel %vm3488, %v3426, %v3552
        %v3569 = vsel %vm3489, %v3431, %v3553
        %v3570 = vsel %vm3490, %v3436, %v3554
        %v3571 = vsel %vm3491, %v3441, %v3555
        %v3572 = vsel %vm3492, %v3446, %v3556
        %v3573 = vsel %vm3493, %v3451, %v3557
        %v3574 = vsel %vm3494, %v3456, %v3558
        %v3575 = vsel %vm3495, %v3461, %v3559
        %v3576 = vsel %vm3496, %v3466, %v3560
        %v3577 = vsel %vm3497, %v3471, %v3561
        %v3578 = vsel %vm3498, %v3476, %v3562
        %v3579 = vsel %vm3499, %v3481, %v3563
        %v3580 = vadd.f32 %v2352, %v3564
        %v3581 = vadd.f32 %v2353, %v3565
        %v3582 = vadd.f32 %v2354, %v3566
        %v3583 = vadd.f32 %v2355, %v3567
        %v3584 = vadd.f32 %v2356, %v3568
        %v3585 = vadd.f32 %v2357, %v3569
        %v3586 = vadd.f32 %v2358, %v3570
        %v3587 = vadd.f32 %v2359, %v3571
        %v3588 = vadd.f32 %v2360, %v3572
        %v3589 = vadd.f32 %v2361, %v3573
        %v3590 = vadd.f32 %v2362, %v3574
        %v3591 = vadd.f32 %v2363, %v3575
        %v3592 = vadd.f32 %v2364, %v3576
        %v3593 = vadd.f32 %v2365, %v3577
        %v3594 = vadd.f32 %v2366, %v3578
        %v3595 = vadd.f32 %v2367, %v3579
        %v3596 = vld [vmem:[%s1 + $0x40] sm:$0xff]
        %v3597 = vld [vmem:[%s1 + $0x48] sm:$0xff]
        %v3598 = vld [vmem:[%s1 + $0x50] sm:$0xff]
        %v3599 = vld [vmem:[%s1 + $0x58] sm:$0xf]
        %v3600 = vld [vmem:[%s2 + $0xc] sm:$0x1]
        %v3601 = vld [vmem:[%s1 + $0x5c] sm:$0xf]
        %v3602 = vld [vmem:[%s2 + $0xd] sm:$0x1]
        %3603 = vst.msk [vmem:[#allocation2] sm:$0xff] %vm1143, 0.0
        %3604 = vst.msk [vmem:[#allocation2 + $0x8] sm:$0xff] %vm1143, 0.0
        %3605 = vst.msk [vmem:[#allocation2 + $0x10] sm:$0xff] %vm1143, 0.0
        %3606 = vst.msk [vmem:[#allocation2 + $0x18] sm:$0x7] %vm1141, 0.0
        %3607 = vst.msk [vmem:[#allocation2 + $0x1b] sm:$0xff] %vm1143, %v3580
        %3608 = vst.msk [vmem:[#allocation2 + $0x23] sm:$0xff] %vm1143, %v3581
        %3609 = vst.msk [vmem:[#allocation2 + $0x2b] sm:$0xff] %vm1143, %v3582
        %3610 = vst.msk [vmem:[#allocation2 + $0x33] sm:$0xff] %vm1143, %v3583
        %3611 = vst.msk [vmem:[#allocation2 + $0x3b] sm:$0xff] %vm1143, %v3584
        %3612 = vst.msk [vmem:[#allocation2 + $0x43] sm:$0xff] %vm1143, %v3585
        %3613 = vst.msk [vmem:[#allocation2 + $0x4b] sm:$0xff] %vm1143, %v3586
        %3614 = vst.msk [vmem:[#allocation2 + $0x53] sm:$0xff] %vm1143, %v3587
        %3615 = vst.msk [vmem:[#allocation2 + $0x5b] sm:$0xff] %vm1143, %v3588
        %3616 = vst.msk [vmem:[#allocation2 + $0x63] sm:$0xff] %vm1143, %v3589
        %3617 = vst.msk [vmem:[#allocation2 + $0x6b] sm:$0xff] %vm1143, %v3590
        %3618 = vst.msk [vmem:[#allocation2 + $0x73] sm:$0xff] %vm1143, %v3591
        %3619 = vst.msk [vmem:[#allocation2 + $0x7b] sm:$0xff] %vm1143, %v3592
        %3620 = vst.msk [vmem:[#allocation2 + $0x83] sm:$0xff] %vm1143, %v3593
        %3621 = vst.msk [vmem:[#allocation2 + $0x8b] sm:$0xff] %vm1143, %v3594
        %3622 = vst.msk [vmem:[#allocation2 + $0x93] sm:$0xff] %vm1143, %v3595
        %3623 = vst.msk [vmem:[#allocation2 + $0x9b] sm:$0xff] %vm1143, 0.0
        %3624 = vst.msk [vmem:[#allocation2 + $0xa3] sm:$0xff] %vm1143, 0.0
        %3625 = vst.msk [vmem:[#allocation2 + $0xab] sm:$0xff] %vm1143, 0.0
        %3626 = vst.msk [vmem:[#allocation2 + $0xb3] sm:$0x7] %vm1141, 0.0
        %v3627 = vld [vmem:[#allocation2] sm:$0xff]
        %v3628 = vld [vmem:[#allocation2 + $0x8] sm:$0xff]
        %v3629 = vld [vmem:[#allocation2 + $0x10] sm:$0xff]
        %v3630 = vld [vmem:[#allocation2 + $0x18] sm:$0xff]
        %v3631 = vld [vmem:[#allocation2 + $0x20] sm:$0xff]
        %v3632 = vld [vmem:[#allocation2 + $0x28] sm:$0xff]
        %v3633 = vld [vmem:[#allocation2 + $0x30] sm:$0xff]
        %v3634 = vld [vmem:[#allocation2 + $0x38] sm:$0xff]
        %v3635 = vld [vmem:[#allocation2 + $0x40] sm:$0xff]
        %v3636 = vld [vmem:[#allocation2 + $0x48] sm:$0xff]
        %v3637 = vld [vmem:[#allocation2 + $0x50] sm:$0xff]
        %v3638 = vld [vmem:[#allocation2 + $0x58] sm:$0xff]
        %v3639 = vld [vmem:[#allocation2 + $0x60] sm:$0xff]
        %v3640 = vld [vmem:[#allocation2 + $0x68] sm:$0xff]
        %v3641 = vld [vmem:[#allocation2 + $0x70] sm:$0xff]
        %v3642 = vld [vmem:[#allocation2 + $0x78] sm:$0xff]
        %v3643 = vld [vmem:[#allocation2 + $0x9] sm:$0xff]
        %v3644 = vld [vmem:[#allocation2 + $0x11] sm:$0xff]
        %v3645 = vld [vmem:[#allocation2 + $0x19] sm:$0xff]
        %v3646 = vld [vmem:[#allocation2 + $0x21] sm:$0xff]
        %v3647 = vld [vmem:[#allocation2 + $0x29] sm:$0xff]
        %v3648 = vld [vmem:[#allocation2 + $0x31] sm:$0xff]
        %v3649 = vld [vmem:[#allocation2 + $0x39] sm:$0xff]
        %v3650 = vld [vmem:[#allocation2 + $0x41] sm:$0xff]
        %v3651 = vld [vmem:[#allocation2 + $0x49] sm:$0xff]
        %v3652 = vld [vmem:[#allocation2 + $0x51] sm:$0xff]
        %v3653 = vld [vmem:[#allocation2 + $0x59] sm:$0xff]
        %v3654 = vld [vmem:[#allocation2 + $0x61] sm:$0xff]
        %v3655 = vld [vmem:[#allocation2 + $0x69] sm:$0xff]
        %v3656 = vld [vmem:[#allocation2 + $0x71] sm:$0xff]
        %v3657 = vld [vmem:[#allocation2 + $0x79] sm:$0xff]
        %v3658 = vld [vmem:[#allocation2 + $0x81] sm:$0xff]
        %v3659 = vld [vmem:[#allocation2 + $0x12] sm:$0xff]
        %v3660 = vld [vmem:[#allocation2 + $0x1a] sm:$0xff]
        %v3661 = vld [vmem:[#allocation2 + $0x22] sm:$0xff]
        %v3662 = vld [vmem:[#allocation2 + $0x2a] sm:$0xff]
        %v3663 = vld [vmem:[#allocation2 + $0x32] sm:$0xff]
        %v3664 = vld [vmem:[#allocation2 + $0x3a] sm:$0xff]
        %v3665 = vld [vmem:[#allocation2 + $0x42] sm:$0xff]
        %v3666 = vld [vmem:[#allocation2 + $0x4a] sm:$0xff]
        %v3667 = vld [vmem:[#allocation2 + $0x52] sm:$0xff]
        %v3668 = vld [vmem:[#allocation2 + $0x5a] sm:$0xff]
        %v3669 = vld [vmem:[#allocation2 + $0x62] sm:$0xff]
        %v3670 = vld [vmem:[#allocation2 + $0x6a] sm:$0xff]
        %v3671 = vld [vmem:[#allocation2 + $0x72] sm:$0xff]
        %v3672 = vld [vmem:[#allocation2 + $0x7a] sm:$0xff]
        %v3673 = vld [vmem:[#allocation2 + $0x82] sm:$0xff]
        %v3674 = vld [vmem:[#allocation2 + $0x8a] sm:$0xff]
        %v3675 = vld [vmem:[#allocation2 + $0x1b] sm:$0xff]
        %v3676 = vld [vmem:[#allocation2 + $0x23] sm:$0xff]
        %v3677 = vld [vmem:[#allocation2 + $0x2b] sm:$0xff]
        %v3678 = vld [vmem:[#allocation2 + $0x33] sm:$0xff]
        %v3679 = vld [vmem:[#allocation2 + $0x3b] sm:$0xff]
        %v3680 = vld [vmem:[#allocation2 + $0x43] sm:$0xff]
        %v3681 = vld [vmem:[#allocation2 + $0x4b] sm:$0xff]
        %v3682 = vld [vmem:[#allocation2 + $0x53] sm:$0xff]
        %v3683 = vld [vmem:[#allocation2 + $0x5b] sm:$0xff]
        %v3684 = vld [vmem:[#allocation2 + $0x63] sm:$0xff]
        %v3685 = vld [vmem:[#allocation2 + $0x6b] sm:$0xff]
        %v3686 = vld [vmem:[#allocation2 + $0x73] sm:$0xff]
        %v3687 = vld [vmem:[#allocation2 + $0x7b] sm:$0xff]
        %v3688 = vld [vmem:[#allocation2 + $0x83] sm:$0xff]
        %v3689 = vld [vmem:[#allocation2 + $0x8b] sm:$0xff]
        %v3690 = vld [vmem:[#allocation2 + $0x93] sm:$0xff]
        %v3691 = vld [vmem:[#allocation2 + $0x24] sm:$0xff]
        %v3692 = vld [vmem:[#allocation2 + $0x2c] sm:$0xff]
        %v3693 = vld [vmem:[#allocation2 + $0x34] sm:$0xff]
        %v3694 = vld [vmem:[#allocation2 + $0x3c] sm:$0xff]
        %v3695 = vld [vmem:[#allocation2 + $0x44] sm:$0xff]
        %v3696 = vld [vmem:[#allocation2 + $0x4c] sm:$0xff]
        %v3697 = vld [vmem:[#allocation2 + $0x54] sm:$0xff]
        %v3698 = vld [vmem:[#allocation2 + $0x5c] sm:$0xff]
        %v3699 = vld [vmem:[#allocation2 + $0x64] sm:$0xff]
        %v3700 = vld [vmem:[#allocation2 + $0x6c] sm:$0xff]
        %v3701 = vld [vmem:[#allocation2 + $0x74] sm:$0xff]
        %v3702 = vld [vmem:[#allocation2 + $0x7c] sm:$0xff]
        %v3703 = vld [vmem:[#allocation2 + $0x84] sm:$0xff]
        %v3704 = vld [vmem:[#allocation2 + $0x8c] sm:$0xff]
        %v3705 = vld [vmem:[#allocation2 + $0x94] sm:$0xff]
        %v3706 = vld [vmem:[#allocation2 + $0x9c] sm:$0xff]
        %v3707 = vld [vmem:[#allocation2 + $0x2d] sm:$0xff]
        %v3708 = vld [vmem:[#allocation2 + $0x35] sm:$0xff]
        %v3709 = vld [vmem:[#allocation2 + $0x3d] sm:$0xff]
        %v3710 = vld [vmem:[#allocation2 + $0x45] sm:$0xff]
        %v3711 = vld [vmem:[#allocation2 + $0x4d] sm:$0xff]
        %v3712 = vld [vmem:[#allocation2 + $0x55] sm:$0xff]
        %v3713 = vld [vmem:[#allocation2 + $0x5d] sm:$0xff]
        %v3714 = vld [vmem:[#allocation2 + $0x65] sm:$0xff]
        %v3715 = vld [vmem:[#allocation2 + $0x6d] sm:$0xff]
        %v3716 = vld [vmem:[#allocation2 + $0x75] sm:$0xff]
        %v3717 = vld [vmem:[#allocation2 + $0x7d] sm:$0xff]
        %v3718 = vld [vmem:[#allocation2 + $0x85] sm:$0xff]
        %v3719 = vld [vmem:[#allocation2 + $0x8d] sm:$0xff]
        %v3720 = vld [vmem:[#allocation2 + $0x95] sm:$0xff]
        %v3721 = vld [vmem:[#allocation2 + $0x9d] sm:$0xff]
        %v3722 = vld [vmem:[#allocation2 + $0xa5] sm:$0xff]
        %v3723 = vld [vmem:[#allocation2 + $0x36] sm:$0xff]
        %v3724 = vld [vmem:[#allocation2 + $0x3e] sm:$0xff]
        %v3725 = vld [vmem:[#allocation2 + $0x46] sm:$0xff]
        %v3726 = vld [vmem:[#allocation2 + $0x4e] sm:$0xff]
        %v3727 = vld [vmem:[#allocation2 + $0x56] sm:$0xff]
        %v3728 = vld [vmem:[#allocation2 + $0x5e] sm:$0xff]
        %v3729 = vld [vmem:[#allocation2 + $0x66] sm:$0xff]
        %v3730 = vld [vmem:[#allocation2 + $0x6e] sm:$0xff]
        %v3731 = vld [vmem:[#allocation2 + $0x76] sm:$0xff]
        %v3732 = vld [vmem:[#allocation2 + $0x7e] sm:$0xff]
        %v3733 = vld [vmem:[#allocation2 + $0x86] sm:$0xff]
        %v3734 = vld [vmem:[#allocation2 + $0x8e] sm:$0xff]
        %v3735 = vld [vmem:[#allocation2 + $0x96] sm:$0xff]
        %v3736 = vld [vmem:[#allocation2 + $0x9e] sm:$0xff]
        %v3737 = vld [vmem:[#allocation2 + $0xa6] sm:$0xff]
        %v3738 = vld [vmem:[#allocation2 + $0xae] sm:$0xff]
        %3755 = vrot.lane.b32.xlu0 %v3643, 4
        %v3756 = vpop.permute.xlu0 %3755
        %3757 = vrot.lane.b32.xlu0 %v3644, 4
        %v3758 = vpop.permute.xlu0 %3757
        %3759 = vrot.lane.b32.xlu0 %v3645, 4
        %v3760 = vpop.permute.xlu0 %3759
        %3761 = vrot.lane.b32.xlu0 %v3646, 4
        %v3762 = vpop.permute.xlu0 %3761
        %3763 = vrot.lane.b32.xlu0 %v3647, 4
        %v3764 = vpop.permute.xlu0 %3763
        %3765 = vrot.lane.b32.xlu0 %v3648, 4
        %v3766 = vpop.permute.xlu0 %3765
        %3767 = vrot.lane.b32.xlu0 %v3649, 4
        %v3768 = vpop.permute.xlu0 %3767
        %3769 = vrot.lane.b32.xlu0 %v3650, 4
        %v3770 = vpop.permute.xlu0 %3769
        %3771 = vrot.lane.b32.xlu0 %v3651, 4
        %v3772 = vpop.permute.xlu0 %3771
        %3773 = vrot.lane.b32.xlu0 %v3652, 4
        %v3774 = vpop.permute.xlu0 %3773
        %3775 = vrot.lane.b32.xlu0 %v3653, 4
        %v3776 = vpop.permute.xlu0 %3775
        %3777 = vrot.lane.b32.xlu0 %v3654, 4
        %v3778 = vpop.permute.xlu0 %3777
        %3779 = vrot.lane.b32.xlu0 %v3655, 4
        %v3780 = vpop.permute.xlu0 %3779
        %3781 = vrot.lane.b32.xlu0 %v3656, 4
        %v3782 = vpop.permute.xlu0 %3781
        %3783 = vrot.lane.b32.xlu0 %v3657, 4
        %v3784 = vpop.permute.xlu0 %3783
        %3785 = vrot.lane.b32.xlu0 %v3658, 4
        %v3786 = vpop.permute.xlu0 %3785
        %3819 = vrot.lane.b32.xlu0 %v3659, 8
        %v3820 = vpop.permute.xlu0 %3819
        %3821 = vrot.lane.b32.xlu0 %v3660, 8
        %v3822 = vpop.permute.xlu0 %3821
        %3823 = vrot.lane.b32.xlu0 %v3661, 8
        %v3824 = vpop.permute.xlu0 %3823
        %3825 = vrot.lane.b32.xlu0 %v3662, 8
        %v3826 = vpop.permute.xlu0 %3825
        %3827 = vrot.lane.b32.xlu0 %v3663, 8
        %v3828 = vpop.permute.xlu0 %3827
        %3829 = vrot.lane.b32.xlu0 %v3664, 8
        %v3830 = vpop.permute.xlu0 %3829
        %3831 = vrot.lane.b32.xlu0 %v3665, 8
        %v3832 = vpop.permute.xlu0 %3831
        %3833 = vrot.lane.b32.xlu0 %v3666, 8
        %v3834 = vpop.permute.xlu0 %3833
        %3835 = vrot.lane.b32.xlu0 %v3667, 8
        %v3836 = vpop.permute.xlu0 %3835
        %3837 = vrot.lane.b32.xlu0 %v3668, 8
        %v3838 = vpop.permute.xlu0 %3837
        %3839 = vrot.lane.b32.xlu0 %v3669, 8
        %v3840 = vpop.permute.xlu0 %3839
        %3841 = vrot.lane.b32.xlu0 %v3670, 8
        %v3842 = vpop.permute.xlu0 %3841
        %3843 = vrot.lane.b32.xlu0 %v3671, 8
        %v3844 = vpop.permute.xlu0 %3843
        %3845 = vrot.lane.b32.xlu0 %v3672, 8
        %v3846 = vpop.permute.xlu0 %3845
        %3847 = vrot.lane.b32.xlu0 %v3673, 8
        %v3848 = vpop.permute.xlu0 %3847
        %3849 = vrot.lane.b32.xlu0 %v3674, 8
        %v3850 = vpop.permute.xlu0 %3849
        %3883 = vrot.lane.b32.xlu0 %v3675, 12
        %v3884 = vpop.permute.xlu0 %3883
        %3885 = vrot.lane.b32.xlu0 %v3676, 12
        %v3886 = vpop.permute.xlu0 %3885
        %3887 = vrot.lane.b32.xlu0 %v3677, 12
        %v3888 = vpop.permute.xlu0 %3887
        %3889 = vrot.lane.b32.xlu0 %v3678, 12
        %v3890 = vpop.permute.xlu0 %3889
        %3891 = vrot.lane.b32.xlu0 %v3679, 12
        %v3892 = vpop.permute.xlu0 %3891
        %3893 = vrot.lane.b32.xlu0 %v3680, 12
        %v3894 = vpop.permute.xlu0 %3893
        %3895 = vrot.lane.b32.xlu0 %v3681, 12
        %v3896 = vpop.permute.xlu0 %3895
        %3897 = vrot.lane.b32.xlu0 %v3682, 12
        %v3898 = vpop.permute.xlu0 %3897
        %3899 = vrot.lane.b32.xlu0 %v3683, 12
        %v3900 = vpop.permute.xlu0 %3899
        %3901 = vrot.lane.b32.xlu0 %v3684, 12
        %v3902 = vpop.permute.xlu0 %3901
        %3903 = vrot.lane.b32.xlu0 %v3685, 12
        %v3904 = vpop.permute.xlu0 %3903
        %3905 = vrot.lane.b32.xlu0 %v3686, 12
        %v3906 = vpop.permute.xlu0 %3905
        %3907 = vrot.lane.b32.xlu0 %v3687, 12
        %v3908 = vpop.permute.xlu0 %3907
        %3909 = vrot.lane.b32.xlu0 %v3688, 12
        %v3910 = vpop.permute.xlu0 %3909
        %3911 = vrot.lane.b32.xlu0 %v3689, 12
        %v3912 = vpop.permute.xlu0 %3911
        %3913 = vrot.lane.b32.xlu0 %v3690, 12
        %v3914 = vpop.permute.xlu0 %3913
        %3947 = vrot.lane.b32.xlu0 %v3691, 16
        %v3948 = vpop.permute.xlu0 %3947
        %3949 = vrot.lane.b32.xlu0 %v3692, 16
        %v3950 = vpop.permute.xlu0 %3949
        %3951 = vrot.lane.b32.xlu0 %v3693, 16
        %v3952 = vpop.permute.xlu0 %3951
        %3953 = vrot.lane.b32.xlu0 %v3694, 16
        %v3954 = vpop.permute.xlu0 %3953
        %3955 = vrot.lane.b32.xlu0 %v3695, 16
        %v3956 = vpop.permute.xlu0 %3955
        %3957 = vrot.lane.b32.xlu0 %v3696, 16
        %v3958 = vpop.permute.xlu0 %3957
        %3959 = vrot.lane.b32.xlu0 %v3697, 16
        %v3960 = vpop.permute.xlu0 %3959
        %3961 = vrot.lane.b32.xlu0 %v3698, 16
        %v3962 = vpop.permute.xlu0 %3961
        %3963 = vrot.lane.b32.xlu0 %v3699, 16
        %v3964 = vpop.permute.xlu0 %3963
        %3965 = vrot.lane.b32.xlu0 %v3700, 16
        %v3966 = vpop.permute.xlu0 %3965
        %3967 = vrot.lane.b32.xlu0 %v3701, 16
        %v3968 = vpop.permute.xlu0 %3967
        %3969 = vrot.lane.b32.xlu0 %v3702, 16
        %v3970 = vpop.permute.xlu0 %3969
        %3971 = vrot.lane.b32.xlu0 %v3703, 16
        %v3972 = vpop.permute.xlu0 %3971
        %3973 = vrot.lane.b32.xlu0 %v3704, 16
        %v3974 = vpop.permute.xlu0 %3973
        %3975 = vrot.lane.b32.xlu0 %v3705, 16
        %v3976 = vpop.permute.xlu0 %3975
        %3977 = vrot.lane.b32.xlu0 %v3706, 16
        %v3978 = vpop.permute.xlu0 %3977
        %4011 = vrot.lane.b32.xlu0 %v3707, 20
        %v4012 = vpop.permute.xlu0 %4011
        %4013 = vrot.lane.b32.xlu0 %v3708, 20
        %v4014 = vpop.permute.xlu0 %4013
        %4015 = vrot.lane.b32.xlu0 %v3709, 20
        %v4016 = vpop.permute.xlu0 %4015
        %4017 = vrot.lane.b32.xlu0 %v3710, 20
        %v4018 = vpop.permute.xlu0 %4017
        %4019 = vrot.lane.b32.xlu0 %v3711, 20
        %v4020 = vpop.permute.xlu0 %4019
        %4021 = vrot.lane.b32.xlu0 %v3712, 20
        %v4022 = vpop.permute.xlu0 %4021
        %4023 = vrot.lane.b32.xlu0 %v3713, 20
        %v4024 = vpop.permute.xlu0 %4023
        %4025 = vrot.lane.b32.xlu0 %v3714, 20
        %v4026 = vpop.permute.xlu0 %4025
        %4027 = vrot.lane.b32.xlu0 %v3715, 20
        %v4028 = vpop.permute.xlu0 %4027
        %4029 = vrot.lane.b32.xlu0 %v3716, 20
        %v4030 = vpop.permute.xlu0 %4029
        %4031 = vrot.lane.b32.xlu0 %v3717, 20
        %v4032 = vpop.permute.xlu0 %4031
        %4033 = vrot.lane.b32.xlu0 %v3718, 20
        %v4034 = vpop.permute.xlu0 %4033
        %4035 = vrot.lane.b32.xlu0 %v3719, 20
        %v4036 = vpop.permute.xlu0 %4035
        %4037 = vrot.lane.b32.xlu0 %v3720, 20
        %v4038 = vpop.permute.xlu0 %4037
        %4039 = vrot.lane.b32.xlu0 %v3721, 20
        %v4040 = vpop.permute.xlu0 %4039
        %4041 = vrot.lane.b32.xlu0 %v3722, 20
        %v4042 = vpop.permute.xlu0 %4041
        %4075 = vrot.lane.b32.xlu0 %v3723, 24
        %v4076 = vpop.permute.xlu0 %4075
        %4077 = vrot.lane.b32.xlu0 %v3724, 24
        %v4078 = vpop.permute.xlu0 %4077
        %4079 = vrot.lane.b32.xlu0 %v3725, 24
        %v4080 = vpop.permute.xlu0 %4079
        %4081 = vrot.lane.b32.xlu0 %v3726, 24
        %v4082 = vpop.permute.xlu0 %4081
        %4083 = vrot.lane.b32.xlu0 %v3727, 24
        %v4084 = vpop.permute.xlu0 %4083
        %4085 = vrot.lane.b32.xlu0 %v3728, 24
        %v4086 = vpop.permute.xlu0 %4085
        %4087 = vrot.lane.b32.xlu0 %v3729, 24
        %v4088 = vpop.permute.xlu0 %4087
        %4089 = vrot.lane.b32.xlu0 %v3730, 24
        %v4090 = vpop.permute.xlu0 %4089
        %4091 = vrot.lane.b32.xlu0 %v3731, 24
        %v4092 = vpop.permute.xlu0 %4091
        %4093 = vrot.lane.b32.xlu0 %v3732, 24
        %v4094 = vpop.permute.xlu0 %4093
        %4095 = vrot.lane.b32.xlu0 %v3733, 24
        %v4096 = vpop.permute.xlu0 %4095
        %4097 = vrot.lane.b32.xlu0 %v3734, 24
        %v4098 = vpop.permute.xlu0 %4097
        %4099 = vrot.lane.b32.xlu0 %v3735, 24
        %v4100 = vpop.permute.xlu0 %4099
        %4101 = vrot.lane.b32.xlu0 %v3736, 24
        %v4102 = vpop.permute.xlu0 %4101
        %4103 = vrot.lane.b32.xlu0 %v3737, 24
        %v4104 = vpop.permute.xlu0 %4103
        %4105 = vrot.lane.b32.xlu0 %v3738, 24
        %v4106 = vpop.permute.xlu0 %4105
        %v4123 = vsel %vm1143, %v3627, %v3756
        %v4124 = vsel %vm1143, %v3628, %v3758
        %v4125 = vsel %vm1143, %v3629, %v3760
        %v4126 = vsel %vm1143, %v3630, %v3762
        %v4127 = vsel %vm1143, %v3631, %v3764
        %v4128 = vsel %vm1143, %v3632, %v3766
        %v4129 = vsel %vm1143, %v3633, %v3768
        %v4130 = vsel %vm1143, %v3634, %v3770
        %v4131 = vsel %vm1143, %v3635, %v3772
        %v4132 = vsel %vm1143, %v3636, %v3774
        %v4133 = vsel %vm1143, %v3637, %v3776
        %v4134 = vsel %vm1143, %v3638, %v3778
        %v4135 = vsel %vm1143, %v3639, %v3780
        %v4136 = vsel %vm1143, %v3640, %v3782
        %v4137 = vsel %vm1143, %v3641, %v3784
        %v4138 = vsel %vm1143, %v3642, %v3786
        %v4139 = vsel %vm1673, %v4123, %v3820
        %v4140 = vsel %vm1673, %v4124, %v3822
        %v4141 = vsel %vm1673, %v4125, %v3824
        %v4142 = vsel %vm1673, %v4126, %v3826
        %v4143 = vsel %vm1673, %v4127, %v3828
        %v4144 = vsel %vm1673, %v4128, %v3830
        %v4145 = vsel %vm1673, %v4129, %v3832
        %v4146 = vsel %vm1673, %v4130, %v3834
        %v4147 = vsel %vm1673, %v4131, %v3836
        %v4148 = vsel %vm1673, %v4132, %v3838
        %v4149 = vsel %vm1673, %v4133, %v3840
        %v4150 = vsel %vm1673, %v4134, %v3842
        %v4151 = vsel %vm1673, %v4135, %v3844
        %v4152 = vsel %vm1673, %v4136, %v3846
        %v4153 = vsel %vm1673, %v4137, %v3848
        %v4154 = vsel %vm1673, %v4138, %v3850
        %v4155 = vsel %vm1690, %v4139, %v3884
        %v4156 = vsel %vm1690, %v4140, %v3886
        %v4157 = vsel %vm1690, %v4141, %v3888
        %v4158 = vsel %vm1690, %v4142, %v3890
        %v4159 = vsel %vm1690, %v4143, %v3892
        %v4160 = vsel %vm1690, %v4144, %v3894
        %v4161 = vsel %vm1690, %v4145, %v3896
        %v4162 = vsel %vm1690, %v4146, %v3898
        %v4163 = vsel %vm1690, %v4147, %v3900
        %v4164 = vsel %vm1690, %v4148, %v3902
        %v4165 = vsel %vm1690, %v4149, %v3904
        %v4166 = vsel %vm1690, %v4150, %v3906
        %v4167 = vsel %vm1690, %v4151, %v3908
        %v4168 = vsel %vm1690, %v4152, %v3910
        %v4169 = vsel %vm1690, %v4153, %v3912
        %v4170 = vsel %vm1690, %v4154, %v3914
        %v4171 = vsel %vm1707, %v4155, %v3948
        %v4172 = vsel %vm1707, %v4156, %v3950
        %v4173 = vsel %vm1707, %v4157, %v3952
        %v4174 = vsel %vm1707, %v4158, %v3954
        %v4175 = vsel %vm1707, %v4159, %v3956
        %v4176 = vsel %vm1707, %v4160, %v3958
        %v4177 = vsel %vm1707, %v4161, %v3960
        %v4178 = vsel %vm1707, %v4162, %v3962
        %v4179 = vsel %vm1707, %v4163, %v3964
        %v4180 = vsel %vm1707, %v4164, %v3966
        %v4181 = vsel %vm1707, %v4165, %v3968
        %v4182 = vsel %vm1707, %v4166, %v3970
        %v4183 = vsel %vm1707, %v4167, %v3972
        %v4184 = vsel %vm1707, %v4168, %v3974
        %v4185 = vsel %vm1707, %v4169, %v3976
        %v4186 = vsel %vm1707, %v4170, %v3978
        %v4187 = vsel %vm1724, %v4171, %v4012
        %v4188 = vsel %vm1724, %v4172, %v4014
        %v4189 = vsel %vm1724, %v4173, %v4016
        %v4190 = vsel %vm1724, %v4174, %v4018
        %v4191 = vsel %vm1724, %v4175, %v4020
        %v4192 = vsel %vm1724, %v4176, %v4022
        %v4193 = vsel %vm1724, %v4177, %v4024
        %v4194 = vsel %vm1724, %v4178, %v4026
        %v4195 = vsel %vm1724, %v4179, %v4028
        %v4196 = vsel %vm1724, %v4180, %v4030
        %v4197 = vsel %vm1724, %v4181, %v4032
        %v4198 = vsel %vm1724, %v4182, %v4034
        %v4199 = vsel %vm1724, %v4183, %v4036
        %v4200 = vsel %vm1724, %v4184, %v4038
        %v4201 = vsel %vm1724, %v4185, %v4040
        %v4202 = vsel %vm1724, %v4186, %v4042
        %v4203 = vsel %vm1741, %v4187, %v4076
        %v4204 = vsel %vm1741, %v4188, %v4078
        %v4205 = vsel %vm1741, %v4189, %v4080
        %v4206 = vsel %vm1741, %v4190, %v4082
        %v4207 = vsel %vm1741, %v4191, %v4084
        %v4208 = vsel %vm1741, %v4192, %v4086
        %v4209 = vsel %vm1741, %v4193, %v4088
        %v4210 = vsel %vm1741, %v4194, %v4090
        %v4211 = vsel %vm1741, %v4195, %v4092
        %v4212 = vsel %vm1741, %v4196, %v4094
        %v4213 = vsel %vm1741, %v4197, %v4096
        %v4214 = vsel %vm1741, %v4198, %v4098
        %v4215 = vsel %vm1741, %v4199, %v4100
        %v4216 = vsel %vm1741, %v4200, %v4102
        %v4217 = vsel %vm1741, %v4201, %v4104
        %v4218 = vsel %vm1741, %v4202, %v4106
        %v4219 = vlaneseq
        %v4220 = vshrl.u32 %v4219, 7
        %v4221 = vsub.s32 0, %v4220
        %v4222 = vrot.slane %v3600, %v4221
        %v4224 = vsel %vm1762, %v4203, 0
        %v4227 = vsel %vm1762, %v4204, 0
        %v4230 = vsel %vm1762, %v4205, 0
        %v4233 = vsel %vm1762, %v4206, 0
        %v4236 = vsel %vm1762, %v4207, 0
        %v4239 = vsel %vm1762, %v4208, 0
        %v4242 = vsel %vm1762, %v4209, 0
        %v4245 = vsel %vm1762, %v4210, 0
        %v4248 = vsel %vm1762, %v4211, 0
        %v4251 = vsel %vm1762, %v4212, 0
        %v4254 = vsel %vm1762, %v4213, 0
        %v4257 = vsel %vm1762, %v4214, 0
        %v4260 = vsel %vm1762, %v4215, 0
        %v4263 = vsel %vm1762, %v4216, 0
        %v4266 = vsel %vm1762, %v4217, 0
        %v4269 = vsel %vm1762, %v4218, 0
        %v4272 = vsel %vm1811, %v3599, 0
        %4274 = vmatprep.subr.mxu0 0.0
        %4275 = vmatpush1.msra.mxu0 %v3596
        %4276 = vmatprep.subr.mxu0 0.0
        %4277 = vmatpush1.msra.mxu0 %v3597
        %4278 = vmatprep.subr.mxu0 0.0
        %4279 = vmatpush1.msra.mxu0 %v3598
        %4280 = vmatprep.subr.mxu0 0.0
        %4281 = vmatpush1.msra.mxu0 %v4272
        %4282 = vmatprep.subr.mxu0 0.0
        %4283 = vmatpush1.msra.mxu0 0.0
        %4284 = vmatprep.subr.mxu0 0.0
        %4285 = vmatpush1.msra.mxu0 0.0
        %4286 = vmatprep.subr.mxu0 0.0
        %4287 = vmatpush1.msra.mxu0 0.0
        %4288 = vmatprep.subr.mxu0 0.0
        %4289 = vmatpush1.msra.mxu0 0.0
        %4290 = vmatprep.subr.mxu0 0.0
        %4291 = vmatpush1.msra.mxu0 0.0
        %4292 = vmatprep.subr.mxu0 0.0
        %4293 = vmatpush1.msra.mxu0 0.0
        %4294 = vmatprep.subr.mxu0 0.0
        %4295 = vmatpush1.msra.mxu0 0.0
        %4296 = vmatprep.subr.mxu0 0.0
        %4297 = vmatpush1.msra.mxu0 0.0
        %4298 = vmatprep.subr.mxu0 0.0
        %4299 = vmatpush1.msra.mxu0 0.0
        %4300 = vmatprep.subr.mxu0 0.0
        %4301 = vmatpush1.msra.mxu0 0.0
        %4302 = vmatprep.subr.mxu0 0.0
        %4303 = vmatpush1.msra.mxu0 0.0
        %4304 = vmatprep.subr.mxu0 0.0
        %4305 = vmatpush1.msra.mxu0 0.0
        %4306 = vmatprep.subr.mxu0 0.0
        %4307 = vmatpush1.msra.mxu0 0.0
        %4308 = vmatprep.subr.mxu0 0.0
        %4309 = vmatpush1.msra.mxu0 0.0
        %4310 = vmatprep.subr.mxu0 0.0
        %4311 = vmatpush1.msra.mxu0 0.0
        %4312 = vmatprep.subr.mxu0 0.0
        %4313 = vmatpush1.msra.mxu0 0.0
        %4314 = vmatprep.subr.mxu0 0.0
        %4315 = vmatpush1.msra.mxu0 0.0
        %4316 = vmatprep.subr.mxu0 0.0
        %4317 = vmatpush1.msra.mxu0 0.0
        %4318 = vmatprep.subr.mxu0 0.0
        %4319 = vmatpush1.msra.mxu0 0.0
        %4320 = vmatprep.subr.mxu0 0.0
        %4321 = vmatpush1.msra.mxu0 0.0
        %4322 = vmatprep.subr.mxu0 0.0
        %4323 = vmatpush1.msra.mxu0 0.0
        %4324 = vmatprep.subr.mxu0 0.0
        %4325 = vmatpush1.msra.mxu0 0.0
        %4326 = vmatprep.subr.mxu0 0.0
        %4327 = vmatpush1.msra.mxu0 0.0
        %4328 = vmatprep.subr.mxu0 0.0
        %4329 = vmatpush1.msra.mxu0 0.0
        %4330 = vmatprep.subr.mxu0 0.0
        %4331 = vmatpush1.msra.mxu0 0.0
        %4332 = vmatprep.subr.mxu0 0.0
        %4333 = vmatpush1.msra.mxu0 0.0
        %4334 = vmatprep.subr.mxu0 0.0
        %4335 = vmatpush1.msra.mxu0 0.0
        %4336 = vmatprep.subr.mxu0 0.0
        %4337 = vmatpush1.msra.mxu0 0.0
        %4338 = vmatprep.mubr.f32.mxu0 0.0
        %4339 = vmatmul.mubr.f32.gmra.mrb[0].mxu0 %v4224
        %v4340 = vpop.f32.mrb[0].mxu0
        %v4341 = vadd.f32 %v4222, %v4340
        %v4342 = vpop.f32.mrb[0].mxu0
        %4343 = vmatprep.mubr.f32.mxu0 0.0
        %4344 = vmatmul.mubr.f32.gmra.mrb[0].mxu0 %v4227
        %v4345 = vpop.f32.mrb[0].mxu0
        %v4346 = vadd.f32 %v4222, %v4345
        %v4347 = vpop.f32.mrb[0].mxu0
        %4348 = vmatprep.mubr.f32.mxu0 0.0
        %4349 = vmatmul.mubr.f32.gmra.mrb[0].mxu0 %v4230
        %v4350 = vpop.f32.mrb[0].mxu0
        %v4351 = vadd.f32 %v4222, %v4350
        %v4352 = vpop.f32.mrb[0].mxu0
        %4353 = vmatprep.mubr.f32.mxu0 0.0
        %4354 = vmatmul.mubr.f32.gmra.mrb[0].mxu0 %v4233
        %v4355 = vpop.f32.mrb[0].mxu0
        %v4356 = vadd.f32 %v4222, %v4355
        %v4357 = vpop.f32.mrb[0].mxu0
        %4358 = vmatprep.mubr.f32.mxu0 0.0
        %4359 = vmatmul.mubr.f32.gmra.mrb[0].mxu0 %v4236
        %v4360 = vpop.f32.mrb[0].mxu0
        %v4361 = vadd.f32 %v4222, %v4360
        %v4362 = vpop.f32.mrb[0].mxu0
        %4363 = vmatprep.mubr.f32.mxu0 0.0
        %4364 = vmatmul.mubr.f32.gmra.mrb[0].mxu0 %v4239
        %v4365 = vpop.f32.mrb[0].mxu0
        %v4366 = vadd.f32 %v4222, %v4365
        %v4367 = vpop.f32.mrb[0].mxu0
        %4368 = vmatprep.mubr.f32.mxu0 0.0
        %4369 = vmatmul.mubr.f32.gmra.mrb[0].mxu0 %v4242
        %v4370 = vpop.f32.mrb[0].mxu0
        %v4371 = vadd.f32 %v4222, %v4370
        %v4372 = vpop.f32.mrb[0].mxu0
        %4373 = vmatprep.mubr.f32.mxu0 0.0
        %4374 = vmatmul.mubr.f32.gmra.mrb[0].mxu0 %v4245
        %v4375 = vpop.f32.mrb[0].mxu0
        %v4376 = vadd.f32 %v4222, %v4375
        %v4377 = vpop.f32.mrb[0].mxu0
        %4378 = vmatprep.mubr.f32.mxu0 0.0
        %4379 = vmatmul.mubr.f32.gmra.mrb[0].mxu0 %v4248
        %v4380 = vpop.f32.mrb[0].mxu0
        %v4381 = vadd.f32 %v4222, %v4380
        %v4382 = vpop.f32.mrb[0].mxu0
        %4383 = vmatprep.mubr.f32.mxu0 0.0
        %4384 = vmatmul.mubr.f32.gmra.mrb[0].mxu0 %v4251
        %v4385 = vpop.f32.mrb[0].mxu0
        %v4386 = vadd.f32 %v4222, %v4385
        %v4387 = vpop.f32.mrb[0].mxu0
        %4388 = vmatprep.mubr.f32.mxu0 0.0
        %4389 = vmatmul.mubr.f32.gmra.mrb[0].mxu0 %v4254
        %v4390 = vpop.f32.mrb[0].mxu0
        %v4391 = vadd.f32 %v4222, %v4390
        %v4392 = vpop.f32.mrb[0].mxu0
        %4393 = vmatprep.mubr.f32.mxu0 0.0
        %4394 = vmatmul.mubr.f32.gmra.mrb[0].mxu0 %v4257
        %v4395 = vpop.f32.mrb[0].mxu0
        %v4396 = vadd.f32 %v4222, %v4395
        %v4397 = vpop.f32.mrb[0].mxu0
        %4398 = vmatprep.mubr.f32.mxu0 0.0
        %4399 = vmatmul.mubr.f32.gmra.mrb[0].mxu0 %v4260
        %v4400 = vpop.f32.mrb[0].mxu0
        %v4401 = vadd.f32 %v4222, %v4400
        %v4402 = vpop.f32.mrb[0].mxu0
        %4403 = vmatprep.mubr.f32.mxu0 0.0
        %4404 = vmatmul.mubr.f32.gmra.mrb[0].mxu0 %v4263
        %v4405 = vpop.f32.mrb[0].mxu0
        %v4406 = vadd.f32 %v4222, %v4405
        %v4407 = vpop.f32.mrb[0].mxu0
        %4408 = vmatprep.mubr.f32.mxu0 0.0
        %4409 = vmatmul.mubr.f32.gmra.mrb[0].mxu0 %v4266
        %v4410 = vpop.f32.mrb[0].mxu0
        %v4411 = vadd.f32 %v4222, %v4410
        %v4412 = vpop.f32.mrb[0].mxu0
        %4413 = vmatprep.mubr.f32.mxu0 0.0
        %4414 = vmatmul.mubr.f32.gmra.mrb[0].mxu0 %v4269
        %v4415 = vpop.f32.mrb[0].mxu0
        %v4416 = vadd.f32 %v4222, %v4415
        %v4417 = vpop.f32.mrb[0].mxu0
        %4418 = vdwg.mxu0
        %vm4419 = vcmp.gt.f32.partialorder %v4341, 0.0
        %vm4420 = vcmp.gt.f32.partialorder %v4346, 0.0
        %vm4421 = vcmp.gt.f32.partialorder %v4351, 0.0
        %vm4422 = vcmp.gt.f32.partialorder %v4356, 0.0
        %vm4423 = vcmp.gt.f32.partialorder %v4361, 0.0
        %vm4424 = vcmp.gt.f32.partialorder %v4366, 0.0
        %vm4425 = vcmp.gt.f32.partialorder %v4371, 0.0
        %vm4426 = vcmp.gt.f32.partialorder %v4376, 0.0
        %vm4427 = vcmp.gt.f32.partialorder %v4381, 0.0
        %vm4428 = vcmp.gt.f32.partialorder %v4386, 0.0
        %vm4429 = vcmp.gt.f32.partialorder %v4391, 0.0
        %vm4430 = vcmp.gt.f32.partialorder %v4396, 0.0
        %vm4431 = vcmp.gt.f32.partialorder %v4401, 0.0
        %vm4432 = vcmp.gt.f32.partialorder %v4406, 0.0
        %vm4433 = vcmp.gt.f32.partialorder %v4411, 0.0
        %vm4434 = vcmp.gt.f32.partialorder %v4416, 0.0
        %v4435 = vmin.f32 %v4341, 0.0
        %v4436 = vmin.f32 %v4346, 0.0
        %v4437 = vmin.f32 %v4351, 0.0
        %v4438 = vmin.f32 %v4356, 0.0
        %v4439 = vmin.f32 %v4361, 0.0
        %v4440 = vmin.f32 %v4366, 0.0
        %v4441 = vmin.f32 %v4371, 0.0
        %v4442 = vmin.f32 %v4376, 0.0
        %v4443 = vmin.f32 %v4381, 0.0
        %v4444 = vmin.f32 %v4386, 0.0
        %v4445 = vmin.f32 %v4391, 0.0
        %v4446 = vmin.f32 %v4396, 0.0
        %v4447 = vmin.f32 %v4401, 0.0
        %v4448 = vmin.f32 %v4406, 0.0
        %v4449 = vmin.f32 %v4411, 0.0
        %v4450 = vmin.f32 %v4416, 0.0
        %v4451 = vmul.f32 %v4435, 1.442695
        %v4452 = vpow.pop %v4451
        %v4453 = vmul.f32 %v4436, 1.442695
        %v4454 = vpow.pop %v4453
        %v4455 = vmul.f32 %v4437, 1.442695
        %v4456 = vpow.pop %v4455
        %v4457 = vmul.f32 %v4438, 1.442695
        %v4458 = vpow.pop %v4457
        %v4459 = vmul.f32 %v4439, 1.442695
        %v4460 = vpow.pop %v4459
        %v4461 = vmul.f32 %v4440, 1.442695
        %v4462 = vpow.pop %v4461
        %v4463 = vmul.f32 %v4441, 1.442695
        %v4464 = vpow.pop %v4463
        %v4465 = vmul.f32 %v4442, 1.442695
        %v4466 = vpow.pop %v4465
        %v4467 = vmul.f32 %v4443, 1.442695
        %v4468 = vpow.pop %v4467
        %v4469 = vmul.f32 %v4444, 1.442695
        %v4470 = vpow.pop %v4469
        %v4471 = vmul.f32 %v4445, 1.442695
        %v4472 = vpow.pop %v4471
        %v4473 = vmul.f32 %v4446, 1.442695
        %v4474 = vpow.pop %v4473
        %v4475 = vmul.f32 %v4447, 1.442695
        %v4476 = vpow.pop %v4475
        %v4477 = vmul.f32 %v4448, 1.442695
        %v4478 = vpow.pop %v4477
        %v4479 = vmul.f32 %v4449, 1.442695
        %v4480 = vpow.pop %v4479
        %v4481 = vmul.f32 %v4450, 1.442695
        %v4482 = vpow.pop %v4481
        %v4483 = vsub.f32 %v4452, 1.0
        %v4484 = vsub.f32 %v4454, 1.0
        %v4485 = vsub.f32 %v4456, 1.0
        %v4486 = vsub.f32 %v4458, 1.0
        %v4487 = vsub.f32 %v4460, 1.0
        %v4488 = vsub.f32 %v4462, 1.0
        %v4489 = vsub.f32 %v4464, 1.0
        %v4490 = vsub.f32 %v4466, 1.0
        %v4491 = vsub.f32 %v4468, 1.0
        %v4492 = vsub.f32 %v4470, 1.0
        %v4493 = vsub.f32 %v4472, 1.0
        %v4494 = vsub.f32 %v4474, 1.0
        %v4495 = vsub.f32 %v4476, 1.0
        %v4496 = vsub.f32 %v4478, 1.0
        %v4497 = vsub.f32 %v4480, 1.0
        %v4498 = vsub.f32 %v4482, 1.0
        %v4499 = vsel %vm4419, %v4341, %v4483
        %v4500 = vsel %vm4420, %v4346, %v4484
        %v4501 = vsel %vm4421, %v4351, %v4485
        %v4502 = vsel %vm4422, %v4356, %v4486
        %v4503 = vsel %vm4423, %v4361, %v4487
        %v4504 = vsel %vm4424, %v4366, %v4488
        %v4505 = vsel %vm4425, %v4371, %v4489
        %v4506 = vsel %vm4426, %v4376, %v4490
        %v4507 = vsel %vm4427, %v4381, %v4491
        %v4508 = vsel %vm4428, %v4386, %v4492
        %v4509 = vsel %vm4429, %v4391, %v4493
        %v4510 = vsel %vm4430, %v4396, %v4494
        %v4511 = vsel %vm4431, %v4401, %v4495
        %v4512 = vsel %vm4432, %v4406, %v4496
        %v4513 = vsel %vm4433, %v4411, %v4497
        %v4514 = vsel %vm4434, %v4416, %v4498
        %v4515 = vlaneseq
        %v4516 = vshrl.u32 %v4515, 7
        %v4517 = vsub.s32 0, %v4516
        %v4518 = vrot.slane %v3602, %v4517
        %v4520 = vsel %vm1143, %v4499, 0
        %v4523 = vsel %vm1143, %v4500, 0
        %v4526 = vsel %vm1143, %v4501, 0
        %v4529 = vsel %vm1143, %v4502, 0
        %v4532 = vsel %vm1143, %v4503, 0
        %v4535 = vsel %vm1143, %v4504, 0
        %v4538 = vsel %vm1143, %v4505, 0
        %v4541 = vsel %vm1143, %v4506, 0
        %v4544 = vsel %vm1143, %v4507, 0
        %v4547 = vsel %vm1143, %v4508, 0
        %v4550 = vsel %vm1143, %v4509, 0
        %v4553 = vsel %vm1143, %v4510, 0
        %v4556 = vsel %vm1143, %v4511, 0
        %v4559 = vsel %vm1143, %v4512, 0
        %v4562 = vsel %vm1143, %v4513, 0
        %v4565 = vsel %vm1143, %v4514, 0
        %v4568 = vsel %vm1811, %v3601, 0
        %4570 = vmatprep.subr.mxu0 0.0
        %4571 = vmatpush1.msra.mxu0 %v4568
        %4572 = vmatprep.subr.mxu0 0.0
        %4573 = vmatpush1.msra.mxu0 0.0
        %4574 = vmatprep.subr.mxu0 0.0
        %4575 = vmatpush1.msra.mxu0 0.0
        %4576 = vmatprep.subr.mxu0 0.0
        %4577 = vmatpush1.msra.mxu0 0.0
        %4578 = vmatprep.subr.mxu0 0.0
        %4579 = vmatpush1.msra.mxu0 0.0
        %4580 = vmatprep.subr.mxu0 0.0
        %4581 = vmatpush1.msra.mxu0 0.0
        %4582 = vmatprep.subr.mxu0 0.0
        %4583 = vmatpush1.msra.mxu0 0.0
        %4584 = vmatprep.subr.mxu0 0.0
        %4585 = vmatpush1.msra.mxu0 0.0
        %4586 = vmatprep.subr.mxu0 0.0
        %4587 = vmatpush1.msra.mxu0 0.0
        %4588 = vmatprep.subr.mxu0 0.0
        %4589 = vmatpush1.msra.mxu0 0.0
        %4590 = vmatprep.subr.mxu0 0.0
        %4591 = vmatpush1.msra.mxu0 0.0
        %4592 = vmatprep.subr.mxu0 0.0
        %4593 = vmatpush1.msra.mxu0 0.0
        %4594 = vmatprep.subr.mxu0 0.0
        %4595 = vmatpush1.msra.mxu0 0.0
        %4596 = vmatprep.subr.mxu0 0.0
        %4597 = vmatpush1.msra.mxu0 0.0
        %4598 = vmatprep.subr.mxu0 0.0
        %4599 = vmatpush1.msra.mxu0 0.0
        %4600 = vmatprep.subr.mxu0 0.0
        %4601 = vmatpush1.msra.mxu0 0.0
        %4602 = vmatprep.subr.mxu0 0.0
        %4603 = vmatpush1.msra.mxu0 0.0
        %4604 = vmatprep.subr.mxu0 0.0
        %4605 = vmatpush1.msra.mxu0 0.0
        %4606 = vmatprep.subr.mxu0 0.0
        %4607 = vmatpush1.msra.mxu0 0.0
        %4608 = vmatprep.subr.mxu0 0.0
        %4609 = vmatpush1.msra.mxu0 0.0
        %4610 = vmatprep.subr.mxu0 0.0
        %4611 = vmatpush1.msra.mxu0 0.0
        %4612 = vmatprep.subr.mxu0 0.0
        %4613 = vmatpush1.msra.mxu0 0.0
        %4614 = vmatprep.subr.mxu0 0.0
        %4615 = vmatpush1.msra.mxu0 0.0
        %4616 = vmatprep.subr.mxu0 0.0
        %4617 = vmatpush1.msra.mxu0 0.0
        %4618 = vmatprep.subr.mxu0 0.0
        %4619 = vmatpush1.msra.mxu0 0.0
        %4620 = vmatprep.subr.mxu0 0.0
        %4621 = vmatpush1.msra.mxu0 0.0
        %4622 = vmatprep.subr.mxu0 0.0
        %4623 = vmatpush1.msra.mxu0 0.0
        %4624 = vmatprep.subr.mxu0 0.0
        %4625 = vmatpush1.msra.mxu0 0.0
        %4626 = vmatprep.subr.mxu0 0.0
        %4627 = vmatpush1.msra.mxu0 0.0
        %4628 = vmatprep.subr.mxu0 0.0
        %4629 = vmatpush1.msra.mxu0 0.0
        %4630 = vmatprep.subr.mxu0 0.0
        %4631 = vmatpush1.msra.mxu0 0.0
        %4632 = vmatprep.subr.mxu0 0.0
        %4633 = vmatpush1.msra.mxu0 0.0
        %4634 = vmatprep.mubr.f32.mxu0 0.0
        %4635 = vmatmul.mubr.f32.gmra.mrb[0].mxu0 %v4520
        %v4636 = vpop.f32.mrb[0].mxu0
        %v4637 = vadd.f32 %v4518, %v4636
        %v4638 = vpop.f32.mrb[0].mxu0
        %4639 = vmatprep.mubr.f32.mxu0 0.0
        %4640 = vmatmul.mubr.f32.gmra.mrb[0].mxu0 %v4523
        %v4641 = vpop.f32.mrb[0].mxu0
        %v4642 = vadd.f32 %v4518, %v4641
        %v4643 = vpop.f32.mrb[0].mxu0
        %4644 = vmatprep.mubr.f32.mxu0 0.0
        %4645 = vmatmul.mubr.f32.gmra.mrb[0].mxu0 %v4526
        %v4646 = vpop.f32.mrb[0].mxu0
        %v4647 = vadd.f32 %v4518, %v4646
        %v4648 = vpop.f32.mrb[0].mxu0
        %4649 = vmatprep.mubr.f32.mxu0 0.0
        %4650 = vmatmul.mubr.f32.gmra.mrb[0].mxu0 %v4529
        %v4651 = vpop.f32.mrb[0].mxu0
        %v4652 = vadd.f32 %v4518, %v4651
        %v4653 = vpop.f32.mrb[0].mxu0
        %4654 = vmatprep.mubr.f32.mxu0 0.0
        %4655 = vmatmul.mubr.f32.gmra.mrb[0].mxu0 %v4532
        %v4656 = vpop.f32.mrb[0].mxu0
        %v4657 = vadd.f32 %v4518, %v4656
        %v4658 = vpop.f32.mrb[0].mxu0
        %4659 = vmatprep.mubr.f32.mxu0 0.0
        %4660 = vmatmul.mubr.f32.gmra.mrb[0].mxu0 %v4535
        %v4661 = vpop.f32.mrb[0].mxu0
        %v4662 = vadd.f32 %v4518, %v4661
        %v4663 = vpop.f32.mrb[0].mxu0
        %4664 = vmatprep.mubr.f32.mxu0 0.0
        %4665 = vmatmul.mubr.f32.gmra.mrb[0].mxu0 %v4538
        %v4666 = vpop.f32.mrb[0].mxu0
        %v4667 = vadd.f32 %v4518, %v4666
        %v4668 = vpop.f32.mrb[0].mxu0
        %4669 = vmatprep.mubr.f32.mxu0 0.0
        %4670 = vmatmul.mubr.f32.gmra.mrb[0].mxu0 %v4541
        %v4671 = vpop.f32.mrb[0].mxu0
        %v4672 = vadd.f32 %v4518, %v4671
        %v4673 = vpop.f32.mrb[0].mxu0
        %4674 = vmatprep.mubr.f32.mxu0 0.0
        %4675 = vmatmul.mubr.f32.gmra.mrb[0].mxu0 %v4544
        %v4676 = vpop.f32.mrb[0].mxu0
        %v4677 = vadd.f32 %v4518, %v4676
        %v4678 = vpop.f32.mrb[0].mxu0
        %4679 = vmatprep.mubr.f32.mxu0 0.0
        %4680 = vmatmul.mubr.f32.gmra.mrb[0].mxu0 %v4547
        %v4681 = vpop.f32.mrb[0].mxu0
        %v4682 = vadd.f32 %v4518, %v4681
        %v4683 = vpop.f32.mrb[0].mxu0
        %4684 = vmatprep.mubr.f32.mxu0 0.0
        %4685 = vmatmul.mubr.f32.gmra.mrb[0].mxu0 %v4550
        %v4686 = vpop.f32.mrb[0].mxu0
        %v4687 = vadd.f32 %v4518, %v4686
        %v4688 = vpop.f32.mrb[0].mxu0
        %4689 = vmatprep.mubr.f32.mxu0 0.0
        %4690 = vmatmul.mubr.f32.gmra.mrb[0].mxu0 %v4553
        %v4691 = vpop.f32.mrb[0].mxu0
        %v4692 = vadd.f32 %v4518, %v4691
        %v4693 = vpop.f32.mrb[0].mxu0
        %4694 = vmatprep.mubr.f32.mxu0 0.0
        %4695 = vmatmul.mubr.f32.gmra.mrb[0].mxu0 %v4556
        %v4696 = vpop.f32.mrb[0].mxu0
        %v4697 = vadd.f32 %v4518, %v4696
        %v4698 = vpop.f32.mrb[0].mxu0
        %4699 = vmatprep.mubr.f32.mxu0 0.0
        %4700 = vmatmul.mubr.f32.gmra.mrb[0].mxu0 %v4559
        %v4701 = vpop.f32.mrb[0].mxu0
        %v4702 = vadd.f32 %v4518, %v4701
        %v4703 = vpop.f32.mrb[0].mxu0
        %4704 = vmatprep.mubr.f32.mxu0 0.0
        %4705 = vmatmul.mubr.f32.gmra.mrb[0].mxu0 %v4562
        %v4706 = vpop.f32.mrb[0].mxu0
        %v4707 = vadd.f32 %v4518, %v4706
        %v4708 = vpop.f32.mrb[0].mxu0
        %4709 = vmatprep.mubr.f32.mxu0 0.0
        %4710 = vmatmul.mubr.f32.gmra.mrb[0].mxu0 %v4565
        %v4711 = vpop.f32.mrb[0].mxu0
        %v4712 = vadd.f32 %v4518, %v4711
        %v4713 = vpop.f32.mrb[0].mxu0
        %4714 = vdwg.mxu0
        %vm4715 = vcmp.gt.f32.partialorder %v4637, 0.0
        %vm4716 = vcmp.gt.f32.partialorder %v4642, 0.0
        %vm4717 = vcmp.gt.f32.partialorder %v4647, 0.0
        %vm4718 = vcmp.gt.f32.partialorder %v4652, 0.0
        %vm4719 = vcmp.gt.f32.partialorder %v4657, 0.0
        %vm4720 = vcmp.gt.f32.partialorder %v4662, 0.0
        %vm4721 = vcmp.gt.f32.partialorder %v4667, 0.0
        %vm4722 = vcmp.gt.f32.partialorder %v4672, 0.0
        %vm4723 = vcmp.gt.f32.partialorder %v4677, 0.0
        %vm4724 = vcmp.gt.f32.partialorder %v4682, 0.0
        %vm4725 = vcmp.gt.f32.partialorder %v4687, 0.0
        %vm4726 = vcmp.gt.f32.partialorder %v4692, 0.0
        %vm4727 = vcmp.gt.f32.partialorder %v4697, 0.0
        %vm4728 = vcmp.gt.f32.partialorder %v4702, 0.0
        %vm4729 = vcmp.gt.f32.partialorder %v4707, 0.0
        %vm4730 = vcmp.gt.f32.partialorder %v4712, 0.0
        %v4731 = vmin.f32 %v4637, 0.0
        %v4732 = vmin.f32 %v4642, 0.0
        %v4733 = vmin.f32 %v4647, 0.0
        %v4734 = vmin.f32 %v4652, 0.0
        %v4735 = vmin.f32 %v4657, 0.0
        %v4736 = vmin.f32 %v4662, 0.0
        %v4737 = vmin.f32 %v4667, 0.0
        %v4738 = vmin.f32 %v4672, 0.0
        %v4739 = vmin.f32 %v4677, 0.0
        %v4740 = vmin.f32 %v4682, 0.0
        %v4741 = vmin.f32 %v4687, 0.0
        %v4742 = vmin.f32 %v4692, 0.0
        %v4743 = vmin.f32 %v4697, 0.0
        %v4744 = vmin.f32 %v4702, 0.0
        %v4745 = vmin.f32 %v4707, 0.0
        %v4746 = vmin.f32 %v4712, 0.0
        %v4747 = vmul.f32 %v4731, 1.442695
        %v4748 = vpow.pop %v4747
        %v4749 = vmul.f32 %v4732, 1.442695
        %v4750 = vpow.pop %v4749
        %v4751 = vmul.f32 %v4733, 1.442695
        %v4752 = vpow.pop %v4751
        %v4753 = vmul.f32 %v4734, 1.442695
        %v4754 = vpow.pop %v4753
        %v4755 = vmul.f32 %v4735, 1.442695
        %v4756 = vpow.pop %v4755
        %v4757 = vmul.f32 %v4736, 1.442695
        %v4758 = vpow.pop %v4757
        %v4759 = vmul.f32 %v4737, 1.442695
        %v4760 = vpow.pop %v4759
        %v4761 = vmul.f32 %v4738, 1.442695
        %v4762 = vpow.pop %v4761
        %v4763 = vmul.f32 %v4739, 1.442695
        %v4764 = vpow.pop %v4763
        %v4765 = vmul.f32 %v4740, 1.442695
        %v4766 = vpow.pop %v4765
        %v4767 = vmul.f32 %v4741, 1.442695
        %v4768 = vpow.pop %v4767
        %v4769 = vmul.f32 %v4742, 1.442695
        %v4770 = vpow.pop %v4769
        %v4771 = vmul.f32 %v4743, 1.442695
        %v4772 = vpow.pop %v4771
        %v4773 = vmul.f32 %v4744, 1.442695
        %v4774 = vpow.pop %v4773
        %v4775 = vmul.f32 %v4745, 1.442695
        %v4776 = vpow.pop %v4775
        %v4777 = vmul.f32 %v4746, 1.442695
        %v4778 = vpow.pop %v4777
        %v4779 = vsub.f32 %v4748, 1.0
        %v4780 = vsub.f32 %v4750, 1.0
        %v4781 = vsub.f32 %v4752, 1.0
        %v4782 = vsub.f32 %v4754, 1.0
        %v4783 = vsub.f32 %v4756, 1.0
        %v4784 = vsub.f32 %v4758, 1.0
        %v4785 = vsub.f32 %v4760, 1.0
        %v4786 = vsub.f32 %v4762, 1.0
        %v4787 = vsub.f32 %v4764, 1.0
        %v4788 = vsub.f32 %v4766, 1.0
        %v4789 = vsub.f32 %v4768, 1.0
        %v4790 = vsub.f32 %v4770, 1.0
        %v4791 = vsub.f32 %v4772, 1.0
        %v4792 = vsub.f32 %v4774, 1.0
        %v4793 = vsub.f32 %v4776, 1.0
        %v4794 = vsub.f32 %v4778, 1.0
        %v4795 = vsel %vm4715, %v4637, %v4779
        %v4796 = vsel %vm4716, %v4642, %v4780
        %v4797 = vsel %vm4717, %v4647, %v4781
        %v4798 = vsel %vm4718, %v4652, %v4782
        %v4799 = vsel %vm4719, %v4657, %v4783
        %v4800 = vsel %vm4720, %v4662, %v4784
        %v4801 = vsel %vm4721, %v4667, %v4785
        %v4802 = vsel %vm4722, %v4672, %v4786
        %v4803 = vsel %vm4723, %v4677, %v4787
        %v4804 = vsel %vm4724, %v4682, %v4788
        %v4805 = vsel %vm4725, %v4687, %v4789
        %v4806 = vsel %vm4726, %v4692, %v4790
        %v4807 = vsel %vm4727, %v4697, %v4791
        %v4808 = vsel %vm4728, %v4702, %v4792
        %v4809 = vsel %vm4729, %v4707, %v4793
        %v4810 = vsel %vm4730, %v4712, %v4794
        %v4811 = vadd.f32 %v3580, %v4795
        %v4812 = vadd.f32 %v3581, %v4796
        %v4813 = vadd.f32 %v3582, %v4797
        %v4814 = vadd.f32 %v3583, %v4798
        %v4815 = vadd.f32 %v3584, %v4799
        %v4816 = vadd.f32 %v3585, %v4800
        %v4817 = vadd.f32 %v3586, %v4801
        %v4818 = vadd.f32 %v3587, %v4802
        %v4819 = vadd.f32 %v3588, %v4803
        %v4820 = vadd.f32 %v3589, %v4804
        %v4821 = vadd.f32 %v3590, %v4805
        %v4822 = vadd.f32 %v3591, %v4806
        %v4823 = vadd.f32 %v3592, %v4807
        %v4824 = vadd.f32 %v3593, %v4808
        %v4825 = vadd.f32 %v3594, %v4809
        %v4826 = vadd.f32 %v3595, %v4810
        %v4827 = vld [vmem:[%s1 + $0x60] sm:$0xff]
        %v4828 = vld [vmem:[%s1 + $0x68] sm:$0xff]
        %v4829 = vld [vmem:[%s2 + $0xe] sm:$0x1]
        %4830 = vst.msk [vmem:[#allocation2] sm:$0x1] %vm2376, 0.0
        %4831 = vst.msk [vmem:[#allocation2 + $0x1] sm:$0xff] %vm1143, %v4811
        %4832 = vst.msk [vmem:[#allocation2 + $0x9] sm:$0xff] %vm1143, %v4812
        %4833 = vst.msk [vmem:[#allocation2 + $0x11] sm:$0xff] %vm1143, %v4813
        %4834 = vst.msk [vmem:[#allocation2 + $0x19] sm:$0xff] %vm1143, %v4814
        %4835 = vst.msk [vmem:[#allocation2 + $0x21] sm:$0xff] %vm1143, %v4815
        %4836 = vst.msk [vmem:[#allocation2 + $0x29] sm:$0xff] %vm1143, %v4816
        %4837 = vst.msk [vmem:[#allocation2 + $0x31] sm:$0xff] %vm1143, %v4817
        %4838 = vst.msk [vmem:[#allocation2 + $0x39] sm:$0xff] %vm1143, %v4818
        %4839 = vst.msk [vmem:[#allocation2 + $0x41] sm:$0xff] %vm1143, %v4819
        %4840 = vst.msk [vmem:[#allocation2 + $0x49] sm:$0xff] %vm1143, %v4820
        %4841 = vst.msk [vmem:[#allocation2 + $0x51] sm:$0xff] %vm1143, %v4821
        %4842 = vst.msk [vmem:[#allocation2 + $0x59] sm:$0xff] %vm1143, %v4822
        %4843 = vst.msk [vmem:[#allocation2 + $0x61] sm:$0xff] %vm1143, %v4823
        %4844 = vst.msk [vmem:[#allocation2 + $0x69] sm:$0xff] %vm1143, %v4824
        %4845 = vst.msk [vmem:[#allocation2 + $0x71] sm:$0xff] %vm1143, %v4825
        %4846 = vst.msk [vmem:[#allocation2 + $0x79] sm:$0xff] %vm1143, %v4826
        %4847 = vst.msk [vmem:[#allocation2 + $0x81] sm:$0x1] %vm2376, 0.0
        %v4848 = vld [vmem:[#allocation2] ss:$2 sm:$0xff]
        %s4849 = scalar_lea.vmem [#allocation2], 16
        %v4850 = vld [vmem:[%s4849] ss:$2 sm:$0xff]
        %s4851 = scalar_lea.vmem [#allocation2], 32
        %v4852 = vld [vmem:[%s4851] ss:$2 sm:$0xff]
        %s4853 = scalar_lea.vmem [#allocation2], 48
        %v4854 = vld [vmem:[%s4853] ss:$2 sm:$0xff]
        %s4855 = scalar_lea.vmem [#allocation2], 64
        %v4856 = vld [vmem:[%s4855] ss:$2 sm:$0xff]
        %s4857 = scalar_lea.vmem [#allocation2], 80
        %v4858 = vld [vmem:[%s4857] ss:$2 sm:$0xff]
        %s4859 = scalar_lea.vmem [#allocation2], 96
        %v4860 = vld [vmem:[%s4859] ss:$2 sm:$0xff]
        %s4861 = scalar_lea.vmem [#allocation2], 112
        %v4862 = vld [vmem:[%s4861] ss:$2 sm:$0xff]
        %s4863 = scalar_lea.vmem [#allocation2], 1
        %v4864 = vld [vmem:[%s4863] ss:$2 sm:$0xff]
        %s4865 = scalar_lea.vmem [#allocation2], 17
        %v4866 = vld [vmem:[%s4865] ss:$2 sm:$0xff]
        %s4867 = scalar_lea.vmem [#allocation2], 33
        %v4868 = vld [vmem:[%s4867] ss:$2 sm:$0xff]
        %s4869 = scalar_lea.vmem [#allocation2], 49
        %v4870 = vld [vmem:[%s4869] ss:$2 sm:$0xff]
        %s4871 = scalar_lea.vmem [#allocation2], 65
        %v4872 = vld [vmem:[%s4871] ss:$2 sm:$0xff]
        %s4873 = scalar_lea.vmem [#allocation2], 81
        %v4874 = vld [vmem:[%s4873] ss:$2 sm:$0xff]
        %s4875 = scalar_lea.vmem [#allocation2], 97
        %v4876 = vld [vmem:[%s4875] ss:$2 sm:$0xff]
        %s4877 = scalar_lea.vmem [#allocation2], 113
        %v4878 = vld [vmem:[%s4877] ss:$2 sm:$0xff]
        %s4879 = scalar_lea.vmem [#allocation2], 2
        %v4880 = vld [vmem:[%s4879] ss:$2 sm:$0xff]
        %s4881 = scalar_lea.vmem [#allocation2], 18
        %v4882 = vld [vmem:[%s4881] ss:$2 sm:$0xff]
        %s4883 = scalar_lea.vmem [#allocation2], 34
        %v4884 = vld [vmem:[%s4883] ss:$2 sm:$0xff]
        %s4885 = scalar_lea.vmem [#allocation2], 50
        %v4886 = vld [vmem:[%s4885] ss:$2 sm:$0xff]
        %s4887 = scalar_lea.vmem [#allocation2], 66
        %v4888 = vld [vmem:[%s4887] ss:$2 sm:$0xff]
        %s4889 = scalar_lea.vmem [#allocation2], 82
        %v4890 = vld [vmem:[%s4889] ss:$2 sm:$0xff]
        %s4891 = scalar_lea.vmem [#allocation2], 98
        %v4892 = vld [vmem:[%s4891] ss:$2 sm:$0xff]
        %s4893 = scalar_lea.vmem [#allocation2], 114
        %v4894 = vld [vmem:[%s4893] ss:$2 sm:$0xff]
        %s4895 = scalar_lea.vmem [#allocation2], 3
        %v4896 = vld [vmem:[%s4895] ss:$2 sm:$0xff]
        %s4897 = scalar_lea.vmem [#allocation2], 19
        %v4898 = vld [vmem:[%s4897] ss:$2 sm:$0xff]
        %s4899 = scalar_lea.vmem [#allocation2], 35
        %v4900 = vld [vmem:[%s4899] ss:$2 sm:$0xff]
        %s4901 = scalar_lea.vmem [#allocation2], 51
        %v4902 = vld [vmem:[%s4901] ss:$2 sm:$0xff]
        %s4903 = scalar_lea.vmem [#allocation2], 67
        %v4904 = vld [vmem:[%s4903] ss:$2 sm:$0xff]
        %s4905 = scalar_lea.vmem [#allocation2], 83
        %v4906 = vld [vmem:[%s4905] ss:$2 sm:$0xff]
        %s4907 = scalar_lea.vmem [#allocation2], 99
        %v4908 = vld [vmem:[%s4907] ss:$2 sm:$0xff]
        %s4909 = scalar_lea.vmem [#allocation2], 115
        %v4910 = vld [vmem:[%s4909] ss:$2 sm:$0xff]
        %4919 = vrot.lane.b32.xlu0 %v4864, 4
        %v4920 = vpop.permute.xlu0 %4919
        %4921 = vrot.lane.b32.xlu0 %v4866, 4
        %v4922 = vpop.permute.xlu0 %4921
        %4923 = vrot.lane.b32.xlu0 %v4868, 4
        %v4924 = vpop.permute.xlu0 %4923
        %4925 = vrot.lane.b32.xlu0 %v4870, 4
        %v4926 = vpop.permute.xlu0 %4925
        %4927 = vrot.lane.b32.xlu0 %v4872, 4
        %v4928 = vpop.permute.xlu0 %4927
        %4929 = vrot.lane.b32.xlu0 %v4874, 4
        %v4930 = vpop.permute.xlu0 %4929
        %4931 = vrot.lane.b32.xlu0 %v4876, 4
        %v4932 = vpop.permute.xlu0 %4931
        %4933 = vrot.lane.b32.xlu0 %v4878, 4
        %v4934 = vpop.permute.xlu0 %4933
        %4951 = vrot.lane.b32.xlu0 %v4880, 8
        %v4952 = vpop.permute.xlu0 %4951
        %4953 = vrot.lane.b32.xlu0 %v4882, 8
        %v4954 = vpop.permute.xlu0 %4953
        %4955 = vrot.lane.b32.xlu0 %v4884, 8
        %v4956 = vpop.permute.xlu0 %4955
        %4957 = vrot.lane.b32.xlu0 %v4886, 8
        %v4958 = vpop.permute.xlu0 %4957
        %4959 = vrot.lane.b32.xlu0 %v4888, 8
        %v4960 = vpop.permute.xlu0 %4959
        %4961 = vrot.lane.b32.xlu0 %v4890, 8
        %v4962 = vpop.permute.xlu0 %4961
        %4963 = vrot.lane.b32.xlu0 %v4892, 8
        %v4964 = vpop.permute.xlu0 %4963
        %4965 = vrot.lane.b32.xlu0 %v4894, 8
        %v4966 = vpop.permute.xlu0 %4965
        %4983 = vrot.lane.b32.xlu0 %v4896, 12
        %v4984 = vpop.permute.xlu0 %4983
        %4985 = vrot.lane.b32.xlu0 %v4898, 12
        %v4986 = vpop.permute.xlu0 %4985
        %4987 = vrot.lane.b32.xlu0 %v4900, 12
        %v4988 = vpop.permute.xlu0 %4987
        %4989 = vrot.lane.b32.xlu0 %v4902, 12
        %v4990 = vpop.permute.xlu0 %4989
        %4991 = vrot.lane.b32.xlu0 %v4904, 12
        %v4992 = vpop.permute.xlu0 %4991
        %4993 = vrot.lane.b32.xlu0 %v4906, 12
        %v4994 = vpop.permute.xlu0 %4993
        %4995 = vrot.lane.b32.xlu0 %v4908, 12
        %v4996 = vpop.permute.xlu0 %4995
        %4997 = vrot.lane.b32.xlu0 %v4910, 12
        %v4998 = vpop.permute.xlu0 %4997
        %v5007 = vsel %vm1143, %v4848, %v4920
        %v5008 = vsel %vm1143, %v4850, %v4922
        %v5009 = vsel %vm1143, %v4852, %v4924
        %v5010 = vsel %vm1143, %v4854, %v4926
        %v5011 = vsel %vm1143, %v4856, %v4928
        %v5012 = vsel %vm1143, %v4858, %v4930
        %v5013 = vsel %vm1143, %v4860, %v4932
        %v5014 = vsel %vm1143, %v4862, %v4934
        %v5015 = vsel %vm1673, %v5007, %v4952
        %v5016 = vsel %vm1673, %v5008, %v4954
        %v5017 = vsel %vm1673, %v5009, %v4956
        %v5018 = vsel %vm1673, %v5010, %v4958
        %v5019 = vsel %vm1673, %v5011, %v4960
        %v5020 = vsel %vm1673, %v5012, %v4962
        %v5021 = vsel %vm1673, %v5013, %v4964
        %v5022 = vsel %vm1673, %v5014, %v4966
        %v5023 = vsel %vm1690, %v5015, %v4984
        %v5024 = vsel %vm1690, %v5016, %v4986
        %v5025 = vsel %vm1690, %v5017, %v4988
        %v5026 = vsel %vm1690, %v5018, %v4990
        %v5027 = vsel %vm1690, %v5019, %v4992
        %v5028 = vsel %vm1690, %v5020, %v4994
        %v5029 = vsel %vm1690, %v5021, %v4996
        %v5030 = vsel %vm1690, %v5022, %v4998
        %v5031 = vlaneseq
        %v5032 = vshrl.u32 %v5031, 7
        %v5033 = vsub.s32 0, %v5032
        %v5034 = vrot.slane %v4829, %v5033
        %v5036 = vsel %vm1707, %v5023, 0
        %v5039 = vsel %vm1707, %v5024, 0
        %v5042 = vsel %vm1707, %v5025, 0
        %v5045 = vsel %vm1707, %v5026, 0
        %v5048 = vsel %vm1707, %v5027, 0
        %v5051 = vsel %vm1707, %v5028, 0
        %v5054 = vsel %vm1707, %v5029, 0
        %v5057 = vsel %vm1707, %v5030, 0
        %5059 = vmatprep.subr.mxu0 0.0
        %5060 = vmatpush1.msra.mxu0 %v4827
        %5061 = vmatprep.subr.mxu0 0.0
        %5062 = vmatpush1.msra.mxu0 %v4828
        %5063 = vmatprep.subr.mxu0 0.0
        %5064 = vmatpush1.msra.mxu0 0.0
        %5065 = vmatprep.subr.mxu0 0.0
        %5066 = vmatpush1.msra.mxu0 0.0
        %5067 = vmatprep.subr.mxu0 0.0
        %5068 = vmatpush1.msra.mxu0 0.0
        %5069 = vmatprep.subr.mxu0 0.0
        %5070 = vmatpush1.msra.mxu0 0.0
        %5071 = vmatprep.subr.mxu0 0.0
        %5072 = vmatpush1.msra.mxu0 0.0
        %5073 = vmatprep.subr.mxu0 0.0
        %5074 = vmatpush1.msra.mxu0 0.0
        %5075 = vmatprep.subr.mxu0 0.0
        %5076 = vmatpush1.msra.mxu0 0.0
        %5077 = vmatprep.subr.mxu0 0.0
        %5078 = vmatpush1.msra.mxu0 0.0
        %5079 = vmatprep.subr.mxu0 0.0
        %5080 = vmatpush1.msra.mxu0 0.0
        %5081 = vmatprep.subr.mxu0 0.0
        %5082 = vmatpush1.msra.mxu0 0.0
        %5083 = vmatprep.subr.mxu0 0.0
        %5084 = vmatpush1.msra.mxu0 0.0
        %5085 = vmatprep.subr.mxu0 0.0
        %5086 = vmatpush1.msra.mxu0 0.0
        %5087 = vmatprep.subr.mxu0 0.0
        %5088 = vmatpush1.msra.mxu0 0.0
        %5089 = vmatprep.subr.mxu0 0.0
        %5090 = vmatpush1.msra.mxu0 0.0
        %5091 = vmatprep.subr.mxu0 0.0
        %5092 = vmatpush1.msra.mxu0 0.0
        %5093 = vmatprep.subr.mxu0 0.0
        %5094 = vmatpush1.msra.mxu0 0.0
        %5095 = vmatprep.subr.mxu0 0.0
        %5096 = vmatpush1.msra.mxu0 0.0
        %5097 = vmatprep.subr.mxu0 0.0
        %5098 = vmatpush1.msra.mxu0 0.0
        %5099 = vmatprep.subr.mxu0 0.0
        %5100 = vmatpush1.msra.mxu0 0.0
        %5101 = vmatprep.subr.mxu0 0.0
        %5102 = vmatpush1.msra.mxu0 0.0
        %5103 = vmatprep.subr.mxu0 0.0
        %5104 = vmatpush1.msra.mxu0 0.0
        %5105 = vmatprep.subr.mxu0 0.0
        %5106 = vmatpush1.msra.mxu0 0.0
        %5107 = vmatprep.subr.mxu0 0.0
        %5108 = vmatpush1.msra.mxu0 0.0
        %5109 = vmatprep.subr.mxu0 0.0
        %5110 = vmatpush1.msra.mxu0 0.0
        %5111 = vmatprep.subr.mxu0 0.0
        %5112 = vmatpush1.msra.mxu0 0.0
        %5113 = vmatprep.subr.mxu0 0.0
        %5114 = vmatpush1.msra.mxu0 0.0
        %5115 = vmatprep.subr.mxu0 0.0
        %5116 = vmatpush1.msra.mxu0 0.0
        %5117 = vmatprep.subr.mxu0 0.0
        %5118 = vmatpush1.msra.mxu0 0.0
        %5119 = vmatprep.subr.mxu0 0.0
        %5120 = vmatpush1.msra.mxu0 0.0
        %5121 = vmatprep.subr.mxu0 0.0
        %5122 = vmatpush1.msra.mxu0 0.0
        %5123 = vmatprep.mubr.f32.mxu0 0.0
        %5124 = vmatmul.mubr.f32.gmra.mrb[0].mxu0 %v5036
        %v5125 = vpop.f32.mrb[0].mxu0
        %v5126 = vadd.f32 %v5034, %v5125
        %v5127 = vpop.f32.mrb[0].mxu0
        %5128 = vmatprep.mubr.f32.mxu0 0.0
        %5129 = vmatmul.mubr.f32.gmra.mrb[0].mxu0 %v5039
        %v5130 = vpop.f32.mrb[0].mxu0
        %v5131 = vadd.f32 %v5034, %v5130
        %v5132 = vpop.f32.mrb[0].mxu0
        %5133 = vmatprep.mubr.f32.mxu0 0.0
        %5134 = vmatmul.mubr.f32.gmra.mrb[0].mxu0 %v5042
        %v5135 = vpop.f32.mrb[0].mxu0
        %v5136 = vadd.f32 %v5034, %v5135
        %v5137 = vpop.f32.mrb[0].mxu0
        %5138 = vmatprep.mubr.f32.mxu0 0.0
        %5139 = vmatmul.mubr.f32.gmra.mrb[0].mxu0 %v5045
        %v5140 = vpop.f32.mrb[0].mxu0
        %v5141 = vadd.f32 %v5034, %v5140
        %v5142 = vpop.f32.mrb[0].mxu0
        %5143 = vmatprep.mubr.f32.mxu0 0.0
        %5144 = vmatmul.mubr.f32.gmra.mrb[0].mxu0 %v5048
        %v5145 = vpop.f32.mrb[0].mxu0
        %v5146 = vadd.f32 %v5034, %v5145
        %v5147 = vpop.f32.mrb[0].mxu0
        %5148 = vmatprep.mubr.f32.mxu0 0.0
        %5149 = vmatmul.mubr.f32.gmra.mrb[0].mxu0 %v5051
        %v5150 = vpop.f32.mrb[0].mxu0
        %v5151 = vadd.f32 %v5034, %v5150
        %v5152 = vpop.f32.mrb[0].mxu0
        %5153 = vmatprep.mubr.f32.mxu0 0.0
        %5154 = vmatmul.mubr.f32.gmra.mrb[0].mxu0 %v5054
        %v5155 = vpop.f32.mrb[0].mxu0
        %v5156 = vadd.f32 %v5034, %v5155
        %v5157 = vpop.f32.mrb[0].mxu0
        %5158 = vmatprep.mubr.f32.mxu0 0.0
        %5159 = vmatmul.mubr.f32.gmra.mrb[0].mxu0 %v5057
        %v5160 = vpop.f32.mrb[0].mxu0
        %v5161 = vadd.f32 %v5034, %v5160
        %v5162 = vpop.f32.mrb[0].mxu0
        %5163 = vdwg.mxu0
        %vm5164 = vcmp.gt.f32.partialorder %v5126, 0.0
        %vm5165 = vcmp.gt.f32.partialorder %v5131, 0.0
        %vm5166 = vcmp.gt.f32.partialorder %v5136, 0.0
        %vm5167 = vcmp.gt.f32.partialorder %v5141, 0.0
        %vm5168 = vcmp.gt.f32.partialorder %v5146, 0.0
        %vm5169 = vcmp.gt.f32.partialorder %v5151, 0.0
        %vm5170 = vcmp.gt.f32.partialorder %v5156, 0.0
        %vm5171 = vcmp.gt.f32.partialorder %v5161, 0.0
        %v5172 = vmin.f32 %v5126, 0.0
        %v5173 = vmin.f32 %v5131, 0.0
        %v5174 = vmin.f32 %v5136, 0.0
        %v5175 = vmin.f32 %v5141, 0.0
        %v5176 = vmin.f32 %v5146, 0.0
        %v5177 = vmin.f32 %v5151, 0.0
        %v5178 = vmin.f32 %v5156, 0.0
        %v5179 = vmin.f32 %v5161, 0.0
        %v5180 = vmul.f32 %v5172, 1.442695
        %v5181 = vpow.pop %v5180
        %v5182 = vmul.f32 %v5173, 1.442695
        %v5183 = vpow.pop %v5182
        %v5184 = vmul.f32 %v5174, 1.442695
        %v5185 = vpow.pop %v5184
        %v5186 = vmul.f32 %v5175, 1.442695
        %v5187 = vpow.pop %v5186
        %v5188 = vmul.f32 %v5176, 1.442695
        %v5189 = vpow.pop %v5188
        %v5190 = vmul.f32 %v5177, 1.442695
        %v5191 = vpow.pop %v5190
        %v5192 = vmul.f32 %v5178, 1.442695
        %v5193 = vpow.pop %v5192
        %v5194 = vmul.f32 %v5179, 1.442695
        %v5195 = vpow.pop %v5194
        %v5196 = vsub.f32 %v5181, 1.0
        %v5197 = vsub.f32 %v5183, 1.0
        %v5198 = vsub.f32 %v5185, 1.0
        %v5199 = vsub.f32 %v5187, 1.0
        %v5200 = vsub.f32 %v5189, 1.0
        %v5201 = vsub.f32 %v5191, 1.0
        %v5202 = vsub.f32 %v5193, 1.0
        %v5203 = vsub.f32 %v5195, 1.0
        %v5204 = vsel %vm5164, %v5126, %v5196
        %v5205 = vsel %vm5165, %v5131, %v5197
        %v5206 = vsel %vm5166, %v5136, %v5198
        %v5207 = vsel %vm5167, %v5141, %v5199
        %v5208 = vsel %vm5168, %v5146, %v5200
        %v5209 = vsel %vm5169, %v5151, %v5201
        %v5210 = vsel %vm5170, %v5156, %v5202
        %v5211 = vsel %vm5171, %v5161, %v5203
        %v5212 = vld [vmem:[%s1 + $0x70] sm:$0xff]
        %v5213 = vld [vmem:[%s1 + $0x78] sm:$0xff]
        %v5214 = vld [vmem:[%s1 + $0x80] sm:$0xff]
        %v5215 = vld [vmem:[%s1 + $0x88] sm:$0xff]
        %v5216 = vld [vmem:[%s1 + $0x90] sm:$0xff]
        %v5217 = vld [vmem:[%s1 + $0x98] sm:$0xff]
        %v5218 = vld [vmem:[%s1 + $0xa0] sm:$0xff]
        %v5219 = vld [vmem:[%s2 + $0xf] sm:$0x1]
        %v5220 = vld [vmem:[%s1 + $0xa8] sm:$0xff]
        %v5221 = vld [vmem:[%s2 + $0x10] sm:$0x1]
        %vm5222 = vcmask 59392
        %5223 = vst.msk [vmem:[#allocation2] sm:$0x7] %vm5222, 0.0
        %5224 = vst.msk [vmem:[#allocation2 + $0x3] sm:$0xff] %vm1673, %v5204
        %5225 = vst.msk [vmem:[#allocation2 + $0xb] sm:$0xff] %vm1673, %v5205
        %5226 = vst.msk [vmem:[#allocation2 + $0x13] sm:$0xff] %vm1673, %v5206
        %5227 = vst.msk [vmem:[#allocation2 + $0x1b] sm:$0xff] %vm1673, %v5207
        %5228 = vst.msk [vmem:[#allocation2 + $0x23] sm:$0xff] %vm1673, %v5208
        %5229 = vst.msk [vmem:[#allocation2 + $0x2b] sm:$0xff] %vm1673, %v5209
        %5230 = vst.msk [vmem:[#allocation2 + $0x33] sm:$0xff] %vm1673, %v5210
        %5231 = vst.msk [vmem:[#allocation2 + $0x3b] sm:$0xff] %vm1673, %v5211
        %5232 = vst.msk [vmem:[#allocation2 + $0x43] sm:$0x7] %vm5222, 0.0
        %v5233 = vld [vmem:[#allocation2] sm:$0xff]
        %v5234 = vld [vmem:[#allocation2 + $0x8] sm:$0xff]
        %v5235 = vld [vmem:[#allocation2 + $0x10] sm:$0xff]
        %v5236 = vld [vmem:[#allocation2 + $0x18] sm:$0xff]
        %v5237 = vld [vmem:[#allocation2 + $0x20] sm:$0xff]
        %v5238 = vld [vmem:[#allocation2 + $0x28] sm:$0xff]
        %v5239 = vld [vmem:[#allocation2 + $0x30] sm:$0xff]
        %v5240 = vld [vmem:[#allocation2 + $0x38] sm:$0xff]
        %v5241 = vld [vmem:[#allocation2 + $0x1] sm:$0xff]
        %v5242 = vld [vmem:[#allocation2 + $0x9] sm:$0xff]
        %v5243 = vld [vmem:[#allocation2 + $0x11] sm:$0xff]
        %v5244 = vld [vmem:[#allocation2 + $0x19] sm:$0xff]
        %v5245 = vld [vmem:[#allocation2 + $0x21] sm:$0xff]
        %v5246 = vld [vmem:[#allocation2 + $0x29] sm:$0xff]
        %v5247 = vld [vmem:[#allocation2 + $0x31] sm:$0xff]
        %v5248 = vld [vmem:[#allocation2 + $0x39] sm:$0xff]
        %v5249 = vld [vmem:[#allocation2 + $0x2] sm:$0xff]
        %v5250 = vld [vmem:[#allocation2 + $0xa] sm:$0xff]
        %v5251 = vld [vmem:[#allocation2 + $0x12] sm:$0xff]
        %v5252 = vld [vmem:[#allocation2 + $0x1a] sm:$0xff]
        %v5253 = vld [vmem:[#allocation2 + $0x22] sm:$0xff]
        %v5254 = vld [vmem:[#allocation2 + $0x2a] sm:$0xff]
        %v5255 = vld [vmem:[#allocation2 + $0x32] sm:$0xff]
        %v5256 = vld [vmem:[#allocation2 + $0x3a] sm:$0xff]
        %v5257 = vld [vmem:[#allocation2 + $0x3] sm:$0xff]
        %v5258 = vld [vmem:[#allocation2 + $0xb] sm:$0xff]
        %v5259 = vld [vmem:[#allocation2 + $0x13] sm:$0xff]
        %v5260 = vld [vmem:[#allocation2 + $0x1b] sm:$0xff]
        %v5261 = vld [vmem:[#allocation2 + $0x23] sm:$0xff]
        %v5262 = vld [vmem:[#allocation2 + $0x2b] sm:$0xff]
        %v5263 = vld [vmem:[#allocation2 + $0x33] sm:$0xff]
        %v5264 = vld [vmem:[#allocation2 + $0x3b] sm:$0xff]
        %v5265 = vld [vmem:[#allocation2 + $0x4] sm:$0xff]
        %v5266 = vld [vmem:[#allocation2 + $0xc] sm:$0xff]
        %v5267 = vld [vmem:[#allocation2 + $0x14] sm:$0xff]
        %v5268 = vld [vmem:[#allocation2 + $0x1c] sm:$0xff]
        %v5269 = vld [vmem:[#allocation2 + $0x24] sm:$0xff]
        %v5270 = vld [vmem:[#allocation2 + $0x2c] sm:$0xff]
        %v5271 = vld [vmem:[#allocation2 + $0x34] sm:$0xff]
        %v5272 = vld [vmem:[#allocation2 + $0x3c] sm:$0xff]
        %v5273 = vld [vmem:[#allocation2 + $0x5] sm:$0xff]
        %v5274 = vld [vmem:[#allocation2 + $0xd] sm:$0xff]
        %v5275 = vld [vmem:[#allocation2 + $0x15] sm:$0xff]
        %v5276 = vld [vmem:[#allocation2 + $0x1d] sm:$0xff]
        %v5277 = vld [vmem:[#allocation2 + $0x25] sm:$0xff]
        %v5278 = vld [vmem:[#allocation2 + $0x2d] sm:$0xff]
        %v5279 = vld [vmem:[#allocation2 + $0x35] sm:$0xff]
        %v5280 = vld [vmem:[#allocation2 + $0x3d] sm:$0xff]
        %v5281 = vld [vmem:[#allocation2 + $0x6] sm:$0xff]
        %v5282 = vld [vmem:[#allocation2 + $0xe] sm:$0xff]
        %v5283 = vld [vmem:[#allocation2 + $0x16] sm:$0xff]
        %v5284 = vld [vmem:[#allocation2 + $0x1e] sm:$0xff]
        %v5285 = vld [vmem:[#allocation2 + $0x26] sm:$0xff]
        %v5286 = vld [vmem:[#allocation2 + $0x2e] sm:$0xff]
        %v5287 = vld [vmem:[#allocation2 + $0x36] sm:$0xff]
        %v5288 = vld [vmem:[#allocation2 + $0x3e] sm:$0xff]
        %5297 = vrot.lane.b32.xlu0 %v5241, 8
        %v5298 = vpop.permute.xlu0 %5297
        %5299 = vrot.lane.b32.xlu0 %v5242, 8
        %v5300 = vpop.permute.xlu0 %5299
        %5301 = vrot.lane.b32.xlu0 %v5243, 8
        %v5302 = vpop.permute.xlu0 %5301
        %5303 = vrot.lane.b32.xlu0 %v5244, 8
        %v5304 = vpop.permute.xlu0 %5303
        %5305 = vrot.lane.b32.xlu0 %v5245, 8
        %v5306 = vpop.permute.xlu0 %5305
        %5307 = vrot.lane.b32.xlu0 %v5246, 8
        %v5308 = vpop.permute.xlu0 %5307
        %5309 = vrot.lane.b32.xlu0 %v5247, 8
        %v5310 = vpop.permute.xlu0 %5309
        %5311 = vrot.lane.b32.xlu0 %v5248, 8
        %v5312 = vpop.permute.xlu0 %5311
        %5329 = vrot.lane.b32.xlu0 %v5249, 16
        %v5330 = vpop.permute.xlu0 %5329
        %5331 = vrot.lane.b32.xlu0 %v5250, 16
        %v5332 = vpop.permute.xlu0 %5331
        %5333 = vrot.lane.b32.xlu0 %v5251, 16
        %v5334 = vpop.permute.xlu0 %5333
        %5335 = vrot.lane.b32.xlu0 %v5252, 16
        %v5336 = vpop.permute.xlu0 %5335
        %5337 = vrot.lane.b32.xlu0 %v5253, 16
        %v5338 = vpop.permute.xlu0 %5337
        %5339 = vrot.lane.b32.xlu0 %v5254, 16
        %v5340 = vpop.permute.xlu0 %5339
        %5341 = vrot.lane.b32.xlu0 %v5255, 16
        %v5342 = vpop.permute.xlu0 %5341
        %5343 = vrot.lane.b32.xlu0 %v5256, 16
        %v5344 = vpop.permute.xlu0 %5343
        %5361 = vrot.lane.b32.xlu0 %v5257, 24
        %v5362 = vpop.permute.xlu0 %5361
        %5363 = vrot.lane.b32.xlu0 %v5258, 24
        %v5364 = vpop.permute.xlu0 %5363
        %5365 = vrot.lane.b32.xlu0 %v5259, 24
        %v5366 = vpop.permute.xlu0 %5365
        %5367 = vrot.lane.b32.xlu0 %v5260, 24
        %v5368 = vpop.permute.xlu0 %5367
        %5369 = vrot.lane.b32.xlu0 %v5261, 24
        %v5370 = vpop.permute.xlu0 %5369
        %5371 = vrot.lane.b32.xlu0 %v5262, 24
        %v5372 = vpop.permute.xlu0 %5371
        %5373 = vrot.lane.b32.xlu0 %v5263, 24
        %v5374 = vpop.permute.xlu0 %5373
        %5375 = vrot.lane.b32.xlu0 %v5264, 24
        %v5376 = vpop.permute.xlu0 %5375
        %5393 = vrot.lane.b32.xlu0 %v5265, 32
        %v5394 = vpop.permute.xlu0 %5393
        %5395 = vrot.lane.b32.xlu0 %v5266, 32
        %v5396 = vpop.permute.xlu0 %5395
        %5397 = vrot.lane.b32.xlu0 %v5267, 32
        %v5398 = vpop.permute.xlu0 %5397
        %5399 = vrot.lane.b32.xlu0 %v5268, 32
        %v5400 = vpop.permute.xlu0 %5399
        %5401 = vrot.lane.b32.xlu0 %v5269, 32
        %v5402 = vpop.permute.xlu0 %5401
        %5403 = vrot.lane.b32.xlu0 %v5270, 32
        %v5404 = vpop.permute.xlu0 %5403
        %5405 = vrot.lane.b32.xlu0 %v5271, 32
        %v5406 = vpop.permute.xlu0 %5405
        %5407 = vrot.lane.b32.xlu0 %v5272, 32
        %v5408 = vpop.permute.xlu0 %5407
        %5425 = vrot.lane.b32.xlu0 %v5273, 40
        %v5426 = vpop.permute.xlu0 %5425
        %5427 = vrot.lane.b32.xlu0 %v5274, 40
        %v5428 = vpop.permute.xlu0 %5427
        %5429 = vrot.lane.b32.xlu0 %v5275, 40
        %v5430 = vpop.permute.xlu0 %5429
        %5431 = vrot.lane.b32.xlu0 %v5276, 40
        %v5432 = vpop.permute.xlu0 %5431
        %5433 = vrot.lane.b32.xlu0 %v5277, 40
        %v5434 = vpop.permute.xlu0 %5433
        %5435 = vrot.lane.b32.xlu0 %v5278, 40
        %v5436 = vpop.permute.xlu0 %5435
        %5437 = vrot.lane.b32.xlu0 %v5279, 40
        %v5438 = vpop.permute.xlu0 %5437
        %5439 = vrot.lane.b32.xlu0 %v5280, 40
        %v5440 = vpop.permute.xlu0 %5439
        %5457 = vrot.lane.b32.xlu0 %v5281, 48
        %v5458 = vpop.permute.xlu0 %5457
        %5459 = vrot.lane.b32.xlu0 %v5282, 48
        %v5460 = vpop.permute.xlu0 %5459
        %5461 = vrot.lane.b32.xlu0 %v5283, 48
        %v5462 = vpop.permute.xlu0 %5461
        %5463 = vrot.lane.b32.xlu0 %v5284, 48
        %v5464 = vpop.permute.xlu0 %5463
        %5465 = vrot.lane.b32.xlu0 %v5285, 48
        %v5466 = vpop.permute.xlu0 %5465
        %5467 = vrot.lane.b32.xlu0 %v5286, 48
        %v5468 = vpop.permute.xlu0 %5467
        %5469 = vrot.lane.b32.xlu0 %v5287, 48
        %v5470 = vpop.permute.xlu0 %5469
        %5471 = vrot.lane.b32.xlu0 %v5288, 48
        %v5472 = vpop.permute.xlu0 %5471
        %v5481 = vsel %vm1673, %v5233, %v5298
        %v5482 = vsel %vm1673, %v5234, %v5300
        %v5483 = vsel %vm1673, %v5235, %v5302
        %v5484 = vsel %vm1673, %v5236, %v5304
        %v5485 = vsel %vm1673, %v5237, %v5306
        %v5486 = vsel %vm1673, %v5238, %v5308
        %v5487 = vsel %vm1673, %v5239, %v5310
        %v5488 = vsel %vm1673, %v5240, %v5312
        %v5489 = vsel %vm1707, %v5481, %v5330
        %v5490 = vsel %vm1707, %v5482, %v5332
        %v5491 = vsel %vm1707, %v5483, %v5334
        %v5492 = vsel %vm1707, %v5484, %v5336
        %v5493 = vsel %vm1707, %v5485, %v5338
        %v5494 = vsel %vm1707, %v5486, %v5340
        %v5495 = vsel %vm1707, %v5487, %v5342
        %v5496 = vsel %vm1707, %v5488, %v5344
        %v5497 = vsel %vm1741, %v5489, %v5362
        %v5498 = vsel %vm1741, %v5490, %v5364
        %v5499 = vsel %vm1741, %v5491, %v5366
        %v5500 = vsel %vm1741, %v5492, %v5368
        %v5501 = vsel %vm1741, %v5493, %v5370
        %v5502 = vsel %vm1741, %v5494, %v5372
        %v5503 = vsel %vm1741, %v5495, %v5374
        %v5504 = vsel %vm1741, %v5496, %v5376
        %vm5505 = vcmask 261120
        %v5506 = vsel %vm5505, %v5497, %v5394
        %v5507 = vsel %vm5505, %v5498, %v5396
        %v5508 = vsel %vm5505, %v5499, %v5398
        %v5509 = vsel %vm5505, %v5500, %v5400
        %v5510 = vsel %vm5505, %v5501, %v5402
        %v5511 = vsel %vm5505, %v5502, %v5404
        %v5512 = vsel %vm5505, %v5503, %v5406
        %v5513 = vsel %vm5505, %v5504, %v5408
        %vm5514 = vcmask 326656
        %v5515 = vsel %vm5514, %v5506, %v5426
        %v5516 = vsel %vm5514, %v5507, %v5428
        %v5517 = vsel %vm5514, %v5508, %v5430
        %v5518 = vsel %vm5514, %v5509, %v5432
        %v5519 = vsel %vm5514, %v5510, %v5434
        %v5520 = vsel %vm5514, %v5511, %v5436
        %v5521 = vsel %vm5514, %v5512, %v5438
        %v5522 = vsel %vm5514, %v5513, %v5440
        %vm5523 = vcmask 392192
        %v5524 = vsel %vm5523, %v5515, %v5458
        %v5525 = vsel %vm5523, %v5516, %v5460
        %v5526 = vsel %vm5523, %v5517, %v5462
        %v5527 = vsel %vm5523, %v5518, %v5464
        %v5528 = vsel %vm5523, %v5519, %v5466
        %v5529 = vsel %vm5523, %v5520, %v5468
        %v5530 = vsel %vm5523, %v5521, %v5470
        %v5531 = vsel %vm5523, %v5522, %v5472
        %v5532 = vlaneseq
        %v5533 = vshrl.u32 %v5532, 7
        %v5534 = vsub.s32 0, %v5533
        %v5535 = vrot.slane %v5219, %v5534
        %vm5536 = vcmask 457728
        %v5538 = vsel %vm5536, %v5524, 0
        %v5541 = vsel %vm5536, %v5525, 0
        %v5544 = vsel %vm5536, %v5526, 0
        %v5547 = vsel %vm5536, %v5527, 0
        %v5550 = vsel %vm5536, %v5528, 0
        %v5553 = vsel %vm5536, %v5529, 0
        %v5556 = vsel %vm5536, %v5530, 0
        %v5559 = vsel %vm5536, %v5531, 0
        %5561 = vmatprep.subr.mxu0 0.0
        %5562 = vmatpush1.msra.mxu0 %v5212
        %5563 = vmatprep.subr.mxu0 0.0
        %5564 = vmatpush1.msra.mxu0 %v5213
        %5565 = vmatprep.subr.mxu0 0.0
        %5566 = vmatpush1.msra.mxu0 %v5214
        %5567 = vmatprep.subr.mxu0 0.0
        %5568 = vmatpush1.msra.mxu0 %v5215
        %5569 = vmatprep.subr.mxu0 0.0
        %5570 = vmatpush1.msra.mxu0 %v5216
        %5571 = vmatprep.subr.mxu0 0.0
        %5572 = vmatpush1.msra.mxu0 %v5217
        %5573 = vmatprep.subr.mxu0 0.0
        %5574 = vmatpush1.msra.mxu0 %v5218
        %5575 = vmatprep.subr.mxu0 0.0
        %5576 = vmatpush1.msra.mxu0 0.0
        %5577 = vmatprep.subr.mxu0 0.0
        %5578 = vmatpush1.msra.mxu0 0.0
        %5579 = vmatprep.subr.mxu0 0.0
        %5580 = vmatpush1.msra.mxu0 0.0
        %5581 = vmatprep.subr.mxu0 0.0
        %5582 = vmatpush1.msra.mxu0 0.0
        %5583 = vmatprep.subr.mxu0 0.0
        %5584 = vmatpush1.msra.mxu0 0.0
        %5585 = vmatprep.subr.mxu0 0.0
        %5586 = vmatpush1.msra.mxu0 0.0
        %5587 = vmatprep.subr.mxu0 0.0
        %5588 = vmatpush1.msra.mxu0 0.0
        %5589 = vmatprep.subr.mxu0 0.0
        %5590 = vmatpush1.msra.mxu0 0.0
        %5591 = vmatprep.subr.mxu0 0.0
        %5592 = vmatpush1.msra.mxu0 0.0
        %5593 = vmatprep.subr.mxu0 0.0
        %5594 = vmatpush1.msra.mxu0 0.0
        %5595 = vmatprep.subr.mxu0 0.0
        %5596 = vmatpush1.msra.mxu0 0.0
        %5597 = vmatprep.subr.mxu0 0.0
        %5598 = vmatpush1.msra.mxu0 0.0
        %5599 = vmatprep.subr.mxu0 0.0
        %5600 = vmatpush1.msra.mxu0 0.0
        %5601 = vmatprep.subr.mxu0 0.0
        %5602 = vmatpush1.msra.mxu0 0.0
        %5603 = vmatprep.subr.mxu0 0.0
        %5604 = vmatpush1.msra.mxu0 0.0
        %5605 = vmatprep.subr.mxu0 0.0
        %5606 = vmatpush1.msra.mxu0 0.0
        %5607 = vmatprep.subr.mxu0 0.0
        %5608 = vmatpush1.msra.mxu0 0.0
        %5609 = vmatprep.subr.mxu0 0.0
        %5610 = vmatpush1.msra.mxu0 0.0
        %5611 = vmatprep.subr.mxu0 0.0
        %5612 = vmatpush1.msra.mxu0 0.0
        %5613 = vmatprep.subr.mxu0 0.0
        %5614 = vmatpush1.msra.mxu0 0.0
        %5615 = vmatprep.subr.mxu0 0.0
        %5616 = vmatpush1.msra.mxu0 0.0
        %5617 = vmatprep.subr.mxu0 0.0
        %5618 = vmatpush1.msra.mxu0 0.0
        %5619 = vmatprep.subr.mxu0 0.0
        %5620 = vmatpush1.msra.mxu0 0.0
        %5621 = vmatprep.subr.mxu0 0.0
        %5622 = vmatpush1.msra.mxu0 0.0
        %5623 = vmatprep.subr.mxu0 0.0
        %5624 = vmatpush1.msra.mxu0 0.0
        %5625 = vmatprep.mubr.f32.mxu0 0.0
        %5626 = vmatmul.mubr.f32.gmra.mrb[0].mxu0 %v5538
        %v5627 = vpop.f32.mrb[0].mxu0
        %v5628 = vadd.f32 %v5535, %v5627
        %v5629 = vpop.f32.mrb[0].mxu0
        %5630 = vmatprep.mubr.f32.mxu0 0.0
        %5631 = vmatmul.mubr.f32.gmra.mrb[0].mxu0 %v5541
        %v5632 = vpop.f32.mrb[0].mxu0
        %v5633 = vadd.f32 %v5535, %v5632
        %v5634 = vpop.f32.mrb[0].mxu0
        %5635 = vmatprep.mubr.f32.mxu0 0.0
        %5636 = vmatmul.mubr.f32.gmra.mrb[0].mxu0 %v5544
        %v5637 = vpop.f32.mrb[0].mxu0
        %v5638 = vadd.f32 %v5535, %v5637
        %v5639 = vpop.f32.mrb[0].mxu0
        %5640 = vmatprep.mubr.f32.mxu0 0.0
        %5641 = vmatmul.mubr.f32.gmra.mrb[0].mxu0 %v5547
        %v5642 = vpop.f32.mrb[0].mxu0
        %v5643 = vadd.f32 %v5535, %v5642
        %v5644 = vpop.f32.mrb[0].mxu0
        %5645 = vmatprep.mubr.f32.mxu0 0.0
        %5646 = vmatmul.mubr.f32.gmra.mrb[0].mxu0 %v5550
        %v5647 = vpop.f32.mrb[0].mxu0
        %v5648 = vadd.f32 %v5535, %v5647
        %v5649 = vpop.f32.mrb[0].mxu0
        %5650 = vmatprep.mubr.f32.mxu0 0.0
        %5651 = vmatmul.mubr.f32.gmra.mrb[0].mxu0 %v5553
        %v5652 = vpop.f32.mrb[0].mxu0
        %v5653 = vadd.f32 %v5535, %v5652
        %v5654 = vpop.f32.mrb[0].mxu0
        %5655 = vmatprep.mubr.f32.mxu0 0.0
        %5656 = vmatmul.mubr.f32.gmra.mrb[0].mxu0 %v5556
        %v5657 = vpop.f32.mrb[0].mxu0
        %v5658 = vadd.f32 %v5535, %v5657
        %v5659 = vpop.f32.mrb[0].mxu0
        %5660 = vmatprep.mubr.f32.mxu0 0.0
        %5661 = vmatmul.mubr.f32.gmra.mrb[0].mxu0 %v5559
        %v5662 = vpop.f32.mrb[0].mxu0
        %v5663 = vadd.f32 %v5535, %v5662
        %v5664 = vpop.f32.mrb[0].mxu0
        %5665 = vdwg.mxu0
        %vm5666 = vcmp.gt.f32.partialorder %v5628, 0.0
        %vm5667 = vcmp.gt.f32.partialorder %v5633, 0.0
        %vm5668 = vcmp.gt.f32.partialorder %v5638, 0.0
        %vm5669 = vcmp.gt.f32.partialorder %v5643, 0.0
        %vm5670 = vcmp.gt.f32.partialorder %v5648, 0.0
        %vm5671 = vcmp.gt.f32.partialorder %v5653, 0.0
        %vm5672 = vcmp.gt.f32.partialorder %v5658, 0.0
        %vm5673 = vcmp.gt.f32.partialorder %v5663, 0.0
        %v5674 = vmin.f32 %v5628, 0.0
        %v5675 = vmin.f32 %v5633, 0.0
        %v5676 = vmin.f32 %v5638, 0.0
        %v5677 = vmin.f32 %v5643, 0.0
        %v5678 = vmin.f32 %v5648, 0.0
        %v5679 = vmin.f32 %v5653, 0.0
        %v5680 = vmin.f32 %v5658, 0.0
        %v5681 = vmin.f32 %v5663, 0.0
        %v5682 = vmul.f32 %v5674, 1.442695
        %v5683 = vpow.pop %v5682
        %v5684 = vmul.f32 %v5675, 1.442695
        %v5685 = vpow.pop %v5684
        %v5686 = vmul.f32 %v5676, 1.442695
        %v5687 = vpow.pop %v5686
        %v5688 = vmul.f32 %v5677, 1.442695
        %v5689 = vpow.pop %v5688
        %v5690 = vmul.f32 %v5678, 1.442695
        %v5691 = vpow.pop %v5690
        %v5692 = vmul.f32 %v5679, 1.442695
        %v5693 = vpow.pop %v5692
        %v5694 = vmul.f32 %v5680, 1.442695
        %v5695 = vpow.pop %v5694
        %v5696 = vmul.f32 %v5681, 1.442695
        %v5697 = vpow.pop %v5696
        %v5698 = vsub.f32 %v5683, 1.0
        %v5699 = vsub.f32 %v5685, 1.0
        %v5700 = vsub.f32 %v5687, 1.0
        %v5701 = vsub.f32 %v5689, 1.0
        %v5702 = vsub.f32 %v5691, 1.0
        %v5703 = vsub.f32 %v5693, 1.0
        %v5704 = vsub.f32 %v5695, 1.0
        %v5705 = vsub.f32 %v5697, 1.0
        %v5706 = vsel %vm5666, %v5628, %v5698
        %v5707 = vsel %vm5667, %v5633, %v5699
        %v5708 = vsel %vm5668, %v5638, %v5700
        %v5709 = vsel %vm5669, %v5643, %v5701
        %v5710 = vsel %vm5670, %v5648, %v5702
        %v5711 = vsel %vm5671, %v5653, %v5703
        %v5712 = vsel %vm5672, %v5658, %v5704
        %v5713 = vsel %vm5673, %v5663, %v5705
        %v5714 = vlaneseq
        %v5715 = vshrl.u32 %v5714, 7
        %v5716 = vsub.s32 0, %v5715
        %v5717 = vrot.slane %v5221, %v5716
        %v5719 = vsel %vm1673, %v5706, 0
        %v5722 = vsel %vm1673, %v5707, 0
        %v5725 = vsel %vm1673, %v5708, 0
        %v5728 = vsel %vm1673, %v5709, 0
        %v5731 = vsel %vm1673, %v5710, 0
        %v5734 = vsel %vm1673, %v5711, 0
        %v5737 = vsel %vm1673, %v5712, 0
        %v5740 = vsel %vm1673, %v5713, 0
        %5742 = vmatprep.subr.mxu0 0.0
        %5743 = vmatpush1.msra.mxu0 %v5220
        %5744 = vmatprep.subr.mxu0 0.0
        %5745 = vmatpush1.msra.mxu0 0.0
        %5746 = vmatprep.subr.mxu0 0.0
        %5747 = vmatpush1.msra.mxu0 0.0
        %5748 = vmatprep.subr.mxu0 0.0
        %5749 = vmatpush1.msra.mxu0 0.0
        %5750 = vmatprep.subr.mxu0 0.0
        %5751 = vmatpush1.msra.mxu0 0.0
        %5752 = vmatprep.subr.mxu0 0.0
        %5753 = vmatpush1.msra.mxu0 0.0
        %5754 = vmatprep.subr.mxu0 0.0
        %5755 = vmatpush1.msra.mxu0 0.0
        %5756 = vmatprep.subr.mxu0 0.0
        %5757 = vmatpush1.msra.mxu0 0.0
        %5758 = vmatprep.subr.mxu0 0.0
        %5759 = vmatpush1.msra.mxu0 0.0
        %5760 = vmatprep.subr.mxu0 0.0
        %5761 = vmatpush1.msra.mxu0 0.0
        %5762 = vmatprep.subr.mxu0 0.0
        %5763 = vmatpush1.msra.mxu0 0.0
        %5764 = vmatprep.subr.mxu0 0.0
        %5765 = vmatpush1.msra.mxu0 0.0
        %5766 = vmatprep.subr.mxu0 0.0
        %5767 = vmatpush1.msra.mxu0 0.0
        %5768 = vmatprep.subr.mxu0 0.0
        %5769 = vmatpush1.msra.mxu0 0.0
        %5770 = vmatprep.subr.mxu0 0.0
        %5771 = vmatpush1.msra.mxu0 0.0
        %5772 = vmatprep.subr.mxu0 0.0
        %5773 = vmatpush1.msra.mxu0 0.0
        %5774 = vmatprep.subr.mxu0 0.0
        %5775 = vmatpush1.msra.mxu0 0.0
        %5776 = vmatprep.subr.mxu0 0.0
        %5777 = vmatpush1.msra.mxu0 0.0
        %5778 = vmatprep.subr.mxu0 0.0
        %5779 = vmatpush1.msra.mxu0 0.0
        %5780 = vmatprep.subr.mxu0 0.0
        %5781 = vmatpush1.msra.mxu0 0.0
        %5782 = vmatprep.subr.mxu0 0.0
        %5783 = vmatpush1.msra.mxu0 0.0
        %5784 = vmatprep.subr.mxu0 0.0
        %5785 = vmatpush1.msra.mxu0 0.0
        %5786 = vmatprep.subr.mxu0 0.0
        %5787 = vmatpush1.msra.mxu0 0.0
        %5788 = vmatprep.subr.mxu0 0.0
        %5789 = vmatpush1.msra.mxu0 0.0
        %5790 = vmatprep.subr.mxu0 0.0
        %5791 = vmatpush1.msra.mxu0 0.0
        %5792 = vmatprep.subr.mxu0 0.0
        %5793 = vmatpush1.msra.mxu0 0.0
        %5794 = vmatprep.subr.mxu0 0.0
        %5795 = vmatpush1.msra.mxu0 0.0
        %5796 = vmatprep.subr.mxu0 0.0
        %5797 = vmatpush1.msra.mxu0 0.0
        %5798 = vmatprep.subr.mxu0 0.0
        %5799 = vmatpush1.msra.mxu0 0.0
        %5800 = vmatprep.subr.mxu0 0.0
        %5801 = vmatpush1.msra.mxu0 0.0
        %5802 = vmatprep.subr.mxu0 0.0
        %5803 = vmatpush1.msra.mxu0 0.0
        %5804 = vmatprep.subr.mxu0 0.0
        %5805 = vmatpush1.msra.mxu0 0.0
        %5806 = vmatprep.mubr.f32.mxu0 0.0
        %5807 = vmatmul.mubr.f32.gmra.mrb[0].mxu0 %v5719
        %v5808 = vpop.f32.mrb[0].mxu0
        %v5809 = vadd.f32 %v5717, %v5808
        %v5810 = vpop.f32.mrb[0].mxu0
        %5811 = vmatprep.mubr.f32.mxu0 0.0
        %5812 = vmatmul.mubr.f32.gmra.mrb[0].mxu0 %v5722
        %v5813 = vpop.f32.mrb[0].mxu0
        %v5814 = vadd.f32 %v5717, %v5813
        %v5815 = vpop.f32.mrb[0].mxu0
        %5816 = vmatprep.mubr.f32.mxu0 0.0
        %5817 = vmatmul.mubr.f32.gmra.mrb[0].mxu0 %v5725
        %v5818 = vpop.f32.mrb[0].mxu0
        %v5819 = vadd.f32 %v5717, %v5818
        %v5820 = vpop.f32.mrb[0].mxu0
        %5821 = vmatprep.mubr.f32.mxu0 0.0
        %5822 = vmatmul.mubr.f32.gmra.mrb[0].mxu0 %v5728
        %v5823 = vpop.f32.mrb[0].mxu0
        %v5824 = vadd.f32 %v5717, %v5823
        %v5825 = vpop.f32.mrb[0].mxu0
        %5826 = vmatprep.mubr.f32.mxu0 0.0
        %5827 = vmatmul.mubr.f32.gmra.mrb[0].mxu0 %v5731
        %v5828 = vpop.f32.mrb[0].mxu0
        %v5829 = vadd.f32 %v5717, %v5828
        %v5830 = vpop.f32.mrb[0].mxu0
        %5831 = vmatprep.mubr.f32.mxu0 0.0
        %5832 = vmatmul.mubr.f32.gmra.mrb[0].mxu0 %v5734
        %v5833 = vpop.f32.mrb[0].mxu0
        %v5834 = vadd.f32 %v5717, %v5833
        %v5835 = vpop.f32.mrb[0].mxu0
        %5836 = vmatprep.mubr.f32.mxu0 0.0
        %5837 = vmatmul.mubr.f32.gmra.mrb[0].mxu0 %v5737
        %v5838 = vpop.f32.mrb[0].mxu0
        %v5839 = vadd.f32 %v5717, %v5838
        %v5840 = vpop.f32.mrb[0].mxu0
        %5841 = vmatprep.mubr.f32.mxu0 0.0
        %5842 = vmatmul.mubr.f32.gmra.mrb[0].mxu0 %v5740
        %v5843 = vpop.f32.mrb[0].mxu0
        %v5844 = vadd.f32 %v5717, %v5843
        %v5845 = vpop.f32.mrb[0].mxu0
        %5846 = vdwg.mxu0
        %vm5847 = vcmp.gt.f32.partialorder %v5809, 0.0
        %vm5848 = vcmp.gt.f32.partialorder %v5814, 0.0
        %vm5849 = vcmp.gt.f32.partialorder %v5819, 0.0
        %vm5850 = vcmp.gt.f32.partialorder %v5824, 0.0
        %vm5851 = vcmp.gt.f32.partialorder %v5829, 0.0
        %vm5852 = vcmp.gt.f32.partialorder %v5834, 0.0
        %vm5853 = vcmp.gt.f32.partialorder %v5839, 0.0
        %vm5854 = vcmp.gt.f32.partialorder %v5844, 0.0
        %v5855 = vmin.f32 %v5809, 0.0
        %v5856 = vmin.f32 %v5814, 0.0
        %v5857 = vmin.f32 %v5819, 0.0
        %v5858 = vmin.f32 %v5824, 0.0
        %v5859 = vmin.f32 %v5829, 0.0
        %v5860 = vmin.f32 %v5834, 0.0
        %v5861 = vmin.f32 %v5839, 0.0
        %v5862 = vmin.f32 %v5844, 0.0
        %v5863 = vmul.f32 %v5855, 1.442695
        %v5864 = vpow.pop %v5863
        %v5865 = vmul.f32 %v5856, 1.442695
        %v5866 = vpow.pop %v5865
        %v5867 = vmul.f32 %v5857, 1.442695
        %v5868 = vpow.pop %v5867
        %v5869 = vmul.f32 %v5858, 1.442695
        %v5870 = vpow.pop %v5869
        %v5871 = vmul.f32 %v5859, 1.442695
        %v5872 = vpow.pop %v5871
        %v5873 = vmul.f32 %v5860, 1.442695
        %v5874 = vpow.pop %v5873
        %v5875 = vmul.f32 %v5861, 1.442695
        %v5876 = vpow.pop %v5875
        %v5877 = vmul.f32 %v5862, 1.442695
        %v5878 = vpow.pop %v5877
        %v5879 = vsub.f32 %v5864, 1.0
        %v5880 = vsub.f32 %v5866, 1.0
        %v5881 = vsub.f32 %v5868, 1.0
        %v5882 = vsub.f32 %v5870, 1.0
        %v5883 = vsub.f32 %v5872, 1.0
        %v5884 = vsub.f32 %v5874, 1.0
        %v5885 = vsub.f32 %v5876, 1.0
        %v5886 = vsub.f32 %v5878, 1.0
        %v5887 = vsel %vm5847, %v5809, %v5879
        %v5888 = vsel %vm5848, %v5814, %v5880
        %v5889 = vsel %vm5849, %v5819, %v5881
        %v5890 = vsel %vm5850, %v5824, %v5882
        %v5891 = vsel %vm5851, %v5829, %v5883
        %v5892 = vsel %vm5852, %v5834, %v5884
        %v5893 = vsel %vm5853, %v5839, %v5885
        %v5894 = vsel %vm5854, %v5844, %v5886
        %v5895 = vadd.f32 %v5204, %v5887
        %v5896 = vadd.f32 %v5205, %v5888
        %v5897 = vadd.f32 %v5206, %v5889
        %v5898 = vadd.f32 %v5207, %v5890
        %v5899 = vadd.f32 %v5208, %v5891
        %v5900 = vadd.f32 %v5209, %v5892
        %v5901 = vadd.f32 %v5210, %v5893
        %v5902 = vadd.f32 %v5211, %v5894
        %v5903 = vld [vmem:[%s1 + $0xb0] sm:$0xff]
        %v5904 = vld [vmem:[%s1 + $0xb8] sm:$0xff]
        %v5905 = vld [vmem:[%s1 + $0xc0] sm:$0xff]
        %v5906 = vld [vmem:[%s1 + $0xc8] sm:$0xff]
        %v5907 = vld [vmem:[%s1 + $0xd0] sm:$0xff]
        %v5908 = vld [vmem:[%s1 + $0xd8] sm:$0xff]
        %v5909 = vld [vmem:[%s1 + $0xe0] sm:$0xff]
        %v5910 = vld [vmem:[%s2 + $0x11] sm:$0x1]
        %v5911 = vld [vmem:[%s1 + $0xe8] sm:$0xff]
        %v5912 = vld [vmem:[%s2 + $0x12] sm:$0x1]
        %5913 = vst.msk [vmem:[#allocation2] sm:$0xff] %vm1673, 0.0
        %vm5914 = vcmask 57344
        %5915 = vst.msk [vmem:[#allocation2 + $0x8] sm:$0x1] %vm5914, 0.0
        %5916 = vst.msk [vmem:[#allocation2 + $0x9] sm:$0xff] %vm1673, %v5895
        %5917 = vst.msk [vmem:[#allocation2 + $0x11] sm:$0xff] %vm1673, %v5896
        %5918 = vst.msk [vmem:[#allocation2 + $0x19] sm:$0xff] %vm1673, %v5897
        %5919 = vst.msk [vmem:[#allocation2 + $0x21] sm:$0xff] %vm1673, %v5898
        %5920 = vst.msk [vmem:[#allocation2 + $0x29] sm:$0xff] %vm1673, %v5899
        %5921 = vst.msk [vmem:[#allocation2 + $0x31] sm:$0xff] %vm1673, %v5900
        %5922 = vst.msk [vmem:[#allocation2 + $0x39] sm:$0xff] %vm1673, %v5901
        %5923 = vst.msk [vmem:[#allocation2 + $0x41] sm:$0xff] %vm1673, %v5902
        %5924 = vst.msk [vmem:[#allocation2 + $0x49] sm:$0xff] %vm1673, 0.0
        %5925 = vst.msk [vmem:[#allocation2 + $0x51] sm:$0x1] %vm5914, 0.0
        %v5926 = vld [vmem:[#allocation2] sm:$0xff]
        %v5927 = vld [vmem:[#allocation2 + $0x8] sm:$0xff]
        %v5928 = vld [vmem:[#allocation2 + $0x10] sm:$0xff]
        %v5929 = vld [vmem:[#allocation2 + $0x18] sm:$0xff]
        %v5930 = vld [vmem:[#allocation2 + $0x20] sm:$0xff]
        %v5931 = vld [vmem:[#allocation2 + $0x28] sm:$0xff]
        %v5932 = vld [vmem:[#allocation2 + $0x30] sm:$0xff]
        %v5933 = vld [vmem:[#allocation2 + $0x38] sm:$0xff]
        %v5934 = vld [vmem:[#allocation2 + $0x3] sm:$0xff]
        %v5935 = vld [vmem:[#allocation2 + $0xb] sm:$0xff]
        %v5936 = vld [vmem:[#allocation2 + $0x13] sm:$0xff]
        %v5937 = vld [vmem:[#allocation2 + $0x1b] sm:$0xff]
        %v5938 = vld [vmem:[#allocation2 + $0x23] sm:$0xff]
        %v5939 = vld [vmem:[#allocation2 + $0x2b] sm:$0xff]
        %v5940 = vld [vmem:[#allocation2 + $0x33] sm:$0xff]
        %v5941 = vld [vmem:[#allocation2 + $0x3b] sm:$0xff]
        %v5942 = vld [vmem:[#allocation2 + $0x6] sm:$0xff]
        %v5943 = vld [vmem:[#allocation2 + $0xe] sm:$0xff]
        %v5944 = vld [vmem:[#allocation2 + $0x16] sm:$0xff]
        %v5945 = vld [vmem:[#allocation2 + $0x1e] sm:$0xff]
        %v5946 = vld [vmem:[#allocation2 + $0x26] sm:$0xff]
        %v5947 = vld [vmem:[#allocation2 + $0x2e] sm:$0xff]
        %v5948 = vld [vmem:[#allocation2 + $0x36] sm:$0xff]
        %v5949 = vld [vmem:[#allocation2 + $0x3e] sm:$0xff]
        %v5950 = vld [vmem:[#allocation2 + $0x9] sm:$0xff]
        %v5951 = vld [vmem:[#allocation2 + $0x11] sm:$0xff]
        %v5952 = vld [vmem:[#allocation2 + $0x19] sm:$0xff]
        %v5953 = vld [vmem:[#allocation2 + $0x21] sm:$0xff]
        %v5954 = vld [vmem:[#allocation2 + $0x29] sm:$0xff]
        %v5955 = vld [vmem:[#allocation2 + $0x31] sm:$0xff]
        %v5956 = vld [vmem:[#allocation2 + $0x39] sm:$0xff]
        %v5957 = vld [vmem:[#allocation2 + $0x41] sm:$0xff]
        %v5958 = vld [vmem:[#allocation2 + $0xc] sm:$0xff]
        %v5959 = vld [vmem:[#allocation2 + $0x14] sm:$0xff]
        %v5960 = vld [vmem:[#allocation2 + $0x1c] sm:$0xff]
        %v5961 = vld [vmem:[#allocation2 + $0x24] sm:$0xff]
        %v5962 = vld [vmem:[#allocation2 + $0x2c] sm:$0xff]
        %v5963 = vld [vmem:[#allocation2 + $0x34] sm:$0xff]
        %v5964 = vld [vmem:[#allocation2 + $0x3c] sm:$0xff]
        %v5965 = vld [vmem:[#allocation2 + $0x44] sm:$0xff]
        %v5966 = vld [vmem:[#allocation2 + $0xf] sm:$0xff]
        %v5967 = vld [vmem:[#allocation2 + $0x17] sm:$0xff]
        %v5968 = vld [vmem:[#allocation2 + $0x1f] sm:$0xff]
        %v5969 = vld [vmem:[#allocation2 + $0x27] sm:$0xff]
        %v5970 = vld [vmem:[#allocation2 + $0x2f] sm:$0xff]
        %v5971 = vld [vmem:[#allocation2 + $0x37] sm:$0xff]
        %v5972 = vld [vmem:[#allocation2 + $0x3f] sm:$0xff]
        %v5973 = vld [vmem:[#allocation2 + $0x47] sm:$0xff]
        %v5974 = vld [vmem:[#allocation2 + $0x12] sm:$0xff]
        %v5975 = vld [vmem:[#allocation2 + $0x1a] sm:$0xff]
        %v5976 = vld [vmem:[#allocation2 + $0x22] sm:$0xff]
        %v5977 = vld [vmem:[#allocation2 + $0x2a] sm:$0xff]
        %v5978 = vld [vmem:[#allocation2 + $0x32] sm:$0xff]
        %v5979 = vld [vmem:[#allocation2 + $0x3a] sm:$0xff]
        %v5980 = vld [vmem:[#allocation2 + $0x42] sm:$0xff]
        %v5981 = vld [vmem:[#allocation2 + $0x4a] sm:$0xff]
        %5990 = vrot.lane.b32.xlu0 %v5934, 8
        %v5991 = vpop.permute.xlu0 %5990
        %5992 = vrot.lane.b32.xlu0 %v5935, 8
        %v5993 = vpop.permute.xlu0 %5992
        %5994 = vrot.lane.b32.xlu0 %v5936, 8
        %v5995 = vpop.permute.xlu0 %5994
        %5996 = vrot.lane.b32.xlu0 %v5937, 8
        %v5997 = vpop.permute.xlu0 %5996
        %5998 = vrot.lane.b32.xlu0 %v5938, 8
        %v5999 = vpop.permute.xlu0 %5998
        %6000 = vrot.lane.b32.xlu0 %v5939, 8
        %v6001 = vpop.permute.xlu0 %6000
        %6002 = vrot.lane.b32.xlu0 %v5940, 8
        %v6003 = vpop.permute.xlu0 %6002
        %6004 = vrot.lane.b32.xlu0 %v5941, 8
        %v6005 = vpop.permute.xlu0 %6004
        %6022 = vrot.lane.b32.xlu0 %v5942, 16
        %v6023 = vpop.permute.xlu0 %6022
        %6024 = vrot.lane.b32.xlu0 %v5943, 16
        %v6025 = vpop.permute.xlu0 %6024
        %6026 = vrot.lane.b32.xlu0 %v5944, 16
        %v6027 = vpop.permute.xlu0 %6026
        %6028 = vrot.lane.b32.xlu0 %v5945, 16
        %v6029 = vpop.permute.xlu0 %6028
        %6030 = vrot.lane.b32.xlu0 %v5946, 16
        %v6031 = vpop.permute.xlu0 %6030
        %6032 = vrot.lane.b32.xlu0 %v5947, 16
        %v6033 = vpop.permute.xlu0 %6032
        %6034 = vrot.lane.b32.xlu0 %v5948, 16
        %v6035 = vpop.permute.xlu0 %6034
        %6036 = vrot.lane.b32.xlu0 %v5949, 16
        %v6037 = vpop.permute.xlu0 %6036
        %6054 = vrot.lane.b32.xlu0 %v5950, 24
        %v6055 = vpop.permute.xlu0 %6054
        %6056 = vrot.lane.b32.xlu0 %v5951, 24
        %v6057 = vpop.permute.xlu0 %6056
        %6058 = vrot.lane.b32.xlu0 %v5952, 24
        %v6059 = vpop.permute.xlu0 %6058
        %6060 = vrot.lane.b32.xlu0 %v5953, 24
        %v6061 = vpop.permute.xlu0 %6060
        %6062 = vrot.lane.b32.xlu0 %v5954, 24
        %v6063 = vpop.permute.xlu0 %6062
        %6064 = vrot.lane.b32.xlu0 %v5955, 24
        %v6065 = vpop.permute.xlu0 %6064
        %6066 = vrot.lane.b32.xlu0 %v5956, 24
        %v6067 = vpop.permute.xlu0 %6066
        %6068 = vrot.lane.b32.xlu0 %v5957, 24
        %v6069 = vpop.permute.xlu0 %6068
        %6086 = vrot.lane.b32.xlu0 %v5958, 32
        %v6087 = vpop.permute.xlu0 %6086
        %6088 = vrot.lane.b32.xlu0 %v5959, 32
        %v6089 = vpop.permute.xlu0 %6088
        %6090 = vrot.lane.b32.xlu0 %v5960, 32
        %v6091 = vpop.permute.xlu0 %6090
        %6092 = vrot.lane.b32.xlu0 %v5961, 32
        %v6093 = vpop.permute.xlu0 %6092
        %6094 = vrot.lane.b32.xlu0 %v5962, 32
        %v6095 = vpop.permute.xlu0 %6094
        %6096 = vrot.lane.b32.xlu0 %v5963, 32
        %v6097 = vpop.permute.xlu0 %6096
        %6098 = vrot.lane.b32.xlu0 %v5964, 32
        %v6099 = vpop.permute.xlu0 %6098
        %6100 = vrot.lane.b32.xlu0 %v5965, 32
        %v6101 = vpop.permute.xlu0 %6100
        %6118 = vrot.lane.b32.xlu0 %v5966, 40
        %v6119 = vpop.permute.xlu0 %6118
        %6120 = vrot.lane.b32.xlu0 %v5967, 40
        %v6121 = vpop.permute.xlu0 %6120
        %6122 = vrot.lane.b32.xlu0 %v5968, 40
        %v6123 = vpop.permute.xlu0 %6122
        %6124 = vrot.lane.b32.xlu0 %v5969, 40
        %v6125 = vpop.permute.xlu0 %6124
        %6126 = vrot.lane.b32.xlu0 %v5970, 40
        %v6127 = vpop.permute.xlu0 %6126
        %6128 = vrot.lane.b32.xlu0 %v5971, 40
        %v6129 = vpop.permute.xlu0 %6128
        %6130 = vrot.lane.b32.xlu0 %v5972, 40
        %v6131 = vpop.permute.xlu0 %6130
        %6132 = vrot.lane.b32.xlu0 %v5973, 40
        %v6133 = vpop.permute.xlu0 %6132
        %6150 = vrot.lane.b32.xlu0 %v5974, 48
        %v6151 = vpop.permute.xlu0 %6150
        %6152 = vrot.lane.b32.xlu0 %v5975, 48
        %v6153 = vpop.permute.xlu0 %6152
        %6154 = vrot.lane.b32.xlu0 %v5976, 48
        %v6155 = vpop.permute.xlu0 %6154
        %6156 = vrot.lane.b32.xlu0 %v5977, 48
        %v6157 = vpop.permute.xlu0 %6156
        %6158 = vrot.lane.b32.xlu0 %v5978, 48
        %v6159 = vpop.permute.xlu0 %6158
        %6160 = vrot.lane.b32.xlu0 %v5979, 48
        %v6161 = vpop.permute.xlu0 %6160
        %6162 = vrot.lane.b32.xlu0 %v5980, 48
        %v6163 = vpop.permute.xlu0 %6162
        %6164 = vrot.lane.b32.xlu0 %v5981, 48
        %v6165 = vpop.permute.xlu0 %6164
        %v6174 = vsel %vm1673, %v5926, %v5991
        %v6175 = vsel %vm1673, %v5927, %v5993
        %v6176 = vsel %vm1673, %v5928, %v5995
        %v6177 = vsel %vm1673, %v5929, %v5997
        %v6178 = vsel %vm1673, %v5930, %v5999
        %v6179 = vsel %vm1673, %v5931, %v6001
        %v6180 = vsel %vm1673, %v5932, %v6003
        %v6181 = vsel %vm1673, %v5933, %v6005
        %v6182 = vsel %vm1707, %v6174, %v6023
        %v6183 = vsel %vm1707, %v6175, %v6025
        %v6184 = vsel %vm1707, %v6176, %v6027
        %v6185 = vsel %vm1707, %v6177, %v6029
        %v6186 = vsel %vm1707, %v6178, %v6031
        %v6187 = vsel %vm1707, %v6179, %v6033
        %v6188 = vsel %vm1707, %v6180, %v6035
        %v6189 = vsel %vm1707, %v6181, %v6037
        %v6190 = vsel %vm1741, %v6182, %v6055
        %v6191 = vsel %vm1741, %v6183, %v6057
        %v6192 = vsel %vm1741, %v6184, %v6059
        %v6193 = vsel %vm1741, %v6185, %v6061
        %v6194 = vsel %vm1741, %v6186, %v6063
        %v6195 = vsel %vm1741, %v6187, %v6065
        %v6196 = vsel %vm1741, %v6188, %v6067
        %v6197 = vsel %vm1741, %v6189, %v6069
        %v6198 = vsel %vm5505, %v6190, %v6087
        %v6199 = vsel %vm5505, %v6191, %v6089
        %v6200 = vsel %vm5505, %v6192, %v6091
        %v6201 = vsel %vm5505, %v6193, %v6093
        %v6202 = vsel %vm5505, %v6194, %v6095
        %v6203 = vsel %vm5505, %v6195, %v6097
        %v6204 = vsel %vm5505, %v6196, %v6099
        %v6205 = vsel %vm5505, %v6197, %v6101
        %v6206 = vsel %vm5514, %v6198, %v6119
        %v6207 = vsel %vm5514, %v6199, %v6121
        %v6208 = vsel %vm5514, %v6200, %v6123
        %v6209 = vsel %vm5514, %v6201, %v6125
        %v6210 = vsel %vm5514, %v6202, %v6127
        %v6211 = vsel %vm5514, %v6203, %v6129
        %v6212 = vsel %vm5514, %v6204, %v6131
        %v6213 = vsel %vm5514, %v6205, %v6133
        %v6214 = vsel %vm5523, %v6206, %v6151
        %v6215 = vsel %vm5523, %v6207, %v6153
        %v6216 = vsel %vm5523, %v6208, %v6155
        %v6217 = vsel %vm5523, %v6209, %v6157
        %v6218 = vsel %vm5523, %v6210, %v6159
        %v6219 = vsel %vm5523, %v6211, %v6161
        %v6220 = vsel %vm5523, %v6212, %v6163
        %v6221 = vsel %vm5523, %v6213, %v6165
        %v6222 = vlaneseq
        %v6223 = vshrl.u32 %v6222, 7
        %v6224 = vsub.s32 0, %v6223
        %v6225 = vrot.slane %v5910, %v6224
        %v6227 = vsel %vm5536, %v6214, 0
        %v6230 = vsel %vm5536, %v6215, 0
        %v6233 = vsel %vm5536, %v6216, 0
        %v6236 = vsel %vm5536, %v6217, 0
        %v6239 = vsel %vm5536, %v6218, 0
        %v6242 = vsel %vm5536, %v6219, 0
        %v6245 = vsel %vm5536, %v6220, 0
        %v6248 = vsel %vm5536, %v6221, 0
        %6250 = vmatprep.subr.mxu0 0.0
        %6251 = vmatpush1.msra.mxu0 %v5903
        %6252 = vmatprep.subr.mxu0 0.0
        %6253 = vmatpush1.msra.mxu0 %v5904
        %6254 = vmatprep.subr.mxu0 0.0
        %6255 = vmatpush1.msra.mxu0 %v5905
        %6256 = vmatprep.subr.mxu0 0.0
        %6257 = vmatpush1.msra.mxu0 %v5906
        %6258 = vmatprep.subr.mxu0 0.0
        %6259 = vmatpush1.msra.mxu0 %v5907
        %6260 = vmatprep.subr.mxu0 0.0
        %6261 = vmatpush1.msra.mxu0 %v5908
        %6262 = vmatprep.subr.mxu0 0.0
        %6263 = vmatpush1.msra.mxu0 %v5909
        %6264 = vmatprep.subr.mxu0 0.0
        %6265 = vmatpush1.msra.mxu0 0.0
        %6266 = vmatprep.subr.mxu0 0.0
        %6267 = vmatpush1.msra.mxu0 0.0
        %6268 = vmatprep.subr.mxu0 0.0
        %6269 = vmatpush1.msra.mxu0 0.0
        %6270 = vmatprep.subr.mxu0 0.0
        %6271 = vmatpush1.msra.mxu0 0.0
        %6272 = vmatprep.subr.mxu0 0.0
        %6273 = vmatpush1.msra.mxu0 0.0
        %6274 = vmatprep.subr.mxu0 0.0
        %6275 = vmatpush1.msra.mxu0 0.0
        %6276 = vmatprep.subr.mxu0 0.0
        %6277 = vmatpush1.msra.mxu0 0.0
        %6278 = vmatprep.subr.mxu0 0.0
        %6279 = vmatpush1.msra.mxu0 0.0
        %6280 = vmatprep.subr.mxu0 0.0
        %6281 = vmatpush1.msra.mxu0 0.0
        %6282 = vmatprep.subr.mxu0 0.0
        %6283 = vmatpush1.msra.mxu0 0.0
        %6284 = vmatprep.subr.mxu0 0.0
        %6285 = vmatpush1.msra.mxu0 0.0
        %6286 = vmatprep.subr.mxu0 0.0
        %6287 = vmatpush1.msra.mxu0 0.0
        %6288 = vmatprep.subr.mxu0 0.0
        %6289 = vmatpush1.msra.mxu0 0.0
        %6290 = vmatprep.subr.mxu0 0.0
        %6291 = vmatpush1.msra.mxu0 0.0
        %6292 = vmatprep.subr.mxu0 0.0
        %6293 = vmatpush1.msra.mxu0 0.0
        %6294 = vmatprep.subr.mxu0 0.0
        %6295 = vmatpush1.msra.mxu0 0.0
        %6296 = vmatprep.subr.mxu0 0.0
        %6297 = vmatpush1.msra.mxu0 0.0
        %6298 = vmatprep.subr.mxu0 0.0
        %6299 = vmatpush1.msra.mxu0 0.0
        %6300 = vmatprep.subr.mxu0 0.0
        %6301 = vmatpush1.msra.mxu0 0.0
        %6302 = vmatprep.subr.mxu0 0.0
        %6303 = vmatpush1.msra.mxu0 0.0
        %6304 = vmatprep.subr.mxu0 0.0
        %6305 = vmatpush1.msra.mxu0 0.0
        %6306 = vmatprep.subr.mxu0 0.0
        %6307 = vmatpush1.msra.mxu0 0.0
        %6308 = vmatprep.subr.mxu0 0.0
        %6309 = vmatpush1.msra.mxu0 0.0
        %6310 = vmatprep.subr.mxu0 0.0
        %6311 = vmatpush1.msra.mxu0 0.0
        %6312 = vmatprep.subr.mxu0 0.0
        %6313 = vmatpush1.msra.mxu0 0.0
        %6314 = vmatprep.mubr.f32.mxu0 0.0
        %6315 = vmatmul.mubr.f32.gmra.mrb[0].mxu0 %v6227
        %v6316 = vpop.f32.mrb[0].mxu0
        %v6317 = vadd.f32 %v6225, %v6316
        %v6318 = vpop.f32.mrb[0].mxu0
        %6319 = vmatprep.mubr.f32.mxu0 0.0
        %6320 = vmatmul.mubr.f32.gmra.mrb[0].mxu0 %v6230
        %v6321 = vpop.f32.mrb[0].mxu0
        %v6322 = vadd.f32 %v6225, %v6321
        %v6323 = vpop.f32.mrb[0].mxu0
        %6324 = vmatprep.mubr.f32.mxu0 0.0
        %6325 = vmatmul.mubr.f32.gmra.mrb[0].mxu0 %v6233
        %v6326 = vpop.f32.mrb[0].mxu0
        %v6327 = vadd.f32 %v6225, %v6326
        %v6328 = vpop.f32.mrb[0].mxu0
        %6329 = vmatprep.mubr.f32.mxu0 0.0
        %6330 = vmatmul.mubr.f32.gmra.mrb[0].mxu0 %v6236
        %v6331 = vpop.f32.mrb[0].mxu0
        %v6332 = vadd.f32 %v6225, %v6331
        %v6333 = vpop.f32.mrb[0].mxu0
        %6334 = vmatprep.mubr.f32.mxu0 0.0
        %6335 = vmatmul.mubr.f32.gmra.mrb[0].mxu0 %v6239
        %v6336 = vpop.f32.mrb[0].mxu0
        %v6337 = vadd.f32 %v6225, %v6336
        %v6338 = vpop.f32.mrb[0].mxu0
        %6339 = vmatprep.mubr.f32.mxu0 0.0
        %6340 = vmatmul.mubr.f32.gmra.mrb[0].mxu0 %v6242
        %v6341 = vpop.f32.mrb[0].mxu0
        %v6342 = vadd.f32 %v6225, %v6341
        %v6343 = vpop.f32.mrb[0].mxu0
        %6344 = vmatprep.mubr.f32.mxu0 0.0
        %6345 = vmatmul.mubr.f32.gmra.mrb[0].mxu0 %v6245
        %v6346 = vpop.f32.mrb[0].mxu0
        %v6347 = vadd.f32 %v6225, %v6346
        %v6348 = vpop.f32.mrb[0].mxu0
        %6349 = vmatprep.mubr.f32.mxu0 0.0
        %6350 = vmatmul.mubr.f32.gmra.mrb[0].mxu0 %v6248
        %v6351 = vpop.f32.mrb[0].mxu0
        %v6352 = vadd.f32 %v6225, %v6351
        %v6353 = vpop.f32.mrb[0].mxu0
        %6354 = vdwg.mxu0
        %vm6355 = vcmp.gt.f32.partialorder %v6317, 0.0
        %vm6356 = vcmp.gt.f32.partialorder %v6322, 0.0
        %vm6357 = vcmp.gt.f32.partialorder %v6327, 0.0
        %vm6358 = vcmp.gt.f32.partialorder %v6332, 0.0
        %vm6359 = vcmp.gt.f32.partialorder %v6337, 0.0
        %vm6360 = vcmp.gt.f32.partialorder %v6342, 0.0
        %vm6361 = vcmp.gt.f32.partialorder %v6347, 0.0
        %vm6362 = vcmp.gt.f32.partialorder %v6352, 0.0
        %v6363 = vmin.f32 %v6317, 0.0
        %v6364 = vmin.f32 %v6322, 0.0
        %v6365 = vmin.f32 %v6327, 0.0
        %v6366 = vmin.f32 %v6332, 0.0
        %v6367 = vmin.f32 %v6337, 0.0
        %v6368 = vmin.f32 %v6342, 0.0
        %v6369 = vmin.f32 %v6347, 0.0
        %v6370 = vmin.f32 %v6352, 0.0
        %v6371 = vmul.f32 %v6363, 1.442695
        %v6372 = vpow.pop %v6371
        %v6373 = vmul.f32 %v6364, 1.442695
        %v6374 = vpow.pop %v6373
        %v6375 = vmul.f32 %v6365, 1.442695
        %v6376 = vpow.pop %v6375
        %v6377 = vmul.f32 %v6366, 1.442695
        %v6378 = vpow.pop %v6377
        %v6379 = vmul.f32 %v6367, 1.442695
        %v6380 = vpow.pop %v6379
        %v6381 = vmul.f32 %v6368, 1.442695
        %v6382 = vpow.pop %v6381
        %v6383 = vmul.f32 %v6369, 1.442695
        %v6384 = vpow.pop %v6383
        %v6385 = vmul.f32 %v6370, 1.442695
        %v6386 = vpow.pop %v6385
        %v6387 = vsub.f32 %v6372, 1.0
        %v6388 = vsub.f32 %v6374, 1.0
        %v6389 = vsub.f32 %v6376, 1.0
        %v6390 = vsub.f32 %v6378, 1.0
        %v6391 = vsub.f32 %v6380, 1.0
        %v6392 = vsub.f32 %v6382, 1.0
        %v6393 = vsub.f32 %v6384, 1.0
        %v6394 = vsub.f32 %v6386, 1.0
        %v6395 = vsel %vm6355, %v6317, %v6387
        %v6396 = vsel %vm6356, %v6322, %v6388
        %v6397 = vsel %vm6357, %v6327, %v6389
        %v6398 = vsel %vm6358, %v6332, %v6390
        %v6399 = vsel %vm6359, %v6337, %v6391
        %v6400 = vsel %vm6360, %v6342, %v6392
        %v6401 = vsel %vm6361, %v6347, %v6393
        %v6402 = vsel %vm6362, %v6352, %v6394
        %v6403 = vlaneseq
        %v6404 = vshrl.u32 %v6403, 7
        %v6405 = vsub.s32 0, %v6404
        %v6406 = vrot.slane %v5912, %v6405
        %v6408 = vsel %vm1673, %v6395, 0
        %v6411 = vsel %vm1673, %v6396, 0
        %v6414 = vsel %vm1673, %v6397, 0
        %v6417 = vsel %vm1673, %v6398, 0
        %v6420 = vsel %vm1673, %v6399, 0
        %v6423 = vsel %vm1673, %v6400, 0
        %v6426 = vsel %vm1673, %v6401, 0
        %v6429 = vsel %vm1673, %v6402, 0
        %6431 = vmatprep.subr.mxu0 0.0
        %6432 = vmatpush1.msra.mxu0 %v5911
        %6433 = vmatprep.subr.mxu0 0.0
        %6434 = vmatpush1.msra.mxu0 0.0
        %6435 = vmatprep.subr.mxu0 0.0
        %6436 = vmatpush1.msra.mxu0 0.0
        %6437 = vmatprep.subr.mxu0 0.0
        %6438 = vmatpush1.msra.mxu0 0.0
        %6439 = vmatprep.subr.mxu0 0.0
        %6440 = vmatpush1.msra.mxu0 0.0
        %6441 = vmatprep.subr.mxu0 0.0
        %6442 = vmatpush1.msra.mxu0 0.0
        %6443 = vmatprep.subr.mxu0 0.0
        %6444 = vmatpush1.msra.mxu0 0.0
        %6445 = vmatprep.subr.mxu0 0.0
        %6446 = vmatpush1.msra.mxu0 0.0
        %6447 = vmatprep.subr.mxu0 0.0
        %6448 = vmatpush1.msra.mxu0 0.0
        %6449 = vmatprep.subr.mxu0 0.0
        %6450 = vmatpush1.msra.mxu0 0.0
        %6451 = vmatprep.subr.mxu0 0.0
        %6452 = vmatpush1.msra.mxu0 0.0
        %6453 = vmatprep.subr.mxu0 0.0
        %6454 = vmatpush1.msra.mxu0 0.0
        %6455 = vmatprep.subr.mxu0 0.0
        %6456 = vmatpush1.msra.mxu0 0.0
        %6457 = vmatprep.subr.mxu0 0.0
        %6458 = vmatpush1.msra.mxu0 0.0
        %6459 = vmatprep.subr.mxu0 0.0
        %6460 = vmatpush1.msra.mxu0 0.0
        %6461 = vmatprep.subr.mxu0 0.0
        %6462 = vmatpush1.msra.mxu0 0.0
        %6463 = vmatprep.subr.mxu0 0.0
        %6464 = vmatpush1.msra.mxu0 0.0
        %6465 = vmatprep.subr.mxu0 0.0
        %6466 = vmatpush1.msra.mxu0 0.0
        %6467 = vmatprep.subr.mxu0 0.0
        %6468 = vmatpush1.msra.mxu0 0.0
        %6469 = vmatprep.subr.mxu0 0.0
        %6470 = vmatpush1.msra.mxu0 0.0
        %6471 = vmatprep.subr.mxu0 0.0
        %6472 = vmatpush1.msra.mxu0 0.0
        %6473 = vmatprep.subr.mxu0 0.0
        %6474 = vmatpush1.msra.mxu0 0.0
        %6475 = vmatprep.subr.mxu0 0.0
        %6476 = vmatpush1.msra.mxu0 0.0
        %6477 = vmatprep.subr.mxu0 0.0
        %6478 = vmatpush1.msra.mxu0 0.0
        %6479 = vmatprep.subr.mxu0 0.0
        %6480 = vmatpush1.msra.mxu0 0.0
        %6481 = vmatprep.subr.mxu0 0.0
        %6482 = vmatpush1.msra.mxu0 0.0
        %6483 = vmatprep.subr.mxu0 0.0
        %6484 = vmatpush1.msra.mxu0 0.0
        %6485 = vmatprep.subr.mxu0 0.0
        %6486 = vmatpush1.msra.mxu0 0.0
        %6487 = vmatprep.subr.mxu0 0.0
        %6488 = vmatpush1.msra.mxu0 0.0
        %6489 = vmatprep.subr.mxu0 0.0
        %6490 = vmatpush1.msra.mxu0 0.0
        %6491 = vmatprep.subr.mxu0 0.0
        %6492 = vmatpush1.msra.mxu0 0.0
        %6493 = vmatprep.subr.mxu0 0.0
        %6494 = vmatpush1.msra.mxu0 0.0
        %6495 = vmatprep.mubr.f32.mxu0 0.0
        %6496 = vmatmul.mubr.f32.gmra.mrb[0].mxu0 %v6408
        %v6497 = vpop.f32.mrb[0].mxu0
        %v6498 = vadd.f32 %v6406, %v6497
        %v6499 = vpop.f32.mrb[0].mxu0
        %6500 = vmatprep.mubr.f32.mxu0 0.0
        %6501 = vmatmul.mubr.f32.gmra.mrb[0].mxu0 %v6411
        %v6502 = vpop.f32.mrb[0].mxu0
        %v6503 = vadd.f32 %v6406, %v6502
        %v6504 = vpop.f32.mrb[0].mxu0
        %6505 = vmatprep.mubr.f32.mxu0 0.0
        %6506 = vmatmul.mubr.f32.gmra.mrb[0].mxu0 %v6414
        %v6507 = vpop.f32.mrb[0].mxu0
        %v6508 = vadd.f32 %v6406, %v6507
        %v6509 = vpop.f32.mrb[0].mxu0
        %6510 = vmatprep.mubr.f32.mxu0 0.0
        %6511 = vmatmul.mubr.f32.gmra.mrb[0].mxu0 %v6417
        %v6512 = vpop.f32.mrb[0].mxu0
        %v6513 = vadd.f32 %v6406, %v6512
        %v6514 = vpop.f32.mrb[0].mxu0
        %6515 = vmatprep.mubr.f32.mxu0 0.0
        %6516 = vmatmul.mubr.f32.gmra.mrb[0].mxu0 %v6420
        %v6517 = vpop.f32.mrb[0].mxu0
        %v6518 = vadd.f32 %v6406, %v6517
        %v6519 = vpop.f32.mrb[0].mxu0
        %6520 = vmatprep.mubr.f32.mxu0 0.0
        %6521 = vmatmul.mubr.f32.gmra.mrb[0].mxu0 %v6423
        %v6522 = vpop.f32.mrb[0].mxu0
        %v6523 = vadd.f32 %v6406, %v6522
        %v6524 = vpop.f32.mrb[0].mxu0
        %6525 = vmatprep.mubr.f32.mxu0 0.0
        %6526 = vmatmul.mubr.f32.gmra.mrb[0].mxu0 %v6426
        %v6527 = vpop.f32.mrb[0].mxu0
        %v6528 = vadd.f32 %v6406, %v6527
        %v6529 = vpop.f32.mrb[0].mxu0
        %6530 = vmatprep.mubr.f32.mxu0 0.0
        %6531 = vmatmul.mubr.f32.gmra.mrb[0].mxu0 %v6429
        %v6532 = vpop.f32.mrb[0].mxu0
        %v6533 = vadd.f32 %v6406, %v6532
        %v6534 = vpop.f32.mrb[0].mxu0
        %6535 = vdwg.mxu0
        %vm6536 = vcmp.gt.f32.partialorder %v6498, 0.0
        %vm6537 = vcmp.gt.f32.partialorder %v6503, 0.0
        %vm6538 = vcmp.gt.f32.partialorder %v6508, 0.0
        %vm6539 = vcmp.gt.f32.partialorder %v6513, 0.0
        %vm6540 = vcmp.gt.f32.partialorder %v6518, 0.0
        %vm6541 = vcmp.gt.f32.partialorder %v6523, 0.0
        %vm6542 = vcmp.gt.f32.partialorder %v6528, 0.0
        %vm6543 = vcmp.gt.f32.partialorder %v6533, 0.0
        %v6544 = vmin.f32 %v6498, 0.0
        %v6545 = vmin.f32 %v6503, 0.0
        %v6546 = vmin.f32 %v6508, 0.0
        %v6547 = vmin.f32 %v6513, 0.0
        %v6548 = vmin.f32 %v6518, 0.0
        %v6549 = vmin.f32 %v6523, 0.0
        %v6550 = vmin.f32 %v6528, 0.0
        %v6551 = vmin.f32 %v6533, 0.0
        %v6552 = vmul.f32 %v6544, 1.442695
        %v6553 = vpow.pop %v6552
        %v6554 = vmul.f32 %v6545, 1.442695
        %v6555 = vpow.pop %v6554
        %v6556 = vmul.f32 %v6546, 1.442695
        %v6557 = vpow.pop %v6556
        %v6558 = vmul.f32 %v6547, 1.442695
        %v6559 = vpow.pop %v6558
        %v6560 = vmul.f32 %v6548, 1.442695
        %v6561 = vpow.pop %v6560
        %v6562 = vmul.f32 %v6549, 1.442695
        %v6563 = vpow.pop %v6562
        %v6564 = vmul.f32 %v6550, 1.442695
        %v6565 = vpow.pop %v6564
        %v6566 = vmul.f32 %v6551, 1.442695
        %v6567 = vpow.pop %v6566
        %v6568 = vsub.f32 %v6553, 1.0
        %v6569 = vsub.f32 %v6555, 1.0
        %v6570 = vsub.f32 %v6557, 1.0
        %v6571 = vsub.f32 %v6559, 1.0
        %v6572 = vsub.f32 %v6561, 1.0
        %v6573 = vsub.f32 %v6563, 1.0
        %v6574 = vsub.f32 %v6565, 1.0
        %v6575 = vsub.f32 %v6567, 1.0
        %v6576 = vsel %vm6536, %v6498, %v6568
        %v6577 = vsel %vm6537, %v6503, %v6569
        %v6578 = vsel %vm6538, %v6508, %v6570
        %v6579 = vsel %vm6539, %v6513, %v6571
        %v6580 = vsel %vm6540, %v6518, %v6572
        %v6581 = vsel %vm6541, %v6523, %v6573
        %v6582 = vsel %vm6542, %v6528, %v6574
        %v6583 = vsel %vm6543, %v6533, %v6575
        %v6584 = vadd.f32 %v5895, %v6576
        %v6585 = vadd.f32 %v5896, %v6577
        %v6586 = vadd.f32 %v5897, %v6578
        %v6587 = vadd.f32 %v5898, %v6579
        %v6588 = vadd.f32 %v5899, %v6580
        %v6589 = vadd.f32 %v5900, %v6581
        %v6590 = vadd.f32 %v5901, %v6582
        %v6591 = vadd.f32 %v5902, %v6583
        %v6592 = vld [vmem:[%s1 + $0xf0] sm:$0xff]
        %v6593 = vld [vmem:[%s1 + $0xf8] sm:$0xff]
        %v6594 = vld [vmem:[%s1 + $0x100] sm:$0xff]
        %v6595 = vld [vmem:[%s1 + $0x108] sm:$0xff]
        %v6596 = vld [vmem:[%s1 + $0x110] sm:$0xff]
        %v6597 = vld [vmem:[%s1 + $0x118] sm:$0xff]
        %v6598 = vld [vmem:[%s1 + $0x120] sm:$0xff]
        %v6599 = vld [vmem:[%s2 + $0x13] sm:$0x1]
        %v6600 = vld [vmem:[%s1 + $0x128] sm:$0xff]
        %v6601 = vld [vmem:[%s2 + $0x14] sm:$0x1]
        %6602 = vst.msk [vmem:[#allocation2] sm:$0xff] %vm1673, 0.0
        %6603 = vst.msk [vmem:[#allocation2 + $0x8] sm:$0xff] %vm1673, 0.0
        %6604 = vst.msk [vmem:[#allocation2 + $0x10] sm:$0xff] %vm1673, 0.0
        %6605 = vst.msk [vmem:[#allocation2 + $0x18] sm:$0x7] %vm5222, 0.0
        %6606 = vst.msk [vmem:[#allocation2 + $0x1b] sm:$0xff] %vm1673, %v6584
        %6607 = vst.msk [vmem:[#allocation2 + $0x23] sm:$0xff] %vm1673, %v6585
        %6608 = vst.msk [vmem:[#allocation2 + $0x2b] sm:$0xff] %vm1673, %v6586
        %6609 = vst.msk [vmem:[#allocation2 + $0x33] sm:$0xff] %vm1673, %v6587
        %6610 = vst.msk [vmem:[#allocation2 + $0x3b] sm:$0xff] %vm1673, %v6588
        %6611 = vst.msk [vmem:[#allocation2 + $0x43] sm:$0xff] %vm1673, %v6589
        %6612 = vst.msk [vmem:[#allocation2 + $0x4b] sm:$0xff] %vm1673, %v6590
        %6613 = vst.msk [vmem:[#allocation2 + $0x53] sm:$0xff] %vm1673, %v6591
        %6614 = vst.msk [vmem:[#allocation2 + $0x5b] sm:$0xff] %vm1673, 0.0
        %6615 = vst.msk [vmem:[#allocation2 + $0x63] sm:$0xff] %vm1673, 0.0
        %6616 = vst.msk [vmem:[#allocation2 + $0x6b] sm:$0xff] %vm1673, 0.0
        %6617 = vst.msk [vmem:[#allocation2 + $0x73] sm:$0x7] %vm5222, 0.0
        %v6618 = vld [vmem:[#allocation2] sm:$0xff]
        %v6619 = vld [vmem:[#allocation2 + $0x8] sm:$0xff]
        %v6620 = vld [vmem:[#allocation2 + $0x10] sm:$0xff]
        %v6621 = vld [vmem:[#allocation2 + $0x18] sm:$0xff]
        %v6622 = vld [vmem:[#allocation2 + $0x20] sm:$0xff]
        %v6623 = vld [vmem:[#allocation2 + $0x28] sm:$0xff]
        %v6624 = vld [vmem:[#allocation2 + $0x30] sm:$0xff]
        %v6625 = vld [vmem:[#allocation2 + $0x38] sm:$0xff]
        %v6626 = vld [vmem:[#allocation2 + $0x9] sm:$0xff]
        %v6627 = vld [vmem:[#allocation2 + $0x11] sm:$0xff]
        %v6628 = vld [vmem:[#allocation2 + $0x19] sm:$0xff]
        %v6629 = vld [vmem:[#allocation2 + $0x21] sm:$0xff]
        %v6630 = vld [vmem:[#allocation2 + $0x29] sm:$0xff]
        %v6631 = vld [vmem:[#allocation2 + $0x31] sm:$0xff]
        %v6632 = vld [vmem:[#allocation2 + $0x39] sm:$0xff]
        %v6633 = vld [vmem:[#allocation2 + $0x41] sm:$0xff]
        %v6634 = vld [vmem:[#allocation2 + $0x12] sm:$0xff]
        %v6635 = vld [vmem:[#allocation2 + $0x1a] sm:$0xff]
        %v6636 = vld [vmem:[#allocation2 + $0x22] sm:$0xff]
        %v6637 = vld [vmem:[#allocation2 + $0x2a] sm:$0xff]
        %v6638 = vld [vmem:[#allocation2 + $0x32] sm:$0xff]
        %v6639 = vld [vmem:[#allocation2 + $0x3a] sm:$0xff]
        %v6640 = vld [vmem:[#allocation2 + $0x42] sm:$0xff]
        %v6641 = vld [vmem:[#allocation2 + $0x4a] sm:$0xff]
        %v6642 = vld [vmem:[#allocation2 + $0x1b] sm:$0xff]
        %v6643 = vld [vmem:[#allocation2 + $0x23] sm:$0xff]
        %v6644 = vld [vmem:[#allocation2 + $0x2b] sm:$0xff]
        %v6645 = vld [vmem:[#allocation2 + $0x33] sm:$0xff]
        %v6646 = vld [vmem:[#allocation2 + $0x3b] sm:$0xff]
        %v6647 = vld [vmem:[#allocation2 + $0x43] sm:$0xff]
        %v6648 = vld [vmem:[#allocation2 + $0x4b] sm:$0xff]
        %v6649 = vld [vmem:[#allocation2 + $0x53] sm:$0xff]
        %v6650 = vld [vmem:[#allocation2 + $0x24] sm:$0xff]
        %v6651 = vld [vmem:[#allocation2 + $0x2c] sm:$0xff]
        %v6652 = vld [vmem:[#allocation2 + $0x34] sm:$0xff]
        %v6653 = vld [vmem:[#allocation2 + $0x3c] sm:$0xff]
        %v6654 = vld [vmem:[#allocation2 + $0x44] sm:$0xff]
        %v6655 = vld [vmem:[#allocation2 + $0x4c] sm:$0xff]
        %v6656 = vld [vmem:[#allocation2 + $0x54] sm:$0xff]
        %v6657 = vld [vmem:[#allocation2 + $0x5c] sm:$0xff]
        %v6658 = vld [vmem:[#allocation2 + $0x2d] sm:$0xff]
        %v6659 = vld [vmem:[#allocation2 + $0x35] sm:$0xff]
        %v6660 = vld [vmem:[#allocation2 + $0x3d] sm:$0xff]
        %v6661 = vld [vmem:[#allocation2 + $0x45] sm:$0xff]
        %v6662 = vld [vmem:[#allocation2 + $0x4d] sm:$0xff]
        %v6663 = vld [vmem:[#allocation2 + $0x55] sm:$0xff]
        %v6664 = vld [vmem:[#allocation2 + $0x5d] sm:$0xff]
        %v6665 = vld [vmem:[#allocation2 + $0x65] sm:$0xff]
        %v6666 = vld [vmem:[#allocation2 + $0x36] sm:$0xff]
        %v6667 = vld [vmem:[#allocation2 + $0x3e] sm:$0xff]
        %v6668 = vld [vmem:[#allocation2 + $0x46] sm:$0xff]
        %v6669 = vld [vmem:[#allocation2 + $0x4e] sm:$0xff]
        %v6670 = vld [vmem:[#allocation2 + $0x56] sm:$0xff]
        %v6671 = vld [vmem:[#allocation2 + $0x5e] sm:$0xff]
        %v6672 = vld [vmem:[#allocation2 + $0x66] sm:$0xff]
        %v6673 = vld [vmem:[#allocation2 + $0x6e] sm:$0xff]
        %6682 = vrot.lane.b32.xlu0 %v6626, 8
        %v6683 = vpop.permute.xlu0 %6682
        %6684 = vrot.lane.b32.xlu0 %v6627, 8
        %v6685 = vpop.permute.xlu0 %6684
        %6686 = vrot.lane.b32.xlu0 %v6628, 8
        %v6687 = vpop.permute.xlu0 %6686
        %6688 = vrot.lane.b32.xlu0 %v6629, 8
        %v6689 = vpop.permute.xlu0 %6688
        %6690 = vrot.lane.b32.xlu0 %v6630, 8
        %v6691 = vpop.permute.xlu0 %6690
        %6692 = vrot.lane.b32.xlu0 %v6631, 8
        %v6693 = vpop.permute.xlu0 %6692
        %6694 = vrot.lane.b32.xlu0 %v6632, 8
        %v6695 = vpop.permute.xlu0 %6694
        %6696 = vrot.lane.b32.xlu0 %v6633, 8
        %v6697 = vpop.permute.xlu0 %6696
        %6714 = vrot.lane.b32.xlu0 %v6634, 16
        %v6715 = vpop.permute.xlu0 %6714
        %6716 = vrot.lane.b32.xlu0 %v6635, 16
        %v6717 = vpop.permute.xlu0 %6716
        %6718 = vrot.lane.b32.xlu0 %v6636, 16
        %v6719 = vpop.permute.xlu0 %6718
        %6720 = vrot.lane.b32.xlu0 %v6637, 16
        %v6721 = vpop.permute.xlu0 %6720
        %6722 = vrot.lane.b32.xlu0 %v6638, 16
        %v6723 = vpop.permute.xlu0 %6722
        %6724 = vrot.lane.b32.xlu0 %v6639, 16
        %v6725 = vpop.permute.xlu0 %6724
        %6726 = vrot.lane.b32.xlu0 %v6640, 16
        %v6727 = vpop.permute.xlu0 %6726
        %6728 = vrot.lane.b32.xlu0 %v6641, 16
        %v6729 = vpop.permute.xlu0 %6728
        %6746 = vrot.lane.b32.xlu0 %v6642, 24
        %v6747 = vpop.permute.xlu0 %6746
        %6748 = vrot.lane.b32.xlu0 %v6643, 24
        %v6749 = vpop.permute.xlu0 %6748
        %6750 = vrot.lane.b32.xlu0 %v6644, 24
        %v6751 = vpop.permute.xlu0 %6750
        %6752 = vrot.lane.b32.xlu0 %v6645, 24
        %v6753 = vpop.permute.xlu0 %6752
        %6754 = vrot.lane.b32.xlu0 %v6646, 24
        %v6755 = vpop.permute.xlu0 %6754
        %6756 = vrot.lane.b32.xlu0 %v6647, 24
        %v6757 = vpop.permute.xlu0 %6756
        %6758 = vrot.lane.b32.xlu0 %v6648, 24
        %v6759 = vpop.permute.xlu0 %6758
        %6760 = vrot.lane.b32.xlu0 %v6649, 24
        %v6761 = vpop.permute.xlu0 %6760
        %6778 = vrot.lane.b32.xlu0 %v6650, 32
        %v6779 = vpop.permute.xlu0 %6778
        %6780 = vrot.lane.b32.xlu0 %v6651, 32
        %v6781 = vpop.permute.xlu0 %6780
        %6782 = vrot.lane.b32.xlu0 %v6652, 32
        %v6783 = vpop.permute.xlu0 %6782
        %6784 = vrot.lane.b32.xlu0 %v6653, 32
        %v6785 = vpop.permute.xlu0 %6784
        %6786 = vrot.lane.b32.xlu0 %v6654, 32
        %v6787 = vpop.permute.xlu0 %6786
        %6788 = vrot.lane.b32.xlu0 %v6655, 32
        %v6789 = vpop.permute.xlu0 %6788
        %6790 = vrot.lane.b32.xlu0 %v6656, 32
        %v6791 = vpop.permute.xlu0 %6790
        %6792 = vrot.lane.b32.xlu0 %v6657, 32
        %v6793 = vpop.permute.xlu0 %6792
        %6810 = vrot.lane.b32.xlu0 %v6658, 40
        %v6811 = vpop.permute.xlu0 %6810
        %6812 = vrot.lane.b32.xlu0 %v6659, 40
        %v6813 = vpop.permute.xlu0 %6812
        %6814 = vrot.lane.b32.xlu0 %v6660, 40
        %v6815 = vpop.permute.xlu0 %6814
        %6816 = vrot.lane.b32.xlu0 %v6661, 40
        %v6817 = vpop.permute.xlu0 %6816
        %6818 = vrot.lane.b32.xlu0 %v6662, 40
        %v6819 = vpop.permute.xlu0 %6818
        %6820 = vrot.lane.b32.xlu0 %v6663, 40
        %v6821 = vpop.permute.xlu0 %6820
        %6822 = vrot.lane.b32.xlu0 %v6664, 40
        %v6823 = vpop.permute.xlu0 %6822
        %6824 = vrot.lane.b32.xlu0 %v6665, 40
        %v6825 = vpop.permute.xlu0 %6824
        %6842 = vrot.lane.b32.xlu0 %v6666, 48
        %v6843 = vpop.permute.xlu0 %6842
        %6844 = vrot.lane.b32.xlu0 %v6667, 48
        %v6845 = vpop.permute.xlu0 %6844
        %6846 = vrot.lane.b32.xlu0 %v6668, 48
        %v6847 = vpop.permute.xlu0 %6846
        %6848 = vrot.lane.b32.xlu0 %v6669, 48
        %v6849 = vpop.permute.xlu0 %6848
        %6850 = vrot.lane.b32.xlu0 %v6670, 48
        %v6851 = vpop.permute.xlu0 %6850
        %6852 = vrot.lane.b32.xlu0 %v6671, 48
        %v6853 = vpop.permute.xlu0 %6852
        %6854 = vrot.lane.b32.xlu0 %v6672, 48
        %v6855 = vpop.permute.xlu0 %6854
        %6856 = vrot.lane.b32.xlu0 %v6673, 48
        %v6857 = vpop.permute.xlu0 %6856
        %v6866 = vsel %vm1673, %v6618, %v6683
        %v6867 = vsel %vm1673, %v6619, %v6685
        %v6868 = vsel %vm1673, %v6620, %v6687
        %v6869 = vsel %vm1673, %v6621, %v6689
        %v6870 = vsel %vm1673, %v6622, %v6691
        %v6871 = vsel %vm1673, %v6623, %v6693
        %v6872 = vsel %vm1673, %v6624, %v6695
        %v6873 = vsel %vm1673, %v6625, %v6697
        %v6874 = vsel %vm1707, %v6866, %v6715
        %v6875 = vsel %vm1707, %v6867, %v6717
        %v6876 = vsel %vm1707, %v6868, %v6719
        %v6877 = vsel %vm1707, %v6869, %v6721
        %v6878 = vsel %vm1707, %v6870, %v6723
        %v6879 = vsel %vm1707, %v6871, %v6725
        %v6880 = vsel %vm1707, %v6872, %v6727
        %v6881 = vsel %vm1707, %v6873, %v6729
        %v6882 = vsel %vm1741, %v6874, %v6747
        %v6883 = vsel %vm1741, %v6875, %v6749
        %v6884 = vsel %vm1741, %v6876, %v6751
        %v6885 = vsel %vm1741, %v6877, %v6753
        %v6886 = vsel %vm1741, %v6878, %v6755
        %v6887 = vsel %vm1741, %v6879, %v6757
        %v6888 = vsel %vm1741, %v6880, %v6759
        %v6889 = vsel %vm1741, %v6881, %v6761
        %v6890 = vsel %vm5505, %v6882, %v6779
        %v6891 = vsel %vm5505, %v6883, %v6781
        %v6892 = vsel %vm5505, %v6884, %v6783
        %v6893 = vsel %vm5505, %v6885, %v6785
        %v6894 = vsel %vm5505, %v6886, %v6787
        %v6895 = vsel %vm5505, %v6887, %v6789
        %v6896 = vsel %vm5505, %v6888, %v6791
        %v6897 = vsel %vm5505, %v6889, %v6793
        %v6898 = vsel %vm5514, %v6890, %v6811
        %v6899 = vsel %vm5514, %v6891, %v6813
        %v6900 = vsel %vm5514, %v6892, %v6815
        %v6901 = vsel %vm5514, %v6893, %v6817
        %v6902 = vsel %vm5514, %v6894, %v6819
        %v6903 = vsel %vm5514, %v6895, %v6821
        %v6904 = vsel %vm5514, %v6896, %v6823
        %v6905 = vsel %vm5514, %v6897, %v6825
        %v6906 = vsel %vm5523, %v6898, %v6843
        %v6907 = vsel %vm5523, %v6899, %v6845
        %v6908 = vsel %vm5523, %v6900, %v6847
        %v6909 = vsel %vm5523, %v6901, %v6849
        %v6910 = vsel %vm5523, %v6902, %v6851
        %v6911 = vsel %vm5523, %v6903, %v6853
        %v6912 = vsel %vm5523, %v6904, %v6855
        %v6913 = vsel %vm5523, %v6905, %v6857
        %v6914 = vlaneseq
        %v6915 = vshrl.u32 %v6914, 7
        %v6916 = vsub.s32 0, %v6915
        %v6917 = vrot.slane %v6599, %v6916
        %v6919 = vsel %vm5536, %v6906, 0
        %v6922 = vsel %vm5536, %v6907, 0
        %v6925 = vsel %vm5536, %v6908, 0
        %v6928 = vsel %vm5536, %v6909, 0
        %v6931 = vsel %vm5536, %v6910, 0
        %v6934 = vsel %vm5536, %v6911, 0
        %v6937 = vsel %vm5536, %v6912, 0
        %v6940 = vsel %vm5536, %v6913, 0
        %6942 = vmatprep.subr.mxu0 0.0
        %6943 = vmatpush1.msra.mxu0 %v6592
        %6944 = vmatprep.subr.mxu0 0.0
        %6945 = vmatpush1.msra.mxu0 %v6593
        %6946 = vmatprep.subr.mxu0 0.0
        %6947 = vmatpush1.msra.mxu0 %v6594
        %6948 = vmatprep.subr.mxu0 0.0
        %6949 = vmatpush1.msra.mxu0 %v6595
        %6950 = vmatprep.subr.mxu0 0.0
        %6951 = vmatpush1.msra.mxu0 %v6596
        %6952 = vmatprep.subr.mxu0 0.0
        %6953 = vmatpush1.msra.mxu0 %v6597
        %6954 = vmatprep.subr.mxu0 0.0
        %6955 = vmatpush1.msra.mxu0 %v6598
        %6956 = vmatprep.subr.mxu0 0.0
        %6957 = vmatpush1.msra.mxu0 0.0
        %6958 = vmatprep.subr.mxu0 0.0
        %6959 = vmatpush1.msra.mxu0 0.0
        %6960 = vmatprep.subr.mxu0 0.0
        %6961 = vmatpush1.msra.mxu0 0.0
        %6962 = vmatprep.subr.mxu0 0.0
        %6963 = vmatpush1.msra.mxu0 0.0
        %6964 = vmatprep.subr.mxu0 0.0
        %6965 = vmatpush1.msra.mxu0 0.0
        %6966 = vmatprep.subr.mxu0 0.0
        %6967 = vmatpush1.msra.mxu0 0.0
        %6968 = vmatprep.subr.mxu0 0.0
        %6969 = vmatpush1.msra.mxu0 0.0
        %6970 = vmatprep.subr.mxu0 0.0
        %6971 = vmatpush1.msra.mxu0 0.0
        %6972 = vmatprep.subr.mxu0 0.0
        %6973 = vmatpush1.msra.mxu0 0.0
        %6974 = vmatprep.subr.mxu0 0.0
        %6975 = vmatpush1.msra.mxu0 0.0
        %6976 = vmatprep.subr.mxu0 0.0
        %6977 = vmatpush1.msra.mxu0 0.0
        %6978 = vmatprep.subr.mxu0 0.0
        %6979 = vmatpush1.msra.mxu0 0.0
        %6980 = vmatprep.subr.mxu0 0.0
        %6981 = vmatpush1.msra.mxu0 0.0
        %6982 = vmatprep.subr.mxu0 0.0
        %6983 = vmatpush1.msra.mxu0 0.0
        %6984 = vmatprep.subr.mxu0 0.0
        %6985 = vmatpush1.msra.mxu0 0.0
        %6986 = vmatprep.subr.mxu0 0.0
        %6987 = vmatpush1.msra.mxu0 0.0
        %6988 = vmatprep.subr.mxu0 0.0
        %6989 = vmatpush1.msra.mxu0 0.0
        %6990 = vmatprep.subr.mxu0 0.0
        %6991 = vmatpush1.msra.mxu0 0.0
        %6992 = vmatprep.subr.mxu0 0.0
        %6993 = vmatpush1.msra.mxu0 0.0
        %6994 = vmatprep.subr.mxu0 0.0
        %6995 = vmatpush1.msra.mxu0 0.0
        %6996 = vmatprep.subr.mxu0 0.0
        %6997 = vmatpush1.msra.mxu0 0.0
        %6998 = vmatprep.subr.mxu0 0.0
        %6999 = vmatpush1.msra.mxu0 0.0
        %7000 = vmatprep.subr.mxu0 0.0
        %7001 = vmatpush1.msra.mxu0 0.0
        %7002 = vmatprep.subr.mxu0 0.0
        %7003 = vmatpush1.msra.mxu0 0.0
        %7004 = vmatprep.subr.mxu0 0.0
        %7005 = vmatpush1.msra.mxu0 0.0
        %7006 = vmatprep.mubr.f32.mxu0 0.0
        %7007 = vmatmul.mubr.f32.gmra.mrb[0].mxu0 %v6919
        %v7008 = vpop.f32.mrb[0].mxu0
        %v7009 = vadd.f32 %v6917, %v7008
        %v7010 = vpop.f32.mrb[0].mxu0
        %7011 = vmatprep.mubr.f32.mxu0 0.0
        %7012 = vmatmul.mubr.f32.gmra.mrb[0].mxu0 %v6922
        %v7013 = vpop.f32.mrb[0].mxu0
        %v7014 = vadd.f32 %v6917, %v7013
        %v7015 = vpop.f32.mrb[0].mxu0
        %7016 = vmatprep.mubr.f32.mxu0 0.0
        %7017 = vmatmul.mubr.f32.gmra.mrb[0].mxu0 %v6925
        %v7018 = vpop.f32.mrb[0].mxu0
        %v7019 = vadd.f32 %v6917, %v7018
        %v7020 = vpop.f32.mrb[0].mxu0
        %7021 = vmatprep.mubr.f32.mxu0 0.0
        %7022 = vmatmul.mubr.f32.gmra.mrb[0].mxu0 %v6928
        %v7023 = vpop.f32.mrb[0].mxu0
        %v7024 = vadd.f32 %v6917, %v7023
        %v7025 = vpop.f32.mrb[0].mxu0
        %7026 = vmatprep.mubr.f32.mxu0 0.0
        %7027 = vmatmul.mubr.f32.gmra.mrb[0].mxu0 %v6931
        %v7028 = vpop.f32.mrb[0].mxu0
        %v7029 = vadd.f32 %v6917, %v7028
        %v7030 = vpop.f32.mrb[0].mxu0
        %7031 = vmatprep.mubr.f32.mxu0 0.0
        %7032 = vmatmul.mubr.f32.gmra.mrb[0].mxu0 %v6934
        %v7033 = vpop.f32.mrb[0].mxu0
        %v7034 = vadd.f32 %v6917, %v7033
        %v7035 = vpop.f32.mrb[0].mxu0
        %7036 = vmatprep.mubr.f32.mxu0 0.0
        %7037 = vmatmul.mubr.f32.gmra.mrb[0].mxu0 %v6937
        %v7038 = vpop.f32.mrb[0].mxu0
        %v7039 = vadd.f32 %v6917, %v7038
        %v7040 = vpop.f32.mrb[0].mxu0
        %7041 = vmatprep.mubr.f32.mxu0 0.0
        %7042 = vmatmul.mubr.f32.gmra.mrb[0].mxu0 %v6940
        %v7043 = vpop.f32.mrb[0].mxu0
        %v7044 = vadd.f32 %v6917, %v7043
        %v7045 = vpop.f32.mrb[0].mxu0
        %7046 = vdwg.mxu0
        %vm7047 = vcmp.gt.f32.partialorder %v7009, 0.0
        %vm7048 = vcmp.gt.f32.partialorder %v7014, 0.0
        %vm7049 = vcmp.gt.f32.partialorder %v7019, 0.0
        %vm7050 = vcmp.gt.f32.partialorder %v7024, 0.0
        %vm7051 = vcmp.gt.f32.partialorder %v7029, 0.0
        %vm7052 = vcmp.gt.f32.partialorder %v7034, 0.0
        %vm7053 = vcmp.gt.f32.partialorder %v7039, 0.0
        %vm7054 = vcmp.gt.f32.partialorder %v7044, 0.0
        %v7055 = vmin.f32 %v7009, 0.0
        %v7056 = vmin.f32 %v7014, 0.0
        %v7057 = vmin.f32 %v7019, 0.0
        %v7058 = vmin.f32 %v7024, 0.0
        %v7059 = vmin.f32 %v7029, 0.0
        %v7060 = vmin.f32 %v7034, 0.0
        %v7061 = vmin.f32 %v7039, 0.0
        %v7062 = vmin.f32 %v7044, 0.0
        %v7063 = vmul.f32 %v7055, 1.442695
        %v7064 = vpow.pop %v7063
        %v7065 = vmul.f32 %v7056, 1.442695
        %v7066 = vpow.pop %v7065
        %v7067 = vmul.f32 %v7057, 1.442695
        %v7068 = vpow.pop %v7067
        %v7069 = vmul.f32 %v7058, 1.442695
        %v7070 = vpow.pop %v7069
        %v7071 = vmul.f32 %v7059, 1.442695
        %v7072 = vpow.pop %v7071
        %v7073 = vmul.f32 %v7060, 1.442695
        %v7074 = vpow.pop %v7073
        %v7075 = vmul.f32 %v7061, 1.442695
        %v7076 = vpow.pop %v7075
        %v7077 = vmul.f32 %v7062, 1.442695
        %v7078 = vpow.pop %v7077
        %v7079 = vsub.f32 %v7064, 1.0
        %v7080 = vsub.f32 %v7066, 1.0
        %v7081 = vsub.f32 %v7068, 1.0
        %v7082 = vsub.f32 %v7070, 1.0
        %v7083 = vsub.f32 %v7072, 1.0
        %v7084 = vsub.f32 %v7074, 1.0
        %v7085 = vsub.f32 %v7076, 1.0
        %v7086 = vsub.f32 %v7078, 1.0
        %v7087 = vsel %vm7047, %v7009, %v7079
        %v7088 = vsel %vm7048, %v7014, %v7080
        %v7089 = vsel %vm7049, %v7019, %v7081
        %v7090 = vsel %vm7050, %v7024, %v7082
        %v7091 = vsel %vm7051, %v7029, %v7083
        %v7092 = vsel %vm7052, %v7034, %v7084
        %v7093 = vsel %vm7053, %v7039, %v7085
        %v7094 = vsel %vm7054, %v7044, %v7086
        %v7095 = vlaneseq
        %v7096 = vshrl.u32 %v7095, 7
        %v7097 = vsub.s32 0, %v7096
        %v7098 = vrot.slane %v6601, %v7097
        %v7100 = vsel %vm1673, %v7087, 0
        %v7103 = vsel %vm1673, %v7088, 0
        %v7106 = vsel %vm1673, %v7089, 0
        %v7109 = vsel %vm1673, %v7090, 0
        %v7112 = vsel %vm1673, %v7091, 0
        %v7115 = vsel %vm1673, %v7092, 0
        %v7118 = vsel %vm1673, %v7093, 0
        %v7121 = vsel %vm1673, %v7094, 0
        %7123 = vmatprep.subr.mxu0 0.0
        %7124 = vmatpush1.msra.mxu0 %v6600
        %7125 = vmatprep.subr.mxu0 0.0
        %7126 = vmatpush1.msra.mxu0 0.0
        %7127 = vmatprep.subr.mxu0 0.0
        %7128 = vmatpush1.msra.mxu0 0.0
        %7129 = vmatprep.subr.mxu0 0.0
        %7130 = vmatpush1.msra.mxu0 0.0
        %7131 = vmatprep.subr.mxu0 0.0
        %7132 = vmatpush1.msra.mxu0 0.0
        %7133 = vmatprep.subr.mxu0 0.0
        %7134 = vmatpush1.msra.mxu0 0.0
        %7135 = vmatprep.subr.mxu0 0.0
        %7136 = vmatpush1.msra.mxu0 0.0
        %7137 = vmatprep.subr.mxu0 0.0
        %7138 = vmatpush1.msra.mxu0 0.0
        %7139 = vmatprep.subr.mxu0 0.0
        %7140 = vmatpush1.msra.mxu0 0.0
        %7141 = vmatprep.subr.mxu0 0.0
        %7142 = vmatpush1.msra.mxu0 0.0
        %7143 = vmatprep.subr.mxu0 0.0
        %7144 = vmatpush1.msra.mxu0 0.0
        %7145 = vmatprep.subr.mxu0 0.0
        %7146 = vmatpush1.msra.mxu0 0.0
        %7147 = vmatprep.subr.mxu0 0.0
        %7148 = vmatpush1.msra.mxu0 0.0
        %7149 = vmatprep.subr.mxu0 0.0
        %7150 = vmatpush1.msra.mxu0 0.0
        %7151 = vmatprep.subr.mxu0 0.0
        %7152 = vmatpush1.msra.mxu0 0.0
        %7153 = vmatprep.subr.mxu0 0.0
        %7154 = vmatpush1.msra.mxu0 0.0
        %7155 = vmatprep.subr.mxu0 0.0
        %7156 = vmatpush1.msra.mxu0 0.0
        %7157 = vmatprep.subr.mxu0 0.0
        %7158 = vmatpush1.msra.mxu0 0.0
        %7159 = vmatprep.subr.mxu0 0.0
        %7160 = vmatpush1.msra.mxu0 0.0
        %7161 = vmatprep.subr.mxu0 0.0
        %7162 = vmatpush1.msra.mxu0 0.0
        %7163 = vmatprep.subr.mxu0 0.0
        %7164 = vmatpush1.msra.mxu0 0.0
        %7165 = vmatprep.subr.mxu0 0.0
        %7166 = vmatpush1.msra.mxu0 0.0
        %7167 = vmatprep.subr.mxu0 0.0
        %7168 = vmatpush1.msra.mxu0 0.0
        %7169 = vmatprep.subr.mxu0 0.0
        %7170 = vmatpush1.msra.mxu0 0.0
        %7171 = vmatprep.subr.mxu0 0.0
        %7172 = vmatpush1.msra.mxu0 0.0
        %7173 = vmatprep.subr.mxu0 0.0
        %7174 = vmatpush1.msra.mxu0 0.0
        %7175 = vmatprep.subr.mxu0 0.0
        %7176 = vmatpush1.msra.mxu0 0.0
        %7177 = vmatprep.subr.mxu0 0.0
        %7178 = vmatpush1.msra.mxu0 0.0
        %7179 = vmatprep.subr.mxu0 0.0
        %7180 = vmatpush1.msra.mxu0 0.0
        %7181 = vmatprep.subr.mxu0 0.0
        %7182 = vmatpush1.msra.mxu0 0.0
        %7183 = vmatprep.subr.mxu0 0.0
        %7184 = vmatpush1.msra.mxu0 0.0
        %7185 = vmatprep.subr.mxu0 0.0
        %7186 = vmatpush1.msra.mxu0 0.0
        %7187 = vmatprep.mubr.f32.mxu0 0.0
        %7188 = vmatmul.mubr.f32.gmra.mrb[0].mxu0 %v7100
        %v7189 = vpop.f32.mrb[0].mxu0
        %v7190 = vadd.f32 %v7098, %v7189
        %v7191 = vpop.f32.mrb[0].mxu0
        %7192 = vmatprep.mubr.f32.mxu0 0.0
        %7193 = vmatmul.mubr.f32.gmra.mrb[0].mxu0 %v7103
        %v7194 = vpop.f32.mrb[0].mxu0
        %v7195 = vadd.f32 %v7098, %v7194
        %v7196 = vpop.f32.mrb[0].mxu0
        %7197 = vmatprep.mubr.f32.mxu0 0.0
        %7198 = vmatmul.mubr.f32.gmra.mrb[0].mxu0 %v7106
        %v7199 = vpop.f32.mrb[0].mxu0
        %v7200 = vadd.f32 %v7098, %v7199
        %v7201 = vpop.f32.mrb[0].mxu0
        %7202 = vmatprep.mubr.f32.mxu0 0.0
        %7203 = vmatmul.mubr.f32.gmra.mrb[0].mxu0 %v7109
        %v7204 = vpop.f32.mrb[0].mxu0
        %v7205 = vadd.f32 %v7098, %v7204
        %v7206 = vpop.f32.mrb[0].mxu0
        %7207 = vmatprep.mubr.f32.mxu0 0.0
        %7208 = vmatmul.mubr.f32.gmra.mrb[0].mxu0 %v7112
        %v7209 = vpop.f32.mrb[0].mxu0
        %v7210 = vadd.f32 %v7098, %v7209
        %v7211 = vpop.f32.mrb[0].mxu0
        %7212 = vmatprep.mubr.f32.mxu0 0.0
        %7213 = vmatmul.mubr.f32.gmra.mrb[0].mxu0 %v7115
        %v7214 = vpop.f32.mrb[0].mxu0
        %v7215 = vadd.f32 %v7098, %v7214
        %v7216 = vpop.f32.mrb[0].mxu0
        %7217 = vmatprep.mubr.f32.mxu0 0.0
        %7218 = vmatmul.mubr.f32.gmra.mrb[0].mxu0 %v7118
        %v7219 = vpop.f32.mrb[0].mxu0
        %v7220 = vadd.f32 %v7098, %v7219
        %v7221 = vpop.f32.mrb[0].mxu0
        %7222 = vmatprep.mubr.f32.mxu0 0.0
        %7223 = vmatmul.mubr.f32.gmra.mrb[0].mxu0 %v7121
        %v7224 = vpop.f32.mrb[0].mxu0
        %v7225 = vadd.f32 %v7098, %v7224
        %v7226 = vpop.f32.mrb[0].mxu0
        %7227 = vdwg.mxu0
        %vm7228 = vcmp.gt.f32.partialorder %v7190, 0.0
        %vm7229 = vcmp.gt.f32.partialorder %v7195, 0.0
        %vm7230 = vcmp.gt.f32.partialorder %v7200, 0.0
        %vm7231 = vcmp.gt.f32.partialorder %v7205, 0.0
        %vm7232 = vcmp.gt.f32.partialorder %v7210, 0.0
        %vm7233 = vcmp.gt.f32.partialorder %v7215, 0.0
        %vm7234 = vcmp.gt.f32.partialorder %v7220, 0.0
        %vm7235 = vcmp.gt.f32.partialorder %v7225, 0.0
        %v7236 = vmin.f32 %v7190, 0.0
        %v7237 = vmin.f32 %v7195, 0.0
        %v7238 = vmin.f32 %v7200, 0.0
        %v7239 = vmin.f32 %v7205, 0.0
        %v7240 = vmin.f32 %v7210, 0.0
        %v7241 = vmin.f32 %v7215, 0.0
        %v7242 = vmin.f32 %v7220, 0.0
        %v7243 = vmin.f32 %v7225, 0.0
        %v7244 = vmul.f32 %v7236, 1.442695
        %v7245 = vpow.pop %v7244
        %v7246 = vmul.f32 %v7237, 1.442695
        %v7247 = vpow.pop %v7246
        %v7248 = vmul.f32 %v7238, 1.442695
        %v7249 = vpow.pop %v7248
        %v7250 = vmul.f32 %v7239, 1.442695
        %v7251 = vpow.pop %v7250
        %v7252 = vmul.f32 %v7240, 1.442695
        %v7253 = vpow.pop %v7252
        %v7254 = vmul.f32 %v7241, 1.442695
        %v7255 = vpow.pop %v7254
        %v7256 = vmul.f32 %v7242, 1.442695
        %v7257 = vpow.pop %v7256
        %v7258 = vmul.f32 %v7243, 1.442695
        %v7259 = vpow.pop %v7258
        %v7260 = vsub.f32 %v7245, 1.0
        %v7261 = vsub.f32 %v7247, 1.0
        %v7262 = vsub.f32 %v7249, 1.0
        %v7263 = vsub.f32 %v7251, 1.0
        %v7264 = vsub.f32 %v7253, 1.0
        %v7265 = vsub.f32 %v7255, 1.0
        %v7266 = vsub.f32 %v7257, 1.0
        %v7267 = vsub.f32 %v7259, 1.0
        %v7268 = vsel %vm7228, %v7190, %v7260
        %v7269 = vsel %vm7229, %v7195, %v7261
        %v7270 = vsel %vm7230, %v7200, %v7262
        %v7271 = vsel %vm7231, %v7205, %v7263
        %v7272 = vsel %vm7232, %v7210, %v7264
        %v7273 = vsel %vm7233, %v7215, %v7265
        %v7274 = vsel %vm7234, %v7220, %v7266
        %v7275 = vsel %vm7235, %v7225, %v7267
        %v7276 = vadd.f32 %v6584, %v7268
        %v7277 = vadd.f32 %v6585, %v7269
        %v7278 = vadd.f32 %v6586, %v7270
        %v7279 = vadd.f32 %v6587, %v7271
        %v7280 = vadd.f32 %v6588, %v7272
        %v7281 = vadd.f32 %v6589, %v7273
        %v7282 = vadd.f32 %v6590, %v7274
        %v7283 = vadd.f32 %v6591, %v7275
        %v7284 = vld [vmem:[%s1 + $0x130] sm:$0xff]
        %v7285 = vld [vmem:[%s1 + $0x138] sm:$0xff]
        %v7286 = vld [vmem:[%s1 + $0x140] sm:$0xff]
        %v7287 = vld [vmem:[%s1 + $0x148] sm:$0xff]
        %v7288 = vld [vmem:[%s2 + $0x15] sm:$0x1]
        %7289 = vst.msk [vmem:[#allocation2] sm:$0x1] %vm5914, 0.0
        %7290 = vst.msk [vmem:[#allocation2 + $0x1] sm:$0xff] %vm1673, %v7276
        %7291 = vst.msk [vmem:[#allocation2 + $0x9] sm:$0xff] %vm1673, %v7277
        %7292 = vst.msk [vmem:[#allocation2 + $0x11] sm:$0xff] %vm1673, %v7278
        %7293 = vst.msk [vmem:[#allocation2 + $0x19] sm:$0xff] %vm1673, %v7279
        %7294 = vst.msk [vmem:[#allocation2 + $0x21] sm:$0xff] %vm1673, %v7280
        %7295 = vst.msk [vmem:[#allocation2 + $0x29] sm:$0xff] %vm1673, %v7281
        %7296 = vst.msk [vmem:[#allocation2 + $0x31] sm:$0xff] %vm1673, %v7282
        %7297 = vst.msk [vmem:[#allocation2 + $0x39] sm:$0xff] %vm1673, %v7283
        %7298 = vst.msk [vmem:[#allocation2 + $0x41] sm:$0x1] %vm5914, 0.0
        %v7299 = vld [vmem:[#allocation2] ss:$2 sm:$0xff]
        %v7300 = vld [vmem:[%s4849] ss:$2 sm:$0xff]
        %v7301 = vld [vmem:[%s4851] ss:$2 sm:$0xff]
        %v7302 = vld [vmem:[%s4853] ss:$2 sm:$0xff]
        %v7303 = vld [vmem:[%s4863] ss:$2 sm:$0xff]
        %v7304 = vld [vmem:[%s4865] ss:$2 sm:$0xff]
        %v7305 = vld [vmem:[%s4867] ss:$2 sm:$0xff]
        %v7306 = vld [vmem:[%s4869] ss:$2 sm:$0xff]
        %v7307 = vld [vmem:[%s4879] ss:$2 sm:$0xff]
        %v7308 = vld [vmem:[%s4881] ss:$2 sm:$0xff]
        %v7309 = vld [vmem:[%s4883] ss:$2 sm:$0xff]
        %v7310 = vld [vmem:[%s4885] ss:$2 sm:$0xff]
        %v7311 = vld [vmem:[%s4895] ss:$2 sm:$0xff]
        %v7312 = vld [vmem:[%s4897] ss:$2 sm:$0xff]
        %v7313 = vld [vmem:[%s4899] ss:$2 sm:$0xff]
        %v7314 = vld [vmem:[%s4901] ss:$2 sm:$0xff]
        %7319 = vrot.lane.b32.xlu0 %v7303, 8
        %v7320 = vpop.permute.xlu0 %7319
        %7321 = vrot.lane.b32.xlu0 %v7304, 8
        %v7322 = vpop.permute.xlu0 %7321
        %7323 = vrot.lane.b32.xlu0 %v7305, 8
        %v7324 = vpop.permute.xlu0 %7323
        %7325 = vrot.lane.b32.xlu0 %v7306, 8
        %v7326 = vpop.permute.xlu0 %7325
        %7335 = vrot.lane.b32.xlu0 %v7307, 16
        %v7336 = vpop.permute.xlu0 %7335
        %7337 = vrot.lane.b32.xlu0 %v7308, 16
        %v7338 = vpop.permute.xlu0 %7337
        %7339 = vrot.lane.b32.xlu0 %v7309, 16
        %v7340 = vpop.permute.xlu0 %7339
        %7341 = vrot.lane.b32.xlu0 %v7310, 16
        %v7342 = vpop.permute.xlu0 %7341
        %7351 = vrot.lane.b32.xlu0 %v7311, 24
        %v7352 = vpop.permute.xlu0 %7351
        %7353 = vrot.lane.b32.xlu0 %v7312, 24
        %v7354 = vpop.permute.xlu0 %7353
        %7355 = vrot.lane.b32.xlu0 %v7313, 24
        %v7356 = vpop.permute.xlu0 %7355
        %7357 = vrot.lane.b32.xlu0 %v7314, 24
        %v7358 = vpop.permute.xlu0 %7357
        %v7363 = vsel %vm1673, %v7299, %v7320
        %v7364 = vsel %vm1673, %v7300, %v7322
        %v7365 = vsel %vm1673, %v7301, %v7324
        %v7366 = vsel %vm1673, %v7302, %v7326
        %v7367 = vsel %vm1707, %v7363, %v7336
        %v7368 = vsel %vm1707, %v7364, %v7338
        %v7369 = vsel %vm1707, %v7365, %v7340
        %v7370 = vsel %vm1707, %v7366, %v7342
        %v7371 = vsel %vm1741, %v7367, %v7352
        %v7372 = vsel %vm1741, %v7368, %v7354
        %v7373 = vsel %vm1741, %v7369, %v7356
        %v7374 = vsel %vm1741, %v7370, %v7358
        %v7375 = vlaneseq
        %v7376 = vshrl.u32 %v7375, 7
        %v7377 = vsub.s32 0, %v7376
        %v7378 = vrot.slane %v7288, %v7377
        %v7380 = vsel %vm5505, %v7371, 0
        %v7383 = vsel %vm5505, %v7372, 0
        %v7386 = vsel %vm5505, %v7373, 0
        %v7389 = vsel %vm5505, %v7374, 0
        %7391 = vmatprep.subr.mxu0 0.0
        %7392 = vmatpush1.msra.mxu0 %v7284
        %7393 = vmatprep.subr.mxu0 0.0
        %7394 = vmatpush1.msra.mxu0 %v7285
        %7395 = vmatprep.subr.mxu0 0.0
        %7396 = vmatpush1.msra.mxu0 %v7286
        %7397 = vmatprep.subr.mxu0 0.0
        %7398 = vmatpush1.msra.mxu0 %v7287
        %7399 = vmatprep.subr.mxu0 0.0
        %7400 = vmatpush1.msra.mxu0 0.0
        %7401 = vmatprep.subr.mxu0 0.0
        %7402 = vmatpush1.msra.mxu0 0.0
        %7403 = vmatprep.subr.mxu0 0.0
        %7404 = vmatpush1.msra.mxu0 0.0
        %7405 = vmatprep.subr.mxu0 0.0
        %7406 = vmatpush1.msra.mxu0 0.0
        %7407 = vmatprep.subr.mxu0 0.0
        %7408 = vmatpush1.msra.mxu0 0.0
        %7409 = vmatprep.subr.mxu0 0.0
        %7410 = vmatpush1.msra.mxu0 0.0
        %7411 = vmatprep.subr.mxu0 0.0
        %7412 = vmatpush1.msra.mxu0 0.0
        %7413 = vmatprep.subr.mxu0 0.0
        %7414 = vmatpush1.msra.mxu0 0.0
        %7415 = vmatprep.subr.mxu0 0.0
        %7416 = vmatpush1.msra.mxu0 0.0
        %7417 = vmatprep.subr.mxu0 0.0
        %7418 = vmatpush1.msra.mxu0 0.0
        %7419 = vmatprep.subr.mxu0 0.0
        %7420 = vmatpush1.msra.mxu0 0.0
        %7421 = vmatprep.subr.mxu0 0.0
        %7422 = vmatpush1.msra.mxu0 0.0
        %7423 = vmatprep.subr.mxu0 0.0
        %7424 = vmatpush1.msra.mxu0 0.0
        %7425 = vmatprep.subr.mxu0 0.0
        %7426 = vmatpush1.msra.mxu0 0.0
        %7427 = vmatprep.subr.mxu0 0.0
        %7428 = vmatpush1.msra.mxu0 0.0
        %7429 = vmatprep.subr.mxu0 0.0
        %7430 = vmatpush1.msra.mxu0 0.0
        %7431 = vmatprep.subr.mxu0 0.0
        %7432 = vmatpush1.msra.mxu0 0.0
        %7433 = vmatprep.subr.mxu0 0.0
        %7434 = vmatpush1.msra.mxu0 0.0
        %7435 = vmatprep.subr.mxu0 0.0
        %7436 = vmatpush1.msra.mxu0 0.0
        %7437 = vmatprep.subr.mxu0 0.0
        %7438 = vmatpush1.msra.mxu0 0.0
        %7439 = vmatprep.subr.mxu0 0.0
        %7440 = vmatpush1.msra.mxu0 0.0
        %7441 = vmatprep.subr.mxu0 0.0
        %7442 = vmatpush1.msra.mxu0 0.0
        %7443 = vmatprep.subr.mxu0 0.0
        %7444 = vmatpush1.msra.mxu0 0.0
        %7445 = vmatprep.subr.mxu0 0.0
        %7446 = vmatpush1.msra.mxu0 0.0
        %7447 = vmatprep.subr.mxu0 0.0
        %7448 = vmatpush1.msra.mxu0 0.0
        %7449 = vmatprep.subr.mxu0 0.0
        %7450 = vmatpush1.msra.mxu0 0.0
        %7451 = vmatprep.subr.mxu0 0.0
        %7452 = vmatpush1.msra.mxu0 0.0
        %7453 = vmatprep.subr.mxu0 0.0
        %7454 = vmatpush1.msra.mxu0 0.0
        %7455 = vmatprep.mubr.f32.mxu0 0.0
        %7456 = vmatmul.mubr.f32.gmra.mrb[0].mxu0 %v7380
        %v7457 = vpop.f32.mrb[0].mxu0
        %v7458 = vadd.f32 %v7378, %v7457
        %v7459 = vpop.f32.mrb[0].mxu0
        %7460 = vmatprep.mubr.f32.mxu0 0.0
        %7461 = vmatmul.mubr.f32.gmra.mrb[0].mxu0 %v7383
        %v7462 = vpop.f32.mrb[0].mxu0
        %v7463 = vadd.f32 %v7378, %v7462
        %v7464 = vpop.f32.mrb[0].mxu0
        %7465 = vmatprep.mubr.f32.mxu0 0.0
        %7466 = vmatmul.mubr.f32.gmra.mrb[0].mxu0 %v7386
        %v7467 = vpop.f32.mrb[0].mxu0
        %v7468 = vadd.f32 %v7378, %v7467
        %v7469 = vpop.f32.mrb[0].mxu0
        %7470 = vmatprep.mubr.f32.mxu0 0.0
        %7471 = vmatmul.mubr.f32.gmra.mrb[0].mxu0 %v7389
        %v7472 = vpop.f32.mrb[0].mxu0
        %v7473 = vadd.f32 %v7378, %v7472
        %v7474 = vpop.f32.mrb[0].mxu0
        %7475 = vdwg.mxu0
        %vm7476 = vcmp.gt.f32.partialorder %v7458, 0.0
        %vm7477 = vcmp.gt.f32.partialorder %v7463, 0.0
        %vm7478 = vcmp.gt.f32.partialorder %v7468, 0.0
        %vm7479 = vcmp.gt.f32.partialorder %v7473, 0.0
        %v7480 = vmin.f32 %v7458, 0.0
        %v7481 = vmin.f32 %v7463, 0.0
        %v7482 = vmin.f32 %v7468, 0.0
        %v7483 = vmin.f32 %v7473, 0.0
        %v7484 = vmul.f32 %v7480, 1.442695
        %v7485 = vpow.pop %v7484
        %v7486 = vmul.f32 %v7481, 1.442695
        %v7487 = vpow.pop %v7486
        %v7488 = vmul.f32 %v7482, 1.442695
        %v7489 = vpow.pop %v7488
        %v7490 = vmul.f32 %v7483, 1.442695
        %v7491 = vpow.pop %v7490
        %v7492 = vsub.f32 %v7485, 1.0
        %v7493 = vsub.f32 %v7487, 1.0
        %v7494 = vsub.f32 %v7489, 1.0
        %v7495 = vsub.f32 %v7491, 1.0
        %v7496 = vsel %vm7476, %v7458, %v7492
        %v7497 = vsel %vm7477, %v7463, %v7493
        %v7498 = vsel %vm7478, %v7468, %v7494
        %v7499 = vsel %vm7479, %v7473, %v7495
        %v7500 = vld [vmem:[%s1 + $0x150] sm:$0xff]
        %v7501 = vld [vmem:[%s1 + $0x158] sm:$0xff]
        %v7502 = vld [vmem:[%s1 + $0x160] sm:$0xff]
        %v7503 = vld [vmem:[%s1 + $0x168] sm:$0xff]
        %v7504 = vld [vmem:[%s1 + $0x170] sm:$0xff]
        %v7505 = vld [vmem:[%s1 + $0x178] sm:$0xff]
        %v7506 = vld [vmem:[%s1 + $0x180] sm:$0xff]
        %v7507 = vld [vmem:[%s1 + $0x188] sm:$0xff]
        %v7508 = vld [vmem:[%s1 + $0x190] sm:$0xff]
        %v7509 = vld [vmem:[%s1 + $0x198] sm:$0xff]
        %v7510 = vld [vmem:[%s1 + $0x1a0] sm:$0xff]
        %v7511 = vld [vmem:[%s1 + $0x1a8] sm:$0xff]
        %v7512 = vld [vmem:[%s1 + $0x1b0] sm:$0xff]
        %v7513 = vld [vmem:[%s1 + $0x1b8] sm:$0xff]
        %v7514 = vld [vmem:[%s2 + $0x16] sm:$0x1]
        %v7515 = vld [vmem:[%s1 + $0x1c0] sm:$0xff]
        %v7516 = vld [vmem:[%s1 + $0x1c8] sm:$0xff]
        %v7517 = vld [vmem:[%s2 + $0x17] sm:$0x1]
        %vm7518 = vcmask 124928
        %7519 = vst.msk [vmem:[#allocation2] sm:$0x7] %vm7518, 0.0
        %7520 = vst.msk [vmem:[#allocation2 + $0x3] sm:$0xff] %vm1707, %v7496
        %7521 = vst.msk [vmem:[#allocation2 + $0xb] sm:$0xff] %vm1707, %v7497
        %7522 = vst.msk [vmem:[#allocation2 + $0x13] sm:$0xff] %vm1707, %v7498
        %7523 = vst.msk [vmem:[#allocation2 + $0x1b] sm:$0xff] %vm1707, %v7499
        %7524 = vst.msk [vmem:[#allocation2 + $0x23] sm:$0x7] %vm7518, 0.0
        %v7525 = vld [vmem:[#allocation2] sm:$0xff]
        %v7526 = vld [vmem:[#allocation2 + $0x8] sm:$0xff]
        %v7527 = vld [vmem:[#allocation2 + $0x10] sm:$0xff]
        %v7528 = vld [vmem:[#allocation2 + $0x18] sm:$0xff]
        %v7529 = vld [vmem:[#allocation2 + $0x1] sm:$0xff]
        %v7530 = vld [vmem:[#allocation2 + $0x9] sm:$0xff]
        %v7531 = vld [vmem:[#allocation2 + $0x11] sm:$0xff]
        %v7532 = vld [vmem:[#allocation2 + $0x19] sm:$0xff]
        %v7533 = vld [vmem:[#allocation2 + $0x2] sm:$0xff]
        %v7534 = vld [vmem:[#allocation2 + $0xa] sm:$0xff]
        %v7535 = vld [vmem:[#allocation2 + $0x12] sm:$0xff]
        %v7536 = vld [vmem:[#allocation2 + $0x1a] sm:$0xff]
        %v7537 = vld [vmem:[#allocation2 + $0x3] sm:$0xff]
        %v7538 = vld [vmem:[#allocation2 + $0xb] sm:$0xff]
        %v7539 = vld [vmem:[#allocation2 + $0x13] sm:$0xff]
        %v7540 = vld [vmem:[#allocation2 + $0x1b] sm:$0xff]
        %v7541 = vld [vmem:[#allocation2 + $0x4] sm:$0xff]
        %v7542 = vld [vmem:[#allocation2 + $0xc] sm:$0xff]
        %v7543 = vld [vmem:[#allocation2 + $0x14] sm:$0xff]
        %v7544 = vld [vmem:[#allocation2 + $0x1c] sm:$0xff]
        %v7545 = vld [vmem:[#allocation2 + $0x5] sm:$0xff]
        %v7546 = vld [vmem:[#allocation2 + $0xd] sm:$0xff]
        %v7547 = vld [vmem:[#allocation2 + $0x15] sm:$0xff]
        %v7548 = vld [vmem:[#allocation2 + $0x1d] sm:$0xff]
        %v7549 = vld [vmem:[#allocation2 + $0x6] sm:$0xff]
        %v7550 = vld [vmem:[#allocation2 + $0xe] sm:$0xff]
        %v7551 = vld [vmem:[#allocation2 + $0x16] sm:$0xff]
        %v7552 = vld [vmem:[#allocation2 + $0x1e] sm:$0xff]
        %7557 = vrot.lane.b32.xlu0 %v7529, 16
        %v7558 = vpop.permute.xlu0 %7557
        %7559 = vrot.lane.b32.xlu0 %v7530, 16
        %v7560 = vpop.permute.xlu0 %7559
        %7561 = vrot.lane.b32.xlu0 %v7531, 16
        %v7562 = vpop.permute.xlu0 %7561
        %7563 = vrot.lane.b32.xlu0 %v7532, 16
        %v7564 = vpop.permute.xlu0 %7563
        %7573 = vrot.lane.b32.xlu0 %v7533, 32
        %v7574 = vpop.permute.xlu0 %7573
        %7575 = vrot.lane.b32.xlu0 %v7534, 32
        %v7576 = vpop.permute.xlu0 %7575
        %7577 = vrot.lane.b32.xlu0 %v7535, 32
        %v7578 = vpop.permute.xlu0 %7577
        %7579 = vrot.lane.b32.xlu0 %v7536, 32
        %v7580 = vpop.permute.xlu0 %7579
        %7589 = vrot.lane.b32.xlu0 %v7537, 48
        %v7590 = vpop.permute.xlu0 %7589
        %7591 = vrot.lane.b32.xlu0 %v7538, 48
        %v7592 = vpop.permute.xlu0 %7591
        %7593 = vrot.lane.b32.xlu0 %v7539, 48
        %v7594 = vpop.permute.xlu0 %7593
        %7595 = vrot.lane.b32.xlu0 %v7540, 48
        %v7596 = vpop.permute.xlu0 %7595
        %7605 = vrot.lane.b32.xlu0 %v7541, 64
        %v7606 = vpop.permute.xlu0 %7605
        %7607 = vrot.lane.b32.xlu0 %v7542, 64
        %v7608 = vpop.permute.xlu0 %7607
        %7609 = vrot.lane.b32.xlu0 %v7543, 64
        %v7610 = vpop.permute.xlu0 %7609
        %7611 = vrot.lane.b32.xlu0 %v7544, 64
        %v7612 = vpop.permute.xlu0 %7611
        %7621 = vrot.lane.b32.xlu0 %v7545, 80
        %v7622 = vpop.permute.xlu0 %7621
        %7623 = vrot.lane.b32.xlu0 %v7546, 80
        %v7624 = vpop.permute.xlu0 %7623
        %7625 = vrot.lane.b32.xlu0 %v7547, 80
        %v7626 = vpop.permute.xlu0 %7625
        %7627 = vrot.lane.b32.xlu0 %v7548, 80
        %v7628 = vpop.permute.xlu0 %7627
        %7637 = vrot.lane.b32.xlu0 %v7549, 96
        %v7638 = vpop.permute.xlu0 %7637
        %7639 = vrot.lane.b32.xlu0 %v7550, 96
        %v7640 = vpop.permute.xlu0 %7639
        %7641 = vrot.lane.b32.xlu0 %v7551, 96
        %v7642 = vpop.permute.xlu0 %7641
        %7643 = vrot.lane.b32.xlu0 %v7552, 96
        %v7644 = vpop.permute.xlu0 %7643
        %v7649 = vsel %vm1707, %v7525, %v7558
        %v7650 = vsel %vm1707, %v7526, %v7560
        %v7651 = vsel %vm1707, %v7527, %v7562
        %v7652 = vsel %vm1707, %v7528, %v7564
        %v7653 = vsel %vm5505, %v7649, %v7574
        %v7654 = vsel %vm5505, %v7650, %v7576
        %v7655 = vsel %vm5505, %v7651, %v7578
        %v7656 = vsel %vm5505, %v7652, %v7580
        %v7657 = vsel %vm5523, %v7653, %v7590
        %v7658 = vsel %vm5523, %v7654, %v7592
        %v7659 = vsel %vm5523, %v7655, %v7594
        %v7660 = vsel %vm5523, %v7656, %v7596
        %vm7661 = vcmask 523264
        %v7662 = vsel %vm7661, %v7657, %v7606
        %v7663 = vsel %vm7661, %v7658, %v7608
        %v7664 = vsel %vm7661, %v7659, %v7610
        %v7665 = vsel %vm7661, %v7660, %v7612
        %vm7666 = vcmask 654336
        %v7667 = vsel %vm7666, %v7662, %v7622
        %v7668 = vsel %vm7666, %v7663, %v7624
        %v7669 = vsel %vm7666, %v7664, %v7626
        %v7670 = vsel %vm7666, %v7665, %v7628
        %vm7671 = vcmask 785408
        %v7672 = vsel %vm7671, %v7667, %v7638
        %v7673 = vsel %vm7671, %v7668, %v7640
        %v7674 = vsel %vm7671, %v7669, %v7642
        %v7675 = vsel %vm7671, %v7670, %v7644
        %v7676 = vlaneseq
        %v7677 = vshrl.u32 %v7676, 7
        %v7678 = vsub.s32 0, %v7677
        %v7679 = vrot.slane %v7514, %v7678
        %vm7680 = vcmask 916480
        %v7682 = vsel %vm7680, %v7672, 0
        %v7685 = vsel %vm7680, %v7673, 0
        %v7688 = vsel %vm7680, %v7674, 0
        %v7691 = vsel %vm7680, %v7675, 0
        %7693 = vmatprep.subr.mxu0 0.0
        %7694 = vmatpush1.msra.mxu0 %v7500
        %7695 = vmatprep.subr.mxu0 0.0
        %7696 = vmatpush1.msra.mxu0 %v7501
        %7697 = vmatprep.subr.mxu0 0.0
        %7698 = vmatpush1.msra.mxu0 %v7502
        %7699 = vmatprep.subr.mxu0 0.0
        %7700 = vmatpush1.msra.mxu0 %v7503
        %7701 = vmatprep.subr.mxu0 0.0
        %7702 = vmatpush1.msra.mxu0 %v7504
        %7703 = vmatprep.subr.mxu0 0.0
        %7704 = vmatpush1.msra.mxu0 %v7505
        %7705 = vmatprep.subr.mxu0 0.0
        %7706 = vmatpush1.msra.mxu0 %v7506
        %7707 = vmatprep.subr.mxu0 0.0
        %7708 = vmatpush1.msra.mxu0 %v7507
        %7709 = vmatprep.subr.mxu0 0.0
        %7710 = vmatpush1.msra.mxu0 %v7508
        %7711 = vmatprep.subr.mxu0 0.0
        %7712 = vmatpush1.msra.mxu0 %v7509
        %7713 = vmatprep.subr.mxu0 0.0
        %7714 = vmatpush1.msra.mxu0 %v7510
        %7715 = vmatprep.subr.mxu0 0.0
        %7716 = vmatpush1.msra.mxu0 %v7511
        %7717 = vmatprep.subr.mxu0 0.0
        %7718 = vmatpush1.msra.mxu0 %v7512
        %7719 = vmatprep.subr.mxu0 0.0
        %7720 = vmatpush1.msra.mxu0 %v7513
        %7721 = vmatprep.subr.mxu0 0.0
        %7722 = vmatpush1.msra.mxu0 0.0
        %7723 = vmatprep.subr.mxu0 0.0
        %7724 = vmatpush1.msra.mxu0 0.0
        %7725 = vmatprep.subr.mxu0 0.0
        %7726 = vmatpush1.msra.mxu0 0.0
        %7727 = vmatprep.subr.mxu0 0.0
        %7728 = vmatpush1.msra.mxu0 0.0
        %7729 = vmatprep.subr.mxu0 0.0
        %7730 = vmatpush1.msra.mxu0 0.0
        %7731 = vmatprep.subr.mxu0 0.0
        %7732 = vmatpush1.msra.mxu0 0.0
        %7733 = vmatprep.subr.mxu0 0.0
        %7734 = vmatpush1.msra.mxu0 0.0
        %7735 = vmatprep.subr.mxu0 0.0
        %7736 = vmatpush1.msra.mxu0 0.0
        %7737 = vmatprep.subr.mxu0 0.0
        %7738 = vmatpush1.msra.mxu0 0.0
        %7739 = vmatprep.subr.mxu0 0.0
        %7740 = vmatpush1.msra.mxu0 0.0
        %7741 = vmatprep.subr.mxu0 0.0
        %7742 = vmatpush1.msra.mxu0 0.0
        %7743 = vmatprep.subr.mxu0 0.0
        %7744 = vmatpush1.msra.mxu0 0.0
        %7745 = vmatprep.subr.mxu0 0.0
        %7746 = vmatpush1.msra.mxu0 0.0
        %7747 = vmatprep.subr.mxu0 0.0
        %7748 = vmatpush1.msra.mxu0 0.0
        %7749 = vmatprep.subr.mxu0 0.0
        %7750 = vmatpush1.msra.mxu0 0.0
        %7751 = vmatprep.subr.mxu0 0.0
        %7752 = vmatpush1.msra.mxu0 0.0
        %7753 = vmatprep.subr.mxu0 0.0
        %7754 = vmatpush1.msra.mxu0 0.0
        %7755 = vmatprep.subr.mxu0 0.0
        %7756 = vmatpush1.msra.mxu0 0.0
        %7757 = vmatprep.mubr.f32.mxu0 0.0
        %7758 = vmatmul.mubr.f32.gmra.mrb[0].mxu0 %v7682
        %v7759 = vpop.f32.mrb[0].mxu0
        %v7760 = vadd.f32 %v7679, %v7759
        %v7761 = vpop.f32.mrb[0].mxu0
        %7762 = vmatprep.mubr.f32.mxu0 0.0
        %7763 = vmatmul.mubr.f32.gmra.mrb[0].mxu0 %v7685
        %v7764 = vpop.f32.mrb[0].mxu0
        %v7765 = vadd.f32 %v7679, %v7764
        %v7766 = vpop.f32.mrb[0].mxu0
        %7767 = vmatprep.mubr.f32.mxu0 0.0
        %7768 = vmatmul.mubr.f32.gmra.mrb[0].mxu0 %v7688
        %v7769 = vpop.f32.mrb[0].mxu0
        %v7770 = vadd.f32 %v7679, %v7769
        %v7771 = vpop.f32.mrb[0].mxu0
        %7772 = vmatprep.mubr.f32.mxu0 0.0
        %7773 = vmatmul.mubr.f32.gmra.mrb[0].mxu0 %v7691
        %v7774 = vpop.f32.mrb[0].mxu0
        %v7775 = vadd.f32 %v7679, %v7774
        %v7776 = vpop.f32.mrb[0].mxu0
        %7777 = vdwg.mxu0
        %vm7778 = vcmp.gt.f32.partialorder %v7760, 0.0
        %vm7779 = vcmp.gt.f32.partialorder %v7765, 0.0
        %vm7780 = vcmp.gt.f32.partialorder %v7770, 0.0
        %vm7781 = vcmp.gt.f32.partialorder %v7775, 0.0
        %v7782 = vmin.f32 %v7760, 0.0
        %v7783 = vmin.f32 %v7765, 0.0
        %v7784 = vmin.f32 %v7770, 0.0
        %v7785 = vmin.f32 %v7775, 0.0
        %v7786 = vmul.f32 %v7782, 1.442695
        %v7787 = vpow.pop %v7786
        %v7788 = vmul.f32 %v7783, 1.442695
        %v7789 = vpow.pop %v7788
        %v7790 = vmul.f32 %v7784, 1.442695
        %v7791 = vpow.pop %v7790
        %v7792 = vmul.f32 %v7785, 1.442695
        %v7793 = vpow.pop %v7792
        %v7794 = vsub.f32 %v7787, 1.0
        %v7795 = vsub.f32 %v7789, 1.0
        %v7796 = vsub.f32 %v7791, 1.0
        %v7797 = vsub.f32 %v7793, 1.0
        %v7798 = vsel %vm7778, %v7760, %v7794
        %v7799 = vsel %vm7779, %v7765, %v7795
        %v7800 = vsel %vm7780, %v7770, %v7796
        %v7801 = vsel %vm7781, %v7775, %v7797
        %v7802 = vlaneseq
        %v7803 = vshrl.u32 %v7802, 7
        %v7804 = vsub.s32 0, %v7803
        %v7805 = vrot.slane %v7517, %v7804
        %v7807 = vsel %vm1707, %v7798, 0
        %v7810 = vsel %vm1707, %v7799, 0
        %v7813 = vsel %vm1707, %v7800, 0
        %v7816 = vsel %vm1707, %v7801, 0
        %7818 = vmatprep.subr.mxu0 0.0
        %7819 = vmatpush1.msra.mxu0 %v7515
        %7820 = vmatprep.subr.mxu0 0.0
        %7821 = vmatpush1.msra.mxu0 %v7516
        %7822 = vmatprep.subr.mxu0 0.0
        %7823 = vmatpush1.msra.mxu0 0.0
        %7824 = vmatprep.subr.mxu0 0.0
        %7825 = vmatpush1.msra.mxu0 0.0
        %7826 = vmatprep.subr.mxu0 0.0
        %7827 = vmatpush1.msra.mxu0 0.0
        %7828 = vmatprep.subr.mxu0 0.0
        %7829 = vmatpush1.msra.mxu0 0.0
        %7830 = vmatprep.subr.mxu0 0.0
        %7831 = vmatpush1.msra.mxu0 0.0
        %7832 = vmatprep.subr.mxu0 0.0
        %7833 = vmatpush1.msra.mxu0 0.0
        %7834 = vmatprep.subr.mxu0 0.0
        %7835 = vmatpush1.msra.mxu0 0.0
        %7836 = vmatprep.subr.mxu0 0.0
        %7837 = vmatpush1.msra.mxu0 0.0
        %7838 = vmatprep.subr.mxu0 0.0
        %7839 = vmatpush1.msra.mxu0 0.0
        %7840 = vmatprep.subr.mxu0 0.0
        %7841 = vmatpush1.msra.mxu0 0.0
        %7842 = vmatprep.subr.mxu0 0.0
        %7843 = vmatpush1.msra.mxu0 0.0
        %7844 = vmatprep.subr.mxu0 0.0
        %7845 = vmatpush1.msra.mxu0 0.0
        %7846 = vmatprep.subr.mxu0 0.0
        %7847 = vmatpush1.msra.mxu0 0.0
        %7848 = vmatprep.subr.mxu0 0.0
        %7849 = vmatpush1.msra.mxu0 0.0
        %7850 = vmatprep.subr.mxu0 0.0
        %7851 = vmatpush1.msra.mxu0 0.0
        %7852 = vmatprep.subr.mxu0 0.0
        %7853 = vmatpush1.msra.mxu0 0.0
        %7854 = vmatprep.subr.mxu0 0.0
        %7855 = vmatpush1.msra.mxu0 0.0
        %7856 = vmatprep.subr.mxu0 0.0
        %7857 = vmatpush1.msra.mxu0 0.0
        %7858 = vmatprep.subr.mxu0 0.0
        %7859 = vmatpush1.msra.mxu0 0.0
        %7860 = vmatprep.subr.mxu0 0.0
        %7861 = vmatpush1.msra.mxu0 0.0
        %7862 = vmatprep.subr.mxu0 0.0
        %7863 = vmatpush1.msra.mxu0 0.0
        %7864 = vmatprep.subr.mxu0 0.0
        %7865 = vmatpush1.msra.mxu0 0.0
        %7866 = vmatprep.subr.mxu0 0.0
        %7867 = vmatpush1.msra.mxu0 0.0
        %7868 = vmatprep.subr.mxu0 0.0
        %7869 = vmatpush1.msra.mxu0 0.0
        %7870 = vmatprep.subr.mxu0 0.0
        %7871 = vmatpush1.msra.mxu0 0.0
        %7872 = vmatprep.subr.mxu0 0.0
        %7873 = vmatpush1.msra.mxu0 0.0
        %7874 = vmatprep.subr.mxu0 0.0
        %7875 = vmatpush1.msra.mxu0 0.0
        %7876 = vmatprep.subr.mxu0 0.0
        %7877 = vmatpush1.msra.mxu0 0.0
        %7878 = vmatprep.subr.mxu0 0.0
        %7879 = vmatpush1.msra.mxu0 0.0
        %7880 = vmatprep.subr.mxu0 0.0
        %7881 = vmatpush1.msra.mxu0 0.0
        %7882 = vmatprep.mubr.f32.mxu0 0.0
        %7883 = vmatmul.mubr.f32.gmra.mrb[0].mxu0 %v7807
        %v7884 = vpop.f32.mrb[0].mxu0
        %v7885 = vadd.f32 %v7805, %v7884
        %v7886 = vpop.f32.mrb[0].mxu0
        %7887 = vmatprep.mubr.f32.mxu0 0.0
        %7888 = vmatmul.mubr.f32.gmra.mrb[0].mxu0 %v7810
        %v7889 = vpop.f32.mrb[0].mxu0
        %v7890 = vadd.f32 %v7805, %v7889
        %v7891 = vpop.f32.mrb[0].mxu0
        %7892 = vmatprep.mubr.f32.mxu0 0.0
        %7893 = vmatmul.mubr.f32.gmra.mrb[0].mxu0 %v7813
        %v7894 = vpop.f32.mrb[0].mxu0
        %v7895 = vadd.f32 %v7805, %v7894
        %v7896 = vpop.f32.mrb[0].mxu0
        %7897 = vmatprep.mubr.f32.mxu0 0.0
        %7898 = vmatmul.mubr.f32.gmra.mrb[0].mxu0 %v7816
        %v7899 = vpop.f32.mrb[0].mxu0
        %v7900 = vadd.f32 %v7805, %v7899
        %v7901 = vpop.f32.mrb[0].mxu0
        %7902 = vdwg.mxu0
        %vm7903 = vcmp.gt.f32.partialorder %v7885, 0.0
        %vm7904 = vcmp.gt.f32.partialorder %v7890, 0.0
        %vm7905 = vcmp.gt.f32.partialorder %v7895, 0.0
        %vm7906 = vcmp.gt.f32.partialorder %v7900, 0.0
        %v7907 = vmin.f32 %v7885, 0.0
        %v7908 = vmin.f32 %v7890, 0.0
        %v7909 = vmin.f32 %v7895, 0.0
        %v7910 = vmin.f32 %v7900, 0.0
        %v7911 = vmul.f32 %v7907, 1.442695
        %v7912 = vpow.pop %v7911
        %v7913 = vmul.f32 %v7908, 1.442695
        %v7914 = vpow.pop %v7913
        %v7915 = vmul.f32 %v7909, 1.442695
        %v7916 = vpow.pop %v7915
        %v7917 = vmul.f32 %v7910, 1.442695
        %v7918 = vpow.pop %v7917
        %v7919 = vsub.f32 %v7912, 1.0
        %v7920 = vsub.f32 %v7914, 1.0
        %v7921 = vsub.f32 %v7916, 1.0
        %v7922 = vsub.f32 %v7918, 1.0
        %v7923 = vsel %vm7903, %v7885, %v7919
        %v7924 = vsel %vm7904, %v7890, %v7920
        %v7925 = vsel %vm7905, %v7895, %v7921
        %v7926 = vsel %vm7906, %v7900, %v7922
        %v7927 = vadd.f32 %v7496, %v7923
        %v7928 = vadd.f32 %v7497, %v7924
        %v7929 = vadd.f32 %v7498, %v7925
        %v7930 = vadd.f32 %v7499, %v7926
        %v7931 = vld [vmem:[%s1 + $0x1d0] sm:$0xff]
        %v7932 = vld [vmem:[%s1 + $0x1d8] sm:$0xff]
        %v7933 = vld [vmem:[%s1 + $0x1e0] sm:$0xff]
        %v7934 = vld [vmem:[%s1 + $0x1e8] sm:$0xff]
        %v7935 = vld [vmem:[%s1 + $0x1f0] sm:$0xff]
        %v7936 = vld [vmem:[%s1 + $0x1f8] sm:$0xff]
        %v7937 = vld [vmem:[%s1 + $0x200] sm:$0xff]
        %v7938 = vld [vmem:[%s1 + $0x208] sm:$0xff]
        %v7939 = vld [vmem:[%s1 + $0x210] sm:$0xff]
        %v7940 = vld [vmem:[%s1 + $0x218] sm:$0xff]
        %v7941 = vld [vmem:[%s1 + $0x220] sm:$0xff]
        %v7942 = vld [vmem:[%s1 + $0x228] sm:$0xff]
        %v7943 = vld [vmem:[%s1 + $0x230] sm:$0xff]
        %v7944 = vld [vmem:[%s1 + $0x238] sm:$0xff]
        %v7945 = vld [vmem:[%s2 + $0x18] sm:$0x1]
        %v7946 = vld [vmem:[%s1 + $0x240] sm:$0xff]
        %v7947 = vld [vmem:[%s1 + $0x248] sm:$0xff]
        %v7948 = vld [vmem:[%s2 + $0x19] sm:$0x1]
        %7949 = vst.msk [vmem:[#allocation2] sm:$0xff] %vm1707, 0.0
        %vm7950 = vcmask 122880
        %7951 = vst.msk [vmem:[#allocation2 + $0x8] sm:$0x1] %vm7950, 0.0
        %7952 = vst.msk [vmem:[#allocation2 + $0x9] sm:$0xff] %vm1707, %v7927
        %7953 = vst.msk [vmem:[#allocation2 + $0x11] sm:$0xff] %vm1707, %v7928
        %7954 = vst.msk [vmem:[#allocation2 + $0x19] sm:$0xff] %vm1707, %v7929
        %7955 = vst.msk [vmem:[#allocation2 + $0x21] sm:$0xff] %vm1707, %v7930
        %7956 = vst.msk [vmem:[#allocation2 + $0x29] sm:$0xff] %vm1707, 0.0
        %7957 = vst.msk [vmem:[#allocation2 + $0x31] sm:$0x1] %vm7950, 0.0
        %v7958 = vld [vmem:[#allocation2] sm:$0xff]
        %v7959 = vld [vmem:[#allocation2 + $0x8] sm:$0xff]
        %v7960 = vld [vmem:[#allocation2 + $0x10] sm:$0xff]
        %v7961 = vld [vmem:[#allocation2 + $0x18] sm:$0xff]
        %v7962 = vld [vmem:[#allocation2 + $0x3] sm:$0xff]
        %v7963 = vld [vmem:[#allocation2 + $0xb] sm:$0xff]
        %v7964 = vld [vmem:[#allocation2 + $0x13] sm:$0xff]
        %v7965 = vld [vmem:[#allocation2 + $0x1b] sm:$0xff]
        %v7966 = vld [vmem:[#allocation2 + $0x6] sm:$0xff]
        %v7967 = vld [vmem:[#allocation2 + $0xe] sm:$0xff]
        %v7968 = vld [vmem:[#allocation2 + $0x16] sm:$0xff]
        %v7969 = vld [vmem:[#allocation2 + $0x1e] sm:$0xff]
        %v7970 = vld [vmem:[#allocation2 + $0x9] sm:$0xff]
        %v7971 = vld [vmem:[#allocation2 + $0x11] sm:$0xff]
        %v7972 = vld [vmem:[#allocation2 + $0x19] sm:$0xff]
        %v7973 = vld [vmem:[#allocation2 + $0x21] sm:$0xff]
        %v7974 = vld [vmem:[#allocation2 + $0xc] sm:$0xff]
        %v7975 = vld [vmem:[#allocation2 + $0x14] sm:$0xff]
        %v7976 = vld [vmem:[#allocation2 + $0x1c] sm:$0xff]
        %v7977 = vld [vmem:[#allocation2 + $0x24] sm:$0xff]
        %v7978 = vld [vmem:[#allocation2 + $0xf] sm:$0xff]
        %v7979 = vld [vmem:[#allocation2 + $0x17] sm:$0xff]
        %v7980 = vld [vmem:[#allocation2 + $0x1f] sm:$0xff]
        %v7981 = vld [vmem:[#allocation2 + $0x27] sm:$0xff]
        %v7982 = vld [vmem:[#allocation2 + $0x12] sm:$0xff]
        %v7983 = vld [vmem:[#allocation2 + $0x1a] sm:$0xff]
        %v7984 = vld [vmem:[#allocation2 + $0x22] sm:$0xff]
        %v7985 = vld [vmem:[#allocation2 + $0x2a] sm:$0xff]
        %7990 = vrot.lane.b32.xlu0 %v7962, 16
        %v7991 = vpop.permute.xlu0 %7990
        %7992 = vrot.lane.b32.xlu0 %v7963, 16
        %v7993 = vpop.permute.xlu0 %7992
        %7994 = vrot.lane.b32.xlu0 %v7964, 16
        %v7995 = vpop.permute.xlu0 %7994
        %7996 = vrot.lane.b32.xlu0 %v7965, 16
        %v7997 = vpop.permute.xlu0 %7996
        %8006 = vrot.lane.b32.xlu0 %v7966, 32
        %v8007 = vpop.permute.xlu0 %8006
        %8008 = vrot.lane.b32.xlu0 %v7967, 32
        %v8009 = vpop.permute.xlu0 %8008
        %8010 = vrot.lane.b32.xlu0 %v7968, 32
        %v8011 = vpop.permute.xlu0 %8010
        %8012 = vrot.lane.b32.xlu0 %v7969, 32
        %v8013 = vpop.permute.xlu0 %8012
        %8022 = vrot.lane.b32.xlu0 %v7970, 48
        %v8023 = vpop.permute.xlu0 %8022
        %8024 = vrot.lane.b32.xlu0 %v7971, 48
        %v8025 = vpop.permute.xlu0 %8024
        %8026 = vrot.lane.b32.xlu0 %v7972, 48
        %v8027 = vpop.permute.xlu0 %8026
        %8028 = vrot.lane.b32.xlu0 %v7973, 48
        %v8029 = vpop.permute.xlu0 %8028
        %8038 = vrot.lane.b32.xlu0 %v7974, 64
        %v8039 = vpop.permute.xlu0 %8038
        %8040 = vrot.lane.b32.xlu0 %v7975, 64
        %v8041 = vpop.permute.xlu0 %8040
        %8042 = vrot.lane.b32.xlu0 %v7976, 64
        %v8043 = vpop.permute.xlu0 %8042
        %8044 = vrot.lane.b32.xlu0 %v7977, 64
        %v8045 = vpop.permute.xlu0 %8044
        %8054 = vrot.lane.b32.xlu0 %v7978, 80
        %v8055 = vpop.permute.xlu0 %8054
        %8056 = vrot.lane.b32.xlu0 %v7979, 80
        %v8057 = vpop.permute.xlu0 %8056
        %8058 = vrot.lane.b32.xlu0 %v7980, 80
        %v8059 = vpop.permute.xlu0 %8058
        %8060 = vrot.lane.b32.xlu0 %v7981, 80
        %v8061 = vpop.permute.xlu0 %8060
        %8070 = vrot.lane.b32.xlu0 %v7982, 96
        %v8071 = vpop.permute.xlu0 %8070
        %8072 = vrot.lane.b32.xlu0 %v7983, 96
        %v8073 = vpop.permute.xlu0 %8072
        %8074 = vrot.lane.b32.xlu0 %v7984, 96
        %v8075 = vpop.permute.xlu0 %8074
        %8076 = vrot.lane.b32.xlu0 %v7985, 96
        %v8077 = vpop.permute.xlu0 %8076
        %v8082 = vsel %vm1707, %v7958, %v7991
        %v8083 = vsel %vm1707, %v7959, %v7993
        %v8084 = vsel %vm1707, %v7960, %v7995
        %v8085 = vsel %vm1707, %v7961, %v7997
        %v8086 = vsel %vm5505, %v8082, %v8007
        %v8087 = vsel %vm5505, %v8083, %v8009
        %v8088 = vsel %vm5505, %v8084, %v8011
        %v8089 = vsel %vm5505, %v8085, %v8013
        %v8090 = vsel %vm5523, %v8086, %v8023
        %v8091 = vsel %vm5523, %v8087, %v8025
        %v8092 = vsel %vm5523, %v8088, %v8027
        %v8093 = vsel %vm5523, %v8089, %v8029
        %v8094 = vsel %vm7661, %v8090, %v8039
        %v8095 = vsel %vm7661, %v8091, %v8041
        %v8096 = vsel %vm7661, %v8092, %v8043
        %v8097 = vsel %vm7661, %v8093, %v8045
        %v8098 = vsel %vm7666, %v8094, %v8055
        %v8099 = vsel %vm7666, %v8095, %v8057
        %v8100 = vsel %vm7666, %v8096, %v8059
        %v8101 = vsel %vm7666, %v8097, %v8061
        %v8102 = vsel %vm7671, %v8098, %v8071
        %v8103 = vsel %vm7671, %v8099, %v8073
        %v8104 = vsel %vm7671, %v8100, %v8075
        %v8105 = vsel %vm7671, %v8101, %v8077
        %v8106 = vlaneseq
        %v8107 = vshrl.u32 %v8106, 7
        %v8108 = vsub.s32 0, %v8107
        %v8109 = vrot.slane %v7945, %v8108
        %v8111 = vsel %vm7680, %v8102, 0
        %v8114 = vsel %vm7680, %v8103, 0
        %v8117 = vsel %vm7680, %v8104, 0
        %v8120 = vsel %vm7680, %v8105, 0
        %8122 = vmatprep.subr.mxu0 0.0
        %8123 = vmatpush1.msra.mxu0 %v7931
        %8124 = vmatprep.subr.mxu0 0.0
        %8125 = vmatpush1.msra.mxu0 %v7932
        %8126 = vmatprep.subr.mxu0 0.0
        %8127 = vmatpush1.msra.mxu0 %v7933
        %8128 = vmatprep.subr.mxu0 0.0
        %8129 = vmatpush1.msra.mxu0 %v7934
        %8130 = vmatprep.subr.mxu0 0.0
        %8131 = vmatpush1.msra.mxu0 %v7935
        %8132 = vmatprep.subr.mxu0 0.0
        %8133 = vmatpush1.msra.mxu0 %v7936
        %8134 = vmatprep.subr.mxu0 0.0
        %8135 = vmatpush1.msra.mxu0 %v7937
        %8136 = vmatprep.subr.mxu0 0.0
        %8137 = vmatpush1.msra.mxu0 %v7938
        %8138 = vmatprep.subr.mxu0 0.0
        %8139 = vmatpush1.msra.mxu0 %v7939
        %8140 = vmatprep.subr.mxu0 0.0
        %8141 = vmatpush1.msra.mxu0 %v7940
        %8142 = vmatprep.subr.mxu0 0.0
        %8143 = vmatpush1.msra.mxu0 %v7941
        %8144 = vmatprep.subr.mxu0 0.0
        %8145 = vmatpush1.msra.mxu0 %v7942
        %8146 = vmatprep.subr.mxu0 0.0
        %8147 = vmatpush1.msra.mxu0 %v7943
        %8148 = vmatprep.subr.mxu0 0.0
        %8149 = vmatpush1.msra.mxu0 %v7944
        %8150 = vmatprep.subr.mxu0 0.0
        %8151 = vmatpush1.msra.mxu0 0.0
        %8152 = vmatprep.subr.mxu0 0.0
        %8153 = vmatpush1.msra.mxu0 0.0
        %8154 = vmatprep.subr.mxu0 0.0
        %8155 = vmatpush1.msra.mxu0 0.0
        %8156 = vmatprep.subr.mxu0 0.0
        %8157 = vmatpush1.msra.mxu0 0.0
        %8158 = vmatprep.subr.mxu0 0.0
        %8159 = vmatpush1.msra.mxu0 0.0
        %8160 = vmatprep.subr.mxu0 0.0
        %8161 = vmatpush1.msra.mxu0 0.0
        %8162 = vmatprep.subr.mxu0 0.0
        %8163 = vmatpush1.msra.mxu0 0.0
        %8164 = vmatprep.subr.mxu0 0.0
        %8165 = vmatpush1.msra.mxu0 0.0
        %8166 = vmatprep.subr.mxu0 0.0
        %8167 = vmatpush1.msra.mxu0 0.0
        %8168 = vmatprep.subr.mxu0 0.0
        %8169 = vmatpush1.msra.mxu0 0.0
        %8170 = vmatprep.subr.mxu0 0.0
        %8171 = vmatpush1.msra.mxu0 0.0
        %8172 = vmatprep.subr.mxu0 0.0
        %8173 = vmatpush1.msra.mxu0 0.0
        %8174 = vmatprep.subr.mxu0 0.0
        %8175 = vmatpush1.msra.mxu0 0.0
        %8176 = vmatprep.subr.mxu0 0.0
        %8177 = vmatpush1.msra.mxu0 0.0
        %8178 = vmatprep.subr.mxu0 0.0
        %8179 = vmatpush1.msra.mxu0 0.0
        %8180 = vmatprep.subr.mxu0 0.0
        %8181 = vmatpush1.msra.mxu0 0.0
        %8182 = vmatprep.subr.mxu0 0.0
        %8183 = vmatpush1.msra.mxu0 0.0
        %8184 = vmatprep.subr.mxu0 0.0
        %8185 = vmatpush1.msra.mxu0 0.0
        %8186 = vmatprep.mubr.f32.mxu0 0.0
        %8187 = vmatmul.mubr.f32.gmra.mrb[0].mxu0 %v8111
        %v8188 = vpop.f32.mrb[0].mxu0
        %v8189 = vadd.f32 %v8109, %v8188
        %v8190 = vpop.f32.mrb[0].mxu0
        %8191 = vmatprep.mubr.f32.mxu0 0.0
        %8192 = vmatmul.mubr.f32.gmra.mrb[0].mxu0 %v8114
        %v8193 = vpop.f32.mrb[0].mxu0
        %v8194 = vadd.f32 %v8109, %v8193
        %v8195 = vpop.f32.mrb[0].mxu0
        %8196 = vmatprep.mubr.f32.mxu0 0.0
        %8197 = vmatmul.mubr.f32.gmra.mrb[0].mxu0 %v8117
        %v8198 = vpop.f32.mrb[0].mxu0
        %v8199 = vadd.f32 %v8109, %v8198
        %v8200 = vpop.f32.mrb[0].mxu0
        %8201 = vmatprep.mubr.f32.mxu0 0.0
        %8202 = vmatmul.mubr.f32.gmra.mrb[0].mxu0 %v8120
        %v8203 = vpop.f32.mrb[0].mxu0
        %v8204 = vadd.f32 %v8109, %v8203
        %v8205 = vpop.f32.mrb[0].mxu0
        %8206 = vdwg.mxu0
        %vm8207 = vcmp.gt.f32.partialorder %v8189, 0.0
        %vm8208 = vcmp.gt.f32.partialorder %v8194, 0.0
        %vm8209 = vcmp.gt.f32.partialorder %v8199, 0.0
        %vm8210 = vcmp.gt.f32.partialorder %v8204, 0.0
        %v8211 = vmin.f32 %v8189, 0.0
        %v8212 = vmin.f32 %v8194, 0.0
        %v8213 = vmin.f32 %v8199, 0.0
        %v8214 = vmin.f32 %v8204, 0.0
        %v8215 = vmul.f32 %v8211, 1.442695
        %v8216 = vpow.pop %v8215
        %v8217 = vmul.f32 %v8212, 1.442695
        %v8218 = vpow.pop %v8217
        %v8219 = vmul.f32 %v8213, 1.442695
        %v8220 = vpow.pop %v8219
        %v8221 = vmul.f32 %v8214, 1.442695
        %v8222 = vpow.pop %v8221
        %v8223 = vsub.f32 %v8216, 1.0
        %v8224 = vsub.f32 %v8218, 1.0
        %v8225 = vsub.f32 %v8220, 1.0
        %v8226 = vsub.f32 %v8222, 1.0
        %v8227 = vsel %vm8207, %v8189, %v8223
        %v8228 = vsel %vm8208, %v8194, %v8224
        %v8229 = vsel %vm8209, %v8199, %v8225
        %v8230 = vsel %vm8210, %v8204, %v8226
        %v8231 = vlaneseq
        %v8232 = vshrl.u32 %v8231, 7
        %v8233 = vsub.s32 0, %v8232
        %v8234 = vrot.slane %v7948, %v8233
        %v8236 = vsel %vm1707, %v8227, 0
        %v8239 = vsel %vm1707, %v8228, 0
        %v8242 = vsel %vm1707, %v8229, 0
        %v8245 = vsel %vm1707, %v8230, 0
        %8247 = vmatprep.subr.mxu0 0.0
        %8248 = vmatpush1.msra.mxu0 %v7946
        %8249 = vmatprep.subr.mxu0 0.0
        %8250 = vmatpush1.msra.mxu0 %v7947
        %8251 = vmatprep.subr.mxu0 0.0
        %8252 = vmatpush1.msra.mxu0 0.0
        %8253 = vmatprep.subr.mxu0 0.0
        %8254 = vmatpush1.msra.mxu0 0.0
        %8255 = vmatprep.subr.mxu0 0.0
        %8256 = vmatpush1.msra.mxu0 0.0
        %8257 = vmatprep.subr.mxu0 0.0
        %8258 = vmatpush1.msra.mxu0 0.0
        %8259 = vmatprep.subr.mxu0 0.0
        %8260 = vmatpush1.msra.mxu0 0.0
        %8261 = vmatprep.subr.mxu0 0.0
        %8262 = vmatpush1.msra.mxu0 0.0
        %8263 = vmatprep.subr.mxu0 0.0
        %8264 = vmatpush1.msra.mxu0 0.0
        %8265 = vmatprep.subr.mxu0 0.0
        %8266 = vmatpush1.msra.mxu0 0.0
        %8267 = vmatprep.subr.mxu0 0.0
        %8268 = vmatpush1.msra.mxu0 0.0
        %8269 = vmatprep.subr.mxu0 0.0
        %8270 = vmatpush1.msra.mxu0 0.0
        %8271 = vmatprep.subr.mxu0 0.0
        %8272 = vmatpush1.msra.mxu0 0.0
        %8273 = vmatprep.subr.mxu0 0.0
        %8274 = vmatpush1.msra.mxu0 0.0
        %8275 = vmatprep.subr.mxu0 0.0
        %8276 = vmatpush1.msra.mxu0 0.0
        %8277 = vmatprep.subr.mxu0 0.0
        %8278 = vmatpush1.msra.mxu0 0.0
        %8279 = vmatprep.subr.mxu0 0.0
        %8280 = vmatpush1.msra.mxu0 0.0
        %8281 = vmatprep.subr.mxu0 0.0
        %8282 = vmatpush1.msra.mxu0 0.0
        %8283 = vmatprep.subr.mxu0 0.0
        %8284 = vmatpush1.msra.mxu0 0.0
        %8285 = vmatprep.subr.mxu0 0.0
        %8286 = vmatpush1.msra.mxu0 0.0
        %8287 = vmatprep.subr.mxu0 0.0
        %8288 = vmatpush1.msra.mxu0 0.0
        %8289 = vmatprep.subr.mxu0 0.0
        %8290 = vmatpush1.msra.mxu0 0.0
        %8291 = vmatprep.subr.mxu0 0.0
        %8292 = vmatpush1.msra.mxu0 0.0
        %8293 = vmatprep.subr.mxu0 0.0
        %8294 = vmatpush1.msra.mxu0 0.0
        %8295 = vmatprep.subr.mxu0 0.0
        %8296 = vmatpush1.msra.mxu0 0.0
        %8297 = vmatprep.subr.mxu0 0.0
        %8298 = vmatpush1.msra.mxu0 0.0
        %8299 = vmatprep.subr.mxu0 0.0
        %8300 = vmatpush1.msra.mxu0 0.0
        %8301 = vmatprep.subr.mxu0 0.0
        %8302 = vmatpush1.msra.mxu0 0.0
        %8303 = vmatprep.subr.mxu0 0.0
        %8304 = vmatpush1.msra.mxu0 0.0
        %8305 = vmatprep.subr.mxu0 0.0
        %8306 = vmatpush1.msra.mxu0 0.0
        %8307 = vmatprep.subr.mxu0 0.0
        %8308 = vmatpush1.msra.mxu0 0.0
        %8309 = vmatprep.subr.mxu0 0.0
        %8310 = vmatpush1.msra.mxu0 0.0
        %8311 = vmatprep.mubr.f32.mxu0 0.0
        %8312 = vmatmul.mubr.f32.gmra.mrb[0].mxu0 %v8236
        %v8313 = vpop.f32.mrb[0].mxu0
        %v8314 = vadd.f32 %v8234, %v8313
        %v8315 = vpop.f32.mrb[0].mxu0
        %8316 = vmatprep.mubr.f32.mxu0 0.0
        %8317 = vmatmul.mubr.f32.gmra.mrb[0].mxu0 %v8239
        %v8318 = vpop.f32.mrb[0].mxu0
        %v8319 = vadd.f32 %v8234, %v8318
        %v8320 = vpop.f32.mrb[0].mxu0
        %8321 = vmatprep.mubr.f32.mxu0 0.0
        %8322 = vmatmul.mubr.f32.gmra.mrb[0].mxu0 %v8242
        %v8323 = vpop.f32.mrb[0].mxu0
        %v8324 = vadd.f32 %v8234, %v8323
        %v8325 = vpop.f32.mrb[0].mxu0
        %8326 = vmatprep.mubr.f32.mxu0 0.0
        %8327 = vmatmul.mubr.f32.gmra.mrb[0].mxu0 %v8245
        %v8328 = vpop.f32.mrb[0].mxu0
        %v8329 = vadd.f32 %v8234, %v8328
        %v8330 = vpop.f32.mrb[0].mxu0
        %8331 = vdwg.mxu0
        %vm8332 = vcmp.gt.f32.partialorder %v8314, 0.0
        %vm8333 = vcmp.gt.f32.partialorder %v8319, 0.0
        %vm8334 = vcmp.gt.f32.partialorder %v8324, 0.0
        %vm8335 = vcmp.gt.f32.partialorder %v8329, 0.0
        %v8336 = vmin.f32 %v8314, 0.0
        %v8337 = vmin.f32 %v8319, 0.0
        %v8338 = vmin.f32 %v8324, 0.0
        %v8339 = vmin.f32 %v8329, 0.0
        %v8340 = vmul.f32 %v8336, 1.442695
        %v8341 = vpow.pop %v8340
        %v8342 = vmul.f32 %v8337, 1.442695
        %v8343 = vpow.pop %v8342
        %v8344 = vmul.f32 %v8338, 1.442695
        %v8345 = vpow.pop %v8344
        %v8346 = vmul.f32 %v8339, 1.442695
        %v8347 = vpow.pop %v8346
        %v8348 = vsub.f32 %v8341, 1.0
        %v8349 = vsub.f32 %v8343, 1.0
        %v8350 = vsub.f32 %v8345, 1.0
        %v8351 = vsub.f32 %v8347, 1.0
        %v8352 = vsel %vm8332, %v8314, %v8348
        %v8353 = vsel %vm8333, %v8319, %v8349
        %v8354 = vsel %vm8334, %v8324, %v8350
        %v8355 = vsel %vm8335, %v8329, %v8351
        %v8356 = vadd.f32 %v7927, %v8352
        %v8357 = vadd.f32 %v7928, %v8353
        %v8358 = vadd.f32 %v7929, %v8354
        %v8359 = vadd.f32 %v7930, %v8355
        %v8360 = vld [vmem:[%s1 + $0x250] sm:$0xff]
        %v8361 = vld [vmem:[%s1 + $0x258] sm:$0xff]
        %v8362 = vld [vmem:[%s1 + $0x260] sm:$0xff]
        %v8363 = vld [vmem:[%s1 + $0x268] sm:$0xff]
        %v8364 = vld [vmem:[%s1 + $0x270] sm:$0xff]
        %v8365 = vld [vmem:[%s1 + $0x278] sm:$0xff]
        %v8366 = vld [vmem:[%s1 + $0x280] sm:$0xff]
        %v8367 = vld [vmem:[%s1 + $0x288] sm:$0xff]
        %v8368 = vld [vmem:[%s1 + $0x290] sm:$0xff]
        %v8369 = vld [vmem:[%s1 + $0x298] sm:$0xff]
        %v8370 = vld [vmem:[%s1 + $0x2a0] sm:$0xff]
        %v8371 = vld [vmem:[%s1 + $0x2a8] sm:$0xff]
        %v8372 = vld [vmem:[%s1 + $0x2b0] sm:$0xff]
        %v8373 = vld [vmem:[%s1 + $0x2b8] sm:$0xff]
        %v8374 = vld [vmem:[%s2 + $0x1a] sm:$0x1]
        %v8375 = vld [vmem:[%s1 + $0x2c0] sm:$0xff]
        %v8376 = vld [vmem:[%s1 + $0x2c8] sm:$0xff]
        %v8377 = vld [vmem:[%s2 + $0x1b] sm:$0x1]
        %8378 = vst.msk [vmem:[#allocation2] sm:$0xff] %vm1707, 0.0
        %8379 = vst.msk [vmem:[#allocation2 + $0x8] sm:$0xff] %vm1707, 0.0
        %8380 = vst.msk [vmem:[#allocation2 + $0x10] sm:$0xff] %vm1707, 0.0
        %8381 = vst.msk [vmem:[#allocation2 + $0x18] sm:$0x7] %vm7518, 0.0
        %8382 = vst.msk [vmem:[#allocation2 + $0x1b] sm:$0xff] %vm1707, %v8356
        %8383 = vst.msk [vmem:[#allocation2 + $0x23] sm:$0xff] %vm1707, %v8357
        %8384 = vst.msk [vmem:[#allocation2 + $0x2b] sm:$0xff] %vm1707, %v8358
        %8385 = vst.msk [vmem:[#allocation2 + $0x33] sm:$0xff] %vm1707, %v8359
        %8386 = vst.msk [vmem:[#allocation2 + $0x3b] sm:$0xff] %vm1707, 0.0
        %8387 = vst.msk [vmem:[#allocation2 + $0x43] sm:$0xff] %vm1707, 0.0
        %8388 = vst.msk [vmem:[#allocation2 + $0x4b] sm:$0xff] %vm1707, 0.0
        %8389 = vst.msk [vmem:[#allocation2 + $0x53] sm:$0x7] %vm7518, 0.0
        %v8390 = vld [vmem:[#allocation2] sm:$0xff]
        %v8391 = vld [vmem:[#allocation2 + $0x8] sm:$0xff]
        %v8392 = vld [vmem:[#allocation2 + $0x10] sm:$0xff]
        %v8393 = vld [vmem:[#allocation2 + $0x18] sm:$0xff]
        %v8394 = vld [vmem:[#allocation2 + $0x9] sm:$0xff]
        %v8395 = vld [vmem:[#allocation2 + $0x11] sm:$0xff]
        %v8396 = vld [vmem:[#allocation2 + $0x19] sm:$0xff]
        %v8397 = vld [vmem:[#allocation2 + $0x21] sm:$0xff]
        %v8398 = vld [vmem:[#allocation2 + $0x12] sm:$0xff]
        %v8399 = vld [vmem:[#allocation2 + $0x1a] sm:$0xff]
        %v8400 = vld [vmem:[#allocation2 + $0x22] sm:$0xff]
        %v8401 = vld [vmem:[#allocation2 + $0x2a] sm:$0xff]
        %v8402 = vld [vmem:[#allocation2 + $0x1b] sm:$0xff]
        %v8403 = vld [vmem:[#allocation2 + $0x23] sm:$0xff]
        %v8404 = vld [vmem:[#allocation2 + $0x2b] sm:$0xff]
        %v8405 = vld [vmem:[#allocation2 + $0x33] sm:$0xff]
        %v8406 = vld [vmem:[#allocation2 + $0x24] sm:$0xff]
        %v8407 = vld [vmem:[#allocation2 + $0x2c] sm:$0xff]
        %v8408 = vld [vmem:[#allocation2 + $0x34] sm:$0xff]
        %v8409 = vld [vmem:[#allocation2 + $0x3c] sm:$0xff]
        %v8410 = vld [vmem:[#allocation2 + $0x2d] sm:$0xff]
        %v8411 = vld [vmem:[#allocation2 + $0x35] sm:$0xff]
        %v8412 = vld [vmem:[#allocation2 + $0x3d] sm:$0xff]
        %v8413 = vld [vmem:[#allocation2 + $0x45] sm:$0xff]
        %v8414 = vld [vmem:[#allocation2 + $0x36] sm:$0xff]
        %v8415 = vld [vmem:[#allocation2 + $0x3e] sm:$0xff]
        %v8416 = vld [vmem:[#allocation2 + $0x46] sm:$0xff]
        %v8417 = vld [vmem:[#allocation2 + $0x4e] sm:$0xff]
        %8422 = vrot.lane.b32.xlu0 %v8394, 16
        %v8423 = vpop.permute.xlu0 %8422
        %8424 = vrot.lane.b32.xlu0 %v8395, 16
        %v8425 = vpop.permute.xlu0 %8424
        %8426 = vrot.lane.b32.xlu0 %v8396, 16
        %v8427 = vpop.permute.xlu0 %8426
        %8428 = vrot.lane.b32.xlu0 %v8397, 16
        %v8429 = vpop.permute.xlu0 %8428
        %8438 = vrot.lane.b32.xlu0 %v8398, 32
        %v8439 = vpop.permute.xlu0 %8438
        %8440 = vrot.lane.b32.xlu0 %v8399, 32
        %v8441 = vpop.permute.xlu0 %8440
        %8442 = vrot.lane.b32.xlu0 %v8400, 32
        %v8443 = vpop.permute.xlu0 %8442
        %8444 = vrot.lane.b32.xlu0 %v8401, 32
        %v8445 = vpop.permute.xlu0 %8444
        %8454 = vrot.lane.b32.xlu0 %v8402, 48
        %v8455 = vpop.permute.xlu0 %8454
        %8456 = vrot.lane.b32.xlu0 %v8403, 48
        %v8457 = vpop.permute.xlu0 %8456
        %8458 = vrot.lane.b32.xlu0 %v8404, 48
        %v8459 = vpop.permute.xlu0 %8458
        %8460 = vrot.lane.b32.xlu0 %v8405, 48
        %v8461 = vpop.permute.xlu0 %8460
        %8470 = vrot.lane.b32.xlu0 %v8406, 64
        %v8471 = vpop.permute.xlu0 %8470
        %8472 = vrot.lane.b32.xlu0 %v8407, 64
        %v8473 = vpop.permute.xlu0 %8472
        %8474 = vrot.lane.b32.xlu0 %v8408, 64
        %v8475 = vpop.permute.xlu0 %8474
        %8476 = vrot.lane.b32.xlu0 %v8409, 64
        %v8477 = vpop.permute.xlu0 %8476
        %8486 = vrot.lane.b32.xlu0 %v8410, 80
        %v8487 = vpop.permute.xlu0 %8486
        %8488 = vrot.lane.b32.xlu0 %v8411, 80
        %v8489 = vpop.permute.xlu0 %8488
        %8490 = vrot.lane.b32.xlu0 %v8412, 80
        %v8491 = vpop.permute.xlu0 %8490
        %8492 = vrot.lane.b32.xlu0 %v8413, 80
        %v8493 = vpop.permute.xlu0 %8492
        %8502 = vrot.lane.b32.xlu0 %v8414, 96
        %v8503 = vpop.permute.xlu0 %8502
        %8504 = vrot.lane.b32.xlu0 %v8415, 96
        %v8505 = vpop.permute.xlu0 %8504
        %8506 = vrot.lane.b32.xlu0 %v8416, 96
        %v8507 = vpop.permute.xlu0 %8506
        %8508 = vrot.lane.b32.xlu0 %v8417, 96
        %v8509 = vpop.permute.xlu0 %8508
        %v8514 = vsel %vm1707, %v8390, %v8423
        %v8515 = vsel %vm1707, %v8391, %v8425
        %v8516 = vsel %vm1707, %v8392, %v8427
        %v8517 = vsel %vm1707, %v8393, %v8429
        %v8518 = vsel %vm5505, %v8514, %v8439
        %v8519 = vsel %vm5505, %v8515, %v8441
        %v8520 = vsel %vm5505, %v8516, %v8443
        %v8521 = vsel %vm5505, %v8517, %v8445
        %v8522 = vsel %vm5523, %v8518, %v8455
        %v8523 = vsel %vm5523, %v8519, %v8457
        %v8524 = vsel %vm5523, %v8520, %v8459
        %v8525 = vsel %vm5523, %v8521, %v8461
        %v8526 = vsel %vm7661, %v8522, %v8471
        %v8527 = vsel %vm7661, %v8523, %v8473
        %v8528 = vsel %vm7661, %v8524, %v8475
        %v8529 = vsel %vm7661, %v8525, %v8477
        %v8530 = vsel %vm7666, %v8526, %v8487
        %v8531 = vsel %vm7666, %v8527, %v8489
        %v8532 = vsel %vm7666, %v8528, %v8491
        %v8533 = vsel %vm7666, %v8529, %v8493
        %v8534 = vsel %vm7671, %v8530, %v8503
        %v8535 = vsel %vm7671, %v8531, %v8505
        %v8536 = vsel %vm7671, %v8532, %v8507
        %v8537 = vsel %vm7671, %v8533, %v8509
        %v8538 = vlaneseq
        %v8539 = vshrl.u32 %v8538, 7
        %v8540 = vsub.s32 0, %v8539
        %v8541 = vrot.slane %v8374, %v8540
        %v8543 = vsel %vm7680, %v8534, 0
        %v8546 = vsel %vm7680, %v8535, 0
        %v8549 = vsel %vm7680, %v8536, 0
        %v8552 = vsel %vm7680, %v8537, 0
        %8554 = vmatprep.subr.mxu0 0.0
        %8555 = vmatpush1.msra.mxu0 %v8360
        %8556 = vmatprep.subr.mxu0 0.0
        %8557 = vmatpush1.msra.mxu0 %v8361
        %8558 = vmatprep.subr.mxu0 0.0
        %8559 = vmatpush1.msra.mxu0 %v8362
        %8560 = vmatprep.subr.mxu0 0.0
        %8561 = vmatpush1.msra.mxu0 %v8363
        %8562 = vmatprep.subr.mxu0 0.0
        %8563 = vmatpush1.msra.mxu0 %v8364
        %8564 = vmatprep.subr.mxu0 0.0
        %8565 = vmatpush1.msra.mxu0 %v8365
        %8566 = vmatprep.subr.mxu0 0.0
        %8567 = vmatpush1.msra.mxu0 %v8366
        %8568 = vmatprep.subr.mxu0 0.0
        %8569 = vmatpush1.msra.mxu0 %v8367
        %8570 = vmatprep.subr.mxu0 0.0
        %8571 = vmatpush1.msra.mxu0 %v8368
        %8572 = vmatprep.subr.mxu0 0.0
        %8573 = vmatpush1.msra.mxu0 %v8369
        %8574 = vmatprep.subr.mxu0 0.0
        %8575 = vmatpush1.msra.mxu0 %v8370
        %8576 = vmatprep.subr.mxu0 0.0
        %8577 = vmatpush1.msra.mxu0 %v8371
        %8578 = vmatprep.subr.mxu0 0.0
        %8579 = vmatpush1.msra.mxu0 %v8372
        %8580 = vmatprep.subr.mxu0 0.0
        %8581 = vmatpush1.msra.mxu0 %v8373
        %8582 = vmatprep.subr.mxu0 0.0
        %8583 = vmatpush1.msra.mxu0 0.0
        %8584 = vmatprep.subr.mxu0 0.0
        %8585 = vmatpush1.msra.mxu0 0.0
        %8586 = vmatprep.subr.mxu0 0.0
        %8587 = vmatpush1.msra.mxu0 0.0
        %8588 = vmatprep.subr.mxu0 0.0
        %8589 = vmatpush1.msra.mxu0 0.0
        %8590 = vmatprep.subr.mxu0 0.0
        %8591 = vmatpush1.msra.mxu0 0.0
        %8592 = vmatprep.subr.mxu0 0.0
        %8593 = vmatpush1.msra.mxu0 0.0
        %8594 = vmatprep.subr.mxu0 0.0
        %8595 = vmatpush1.msra.mxu0 0.0
        %8596 = vmatprep.subr.mxu0 0.0
        %8597 = vmatpush1.msra.mxu0 0.0
        %8598 = vmatprep.subr.mxu0 0.0
        %8599 = vmatpush1.msra.mxu0 0.0
        %8600 = vmatprep.subr.mxu0 0.0
        %8601 = vmatpush1.msra.mxu0 0.0
        %8602 = vmatprep.subr.mxu0 0.0
        %8603 = vmatpush1.msra.mxu0 0.0
        %8604 = vmatprep.subr.mxu0 0.0
        %8605 = vmatpush1.msra.mxu0 0.0
        %8606 = vmatprep.subr.mxu0 0.0
        %8607 = vmatpush1.msra.mxu0 0.0
        %8608 = vmatprep.subr.mxu0 0.0
        %8609 = vmatpush1.msra.mxu0 0.0
        %8610 = vmatprep.subr.mxu0 0.0
        %8611 = vmatpush1.msra.mxu0 0.0
        %8612 = vmatprep.subr.mxu0 0.0
        %8613 = vmatpush1.msra.mxu0 0.0
        %8614 = vmatprep.subr.mxu0 0.0
        %8615 = vmatpush1.msra.mxu0 0.0
        %8616 = vmatprep.subr.mxu0 0.0
        %8617 = vmatpush1.msra.mxu0 0.0
        %8618 = vmatprep.mubr.f32.mxu0 0.0
        %8619 = vmatmul.mubr.f32.gmra.mrb[0].mxu0 %v8543
        %v8620 = vpop.f32.mrb[0].mxu0
        %v8621 = vadd.f32 %v8541, %v8620
        %v8622 = vpop.f32.mrb[0].mxu0
        %8623 = vmatprep.mubr.f32.mxu0 0.0
        %8624 = vmatmul.mubr.f32.gmra.mrb[0].mxu0 %v8546
        %v8625 = vpop.f32.mrb[0].mxu0
        %v8626 = vadd.f32 %v8541, %v8625
        %v8627 = vpop.f32.mrb[0].mxu0
        %8628 = vmatprep.mubr.f32.mxu0 0.0
        %8629 = vmatmul.mubr.f32.gmra.mrb[0].mxu0 %v8549
        %v8630 = vpop.f32.mrb[0].mxu0
        %v8631 = vadd.f32 %v8541, %v8630
        %v8632 = vpop.f32.mrb[0].mxu0
        %8633 = vmatprep.mubr.f32.mxu0 0.0
        %8634 = vmatmul.mubr.f32.gmra.mrb[0].mxu0 %v8552
        %v8635 = vpop.f32.mrb[0].mxu0
        %v8636 = vadd.f32 %v8541, %v8635
        %v8637 = vpop.f32.mrb[0].mxu0
        %8638 = vdwg.mxu0
        %vm8639 = vcmp.gt.f32.partialorder %v8621, 0.0
        %vm8640 = vcmp.gt.f32.partialorder %v8626, 0.0
        %vm8641 = vcmp.gt.f32.partialorder %v8631, 0.0
        %vm8642 = vcmp.gt.f32.partialorder %v8636, 0.0
        %v8643 = vmin.f32 %v8621, 0.0
        %v8644 = vmin.f32 %v8626, 0.0
        %v8645 = vmin.f32 %v8631, 0.0
        %v8646 = vmin.f32 %v8636, 0.0
        %v8647 = vmul.f32 %v8643, 1.442695
        %v8648 = vpow.pop %v8647
        %v8649 = vmul.f32 %v8644, 1.442695
        %v8650 = vpow.pop %v8649
        %v8651 = vmul.f32 %v8645, 1.442695
        %v8652 = vpow.pop %v8651
        %v8653 = vmul.f32 %v8646, 1.442695
        %v8654 = vpow.pop %v8653
        %v8655 = vsub.f32 %v8648, 1.0
        %v8656 = vsub.f32 %v8650, 1.0
        %v8657 = vsub.f32 %v8652, 1.0
        %v8658 = vsub.f32 %v8654, 1.0
        %v8659 = vsel %vm8639, %v8621, %v8655
        %v8660 = vsel %vm8640, %v8626, %v8656
        %v8661 = vsel %vm8641, %v8631, %v8657
        %v8662 = vsel %vm8642, %v8636, %v8658
        %v8663 = vlaneseq
        %v8664 = vshrl.u32 %v8663, 7
        %v8665 = vsub.s32 0, %v8664
        %v8666 = vrot.slane %v8377, %v8665
        %v8668 = vsel %vm1707, %v8659, 0
        %v8671 = vsel %vm1707, %v8660, 0
        %v8674 = vsel %vm1707, %v8661, 0
        %v8677 = vsel %vm1707, %v8662, 0
        %8679 = vmatprep.subr.mxu0 0.0
        %8680 = vmatpush1.msra.mxu0 %v8375
        %8681 = vmatprep.subr.mxu0 0.0
        %8682 = vmatpush1.msra.mxu0 %v8376
        %8683 = vmatprep.subr.mxu0 0.0
        %8684 = vmatpush1.msra.mxu0 0.0
        %8685 = vmatprep.subr.mxu0 0.0
        %8686 = vmatpush1.msra.mxu0 0.0
        %8687 = vmatprep.subr.mxu0 0.0
        %8688 = vmatpush1.msra.mxu0 0.0
        %8689 = vmatprep.subr.mxu0 0.0
        %8690 = vmatpush1.msra.mxu0 0.0
        %8691 = vmatprep.subr.mxu0 0.0
        %8692 = vmatpush1.msra.mxu0 0.0
        %8693 = vmatprep.subr.mxu0 0.0
        %8694 = vmatpush1.msra.mxu0 0.0
        %8695 = vmatprep.subr.mxu0 0.0
        %8696 = vmatpush1.msra.mxu0 0.0
        %8697 = vmatprep.subr.mxu0 0.0
        %8698 = vmatpush1.msra.mxu0 0.0
        %8699 = vmatprep.subr.mxu0 0.0
        %8700 = vmatpush1.msra.mxu0 0.0
        %8701 = vmatprep.subr.mxu0 0.0
        %8702 = vmatpush1.msra.mxu0 0.0
        %8703 = vmatprep.subr.mxu0 0.0
        %8704 = vmatpush1.msra.mxu0 0.0
        %8705 = vmatprep.subr.mxu0 0.0
        %8706 = vmatpush1.msra.mxu0 0.0
        %8707 = vmatprep.subr.mxu0 0.0
        %8708 = vmatpush1.msra.mxu0 0.0
        %8709 = vmatprep.subr.mxu0 0.0
        %8710 = vmatpush1.msra.mxu0 0.0
        %8711 = vmatprep.subr.mxu0 0.0
        %8712 = vmatpush1.msra.mxu0 0.0
        %8713 = vmatprep.subr.mxu0 0.0
        %8714 = vmatpush1.msra.mxu0 0.0
        %8715 = vmatprep.subr.mxu0 0.0
        %8716 = vmatpush1.msra.mxu0 0.0
        %8717 = vmatprep.subr.mxu0 0.0
        %8718 = vmatpush1.msra.mxu0 0.0
        %8719 = vmatprep.subr.mxu0 0.0
        %8720 = vmatpush1.msra.mxu0 0.0
        %8721 = vmatprep.subr.mxu0 0.0
        %8722 = vmatpush1.msra.mxu0 0.0
        %8723 = vmatprep.subr.mxu0 0.0
        %8724 = vmatpush1.msra.mxu0 0.0
        %8725 = vmatprep.subr.mxu0 0.0
        %8726 = vmatpush1.msra.mxu0 0.0
        %8727 = vmatprep.subr.mxu0 0.0
        %8728 = vmatpush1.msra.mxu0 0.0
        %8729 = vmatprep.subr.mxu0 0.0
        %8730 = vmatpush1.msra.mxu0 0.0
        %8731 = vmatprep.subr.mxu0 0.0
        %8732 = vmatpush1.msra.mxu0 0.0
        %8733 = vmatprep.subr.mxu0 0.0
        %8734 = vmatpush1.msra.mxu0 0.0
        %8735 = vmatprep.subr.mxu0 0.0
        %8736 = vmatpush1.msra.mxu0 0.0
        %8737 = vmatprep.subr.mxu0 0.0
        %8738 = vmatpush1.msra.mxu0 0.0
        %8739 = vmatprep.subr.mxu0 0.0
        %8740 = vmatpush1.msra.mxu0 0.0
        %8741 = vmatprep.subr.mxu0 0.0
        %8742 = vmatpush1.msra.mxu0 0.0
        %8743 = vmatprep.mubr.f32.mxu0 0.0
        %8744 = vmatmul.mubr.f32.gmra.mrb[0].mxu0 %v8668
        %v8745 = vpop.f32.mrb[0].mxu0
        %v8746 = vadd.f32 %v8666, %v8745
        %v8747 = vpop.f32.mrb[0].mxu0
        %8748 = vmatprep.mubr.f32.mxu0 0.0
        %8749 = vmatmul.mubr.f32.gmra.mrb[0].mxu0 %v8671
        %v8750 = vpop.f32.mrb[0].mxu0
        %v8751 = vadd.f32 %v8666, %v8750
        %v8752 = vpop.f32.mrb[0].mxu0
        %8753 = vmatprep.mubr.f32.mxu0 0.0
        %8754 = vmatmul.mubr.f32.gmra.mrb[0].mxu0 %v8674
        %v8755 = vpop.f32.mrb[0].mxu0
        %v8756 = vadd.f32 %v8666, %v8755
        %v8757 = vpop.f32.mrb[0].mxu0
        %8758 = vmatprep.mubr.f32.mxu0 0.0
        %8759 = vmatmul.mubr.f32.gmra.mrb[0].mxu0 %v8677
        %v8760 = vpop.f32.mrb[0].mxu0
        %v8761 = vadd.f32 %v8666, %v8760
        %v8762 = vpop.f32.mrb[0].mxu0
        %8763 = vdwg.mxu0
        %vm8764 = vcmp.gt.f32.partialorder %v8746, 0.0
        %vm8765 = vcmp.gt.f32.partialorder %v8751, 0.0
        %vm8766 = vcmp.gt.f32.partialorder %v8756, 0.0
        %vm8767 = vcmp.gt.f32.partialorder %v8761, 0.0
        %v8768 = vmin.f32 %v8746, 0.0
        %v8769 = vmin.f32 %v8751, 0.0
        %v8770 = vmin.f32 %v8756, 0.0
        %v8771 = vmin.f32 %v8761, 0.0
        %v8772 = vmul.f32 %v8768, 1.442695
        %v8773 = vpow.pop %v8772
        %v8774 = vmul.f32 %v8769, 1.442695
        %v8775 = vpow.pop %v8774
        %v8776 = vmul.f32 %v8770, 1.442695
        %v8777 = vpow.pop %v8776
        %v8778 = vmul.f32 %v8771, 1.442695
        %v8779 = vpow.pop %v8778
        %v8780 = vsub.f32 %v8773, 1.0
        %v8781 = vsub.f32 %v8775, 1.0
        %v8782 = vsub.f32 %v8777, 1.0
        %v8783 = vsub.f32 %v8779, 1.0
        %v8784 = vsel %vm8764, %v8746, %v8780
        %v8785 = vsel %vm8765, %v8751, %v8781
        %v8786 = vsel %vm8766, %v8756, %v8782
        %v8787 = vsel %vm8767, %v8761, %v8783
        %v8788 = vadd.f32 %v8356, %v8784
        %v8789 = vadd.f32 %v8357, %v8785
        %v8790 = vadd.f32 %v8358, %v8786
        %v8791 = vadd.f32 %v8359, %v8787
        %v8792 = vld [vmem:[%s1 + $0x2d0] sm:$0xff]
        %v8793 = vld [vmem:[%s1 + $0x2d8] sm:$0xff]
        %v8794 = vld [vmem:[%s1 + $0x2e0] sm:$0xff]
        %v8795 = vld [vmem:[%s1 + $0x2e8] sm:$0xff]
        %v8796 = vld [vmem:[%s1 + $0x2f0] sm:$0xff]
        %v8797 = vld [vmem:[%s1 + $0x2f8] sm:$0xff]
        %v8798 = vld [vmem:[%s1 + $0x300] sm:$0xff]
        %v8799 = vld [vmem:[%s1 + $0x308] sm:$0xff]
        %v8800 = vld [vmem:[%s1 + $0x310] sm:$0xff]
        %v8801 = vld [vmem:[%s1 + $0x318] sm:$0xff]
        %v8802 = vld [vmem:[%s1 + $0x320] sm:$0xff]
        %v8803 = vld [vmem:[%s1 + $0x328] sm:$0xff]
        %v8804 = vld [vmem:[%s1 + $0x330] sm:$0xff]
        %v8805 = vld [vmem:[%s1 + $0x338] sm:$0xff]
        %v8806 = vld [vmem:[%s1 + $0x340] sm:$0xff]
        %v8807 = vld [vmem:[%s1 + $0x348] sm:$0xff]
        %v8808 = vld [vmem:[%s2 + $0x1c] sm:$0x1]
        %8809 = vst.msk [vmem:[#allocation2] sm:$0x7] %vm7518, 0.0
        %8810 = vst.msk [vmem:[#allocation2 + $0x3] sm:$0xff] %vm1707, %v8788
        %8811 = vst.msk [vmem:[#allocation2 + $0xb] sm:$0xff] %vm1707, %v8789
        %8812 = vst.msk [vmem:[#allocation2 + $0x13] sm:$0xff] %vm1707, %v8790
        %8813 = vst.msk [vmem:[#allocation2 + $0x1b] sm:$0xff] %vm1707, %v8791
        %8814 = vst.msk [vmem:[#allocation2 + $0x23] sm:$0x1] %vm7950, 0.0
        %v8815 = vld [vmem:[#allocation2] ss:$4 sm:$0xff]
        %v8816 = vld [vmem:[%s4863] ss:$4 sm:$0xff]
        %v8817 = vld [vmem:[%s4879] ss:$4 sm:$0xff]
        %v8818 = vld [vmem:[%s4895] ss:$4 sm:$0xff]
        %s8819 = scalar_lea.vmem [#allocation2], 4
        %v8820 = vld [vmem:[%s8819] ss:$4 sm:$0xff]
        %s8821 = scalar_lea.vmem [#allocation2], 5
        %v8822 = vld [vmem:[%s8821] ss:$4 sm:$0xff]
        %s8823 = scalar_lea.vmem [#allocation2], 6
        %v8824 = vld [vmem:[%s8823] ss:$4 sm:$0xff]
        %s8825 = scalar_lea.vmem [#allocation2], 7
        %v8826 = vld [vmem:[%s8825] ss:$4 sm:$0xff]
        %8828 = vrot.lane.b32.xlu0 %v8816, 16
        %v8829 = vpop.permute.xlu0 %8828
        %8832 = vrot.lane.b32.xlu0 %v8817, 32
        %v8833 = vpop.permute.xlu0 %8832
        %8836 = vrot.lane.b32.xlu0 %v8818, 48
        %v8837 = vpop.permute.xlu0 %8836
        %8840 = vrot.lane.b32.xlu0 %v8820, 64
        %v8841 = vpop.permute.xlu0 %8840
        %8844 = vrot.lane.b32.xlu0 %v8822, 80
        %v8845 = vpop.permute.xlu0 %8844
        %8848 = vrot.lane.b32.xlu0 %v8824, 96
        %v8849 = vpop.permute.xlu0 %8848
        %8852 = vrot.lane.b32.xlu0 %v8826, 112
        %v8853 = vpop.permute.xlu0 %8852
        %v8855 = vsel %vm1707, %v8815, %v8829
        %v8856 = vsel %vm5505, %v8855, %v8833
        %v8857 = vsel %vm5523, %v8856, %v8837
        %v8858 = vsel %vm7661, %v8857, %v8841
        %v8859 = vsel %vm7666, %v8858, %v8845
        %v8860 = vsel %vm7671, %v8859, %v8849
        %v8861 = vsel %vm7680, %v8860, %v8853
        %v8862 = vlaneseq
        %v8863 = vshrl.u32 %v8862, 7
        %v8864 = vsub.s32 0, %v8863
        %v8865 = vrot.slane %v8808, %v8864
        %8866 = vmatprep.subr.mxu0 0.0
        %8867 = vmatpush1.msra.mxu0 %v8792
        %8868 = vmatprep.subr.mxu0 0.0
        %8869 = vmatpush1.msra.mxu0 %v8793
        %8870 = vmatprep.subr.mxu0 0.0
        %8871 = vmatpush1.msra.mxu0 %v8794
        %8872 = vmatprep.subr.mxu0 0.0
        %8873 = vmatpush1.msra.mxu0 %v8795
        %8874 = vmatprep.subr.mxu0 0.0
        %8875 = vmatpush1.msra.mxu0 %v8796
        %8876 = vmatprep.subr.mxu0 0.0
        %8877 = vmatpush1.msra.mxu0 %v8797
        %8878 = vmatprep.subr.mxu0 0.0
        %8879 = vmatpush1.msra.mxu0 %v8798
        %8880 = vmatprep.subr.mxu0 0.0
        %8881 = vmatpush1.msra.mxu0 %v8799
        %8882 = vmatprep.subr.mxu0 0.0
        %8883 = vmatpush1.msra.mxu0 %v8800
        %8884 = vmatprep.subr.mxu0 0.0
        %8885 = vmatpush1.msra.mxu0 %v8801
        %8886 = vmatprep.subr.mxu0 0.0
        %8887 = vmatpush1.msra.mxu0 %v8802
        %8888 = vmatprep.subr.mxu0 0.0
        %8889 = vmatpush1.msra.mxu0 %v8803
        %8890 = vmatprep.subr.mxu0 0.0
        %8891 = vmatpush1.msra.mxu0 %v8804
        %8892 = vmatprep.subr.mxu0 0.0
        %8893 = vmatpush1.msra.mxu0 %v8805
        %8894 = vmatprep.subr.mxu0 0.0
        %8895 = vmatpush1.msra.mxu0 %v8806
        %8896 = vmatprep.subr.mxu0 0.0
        %8897 = vmatpush1.msra.mxu0 %v8807
        %8898 = vmatprep.subr.mxu0 0.0
        %8899 = vmatpush1.msra.mxu0 0.0
        %8900 = vmatprep.subr.mxu0 0.0
        %8901 = vmatpush1.msra.mxu0 0.0
        %8902 = vmatprep.subr.mxu0 0.0
        %8903 = vmatpush1.msra.mxu0 0.0
        %8904 = vmatprep.subr.mxu0 0.0
        %8905 = vmatpush1.msra.mxu0 0.0
        %8906 = vmatprep.subr.mxu0 0.0
        %8907 = vmatpush1.msra.mxu0 0.0
        %8908 = vmatprep.subr.mxu0 0.0
        %8909 = vmatpush1.msra.mxu0 0.0
        %8910 = vmatprep.subr.mxu0 0.0
        %8911 = vmatpush1.msra.mxu0 0.0
        %8912 = vmatprep.subr.mxu0 0.0
        %8913 = vmatpush1.msra.mxu0 0.0
        %8914 = vmatprep.subr.mxu0 0.0
        %8915 = vmatpush1.msra.mxu0 0.0
        %8916 = vmatprep.subr.mxu0 0.0
        %8917 = vmatpush1.msra.mxu0 0.0
        %8918 = vmatprep.subr.mxu0 0.0
        %8919 = vmatpush1.msra.mxu0 0.0
        %8920 = vmatprep.subr.mxu0 0.0
        %8921 = vmatpush1.msra.mxu0 0.0
        %8922 = vmatprep.subr.mxu0 0.0
        %8923 = vmatpush1.msra.mxu0 0.0
        %8924 = vmatprep.subr.mxu0 0.0
        %8925 = vmatpush1.msra.mxu0 0.0
        %8926 = vmatprep.subr.mxu0 0.0
        %8927 = vmatpush1.msra.mxu0 0.0
        %8928 = vmatprep.subr.mxu0 0.0
        %8929 = vmatpush1.msra.mxu0 0.0
        %8930 = vmatprep.mubr.f32.mxu0 0.0
        %8931 = vmatmul.mubr.f32.gmra.mrb[0].mxu0 %v8861
        %v8932 = vpop.f32.mrb[0].mxu0
        %v8933 = vadd.f32 %v8865, %v8932
        %v8934 = vpop.f32.mrb[0].mxu0
        %8935 = vdwg.mxu0
        %vm8936 = vcmp.gt.f32.partialorder %v8933, 0.0
        %v8937 = vmin.f32 %v8933, 0.0
        %v8938 = vmul.f32 %v8937, 1.442695
        %v8939 = vpow.pop %v8938
        %v8940 = vsub.f32 %v8939, 1.0
        %v8941 = vsel %vm8936, %v8933, %v8940
        %v8942 = vld [vmem:[%s1 + $0x350] sm:$0xff]
        %v8943 = vld [vmem:[%s1 + $0x358] sm:$0xff]
        %v8944 = vld [vmem:[%s1 + $0x360] sm:$0xff]
        %v8945 = vld [vmem:[%s1 + $0x368] sm:$0xff]
        %v8946 = vld [vmem:[%s1 + $0x370] sm:$0xff]
        %v8947 = vld [vmem:[%s1 + $0x378] sm:$0xff]
        %v8948 = vld [vmem:[%s1 + $0x380] sm:$0xff]
        %v8949 = vld [vmem:[%s1 + $0x388] sm:$0xff]
        %v8950 = vld [vmem:[%s1 + $0x390] sm:$0xff]
        %v8951 = vld [vmem:[%s1 + $0x398] sm:$0xff]
        %v8952 = vld [vmem:[%s1 + $0x3a0] sm:$0xff]
        %v8953 = vld [vmem:[%s1 + $0x3a8] sm:$0xff]
        %v8954 = vld [vmem:[%s1 + $0x3b0] sm:$0xff]
        %v8955 = vld [vmem:[%s1 + $0x3b8] sm:$0xff]
        %v8956 = vld [vmem:[%s1 + $0x3c0] sm:$0xff]
        %v8957 = vld [vmem:[%s1 + $0x3c8] sm:$0xff]
        %v8958 = vld [vmem:[%s1 + $0x3d0] sm:$0xff]
        %v8959 = vld [vmem:[%s1 + $0x3d8] sm:$0xff]
        %v8960 = vld [vmem:[%s1 + $0x3e0] sm:$0xff]
        %v8961 = vld [vmem:[%s1 + $0x3e8] sm:$0xff]
        %v8962 = vld [vmem:[%s1 + $0x3f0] sm:$0xff]
        %v8963 = vld [vmem:[%s1 + $0x3f8] sm:$0xff]
        %v8964 = vld [vmem:[%s1 + $0x400] sm:$0xff]
        %v8965 = vld [vmem:[%s1 + $0x408] sm:$0xff]
        %v8966 = vld [vmem:[%s1 + $0x410] sm:$0xff]
        %v8967 = vld [vmem:[%s1 + $0x418] sm:$0xff]
        %v8968 = vld [vmem:[%s1 + $0x420] sm:$0xff]
        %v8969 = vld [vmem:[%s1 + $0x428] sm:$0xff]
        %v8970 = vld [vmem:[%s2 + $0x1d] sm:$0x1]
        %v8971 = vld [vmem:[%s1 + $0x430] sm:$0xff]
        %v8972 = vld [vmem:[%s1 + $0x438] sm:$0xff]
        %v8973 = vld [vmem:[%s1 + $0x440] sm:$0xff]
        %v8974 = vld [vmem:[%s1 + $0x448] sm:$0xff]
        %v8975 = vld [vmem:[%s2 + $0x1e] sm:$0x1]
        %vm8976 = vcmask 256000
        %8977 = vst.msk [vmem:[#allocation2] sm:$0x7] %vm8976, 0.0
        %8978 = vst.msk [vmem:[#allocation2 + $0x3] sm:$0xff] %vm5505, %v8941
        %8979 = vst.msk [vmem:[#allocation2 + $0xb] sm:$0x7] %vm8976, 0.0
        %v8980 = vld [vmem:[#allocation2] sm:$0xff]
        %v8981 = vld [vmem:[#allocation2 + $0x1] sm:$0xff]
        %v8982 = vld [vmem:[#allocation2 + $0x2] sm:$0xff]
        %v8983 = vld [vmem:[#allocation2 + $0x3] sm:$0xff]
        %v8984 = vld [vmem:[#allocation2 + $0x4] sm:$0xff]
        %v8985 = vld [vmem:[#allocation2 + $0x5] sm:$0xff]
        %v8986 = vld [vmem:[#allocation2 + $0x6] sm:$0xff]
        %8988 = vrot.lane.b32.xlu0 %v8981, 32
        %v8989 = vpop.permute.xlu0 %8988
        %8992 = vrot.lane.b32.xlu0 %v8982, 64
        %v8993 = vpop.permute.xlu0 %8992
        %8996 = vrot.lane.b32.xlu0 %v8983, 96
        %v8997 = vpop.permute.xlu0 %8996
        %9000 = vrot.lane.b32.xlu0 %v8985, 32
        %v9001 = vpop.permute.xlu0 %9000
        %9004 = vrot.lane.b32.xlu0 %v8986, 64
        %v9005 = vpop.permute.xlu0 %9004
        %v9007 = vsel %vm5505, %v8980, %v8989
        %v9008 = vsel %vm7661, %v9007, %v8993
        %v9009 = vsel %vm7671, %v9008, %v8997
        %v9010 = vsel %vm5505, %v8984, %v9001
        %v9011 = vsel %vm7661, %v9010, %v9005
        %v9012 = vlaneseq
        %v9013 = vshrl.u32 %v9012, 7
        %v9014 = vsub.s32 0, %v9013
        %v9015 = vrot.slane %v8970, %v9014
        %v9017 = vsel %vm7671, %v9011, 0
        %9019 = vmatprep.subr.mxu0 0.0
        %9020 = vmatpush1.msra.mxu0 %v8942
        %9021 = vmatprep.subr.mxu0 0.0
        %9022 = vmatpush1.msra.mxu0 %v8943
        %9023 = vmatprep.subr.mxu0 0.0
        %9024 = vmatpush1.msra.mxu0 %v8944
        %9025 = vmatprep.subr.mxu0 0.0
        %9026 = vmatpush1.msra.mxu0 %v8945
        %9027 = vmatprep.subr.mxu0 0.0
        %9028 = vmatpush1.msra.mxu0 %v8946
        %9029 = vmatprep.subr.mxu0 0.0
        %9030 = vmatpush1.msra.mxu0 %v8947
        %9031 = vmatprep.subr.mxu0 0.0
        %9032 = vmatpush1.msra.mxu0 %v8948
        %9033 = vmatprep.subr.mxu0 0.0
        %9034 = vmatpush1.msra.mxu0 %v8949
        %9035 = vmatprep.subr.mxu0 0.0
        %9036 = vmatpush1.msra.mxu0 %v8950
        %9037 = vmatprep.subr.mxu0 0.0
        %9038 = vmatpush1.msra.mxu0 %v8951
        %9039 = vmatprep.subr.mxu0 0.0
        %9040 = vmatpush1.msra.mxu0 %v8952
        %9041 = vmatprep.subr.mxu0 0.0
        %9042 = vmatpush1.msra.mxu0 %v8953
        %9043 = vmatprep.subr.mxu0 0.0
        %9044 = vmatpush1.msra.mxu0 %v8954
        %9045 = vmatprep.subr.mxu0 0.0
        %9046 = vmatpush1.msra.mxu0 %v8955
        %9047 = vmatprep.subr.mxu0 0.0
        %9048 = vmatpush1.msra.mxu0 %v8956
        %9049 = vmatprep.subr.mxu0 0.0
        %9050 = vmatpush1.msra.mxu0 %v8957
        %9051 = vmatprep.subr.mxu0 0.0
        %9052 = vmatpush1.msra.mxu0 %v8958
        %9053 = vmatprep.subr.mxu0 0.0
        %9054 = vmatpush1.msra.mxu0 %v8959
        %9055 = vmatprep.subr.mxu0 0.0
        %9056 = vmatpush1.msra.mxu0 %v8960
        %9057 = vmatprep.subr.mxu0 0.0
        %9058 = vmatpush1.msra.mxu0 %v8961
        %9059 = vmatprep.subr.mxu0 0.0
        %9060 = vmatpush1.msra.mxu0 %v8962
        %9061 = vmatprep.subr.mxu0 0.0
        %9062 = vmatpush1.msra.mxu0 %v8963
        %9063 = vmatprep.subr.mxu0 0.0
        %9064 = vmatpush1.msra.mxu0 %v8964
        %9065 = vmatprep.subr.mxu0 0.0
        %9066 = vmatpush1.msra.mxu0 %v8965
        %9067 = vmatprep.subr.mxu0 0.0
        %9068 = vmatpush1.msra.mxu0 %v8966
        %9069 = vmatprep.subr.mxu0 0.0
        %9070 = vmatpush1.msra.mxu0 %v8967
        %9071 = vmatprep.subr.mxu0 0.0
        %9072 = vmatpush1.msra.mxu0 %v8968
        %9073 = vmatprep.subr.mxu0 0.0
        %9074 = vmatpush1.msra.mxu0 %v8969
        %9075 = vmatprep.subr.mxu0 0.0
        %9076 = vmatpush1.msra.mxu0 0.0
        %9077 = vmatprep.subr.mxu0 0.0
        %9078 = vmatpush1.msra.mxu0 0.0
        %9079 = vmatprep.subr.mxu0 0.0
        %9080 = vmatpush1.msra.mxu0 0.0
        %9081 = vmatprep.subr.mxu0 0.0
        %9082 = vmatpush1.msra.mxu0 0.0
        %9083 = vmatprep.mubr.f32.mxu0 %v9017
        %9084 = vmatmul.mubr.f32.gmra.mrb[0].mxu0 %v9009
        %v9085 = vpop.f32.mrb[0].mxu0
        %v9086 = vadd.f32 %v9015, %v9085
        %v9087 = vpop.f32.mrb[0].mxu0
        %9088 = vdwg.mxu0
        %vm9089 = vcmp.gt.f32.partialorder %v9086, 0.0
        %v9090 = vmin.f32 %v9086, 0.0
        %v9091 = vmul.f32 %v9090, 1.442695
        %v9092 = vpow.pop %v9091
        %v9093 = vsub.f32 %v9092, 1.0
        %v9094 = vsel %vm9089, %v9086, %v9093
        %v9095 = vlaneseq
        %v9096 = vshrl.u32 %v9095, 7
        %v9097 = vsub.s32 0, %v9096
        %v9098 = vrot.slane %v8975, %v9097
        %v9100 = vsel %vm5505, %v9094, 0
        %9102 = vmatprep.subr.mxu0 0.0
        %9103 = vmatpush1.msra.mxu0 %v8971
        %9104 = vmatprep.subr.mxu0 0.0
        %9105 = vmatpush1.msra.mxu0 %v8972
        %9106 = vmatprep.subr.mxu0 0.0
        %9107 = vmatpush1.msra.mxu0 %v8973
        %9108 = vmatprep.subr.mxu0 0.0
        %9109 = vmatpush1.msra.mxu0 %v8974
        %9110 = vmatprep.subr.mxu0 0.0
        %9111 = vmatpush1.msra.mxu0 0.0
        %9112 = vmatprep.subr.mxu0 0.0
        %9113 = vmatpush1.msra.mxu0 0.0
        %9114 = vmatprep.subr.mxu0 0.0
        %9115 = vmatpush1.msra.mxu0 0.0
        %9116 = vmatprep.subr.mxu0 0.0
        %9117 = vmatpush1.msra.mxu0 0.0
        %9118 = vmatprep.subr.mxu0 0.0
        %9119 = vmatpush1.msra.mxu0 0.0
        %9120 = vmatprep.subr.mxu0 0.0
        %9121 = vmatpush1.msra.mxu0 0.0
        %9122 = vmatprep.subr.mxu0 0.0
        %9123 = vmatpush1.msra.mxu0 0.0
        %9124 = vmatprep.subr.mxu0 0.0
        %9125 = vmatpush1.msra.mxu0 0.0
        %9126 = vmatprep.subr.mxu0 0.0
        %9127 = vmatpush1.msra.mxu0 0.0
        %9128 = vmatprep.subr.mxu0 0.0
        %9129 = vmatpush1.msra.mxu0 0.0
        %9130 = vmatprep.subr.mxu0 0.0
        %9131 = vmatpush1.msra.mxu0 0.0
        %9132 = vmatprep.subr.mxu0 0.0
        %9133 = vmatpush1.msra.mxu0 0.0
        %9134 = vmatprep.subr.mxu0 0.0
        %9135 = vmatpush1.msra.mxu0 0.0
        %9136 = vmatprep.subr.mxu0 0.0
        %9137 = vmatpush1.msra.mxu0 0.0
        %9138 = vmatprep.subr.mxu0 0.0
        %9139 = vmatpush1.msra.mxu0 0.0
        %9140 = vmatprep.subr.mxu0 0.0
        %9141 = vmatpush1.msra.mxu0 0.0
        %9142 = vmatprep.subr.mxu0 0.0
        %9143 = vmatpush1.msra.mxu0 0.0
        %9144 = vmatprep.subr.mxu0 0.0
        %9145 = vmatpush1.msra.mxu0 0.0
        %9146 = vmatprep.subr.mxu0 0.0
        %9147 = vmatpush1.msra.mxu0 0.0
        %9148 = vmatprep.subr.mxu0 0.0
        %9149 = vmatpush1.msra.mxu0 0.0
        %9150 = vmatprep.subr.mxu0 0.0
        %9151 = vmatpush1.msra.mxu0 0.0
        %9152 = vmatprep.subr.mxu0 0.0
        %9153 = vmatpush1.msra.mxu0 0.0
        %9154 = vmatprep.subr.mxu0 0.0
        %9155 = vmatpush1.msra.mxu0 0.0
        %9156 = vmatprep.subr.mxu0 0.0
        %9157 = vmatpush1.msra.mxu0 0.0
        %9158 = vmatprep.subr.mxu0 0.0
        %9159 = vmatpush1.msra.mxu0 0.0
        %9160 = vmatprep.subr.mxu0 0.0
        %9161 = vmatpush1.msra.mxu0 0.0
        %9162 = vmatprep.subr.mxu0 0.0
        %9163 = vmatpush1.msra.mxu0 0.0
        %9164 = vmatprep.subr.mxu0 0.0
        %9165 = vmatpush1.msra.mxu0 0.0
        %9166 = vmatprep.mubr.f32.mxu0 0.0
        %9167 = vmatmul.mubr.f32.gmra.mrb[0].mxu0 %v9100
        %v9168 = vpop.f32.mrb[0].mxu0
        %v9169 = vadd.f32 %v9098, %v9168
        %v9170 = vpop.f32.mrb[0].mxu0
        %9171 = vdwg.mxu0
        %vm9172 = vcmp.gt.f32.partialorder %v9169, 0.0
        %v9173 = vmin.f32 %v9169, 0.0
        %v9174 = vmul.f32 %v9173, 1.442695
        %v9175 = vpow.pop %v9174
        %v9176 = vsub.f32 %v9175, 1.0
        %v9177 = vsel %vm9172, %v9169, %v9176
        %v9178 = vadd.f32 %v8941, %v9177
        %v9179 = vld [vmem:[%s1 + $0x450] sm:$0xff]
        %v9180 = vld [vmem:[%s1 + $0x458] sm:$0xff]
        %v9181 = vld [vmem:[%s1 + $0x460] sm:$0xff]
        %v9182 = vld [vmem:[%s1 + $0x468] sm:$0xff]
        %v9183 = vld [vmem:[%s1 + $0x470] sm:$0xff]
        %v9184 = vld [vmem:[%s1 + $0x478] sm:$0xff]
        %v9185 = vld [vmem:[%s1 + $0x480] sm:$0xff]
        %v9186 = vld [vmem:[%s1 + $0x488] sm:$0xff]
        %v9187 = vld [vmem:[%s1 + $0x490] sm:$0xff]
        %v9188 = vld [vmem:[%s1 + $0x498] sm:$0xff]
        %v9189 = vld [vmem:[%s1 + $0x4a0] sm:$0xff]
        %v9190 = vld [vmem:[%s1 + $0x4a8] sm:$0xff]
        %v9191 = vld [vmem:[%s1 + $0x4b0] sm:$0xff]
        %v9192 = vld [vmem:[%s1 + $0x4b8] sm:$0xff]
        %v9193 = vld [vmem:[%s1 + $0x4c0] sm:$0xff]
        %v9194 = vld [vmem:[%s1 + $0x4c8] sm:$0xff]
        %v9195 = vld [vmem:[%s1 + $0x4d0] sm:$0xff]
        %v9196 = vld [vmem:[%s1 + $0x4d8] sm:$0xff]
        %v9197 = vld [vmem:[%s1 + $0x4e0] sm:$0xff]
        %v9198 = vld [vmem:[%s1 + $0x4e8] sm:$0xff]
        %v9199 = vld [vmem:[%s1 + $0x4f0] sm:$0xff]
        %v9200 = vld [vmem:[%s1 + $0x4f8] sm:$0xff]
        %v9201 = vld [vmem:[%s1 + $0x500] sm:$0xff]
        %v9202 = vld [vmem:[%s1 + $0x508] sm:$0xff]
        %v9203 = vld [vmem:[%s1 + $0x510] sm:$0xff]
        %v9204 = vld [vmem:[%s1 + $0x518] sm:$0xff]
        %v9205 = vld [vmem:[%s1 + $0x520] sm:$0xff]
        %v9206 = vld [vmem:[%s1 + $0x528] sm:$0xff]
        %v9207 = vld [vmem:[%s2 + $0x1f] sm:$0x1]
        %v9208 = vld [vmem:[%s1 + $0x530] sm:$0xff]
        %v9209 = vld [vmem:[%s1 + $0x538] sm:$0xff]
        %v9210 = vld [vmem:[%s1 + $0x540] sm:$0xff]
        %v9211 = vld [vmem:[%s1 + $0x548] sm:$0xff]
        %v9212 = vld [vmem:[%s2 + $0x20] sm:$0x1]
        %9213 = vst.msk [vmem:[#allocation2] sm:$0xff] %vm5505, 0.0
        %vm9214 = vcmask 253952
        %9215 = vst.msk [vmem:[#allocation2 + $0x8] sm:$0x1] %vm9214, 0.0
        %9216 = vst.msk [vmem:[#allocation2 + $0x9] sm:$0xff] %vm5505, %v9178
        %9217 = vst.msk [vmem:[#allocation2 + $0x11] sm:$0xff] %vm5505, 0.0
        %9218 = vst.msk [vmem:[#allocation2 + $0x19] sm:$0x1] %vm9214, 0.0
        %v9219 = vld [vmem:[#allocation2] sm:$0xff]
        %v9220 = vld [vmem:[#allocation2 + $0x3] sm:$0xff]
        %v9221 = vld [vmem:[#allocation2 + $0x6] sm:$0xff]
        %v9222 = vld [vmem:[#allocation2 + $0x9] sm:$0xff]
        %v9223 = vld [vmem:[#allocation2 + $0xc] sm:$0xff]
        %v9224 = vld [vmem:[#allocation2 + $0xf] sm:$0xff]
        %v9225 = vld [vmem:[#allocation2 + $0x12] sm:$0xff]
        %9227 = vrot.lane.b32.xlu0 %v9220, 32
        %v9228 = vpop.permute.xlu0 %9227
        %9231 = vrot.lane.b32.xlu0 %v9221, 64
        %v9232 = vpop.permute.xlu0 %9231
        %9235 = vrot.lane.b32.xlu0 %v9222, 96
        %v9236 = vpop.permute.xlu0 %9235
        %9239 = vrot.lane.b32.xlu0 %v9224, 32
        %v9240 = vpop.permute.xlu0 %9239
        %9243 = vrot.lane.b32.xlu0 %v9225, 64
        %v9244 = vpop.permute.xlu0 %9243
        %v9246 = vsel %vm5505, %v9219, %v9228
        %v9247 = vsel %vm7661, %v9246, %v9232
        %v9248 = vsel %vm7671, %v9247, %v9236
        %v9249 = vsel %vm5505, %v9223, %v9240
        %v9250 = vsel %vm7661, %v9249, %v9244
        %v9251 = vlaneseq
        %v9252 = vshrl.u32 %v9251, 7
        %v9253 = vsub.s32 0, %v9252
        %v9254 = vrot.slane %v9207, %v9253
        %v9256 = vsel %vm7671, %v9250, 0
        %9258 = vmatprep.subr.mxu0 0.0
        %9259 = vmatpush1.msra.mxu0 %v9179
        %9260 = vmatprep.subr.mxu0 0.0
        %9261 = vmatpush1.msra.mxu0 %v9180
        %9262 = vmatprep.subr.mxu0 0.0
        %9263 = vmatpush1.msra.mxu0 %v9181
        %9264 = vmatprep.subr.mxu0 0.0
        %9265 = vmatpush1.msra.mxu0 %v9182
        %9266 = vmatprep.subr.mxu0 0.0
        %9267 = vmatpush1.msra.mxu0 %v9183
        %9268 = vmatprep.subr.mxu0 0.0
        %9269 = vmatpush1.msra.mxu0 %v9184
        %9270 = vmatprep.subr.mxu0 0.0
        %9271 = vmatpush1.msra.mxu0 %v9185
        %9272 = vmatprep.subr.mxu0 0.0
        %9273 = vmatpush1.msra.mxu0 %v9186
        %9274 = vmatprep.subr.mxu0 0.0
        %9275 = vmatpush1.msra.mxu0 %v9187
        %9276 = vmatprep.subr.mxu0 0.0
        %9277 = vmatpush1.msra.mxu0 %v9188
        %9278 = vmatprep.subr.mxu0 0.0
        %9279 = vmatpush1.msra.mxu0 %v9189
        %9280 = vmatprep.subr.mxu0 0.0
        %9281 = vmatpush1.msra.mxu0 %v9190
        %9282 = vmatprep.subr.mxu0 0.0
        %9283 = vmatpush1.msra.mxu0 %v9191
        %9284 = vmatprep.subr.mxu0 0.0
        %9285 = vmatpush1.msra.mxu0 %v9192
        %9286 = vmatprep.subr.mxu0 0.0
        %9287 = vmatpush1.msra.mxu0 %v9193
        %9288 = vmatprep.subr.mxu0 0.0
        %9289 = vmatpush1.msra.mxu0 %v9194
        %9290 = vmatprep.subr.mxu0 0.0
        %9291 = vmatpush1.msra.mxu0 %v9195
        %9292 = vmatprep.subr.mxu0 0.0
        %9293 = vmatpush1.msra.mxu0 %v9196
        %9294 = vmatprep.subr.mxu0 0.0
        %9295 = vmatpush1.msra.mxu0 %v9197
        %9296 = vmatprep.subr.mxu0 0.0
        %9297 = vmatpush1.msra.mxu0 %v9198
        %9298 = vmatprep.subr.mxu0 0.0
        %9299 = vmatpush1.msra.mxu0 %v9199
        %9300 = vmatprep.subr.mxu0 0.0
        %9301 = vmatpush1.msra.mxu0 %v9200
        %9302 = vmatprep.subr.mxu0 0.0
        %9303 = vmatpush1.msra.mxu0 %v9201
        %9304 = vmatprep.subr.mxu0 0.0
        %9305 = vmatpush1.msra.mxu0 %v9202
        %9306 = vmatprep.subr.mxu0 0.0
        %9307 = vmatpush1.msra.mxu0 %v9203
        %9308 = vmatprep.subr.mxu0 0.0
        %9309 = vmatpush1.msra.mxu0 %v9204
        %9310 = vmatprep.subr.mxu0 0.0
        %9311 = vmatpush1.msra.mxu0 %v9205
        %9312 = vmatprep.subr.mxu0 0.0
        %9313 = vmatpush1.msra.mxu0 %v9206
        %9314 = vmatprep.subr.mxu0 0.0
        %9315 = vmatpush1.msra.mxu0 0.0
        %9316 = vmatprep.subr.mxu0 0.0
        %9317 = vmatpush1.msra.mxu0 0.0
        %9318 = vmatprep.subr.mxu0 0.0
        %9319 = vmatpush1.msra.mxu0 0.0
        %9320 = vmatprep.subr.mxu0 0.0
        %9321 = vmatpush1.msra.mxu0 0.0
        %9322 = vmatprep.mubr.f32.mxu0 %v9256
        %9323 = vmatmul.mubr.f32.gmra.mrb[0].mxu0 %v9248
        %v9324 = vpop.f32.mrb[0].mxu0
        %v9325 = vadd.f32 %v9254, %v9324
        %v9326 = vpop.f32.mrb[0].mxu0
        %9327 = vdwg.mxu0
        %vm9328 = vcmp.gt.f32.partialorder %v9325, 0.0
        %v9329 = vmin.f32 %v9325, 0.0
        %v9330 = vmul.f32 %v9329, 1.442695
        %v9331 = vpow.pop %v9330
        %v9332 = vsub.f32 %v9331, 1.0
        %v9333 = vsel %vm9328, %v9325, %v9332
        %v9334 = vlaneseq
        %v9335 = vshrl.u32 %v9334, 7
        %v9336 = vsub.s32 0, %v9335
        %v9337 = vrot.slane %v9212, %v9336
        %v9339 = vsel %vm5505, %v9333, 0
        %9341 = vmatprep.subr.mxu0 0.0
        %9342 = vmatpush1.msra.mxu0 %v9208
        %9343 = vmatprep.subr.mxu0 0.0
        %9344 = vmatpush1.msra.mxu0 %v9209
        %9345 = vmatprep.subr.mxu0 0.0
        %9346 = vmatpush1.msra.mxu0 %v9210
        %9347 = vmatprep.subr.mxu0 0.0
        %9348 = vmatpush1.msra.mxu0 %v9211
        %9349 = vmatprep.subr.mxu0 0.0
        %9350 = vmatpush1.msra.mxu0 0.0
        %9351 = vmatprep.subr.mxu0 0.0
        %9352 = vmatpush1.msra.mxu0 0.0
        %9353 = vmatprep.subr.mxu0 0.0
        %9354 = vmatpush1.msra.mxu0 0.0
        %9355 = vmatprep.subr.mxu0 0.0
        %9356 = vmatpush1.msra.mxu0 0.0
        %9357 = vmatprep.subr.mxu0 0.0
        %9358 = vmatpush1.msra.mxu0 0.0
        %9359 = vmatprep.subr.mxu0 0.0
        %9360 = vmatpush1.msra.mxu0 0.0
        %9361 = vmatprep.subr.mxu0 0.0
        %9362 = vmatpush1.msra.mxu0 0.0
        %9363 = vmatprep.subr.mxu0 0.0
        %9364 = vmatpush1.msra.mxu0 0.0
        %9365 = vmatprep.subr.mxu0 0.0
        %9366 = vmatpush1.msra.mxu0 0.0
        %9367 = vmatprep.subr.mxu0 0.0
        %9368 = vmatpush1.msra.mxu0 0.0
        %9369 = vmatprep.subr.mxu0 0.0
        %9370 = vmatpush1.msra.mxu0 0.0
        %9371 = vmatprep.subr.mxu0 0.0
        %9372 = vmatpush1.msra.mxu0 0.0
        %9373 = vmatprep.subr.mxu0 0.0
        %9374 = vmatpush1.msra.mxu0 0.0
        %9375 = vmatprep.subr.mxu0 0.0
        %9376 = vmatpush1.msra.mxu0 0.0
        %9377 = vmatprep.subr.mxu0 0.0
        %9378 = vmatpush1.msra.mxu0 0.0
        %9379 = vmatprep.subr.mxu0 0.0
        %9380 = vmatpush1.msra.mxu0 0.0
        %9381 = vmatprep.subr.mxu0 0.0
        %9382 = vmatpush1.msra.mxu0 0.0
        %9383 = vmatprep.subr.mxu0 0.0
        %9384 = vmatpush1.msra.mxu0 0.0
        %9385 = vmatprep.subr.mxu0 0.0
        %9386 = vmatpush1.msra.mxu0 0.0
        %9387 = vmatprep.subr.mxu0 0.0
        %9388 = vmatpush1.msra.mxu0 0.0
        %9389 = vmatprep.subr.mxu0 0.0
        %9390 = vmatpush1.msra.mxu0 0.0
        %9391 = vmatprep.subr.mxu0 0.0
        %9392 = vmatpush1.msra.mxu0 0.0
        %9393 = vmatprep.subr.mxu0 0.0
        %9394 = vmatpush1.msra.mxu0 0.0
        %9395 = vmatprep.subr.mxu0 0.0
        %9396 = vmatpush1.msra.mxu0 0.0
        %9397 = vmatprep.subr.mxu0 0.0
        %9398 = vmatpush1.msra.mxu0 0.0
        %9399 = vmatprep.subr.mxu0 0.0
        %9400 = vmatpush1.msra.mxu0 0.0
        %9401 = vmatprep.subr.mxu0 0.0
        %9402 = vmatpush1.msra.mxu0 0.0
        %9403 = vmatprep.subr.mxu0 0.0
        %9404 = vmatpush1.msra.mxu0 0.0
        %9405 = vmatprep.mubr.f32.mxu0 0.0
        %9406 = vmatmul.mubr.f32.gmra.mrb[0].mxu0 %v9339
        %v9407 = vpop.f32.mrb[0].mxu0
        %v9408 = vadd.f32 %v9337, %v9407
        %v9409 = vpop.f32.mrb[0].mxu0
        %9410 = vdwg.mxu0
        %vm9411 = vcmp.gt.f32.partialorder %v9408, 0.0
        %v9412 = vmin.f32 %v9408, 0.0
        %v9413 = vmul.f32 %v9412, 1.442695
        %v9414 = vpow.pop %v9413
        %v9415 = vsub.f32 %v9414, 1.0
        %v9416 = vsel %vm9411, %v9408, %v9415
        %v9417 = vadd.f32 %v9178, %v9416
        %v9418 = vld [vmem:[%s1 + $0x550] sm:$0xff]
        %v9419 = vld [vmem:[%s1 + $0x558] sm:$0xff]
        %v9420 = vld [vmem:[%s1 + $0x560] sm:$0xff]
        %v9421 = vld [vmem:[%s1 + $0x568] sm:$0xff]
        %v9422 = vld [vmem:[%s1 + $0x570] sm:$0xff]
        %v9423 = vld [vmem:[%s1 + $0x578] sm:$0xff]
        %v9424 = vld [vmem:[%s1 + $0x580] sm:$0xff]
        %v9425 = vld [vmem:[%s1 + $0x588] sm:$0xff]
        %v9426 = vld [vmem:[%s1 + $0x590] sm:$0xff]
        %v9427 = vld [vmem:[%s1 + $0x598] sm:$0xff]
        %v9428 = vld [vmem:[%s1 + $0x5a0] sm:$0xff]
        %v9429 = vld [vmem:[%s1 + $0x5a8] sm:$0xff]
        %v9430 = vld [vmem:[%s1 + $0x5b0] sm:$0xff]
        %v9431 = vld [vmem:[%s1 + $0x5b8] sm:$0xff]
        %v9432 = vld [vmem:[%s1 + $0x5c0] sm:$0xff]
        %v9433 = vld [vmem:[%s1 + $0x5c8] sm:$0xff]
        %v9434 = vld [vmem:[%s1 + $0x5d0] sm:$0xff]
        %v9435 = vld [vmem:[%s1 + $0x5d8] sm:$0xff]
        %v9436 = vld [vmem:[%s1 + $0x5e0] sm:$0xff]
        %v9437 = vld [vmem:[%s1 + $0x5e8] sm:$0xff]
        %v9438 = vld [vmem:[%s1 + $0x5f0] sm:$0xff]
        %v9439 = vld [vmem:[%s1 + $0x5f8] sm:$0xff]
        %v9440 = vld [vmem:[%s1 + $0x600] sm:$0xff]
        %v9441 = vld [vmem:[%s1 + $0x608] sm:$0xff]
        %v9442 = vld [vmem:[%s1 + $0x610] sm:$0xff]
        %v9443 = vld [vmem:[%s1 + $0x618] sm:$0xff]
        %v9444 = vld [vmem:[%s1 + $0x620] sm:$0xff]
        %v9445 = vld [vmem:[%s1 + $0x628] sm:$0xff]
        %v9446 = vld [vmem:[%s2 + $0x21] sm:$0x1]
        %v9447 = vld [vmem:[%s1 + $0x630] sm:$0xff]
        %v9448 = vld [vmem:[%s1 + $0x638] sm:$0xff]
        %v9449 = vld [vmem:[%s1 + $0x640] sm:$0xff]
        %v9450 = vld [vmem:[%s1 + $0x648] sm:$0xff]
        %v9451 = vld [vmem:[%s2 + $0x22] sm:$0x1]
        %9452 = vst.msk [vmem:[#allocation2] sm:$0xff] %vm5505, 0.0
        %9453 = vst.msk [vmem:[#allocation2 + $0x8] sm:$0xff] %vm5505, 0.0
        %9454 = vst.msk [vmem:[#allocation2 + $0x10] sm:$0xff] %vm5505, 0.0
        %9455 = vst.msk [vmem:[#allocation2 + $0x18] sm:$0x7] %vm8976, 0.0
        %9456 = vst.msk [vmem:[#allocation2 + $0x1b] sm:$0xff] %vm5505, %v9417
        %9457 = vst.msk [vmem:[#allocation2 + $0x23] sm:$0xff] %vm5505, 0.0
        %9458 = vst.msk [vmem:[#allocation2 + $0x2b] sm:$0xff] %vm5505, 0.0
        %9459 = vst.msk [vmem:[#allocation2 + $0x33] sm:$0xff] %vm5505, 0.0
        %9460 = vst.msk [vmem:[#allocation2 + $0x3b] sm:$0x7] %vm8976, 0.0
        %v9461 = vld [vmem:[#allocation2] sm:$0xff]
        %v9462 = vld [vmem:[#allocation2 + $0x9] sm:$0xff]
        %v9463 = vld [vmem:[#allocation2 + $0x12] sm:$0xff]
        %v9464 = vld [vmem:[#allocation2 + $0x1b] sm:$0xff]
        %v9465 = vld [vmem:[#allocation2 + $0x24] sm:$0xff]
        %v9466 = vld [vmem:[#allocation2 + $0x2d] sm:$0xff]
        %v9467 = vld [vmem:[#allocation2 + $0x36] sm:$0xff]
        %9469 = vrot.lane.b32.xlu0 %v9462, 32
        %v9470 = vpop.permute.xlu0 %9469
        %9473 = vrot.lane.b32.xlu0 %v9463, 64
        %v9474 = vpop.permute.xlu0 %9473
        %9477 = vrot.lane.b32.xlu0 %v9464, 96
        %v9478 = vpop.permute.xlu0 %9477
        %9481 = vrot.lane.b32.xlu0 %v9466, 32
        %v9482 = vpop.permute.xlu0 %9481
        %9485 = vrot.lane.b32.xlu0 %v9467, 64
        %v9486 = vpop.permute.xlu0 %9485
        %v9488 = vsel %vm5505, %v9461, %v9470
        %v9489 = vsel %vm7661, %v9488, %v9474
        %v9490 = vsel %vm7671, %v9489, %v9478
        %v9491 = vsel %vm5505, %v9465, %v9482
        %v9492 = vsel %vm7661, %v9491, %v9486
        %v9493 = vlaneseq
        %v9494 = vshrl.u32 %v9493, 7
        %v9495 = vsub.s32 0, %v9494
        %v9496 = vrot.slane %v9446, %v9495
        %v9498 = vsel %vm7671, %v9492, 0
        %9500 = vmatprep.subr.mxu0 0.0
        %9501 = vmatpush1.msra.mxu0 %v9418
        %9502 = vmatprep.subr.mxu0 0.0
        %9503 = vmatpush1.msra.mxu0 %v9419
        %9504 = vmatprep.subr.mxu0 0.0
        %9505 = vmatpush1.msra.mxu0 %v9420
        %9506 = vmatprep.subr.mxu0 0.0
        %9507 = vmatpush1.msra.mxu0 %v9421
        %9508 = vmatprep.subr.mxu0 0.0
        %9509 = vmatpush1.msra.mxu0 %v9422
        %9510 = vmatprep.subr.mxu0 0.0
        %9511 = vmatpush1.msra.mxu0 %v9423
        %9512 = vmatprep.subr.mxu0 0.0
        %9513 = vmatpush1.msra.mxu0 %v9424
        %9514 = vmatprep.subr.mxu0 0.0
        %9515 = vmatpush1.msra.mxu0 %v9425
        %9516 = vmatprep.subr.mxu0 0.0
        %9517 = vmatpush1.msra.mxu0 %v9426
        %9518 = vmatprep.subr.mxu0 0.0
        %9519 = vmatpush1.msra.mxu0 %v9427
        %9520 = vmatprep.subr.mxu0 0.0
        %9521 = vmatpush1.msra.mxu0 %v9428
        %9522 = vmatprep.subr.mxu0 0.0
        %9523 = vmatpush1.msra.mxu0 %v9429
        %9524 = vmatprep.subr.mxu0 0.0
        %9525 = vmatpush1.msra.mxu0 %v9430
        %9526 = vmatprep.subr.mxu0 0.0
        %9527 = vmatpush1.msra.mxu0 %v9431
        %9528 = vmatprep.subr.mxu0 0.0
        %9529 = vmatpush1.msra.mxu0 %v9432
        %9530 = vmatprep.subr.mxu0 0.0
        %9531 = vmatpush1.msra.mxu0 %v9433
        %9532 = vmatprep.subr.mxu0 0.0
        %9533 = vmatpush1.msra.mxu0 %v9434
        %9534 = vmatprep.subr.mxu0 0.0
        %9535 = vmatpush1.msra.mxu0 %v9435
        %9536 = vmatprep.subr.mxu0 0.0
        %9537 = vmatpush1.msra.mxu0 %v9436
        %9538 = vmatprep.subr.mxu0 0.0
        %9539 = vmatpush1.msra.mxu0 %v9437
        %9540 = vmatprep.subr.mxu0 0.0
        %9541 = vmatpush1.msra.mxu0 %v9438
        %9542 = vmatprep.subr.mxu0 0.0
        %9543 = vmatpush1.msra.mxu0 %v9439
        %9544 = vmatprep.subr.mxu0 0.0
        %9545 = vmatpush1.msra.mxu0 %v9440
        %9546 = vmatprep.subr.mxu0 0.0
        %9547 = vmatpush1.msra.mxu0 %v9441
        %9548 = vmatprep.subr.mxu0 0.0
        %9549 = vmatpush1.msra.mxu0 %v9442
        %9550 = vmatprep.subr.mxu0 0.0
        %9551 = vmatpush1.msra.mxu0 %v9443
        %9552 = vmatprep.subr.mxu0 0.0
        %9553 = vmatpush1.msra.mxu0 %v9444
        %9554 = vmatprep.subr.mxu0 0.0
        %9555 = vmatpush1.msra.mxu0 %v9445
        %9556 = vmatprep.subr.mxu0 0.0
        %9557 = vmatpush1.msra.mxu0 0.0
        %9558 = vmatprep.subr.mxu0 0.0
        %9559 = vmatpush1.msra.mxu0 0.0
        %9560 = vmatprep.subr.mxu0 0.0
        %9561 = vmatpush1.msra.mxu0 0.0
        %9562 = vmatprep.subr.mxu0 0.0
        %9563 = vmatpush1.msra.mxu0 0.0
        %9564 = vmatprep.mubr.f32.mxu0 %v9498
        %9565 = vmatmul.mubr.f32.gmra.mrb[0].mxu0 %v9490
        %v9566 = vpop.f32.mrb[0].mxu0
        %v9567 = vadd.f32 %v9496, %v9566
        %v9568 = vpop.f32.mrb[0].mxu0
        %9569 = vdwg.mxu0
        %vm9570 = vcmp.gt.f32.partialorder %v9567, 0.0
        %v9571 = vmin.f32 %v9567, 0.0
        %v9572 = vmul.f32 %v9571, 1.442695
        %v9573 = vpow.pop %v9572
        %v9574 = vsub.f32 %v9573, 1.0
        %v9575 = vsel %vm9570, %v9567, %v9574
        %v9576 = vlaneseq
        %v9577 = vshrl.u32 %v9576, 7
        %v9578 = vsub.s32 0, %v9577
        %v9579 = vrot.slane %v9451, %v9578
        %v9581 = vsel %vm5505, %v9575, 0
        %9583 = vmatprep.subr.mxu0 0.0
        %9584 = vmatpush1.msra.mxu0 %v9447
        %9585 = vmatprep.subr.mxu0 0.0
        %9586 = vmatpush1.msra.mxu0 %v9448
        %9587 = vmatprep.subr.mxu0 0.0
        %9588 = vmatpush1.msra.mxu0 %v9449
        %9589 = vmatprep.subr.mxu0 0.0
        %9590 = vmatpush1.msra.mxu0 %v9450
        %9591 = vmatprep.subr.mxu0 0.0
        %9592 = vmatpush1.msra.mxu0 0.0
        %9593 = vmatprep.subr.mxu0 0.0
        %9594 = vmatpush1.msra.mxu0 0.0
        %9595 = vmatprep.subr.mxu0 0.0
        %9596 = vmatpush1.msra.mxu0 0.0
        %9597 = vmatprep.subr.mxu0 0.0
        %9598 = vmatpush1.msra.mxu0 0.0
        %9599 = vmatprep.subr.mxu0 0.0
        %9600 = vmatpush1.msra.mxu0 0.0
        %9601 = vmatprep.subr.mxu0 0.0
        %9602 = vmatpush1.msra.mxu0 0.0
        %9603 = vmatprep.subr.mxu0 0.0
        %9604 = vmatpush1.msra.mxu0 0.0
        %9605 = vmatprep.subr.mxu0 0.0
        %9606 = vmatpush1.msra.mxu0 0.0
        %9607 = vmatprep.subr.mxu0 0.0
        %9608 = vmatpush1.msra.mxu0 0.0
        %9609 = vmatprep.subr.mxu0 0.0
        %9610 = vmatpush1.msra.mxu0 0.0
        %9611 = vmatprep.subr.mxu0 0.0
        %9612 = vmatpush1.msra.mxu0 0.0
        %9613 = vmatprep.subr.mxu0 0.0
        %9614 = vmatpush1.msra.mxu0 0.0
        %9615 = vmatprep.subr.mxu0 0.0
        %9616 = vmatpush1.msra.mxu0 0.0
        %9617 = vmatprep.subr.mxu0 0.0
        %9618 = vmatpush1.msra.mxu0 0.0
        %9619 = vmatprep.subr.mxu0 0.0
        %9620 = vmatpush1.msra.mxu0 0.0
        %9621 = vmatprep.subr.mxu0 0.0
        %9622 = vmatpush1.msra.mxu0 0.0
        %9623 = vmatprep.subr.mxu0 0.0
        %9624 = vmatpush1.msra.mxu0 0.0
        %9625 = vmatprep.subr.mxu0 0.0
        %9626 = vmatpush1.msra.mxu0 0.0
        %9627 = vmatprep.subr.mxu0 0.0
        %9628 = vmatpush1.msra.mxu0 0.0
        %9629 = vmatprep.subr.mxu0 0.0
        %9630 = vmatpush1.msra.mxu0 0.0
        %9631 = vmatprep.subr.mxu0 0.0
        %9632 = vmatpush1.msra.mxu0 0.0
        %9633 = vmatprep.subr.mxu0 0.0
        %9634 = vmatpush1.msra.mxu0 0.0
        %9635 = vmatprep.subr.mxu0 0.0
        %9636 = vmatpush1.msra.mxu0 0.0
        %9637 = vmatprep.subr.mxu0 0.0
        %9638 = vmatpush1.msra.mxu0 0.0
        %9639 = vmatprep.subr.mxu0 0.0
        %9640 = vmatpush1.msra.mxu0 0.0
        %9641 = vmatprep.subr.mxu0 0.0
        %9642 = vmatpush1.msra.mxu0 0.0
        %9643 = vmatprep.subr.mxu0 0.0
        %9644 = vmatpush1.msra.mxu0 0.0
        %9645 = vmatprep.subr.mxu0 0.0
        %9646 = vmatpush1.msra.mxu0 0.0
        %9647 = vmatprep.mubr.f32.mxu0 0.0
        %9648 = vmatmul.mubr.f32.gmra.mrb[0].mxu0 %v9581
        %v9649 = vpop.f32.mrb[0].mxu0
        %v9650 = vadd.f32 %v9579, %v9649
        %v9651 = vpop.f32.mrb[0].mxu0
        %9652 = vdwg.mxu0
        %vm9653 = vcmp.gt.f32.partialorder %v9650, 0.0
        %v9654 = vmin.f32 %v9650, 0.0
        %v9655 = vmul.f32 %v9654, 1.442695
        %v9656 = vpow.pop %v9655
        %v9657 = vsub.f32 %v9656, 1.0
        %v9658 = vsel %vm9653, %v9650, %v9657
        %v9659 = vadd.f32 %v9417, %v9658
        %v9660 = vld [vmem:[%s1 + $0x650] sm:$0xff]
        %v9661 = vld [vmem:[%s1 + $0x658] sm:$0xff]
        %v9662 = vld [vmem:[%s1 + $0x660] sm:$0xff]
        %v9663 = vld [vmem:[%s1 + $0x668] sm:$0xff]
        %v9664 = vld [vmem:[%s1 + $0x670] sm:$0xff]
        %v9665 = vld [vmem:[%s1 + $0x678] sm:$0xff]
        %v9666 = vld [vmem:[%s1 + $0x680] sm:$0xff]
        %v9667 = vld [vmem:[%s1 + $0x688] sm:$0xff]
        %v9668 = vld [vmem:[%s1 + $0x690] sm:$0xff]
        %v9669 = vld [vmem:[%s1 + $0x698] sm:$0xff]
        %v9670 = vld [vmem:[%s1 + $0x6a0] sm:$0xff]
        %v9671 = vld [vmem:[%s1 + $0x6a8] sm:$0xff]
        %v9672 = vld [vmem:[%s1 + $0x6b0] sm:$0xff]
        %v9673 = vld [vmem:[%s1 + $0x6b8] sm:$0xff]
        %v9674 = vld [vmem:[%s1 + $0x6c0] sm:$0xff]
        %v9675 = vld [vmem:[%s1 + $0x6c8] sm:$0xff]
        %v9676 = vld [vmem:[%s1 + $0x6d0] sm:$0xff]
        %v9677 = vld [vmem:[%s1 + $0x6d8] sm:$0xff]
        %v9678 = vld [vmem:[%s1 + $0x6e0] sm:$0xff]
        %v9679 = vld [vmem:[%s1 + $0x6e8] sm:$0xff]
        %v9680 = vld [vmem:[%s1 + $0x6f0] sm:$0xff]
        %v9681 = vld [vmem:[%s1 + $0x6f8] sm:$0xff]
        %v9682 = vld [vmem:[%s1 + $0x700] sm:$0xff]
        %v9683 = vld [vmem:[%s1 + $0x708] sm:$0xff]
        %v9684 = vld [vmem:[%s1 + $0x710] sm:$0xff]
        %v9685 = vld [vmem:[%s1 + $0x718] sm:$0xff]
        %v9686 = vld [vmem:[%s1 + $0x720] sm:$0xff]
        %v9687 = vld [vmem:[%s1 + $0x728] sm:$0xff]
        %v9688 = vld [vmem:[%s1 + $0x730] sm:$0xff]
        %v9689 = vld [vmem:[%s1 + $0x738] sm:$0xff]
        %v9690 = vld [vmem:[%s1 + $0x740] sm:$0xff]
        %v9691 = vld [vmem:[%s1 + $0x748] sm:$0xff]
        %v9692 = vld [vmem:[%s2 + $0x23] sm:$0x1]
        %9693 = vst.msk [vmem:[#allocation2] sm:$0x7] %vm8976, 0.0
        %9694 = vst.msk [vmem:[#allocation2 + $0x3] sm:$0xff] %vm5505, %v9659
        %9695 = vst.msk [vmem:[#allocation2 + $0xb] sm:$0x1] %vm9214, 0.0
        %v9696 = vld [vmem:[#allocation2] ss:$4 sm:$0x3]
        %v9697 = vld [vmem:[%s4863] ss:$4 sm:$0x3]
        %v9698 = vld [vmem:[%s4879] ss:$4 sm:$0x3]
        %v9699 = vld [vmem:[%s4895] ss:$4 sm:$0x3]
        %v9700 = vld [vmem:[%s8819] ss:$4 sm:$0x3]
        %v9701 = vld [vmem:[%s8821] ss:$4 sm:$0x3]
        %v9702 = vld [vmem:[%s8823] ss:$4 sm:$0x3]
        %v9703 = vld [vmem:[%s8825] ss:$4 sm:$0x3]
        %9705 = vrot.lane.b32.xlu0 %v9697, 32
        %v9706 = vpop.permute.xlu0 %9705
        %9709 = vrot.lane.b32.xlu0 %v9698, 64
        %v9710 = vpop.permute.xlu0 %9709
        %9713 = vrot.lane.b32.xlu0 %v9699, 96
        %v9714 = vpop.permute.xlu0 %9713
        %9717 = vrot.lane.b32.xlu0 %v9701, 32
        %v9718 = vpop.permute.xlu0 %9717
        %9721 = vrot.lane.b32.xlu0 %v9702, 64
        %v9722 = vpop.permute.xlu0 %9721
        %9725 = vrot.lane.b32.xlu0 %v9703, 96
        %v9726 = vpop.permute.xlu0 %9725
        %v9728 = vsel %vm5505, %v9696, %v9706
        %v9729 = vsel %vm7661, %v9728, %v9710
        %v9730 = vsel %vm7671, %v9729, %v9714
        %v9731 = vsel %vm5505, %v9700, %v9718
        %v9732 = vsel %vm7661, %v9731, %v9722
        %v9733 = vsel %vm7671, %v9732, %v9726
        %v9734 = vlaneseq
        %v9735 = vshrl.u32 %v9734, 7
        %v9736 = vsub.s32 0, %v9735
        %v9737 = vrot.slane %v9692, %v9736
        %9738 = vmatprep.subr.mxu0 0.0
        %9739 = vmatpush1.msra.mxu0 %v9660
        %9740 = vmatprep.subr.mxu0 0.0
        %9741 = vmatpush1.msra.mxu0 %v9661
        %9742 = vmatprep.subr.mxu0 0.0
        %9743 = vmatpush1.msra.mxu0 %v9662
        %9744 = vmatprep.subr.mxu0 0.0
        %9745 = vmatpush1.msra.mxu0 %v9663
        %9746 = vmatprep.subr.mxu0 0.0
        %9747 = vmatpush1.msra.mxu0 %v9664
        %9748 = vmatprep.subr.mxu0 0.0
        %9749 = vmatpush1.msra.mxu0 %v9665
        %9750 = vmatprep.subr.mxu0 0.0
        %9751 = vmatpush1.msra.mxu0 %v9666
        %9752 = vmatprep.subr.mxu0 0.0
        %9753 = vmatpush1.msra.mxu0 %v9667
        %9754 = vmatprep.subr.mxu0 0.0
        %9755 = vmatpush1.msra.mxu0 %v9668
        %9756 = vmatprep.subr.mxu0 0.0
        %9757 = vmatpush1.msra.mxu0 %v9669
        %9758 = vmatprep.subr.mxu0 0.0
        %9759 = vmatpush1.msra.mxu0 %v9670
        %9760 = vmatprep.subr.mxu0 0.0
        %9761 = vmatpush1.msra.mxu0 %v9671
        %9762 = vmatprep.subr.mxu0 0.0
        %9763 = vmatpush1.msra.mxu0 %v9672
        %9764 = vmatprep.subr.mxu0 0.0
        %9765 = vmatpush1.msra.mxu0 %v9673
        %9766 = vmatprep.subr.mxu0 0.0
        %9767 = vmatpush1.msra.mxu0 %v9674
        %9768 = vmatprep.subr.mxu0 0.0
        %9769 = vmatpush1.msra.mxu0 %v9675
        %9770 = vmatprep.subr.mxu0 0.0
        %9771 = vmatpush1.msra.mxu0 %v9676
        %9772 = vmatprep.subr.mxu0 0.0
        %9773 = vmatpush1.msra.mxu0 %v9677
        %9774 = vmatprep.subr.mxu0 0.0
        %9775 = vmatpush1.msra.mxu0 %v9678
        %9776 = vmatprep.subr.mxu0 0.0
        %9777 = vmatpush1.msra.mxu0 %v9679
        %9778 = vmatprep.subr.mxu0 0.0
        %9779 = vmatpush1.msra.mxu0 %v9680
        %9780 = vmatprep.subr.mxu0 0.0
        %9781 = vmatpush1.msra.mxu0 %v9681
        %9782 = vmatprep.subr.mxu0 0.0
        %9783 = vmatpush1.msra.mxu0 %v9682
        %9784 = vmatprep.subr.mxu0 0.0
        %9785 = vmatpush1.msra.mxu0 %v9683
        %9786 = vmatprep.subr.mxu0 0.0
        %9787 = vmatpush1.msra.mxu0 %v9684
        %9788 = vmatprep.subr.mxu0 0.0
        %9789 = vmatpush1.msra.mxu0 %v9685
        %9790 = vmatprep.subr.mxu0 0.0
        %9791 = vmatpush1.msra.mxu0 %v9686
        %9792 = vmatprep.subr.mxu0 0.0
        %9793 = vmatpush1.msra.mxu0 %v9687
        %9794 = vmatprep.subr.mxu0 0.0
        %9795 = vmatpush1.msra.mxu0 %v9688
        %9796 = vmatprep.subr.mxu0 0.0
        %9797 = vmatpush1.msra.mxu0 %v9689
        %9798 = vmatprep.subr.mxu0 0.0
        %9799 = vmatpush1.msra.mxu0 %v9690
        %9800 = vmatprep.subr.mxu0 0.0
        %9801 = vmatpush1.msra.mxu0 %v9691
        %9802 = vmatprep.mubr.f32.mxu0 %v9733
        %9803 = vmatmul.mubr.f32.gmra.mrb[0].mxu0 %v9730
        %v9804 = vpop.f32.mrb[0].mxu0
        %v9805 = vadd.f32 %v9737, %v9804
        %v9806 = vpop.f32.mrb[0].mxu0
        %9807 = vdwg.mxu0
        %vm9808 = vcmp.gt.f32.partialorder %v9805, 0.0
        %v9809 = vmin.f32 %v9805, 0.0
        %v9810 = vmul.f32 %v9809, 1.442695
        %v9811 = vpow.pop %v9810
        %v9812 = vsub.f32 %v9811, 1.0
        %v9813 = vsel %vm9808, %v9805, %v9812
        %v9814 = vld [vmem:[%s1 + $0x750] sm:$0xff]
        %v9815 = vld [vmem:[%s1 + $0x758] sm:$0xff]
        %v9816 = vld [vmem:[%s1 + $0x760] sm:$0xff]
        %v9817 = vld [vmem:[%s1 + $0x768] sm:$0xff]
        %v9818 = vld [vmem:[%s1 + $0x770] sm:$0xff]
        %v9819 = vld [vmem:[%s1 + $0x778] sm:$0xff]
        %v9820 = vld [vmem:[%s1 + $0x780] sm:$0xff]
        %v9821 = vld [vmem:[%s1 + $0x788] sm:$0xff]
        %v9822 = vld [vmem:[%s1 + $0x790] sm:$0xff]
        %v9823 = vld [vmem:[%s1 + $0x798] sm:$0xff]
        %v9824 = vld [vmem:[%s1 + $0x7a0] sm:$0xff]
        %v9825 = vld [vmem:[%s1 + $0x7a8] sm:$0xff]
        %v9826 = vld [vmem:[%s1 + $0x7b0] sm:$0xff]
        %v9827 = vld [vmem:[%s1 + $0x7b8] sm:$0xff]
        %v9828 = vld [vmem:[%s1 + $0x7c0] sm:$0xff]
        %v9829 = vld [vmem:[%s1 + $0x7c8] sm:$0xff]
        %v9830 = vld [vmem:[%s1 + $0x7d0] sm:$0xff]
        %v9831 = vld [vmem:[%s1 + $0x7d8] sm:$0xff]
        %v9832 = vld [vmem:[%s1 + $0x7e0] sm:$0xff]
        %v9833 = vld [vmem:[%s1 + $0x7e8] sm:$0xff]
        %v9834 = vld [vmem:[%s1 + $0x7f0] sm:$0xff]
        %v9835 = vld [vmem:[%s1 + $0x7f8] sm:$0xff]
        %v9836 = vld [vmem:[%s1 + $0x800] sm:$0xff]
        %v9837 = vld [vmem:[%s1 + $0x808] sm:$0xff]
        %v9838 = vld [vmem:[%s2 + $0x24] sm:$0x1]
        %vm9839 = vcmask 516096
        %9840 = vst.msk [vmem:[#allocation2] sm:$0x1] %vm9839, 0.0
        %vm9841 = vcmask 517120
        %9842 = vst.msk [vmem:[#allocation2 + $0x1] sm:$0x3] %vm9841, %v9813
        %9843 = vst.msk [vmem:[#allocation2 + $0x3] sm:$0x1] %vm9839, 0.0
        %v9844 = vld [vmem:[#allocation2] sm:$0x3]
        %v9845 = vld [vmem:[#allocation2 + $0x1] sm:$0x3]
        %v9846 = vld [vmem:[#allocation2 + $0x2] sm:$0x3]
        %9848 = vrot.lane.b32.xlu0 %v9845, 64
        %v9849 = vpop.permute.xlu0 %9848
        %v9851 = vsel %vm7661, %v9844, %v9849
        %v9852 = vlaneseq
        %v9853 = vshrl.u32 %v9852, 7
        %v9854 = vsub.s32 0, %v9853
        %v9855 = vrot.slane %v9838, %v9854
        %v9857 = vsel %vm7661, %v9846, 0
        %9859 = vmatprep.subr.mxu0 0.0
        %9860 = vmatpush1.msra.mxu0 %v9814
        %9861 = vmatprep.subr.mxu0 0.0
        %9862 = vmatpush1.msra.mxu0 %v9815
        %9863 = vmatprep.subr.mxu0 0.0
        %9864 = vmatpush1.msra.mxu0 %v9816
        %9865 = vmatprep.subr.mxu0 0.0
        %9866 = vmatpush1.msra.mxu0 %v9817
        %9867 = vmatprep.subr.mxu0 0.0
        %9868 = vmatpush1.msra.mxu0 %v9818
        %9869 = vmatprep.subr.mxu0 0.0
        %9870 = vmatpush1.msra.mxu0 %v9819
        %9871 = vmatprep.subr.mxu0 0.0
        %9872 = vmatpush1.msra.mxu0 %v9820
        %9873 = vmatprep.subr.mxu0 0.0
        %9874 = vmatpush1.msra.mxu0 %v9821
        %9875 = vmatprep.subr.mxu0 0.0
        %9876 = vmatpush1.msra.mxu0 %v9822
        %9877 = vmatprep.subr.mxu0 0.0
        %9878 = vmatpush1.msra.mxu0 %v9823
        %9879 = vmatprep.subr.mxu0 0.0
        %9880 = vmatpush1.msra.mxu0 %v9824
        %9881 = vmatprep.subr.mxu0 0.0
        %9882 = vmatpush1.msra.mxu0 %v9825
        %9883 = vmatprep.subr.mxu0 0.0
        %9884 = vmatpush1.msra.mxu0 %v9826
        %9885 = vmatprep.subr.mxu0 0.0
        %9886 = vmatpush1.msra.mxu0 %v9827
        %9887 = vmatprep.subr.mxu0 0.0
        %9888 = vmatpush1.msra.mxu0 %v9828
        %9889 = vmatprep.subr.mxu0 0.0
        %9890 = vmatpush1.msra.mxu0 %v9829
        %9891 = vmatprep.subr.mxu0 0.0
        %9892 = vmatpush1.msra.mxu0 %v9830
        %9893 = vmatprep.subr.mxu0 0.0
        %9894 = vmatpush1.msra.mxu0 %v9831
        %9895 = vmatprep.subr.mxu0 0.0
        %9896 = vmatpush1.msra.mxu0 %v9832
        %9897 = vmatprep.subr.mxu0 0.0
        %9898 = vmatpush1.msra.mxu0 %v9833
        %9899 = vmatprep.subr.mxu0 0.0
        %9900 = vmatpush1.msra.mxu0 %v9834
        %9901 = vmatprep.subr.mxu0 0.0
        %9902 = vmatpush1.msra.mxu0 %v9835
        %9903 = vmatprep.subr.mxu0 0.0
        %9904 = vmatpush1.msra.mxu0 %v9836
        %9905 = vmatprep.subr.mxu0 0.0
        %9906 = vmatpush1.msra.mxu0 %v9837
        %9907 = vmatprep.subr.mxu0 0.0
        %9908 = vmatpush1.msra.mxu0 0.0
        %9909 = vmatprep.subr.mxu0 0.0
        %9910 = vmatpush1.msra.mxu0 0.0
        %9911 = vmatprep.subr.mxu0 0.0
        %9912 = vmatpush1.msra.mxu0 0.0
        %9913 = vmatprep.subr.mxu0 0.0
        %9914 = vmatpush1.msra.mxu0 0.0
        %9915 = vmatprep.subr.mxu0 0.0
        %9916 = vmatpush1.msra.mxu0 0.0
        %9917 = vmatprep.subr.mxu0 0.0
        %9918 = vmatpush1.msra.mxu0 0.0
        %9919 = vmatprep.subr.mxu0 0.0
        %9920 = vmatpush1.msra.mxu0 0.0
        %9921 = vmatprep.subr.mxu0 0.0
        %9922 = vmatpush1.msra.mxu0 0.0
        %9923 = vmatprep.mubr.f32.mxu0 %v9857
        %9924 = vmatmul.mubr.f32.gmra.mrb[0].mxu0 %v9851
        %v9925 = vpop.f32.mrb[0].mxu0
        %v9926 = vadd.f32 %v9855, %v9925
        %v9927 = vpop.f32.mrb[0].mxu0
        %9928 = vdwg.mxu0
        %v9929 = vld [vmem:[%s1 + $0x810] sm:$0xff]
        %v9930 = vld [vmem:[%s1 + $0x818] sm:$0xff]
        %v9931 = vld [vmem:[%s1 + $0x820] sm:$0xff]
        %v9932 = vld [vmem:[%s1 + $0x828] sm:$0xff]
        %v9933 = vld [vmem:[%s2 + $0x25] sm:$0x1]
        %v9934 = vld [vmem:[%s2 + $0x26] sm:$0x1]
        %v9935 = vld [vmem:[%s2 + $0x27] sm:$0x1]
        %v9936 = vlaneseq
        %v9937 = vshrl.u32 %v9936, 7
        %v9938 = vsub.s32 0, %v9937
        %v9939 = vrot.slane %v9933, %v9938
        %v9941 = vsel %vm5505, %v9926, 0
        %9943 = vmatprep.subr.mxu0 0.0
        %9944 = vmatpush1.msra.mxu0 %v9929
        %9945 = vmatprep.subr.mxu0 0.0
        %9946 = vmatpush1.msra.mxu0 %v9930
        %9947 = vmatprep.subr.mxu0 0.0
        %9948 = vmatpush1.msra.mxu0 %v9931
        %9949 = vmatprep.subr.mxu0 0.0
        %9950 = vmatpush1.msra.mxu0 %v9932
        %9951 = vmatprep.subr.mxu0 0.0
        %9952 = vmatpush1.msra.mxu0 0.0
        %9953 = vmatprep.subr.mxu0 0.0
        %9954 = vmatpush1.msra.mxu0 0.0
        %9955 = vmatprep.subr.mxu0 0.0
        %9956 = vmatpush1.msra.mxu0 0.0
        %9957 = vmatprep.subr.mxu0 0.0
        %9958 = vmatpush1.msra.mxu0 0.0
        %9959 = vmatprep.subr.mxu0 0.0
        %9960 = vmatpush1.msra.mxu0 0.0
        %9961 = vmatprep.subr.mxu0 0.0
        %9962 = vmatpush1.msra.mxu0 0.0
        %9963 = vmatprep.subr.mxu0 0.0
        %9964 = vmatpush1.msra.mxu0 0.0
        %9965 = vmatprep.subr.mxu0 0.0
        %9966 = vmatpush1.msra.mxu0 0.0
        %9967 = vmatprep.subr.mxu0 0.0
        %9968 = vmatpush1.msra.mxu0 0.0
        %9969 = vmatprep.subr.mxu0 0.0
        %9970 = vmatpush1.msra.mxu0 0.0
        %9971 = vmatprep.subr.mxu0 0.0
        %9972 = vmatpush1.msra.mxu0 0.0
        %9973 = vmatprep.subr.mxu0 0.0
        %9974 = vmatpush1.msra.mxu0 0.0
        %9975 = vmatprep.subr.mxu0 0.0
        %9976 = vmatpush1.msra.mxu0 0.0
        %9977 = vmatprep.subr.mxu0 0.0
        %9978 = vmatpush1.msra.mxu0 0.0
        %9979 = vmatprep.subr.mxu0 0.0
        %9980 = vmatpush1.msra.mxu0 0.0
        %9981 = vmatprep.subr.mxu0 0.0
        %9982 = vmatpush1.msra.mxu0 0.0
        %9983 = vmatprep.subr.mxu0 0.0
        %9984 = vmatpush1.msra.mxu0 0.0
        %9985 = vmatprep.subr.mxu0 0.0
        %9986 = vmatpush1.msra.mxu0 0.0
        %9987 = vmatprep.subr.mxu0 0.0
        %9988 = vmatpush1.msra.mxu0 0.0
        %9989 = vmatprep.subr.mxu0 0.0
        %9990 = vmatpush1.msra.mxu0 0.0
        %9991 = vmatprep.subr.mxu0 0.0
        %9992 = vmatpush1.msra.mxu0 0.0
        %9993 = vmatprep.subr.mxu0 0.0
        %9994 = vmatpush1.msra.mxu0 0.0
        %9995 = vmatprep.subr.mxu0 0.0
        %9996 = vmatpush1.msra.mxu0 0.0
        %9997 = vmatprep.subr.mxu0 0.0
        %9998 = vmatpush1.msra.mxu0 0.0
        %9999 = vmatprep.subr.mxu0 0.0
        %10000 = vmatpush1.msra.mxu0 0.0
        %10001 = vmatprep.subr.mxu0 0.0
        %10002 = vmatpush1.msra.mxu0 0.0
        %10003 = vmatprep.subr.mxu0 0.0
        %10004 = vmatpush1.msra.mxu0 0.0
        %10005 = vmatprep.subr.mxu0 0.0
        %10006 = vmatpush1.msra.mxu0 0.0
        %10007 = vmatprep.mubr.f32.mxu0 0.0
        %10008 = vmatmul.mubr.f32.gmra.mrb[0].mxu0 %v9941
        %v10009 = vpop.f32.mrb[0].mxu0
        %v10010 = vadd.f32 %v9939, %v10009
        %v10011 = vpop.f32.mrb[0].mxu0
        %10012 = vdwg.mxu0
        %v10013 = vtanh.pop %v10010
        %v10014 = vlaneseq
        %v10015 = vshrl.u32 %v10014, 7
        %v10016 = vsub.s32 0, %v10015
        %v10017 = vrot.slane %v9934, %v10016
        %v10018 = vmul.f32 %v10013, %v10017
        %vm10019 = vcmask 254976
        %v10020 = vsel %vm10019, %v10018, 0.0
        %10021 = vadd.xlane.f32.xlu0 %v10020
        %v10022 = vpop.xlane.xlu0 %10021
        %v10023 = vlaneseq
        %v10024 = vshrl.u32 %v10023, 7
        %v10025 = vsub.s32 0, %v10024
        %v10026 = vrot.slane %v9935, %v10025
        %v10027 = vadd.f32 %v10022, %v10026
        %vm10028 = vcmask 1024
        %v10029 = vsel %vm10028, %v10027, -inf
        %v10030 = vrot.slane %v10029, 4
        %v10031 = vmax.f32 %v10029, %v10030
        %v10032 = vrot.slane %v10031, 2
        %v10033 = vmax.f32 %v10031, %v10032
        %v10034 = vrot.slane %v10033, 1
        %v10035 = vmax.f32 %v10033, %v10034
        %v10036 = vsub.f32 %v10027, %v10035
        %v10037 = vmul.f32 %v10036, 1.442695
        %v10038 = vpow.pop %v10037
        %v10039 = vsel %vm10028, %v10038, 0.0
        %v10040 = vrot.slane %v10039, 4
        %v10041 = vadd.f32 %v10039, %v10040
        %v10042 = vrot.slane %v10041, 2
        %v10043 = vadd.f32 %v10041, %v10042
        %v10044 = vrot.slane %v10043, 1
        %v10045 = vadd.f32 %v10043, %v10044
        %v10046 = vrcp.pop %v10045
        %v10047 = vmul.f32 %v10038, %v10046
        %10049 = vset.pattern.permute.xlu0 0
        %10050 = vperm.xlu0 %10049, %v10047
        %v10051 = vpop.permute.xlu0 %10050
        %v10053 = vmul.f32 %v9926, %v10051
        %v10054 = vsel %vm10019, %v10053, 0.0
        %v10055 = vrot.slane %v10054, 4
        %v10056 = vadd.f32 %v10054, %v10055
        %v10057 = vrot.slane %v10056, 2
        %v10058 = vadd.f32 %v10056, %v10057
        %v10059 = vrot.slane %v10058, 1
        %v10060 = vadd.f32 %v10058, %v10059
        %10061 = vst.msk [vmem:[%s162] sm:$0x1] %vm9214, %v10060
        %s10062 = sand.u32 %s93, 1
        %s10063 = scalar_lea.sflag [#allocation4], %s10062
        %s10064 = sand.u32 %s93, 1
        %s10065 = scalar_lea.vmem [#allocation3], %s10064
        // Predicated region
        $region33: #{tpu_custom_call.1} parent=31 // pred_check
          %p10066 = pneg %p103
        $region34: #{tpu_custom_call.1} parent=31 // pred_check_branch
          %10068 = sbr.rel (%p10066) target = $region36
        $region35: #{tpu_custom_call.1} parent=31 // pred_region
          %s10070 = ssub.s32 16, 16
          %10071 = vsyncadd %s10063, %s10070
          %s10072 = smul.addr %s17, 16
          %s10073 = scalar_lea.hbm %s3, %s10072
          %s10075 = sshll.u32 %s10065, 4
          %s10076 = int_to_ptr.vmem [resolvable:$true] %s10075
          %10078 = dma.vmem_to_hbm [thread:$0]  %s10076, 16, %s10073, %s10063
        $region36: #{tpu_custom_call.1} parent=31 // pred_fallthru
          _
      $region32: #{tpu_custom_call.1} parent=5 // pred_fallthru
        _
      %p10079 = scmp.le.s32.totalorder 2, %s12
      // Predicated region
      $region37: #{tpu_custom_call.1} parent=5 // pred_check
        %p10080 = pneg %p10079
      $region38: #{tpu_custom_call.1} parent=5 // pred_check_branch
        %10082 = sbr.rel (%p10080) target = $region40
      $region39: #{tpu_custom_call.1} parent=5 // pred_region
        %s10083 = ssub.s32 %s12, 2
        // Predicated region
        $region41: #{tpu_custom_call.1} parent=39 // pred_check
          %p10084 = pneg %p109
        $region42: #{tpu_custom_call.1} parent=39 // pred_check_branch
          %10086 = sbr.rel (%p10084) target = $region44
        $region43: #{tpu_custom_call.1} parent=39 // pred_region
          %s10087 = sand.u32 %s94, 1
          %s10088 = scalar_lea.sflag [#allocation4], %s10087
          %s10089 = sand.u32 %s94, 1
          %s10090 = scalar_lea.vmem [#allocation3], %s10089
          %10091 = dma.done %s10088, 16
        $region44: #{tpu_custom_call.1} parent=39 // pred_fallthru
          _
      $region40: #{tpu_custom_call.1} parent=5 // pred_fallthru
        _
    $region6: #{tpu_custom_call.1} parent=1 // loop_footer
      %s16 = sadd.s32 1, %s12
    $region7: #{tpu_custom_call.1} parent=1 // loop_footer_branch
      %11 = sbr.rel target = $region3
    $region8: #{tpu_custom_call.1} parent=1 // loop_exit
      _
    %10092 = vsyncpa [#allocation4], 1
    %s10093 = scalar_lea.sflag [#allocation4], 1
    %10094 = vsyncpa %s10093, 1

</llo_original>
